<compile_context>
chip_gen: v6e
topology: v6e:2x2x1
jax: 0.10.0
libtpu: 0.0.40
codegen_flags: <defaults>
</compile_context>

<pallas_src>
import math

import jax
import jax.numpy as jnp
from jax import lax
from jax.experimental import pallas as pl
from jax.experimental.pallas import tpu as pltpu

EPS = 1e-15
BN_EPS = 1e-5


# ---------------------------------------------------------------------------
# Parameter packing: every weight/bias/BN param of a level lives in ONE
# lane-padded (rows, 128) f32 slab -> a single DMA per fused call; the kernel
# static-slices the slab via trace-time (row, shape) offsets.
# ---------------------------------------------------------------------------
def _pack_leaves(leaves):
    offs, row = [], 0
    for a in leaves:
        assert a.ndim == 2 and a.shape[1] <= 128, a.shape
        offs.append((row, tuple(a.shape)))
        row += a.shape[0]
    rows = ((row + 7) // 8) * 8                      # sublane-align the slab
    slab = jnp.zeros((rows, 128), jnp.float32)
    for (off, shp), a in zip(offs, leaves):
        slab = slab.at[off:off + shp[0], :shp[1]].set(a.astype(jnp.float32))
    return slab, tuple(offs)


# ---------------------------------------------------------------------------
# Deterministic parameter init (torch-Linear-style uniform bounds)
# ---------------------------------------------------------------------------
def _init_linear(key, fan_in, fan_out):
    k1, k2 = jax.random.split(key)
    bound = 1.0 / math.sqrt(fan_in)
    w = jax.random.uniform(k1, (fan_in, fan_out), jnp.float32, -bound, bound)
    b = jax.random.uniform(k2, (1, fan_out), jnp.float32, -bound, bound)
    return w, b


def _init_sage(key, cin, cout):
    k1, k2, k3 = jax.random.split(key, 3)
    bound = 1.0 / math.sqrt(cin)
    w_rel = jax.random.uniform(k1, (cin, cout), jnp.float32, -bound, bound)
    b_rel = jax.random.uniform(k2, (1, cout), jnp.float32, -bound, bound)
    w_root = jax.random.uniform(k3, (cin, cout), jnp.float32, -bound, bound)  # bias=False
    return w_rel, b_rel, w_root


def _init_gnn(key, cin, hidden, cout, lin):
    keys = jax.random.split(key, 4)
    convs = [_init_sage(keys[0], cin, hidden),
             _init_sage(keys[1], hidden, hidden),
             _init_sage(keys[2], hidden, cout)]
    bns = [(jnp.ones((1, hidden), jnp.float32), jnp.zeros((1, hidden), jnp.float32)),
           (jnp.ones((1, hidden), jnp.float32), jnp.zeros((1, hidden), jnp.float32)),
           (jnp.ones((1, cout), jnp.float32), jnp.zeros((1, cout), jnp.float32))]
    lin_p = _init_linear(keys[3], 2 * hidden + cout, cout) if lin else None
    return {"convs": convs, "bns": bns, "lin": lin_p}


def _pack_level(towers, head):
    """Pack one level's parameters.  Leaf order == kernel consumption order."""
    leaves, meta = [], []
    for t in towers:
        widths = []
        for (w_rel, b_rel, w_root), (gamma, beta) in zip(t["convs"], t["bns"]):
            # merged rel/root weight:  out = [agg | h] @ [[w_rel],[w_root]] + b_rel
            leaves += [jnp.concatenate([w_rel, w_root], axis=0), b_rel, gamma, beta]
            widths.append(w_rel.shape[1])
        has_lin = t["lin"] is not None
        if has_lin:
            leaves += [t["lin"][0], t["lin"][1]]
            out_dim = t["lin"][0].shape[1]
        else:
            out_dim = sum(widths)
        meta.append({"has_lin": has_lin, "widths": tuple(widths), "out_dim": out_dim})
    if head is not None:
        (w1, b1), (w2, b2) = head
        leaves += [w1, b1, w2, b2]
    slab, offs = _pack_leaves(leaves)
    return slab, offs, tuple(meta)


# ---------------------------------------------------------------------------
# Fused level kernel: N towers of [3 x (DenseSAGEConv + ReLU + BN)] + concat
# (+ Linear+ReLU), finished either with the dense_diff_pool epilogue
# (levels 1/2) or the mean + MLP + log_softmax classification head (level 3).
# ---------------------------------------------------------------------------
def _make_level_kernel(offs, tower_meta, use_mask, with_pool, with_head):
    assert with_pool != with_head

    def kernel(*refs):
        i = 0
        x_ref = refs[i]; i += 1
        adj_ref = refs[i]; i += 1
        mask3 = None
        if use_mask:
            mask3 = refs[i][...]          # (B, N, 1)
            i += 1
        p_ref = refs[i]; i += 1           # packed parameter slab (rows, 128)
        out_refs = refs[i:]

        cursor = [0]

        def nxt():
            off, (r, c) = offs[cursor[0]]
            cursor[0] += 1
            return p_ref[off:off + r, 0:c]          # static slice -> free

        x0 = x_ref[...]                             # (B, N, Cin)
        adj = adj_ref[...]                          # (B, N, N)
        inv_deg = 1.0 / jnp.maximum(jnp.sum(adj, axis=-1, keepdims=True), 1.0)

        def rows_matmul(h, w):
            b, n, cin = h.shape
            out = jnp.dot(h.reshape(b * n, cin), w, preferred_element_type=jnp.float32)
            return out.reshape(b, n, w.shape[1])

        def tsum(a):                                # (B, X, Y) -> (1, 1) total sum
            t = jnp.sum(a, axis=0)
            t = jnp.sum(t, axis=-1, keepdims=True)
            return jnp.sum(t, axis=0, keepdims=True)

        def sage_bn(h):
            w_cat, b, gamma, beta = nxt(), nxt(), nxt(), nxt()
            agg = lax.dot_general(adj, h, (((2,), (1,)), ((0,), (0,))),
                                  preferred_element_type=jnp.float32) * inv_deg
            out = rows_matmul(jnp.concatenate([agg, h], axis=-1), w_cat) + b
            if mask3 is not None:
                out = out * mask3                   # mask after bias (reference order)
            out = jnp.maximum(out, 0.0)
            # BatchNorm1d over the flattened (B*n, C) view, biased batch statistics
            cnt = out.shape[0] * out.shape[1]
            mean = jnp.sum(jnp.sum(out, axis=1, keepdims=True),
                           axis=0, keepdims=True) / cnt
            d = out - mean
            var = jnp.sum(jnp.sum(d * d, axis=1, keepdims=True),
                          axis=0, keepdims=True) / cnt
            return d * lax.rsqrt(var + BN_EPS) * gamma + beta

        touts = []
        for tm in tower_meta:
            h1 = sage_bn(x0)
            h2 = sage_bn(h1)
            h3 = sage_bn(h2)
            hc = jnp.concatenate([h1, h2, h3], axis=-1)
            if tm["has_lin"]:
                wl, bl = nxt(), nxt()
                hc = jnp.maximum(rows_matmul(hc, wl) + bl, 0.0)
            touts.append(hc)

        if with_pool:
            # ---- dense_diff_pool epilogue: nothing intermediate goes to HBM ----
            s_logits, x_emb = touts
            sl = s_logits - jnp.max(s_logits, axis=-1, keepdims=True)
            e = jnp.exp(sl)
            s = e / jnp.sum(e, axis=-1, keepdims=True)          # softmax over clusters
            xx = x_emb
            if mask3 is not None:
                xx = xx * mask3
                s = s * mask3
            xo = lax.dot_general(s, xx, (((1,), (1,)), ((0,), (0,))),
                                 preferred_element_type=jnp.float32)     # (B, C, F)
            sta = lax.dot_general(s, adj, (((1,), (1,)), ((0,), (0,))),
                                  preferred_element_type=jnp.float32)    # (B, C, N)
            ao = lax.dot_general(sta, s, (((2,), (1,)), ((0,), (0,))),
                                 preferred_element_type=jnp.float32)     # (B, C, C)
            sts = lax.dot_general(s, s, (((1,), (1,)), ((0,), (0,))),
                                  preferred_element_type=jnp.float32)    # (B, C, C)
            C = s.shape[-1]
            eye = (lax.broadcasted_iota(jnp.int32, (C, C), 0)
                   == lax.broadcasted_iota(jnp.int32, (C, C), 1)).astype(jnp.float32)
            # ||adj - s s^T||_F^2 = ||adj||^2 - 2 tr(s^T adj s) + ||s^T s||_F^2
            link_sum = (tsum(adj * adj) - 2.0 * tsum(ao * eye[None])
                        + tsum(sts * sts))                                # (1, 1)
            ent_sum = tsum(-s * jnp.log(s + EPS))                         # (1, 1)
            sub = lax.broadcasted_iota(jnp.int32, (8, 128), 0)
            lane = lax.broadcasted_iota(jnp.int32, (8, 128), 1)
            loss = jnp.where((sub == 0) & (lane == 0), link_sum,
                             jnp.where((sub == 0) & (lane == 1), ent_sum, 0.0))
            out_refs[0][...] = xo
            out_refs[1][...] = ao
            out_refs[2][...] = loss
        else:
            # ---- classification head: mean over nodes + lin1 + ReLU + lin2 + log_softmax ----
            w1, b1, w2, b2 = nxt(), nxt(), nxt(), nxt()
            xm = jnp.mean(touts[-1], axis=1)                              # (B, D)
            hh = jnp.maximum(jnp.dot(xm, w1, preferred_element_type=jnp.float32) + b1, 0.0)
            logits = jnp.dot(hh, w2, preferred_element_type=jnp.float32) + b2
            m = jnp.max(logits, axis=-1, keepdims=True)
            lse = jnp.log(jnp.sum(jnp.exp(logits - m), axis=-1, keepdims=True)) + m
            out_refs[0][...] = logits - lse

    return kernel


def _run_level(x, adj, mask, slab, offs, tower_meta, *, with_pool, with_head,
               num_classes=None):
    B, N, Cin = x.shape
    use_mask = mask is not None

    in_specs = [pl.BlockSpec((B, N, Cin), lambda i: (0, 0, 0)),
                pl.BlockSpec((B, N, N), lambda i: (0, 0, 0))]
    args = [x, adj]
    if use_mask:
        in_specs.append(pl.BlockSpec((B, N, 1), lambda i: (0, 0, 0)))
        args.append(mask)
    in_specs.append(pl.BlockSpec(slab.shape, lambda i: (0, 0)))
    args.append(slab)

    if with_pool:
        C = tower_meta[0]["out_dim"]                 # clusters (pool tower output)
        D = tower_meta[1]["out_dim"]                 # embed feature dim
        out_shape = (jax.ShapeDtypeStruct((B, C, D), jnp.float32),
                     jax.ShapeDtypeStruct((B, C, C), jnp.float32),
                     jax.ShapeDtypeStruct((8, 128), jnp.float32))
        out_specs = (pl.BlockSpec((B, C, D), lambda i: (0, 0, 0)),
                     pl.BlockSpec((B, C, C), lambda i: (0, 0, 0)),
                     pl.BlockSpec((8, 128), lambda i: (0, 0)))
    else:
        out_shape = jax.ShapeDtypeStruct((B, num_classes), jnp.float32)
        out_specs = pl.BlockSpec((B, num_classes), lambda i: (0, 0))

    # coarse cost hint for the XLA scheduler
    flops, trans = 0, 0
    for tm in tower_meta:
        c = Cin
        for w in tm["widths"]:
            flops += 2 * B * N * N * c + 2 * B * N * (2 * c) * w
            c = w
        if tm["has_lin"]:
            flops += 2 * B * N * sum(tm["widths"]) * tm["out_dim"]
        trans += B * N * sum(tm["widths"])
    if with_pool:
        C, D = tower_meta[0]["out_dim"], tower_meta[1]["out_dim"]
        flops += 2 * B * (N * C * D + C * N * N + 2 * N * C * C)
        trans += 2 * B * N * C
    out_list = out_shape if isinstance(out_shape, tuple) else (out_shape,)
    bytes_accessed = 4 * (sum(math.prod(a.shape) for a in args)
                          + sum(math.prod(o.shape) for o in out_list))
    cost = pl.CostEstimate(flops=int(flops), transcendentals=int(trans),
                           bytes_accessed=int(bytes_accessed))

    return pl.pallas_call(
        _make_level_kernel(offs, tower_meta, use_mask, with_pool, with_head),
        out_shape=out_shape,
        grid=(1,),
        in_specs=in_specs,
        out_specs=out_specs,
        compiler_params=pltpu.CompilerParams(
            dimension_semantics=("arbitrary",),       # BatchNorm couples the whole batch
            vmem_limit_bytes=32 * 1024 * 1024),
        cost_estimate=cost,
    )(*args)


# ---------------------------------------------------------------------------
# Net init + forward (3 pallas_calls total + tiny scalar loss glue)
# ---------------------------------------------------------------------------
def init_net(key, num_features, hidden, num_classes, max_nodes):
    n1 = math.ceil(0.25 * max_nodes)
    n2 = math.ceil(0.25 * n1)
    ks = jax.random.split(key, 7)
    gnn1_pool = _init_gnn(ks[0], num_features, hidden, n1, lin=True)
    gnn1_embed = _init_gnn(ks[1], num_features, hidden, hidden, lin=False)
    gnn2_pool = _init_gnn(ks[2], 3 * hidden, hidden, n2, lin=True)
    gnn2_embed = _init_gnn(ks[3], 3 * hidden, hidden, hidden, lin=False)
    gnn3_embed = _init_gnn(ks[4], 3 * hidden, hidden, hidden, lin=False)
    lin1 = _init_linear(ks[5], 3 * hidden, hidden)
    lin2 = _init_linear(ks[6], hidden, num_classes)

    slab1, offs1, meta1 = _pack_level([gnn1_pool, gnn1_embed], None)
    slab2, offs2, meta2 = _pack_level([gnn2_pool, gnn2_embed], None)
    slab3, offs3, meta3 = _pack_level([gnn3_embed], (lin1, lin2))

    params = {"slab1": slab1, "slab2": slab2, "slab3": slab3}
    static = {"offs": (offs1, offs2, offs3), "meta": (meta1, meta2, meta3),
              "num_classes": num_classes, "n1": n1, "n2": n2}
    return params, static


def make_net_forward(static):
    offs1, offs2, offs3 = static["offs"]
    meta1, meta2, meta3 = static["meta"]
    num_classes = static["num_classes"]

    def net_forward(params, x, adj, mask):
        B, N, _ = x.shape
        mask3 = mask.reshape(B, N, 1).astype(jnp.float32)

        # level 1: pool + embed towers + dense_diff_pool, all in one fused kernel
        xp, adjp, loss1 = _run_level(x, adj, mask3, params["slab1"], offs1, meta1,
                                     with_pool=True, with_head=False)
        # level 2: same, no mask (per reference)
        xp2, adjp2, loss2 = _run_level(xp, adjp, None, params["slab2"], offs2, meta2,
                                       with_pool=True, with_head=False)
        # level 3: embed tower + classification head fused
        logp = _run_level(xp2, adjp2, None, params["slab3"], offs3, meta3,
                          with_pool=False, with_head=True, num_classes=num_classes)

        # torch: norm(adj - s s^T) / adj.numel()  and  mean entropy  (scalar glue)
        n1 = adjp.shape[1]
        l1 = jnp.sqrt(jnp.maximum(loss1[0, 0], 0.0)) / (B * N * N)
        e1 = loss1[0, 1] / (B * N)
        l2 = jnp.sqrt(jnp.maximum(loss2[0, 0], 0.0)) / (B * n1 * n1)
        e2 = loss2[0, 1] / (B * n1)
        return logp, l1 + l2, e1 + e2

    return net_forward


# ---------------------------------------------------------------------------
if __name__ == "__main__":
    key = jax.random.PRNGKey(0)
    B, N, F_, H, CLS = 2, 32, 6, 32, 4        # batch, max_nodes, features, hidden, classes

    k_x, k_adj, k_p = jax.random.split(key, 3)
    x = jax.random.normal(k_x, (B, N, F_), jnp.float32)
    a = (jax.random.uniform(k_adj, (B, N, N)) < 0.3).astype(jnp.float32)
    adj = jnp.maximum(a, jnp.swapaxes(a, 1, 2))                   # symmetric 0/1 adjacency
    node_counts = jnp.array([28, 32])
    mask = (jnp.arange(N)[None, :] < node_counts[:, None]).astype(jnp.float32)  # (B, N)

    params, static = init_net(k_p, num_features=F_, hidden=H,
                              num_classes=CLS, max_nodes=N)
    fwd = jax.jit(make_net_forward(static))

    logp, link_loss, ent_loss = fwd(params, x, adj, mask)
    jax.block_until_ready((logp, link_loss, ent_loss))

    assert logp.shape == (B, CLS)
    assert bool(jnp.isfinite(logp).all())
    assert bool(jnp.isfinite(link_loss)) and bool(jnp.isfinite(ent_loss))
    print("KERNEL_OK")
</pallas_src>

<mosaic_0001>
module attributes {stable_mosaic.version = 11 : i64} {
  func.func @kernel(%arg0: i32, %arg1: memref<2x8x96xf32, #tpu.memory_space<vmem>>, %arg2: memref<2x8x8xf32, #tpu.memory_space<vmem>>, %arg3: memref<728x128xf32, #tpu.memory_space<vmem>>, %arg4: memref<2x2x96xf32, #tpu.memory_space<vmem>>, %arg5: memref<2x2x2xf32, #tpu.memory_space<vmem>>, %arg6: memref<8x128xf32, #tpu.memory_space<vmem>>) attributes {dimension_semantics = [#tpu.dimension_semantics<arbitrary>], iteration_bounds = array<i64: 1>, scalar_prefetch = 0 : i64, scratch_operands = 0 : i64, tpu.core_type = #tpu.core_type<tc>, window_params = [{pipeline_mode = #tpu.pipeline_mode<synchronous>, transform_indices = @transform_0, window_bounds = array<i64: 2, 8, 96>}, {pipeline_mode = #tpu.pipeline_mode<synchronous>, transform_indices = @transform_1, window_bounds = array<i64: 2, 8, 8>}, {pipeline_mode = #tpu.pipeline_mode<synchronous>, transform_indices = @transform_2, window_bounds = array<i64: 728, 128>}, {pipeline_mode = #tpu.pipeline_mode<synchronous>, transform_indices = @transform_3, window_bounds = array<i64: 2, 2, 96>}, {pipeline_mode = #tpu.pipeline_mode<synchronous>, transform_indices = @transform_4, window_bounds = array<i64: 2, 2, 2>}, {pipeline_mode = #tpu.pipeline_mode<synchronous>, transform_indices = @transform_5, window_bounds = array<i64: 8, 128>}]} {
    %c0 = arith.constant 0 : index
    %c0_0 = arith.constant 0 : index
    %c0_1 = arith.constant 0 : index
    %0 = vector.load %arg1[%c0, %c0_0, %c0_1] : memref<2x8x96xf32, #tpu.memory_space<vmem>>, vector<2x8x96xf32>
    %c0_2 = arith.constant 0 : index
    %c0_3 = arith.constant 0 : index
    %c0_4 = arith.constant 0 : index
    %1 = vector.load %arg2[%c0_2, %c0_3, %c0_4] : memref<2x8x8xf32, #tpu.memory_space<vmem>>, vector<2x8x8xf32>
    %cst = arith.constant dense<0.000000e+00> : vector<2x8xf32>
    %2 = vector.multi_reduction <add>, %1, %cst [2] : vector<2x8x8xf32> to vector<2x8xf32>
    %3 = vector.shape_cast %2 : vector<2x8xf32> to vector<2x8x1xf32>
    %cst_5 = arith.constant 1.000000e+00 : f32
    %4 = vector.broadcast %cst_5 : f32 to vector<2x8x1xf32>
    %5 = arith.maximumf %3, %4 : vector<2x8x1xf32>
    %cst_6 = arith.constant 1.000000e+00 : f32
    %6 = vector.broadcast %cst_6 : f32 to vector<2x8x1xf32>
    %7 = arith.divf %6, %5 : vector<2x8x1xf32>
    %c0_7 = arith.constant 0 : index
    %c0_8 = arith.constant 0 : index
    %8 = vector.load %arg3[%c0_7, %c0_8] : memref<728x128xf32, #tpu.memory_space<vmem>>, vector<192x32xf32>
    %c192 = arith.constant 192 : index
    %c0_9 = arith.constant 0 : index
    %9 = vector.load %arg3[%c192, %c0_9] : memref<728x128xf32, #tpu.memory_space<vmem>>, vector<1x32xf32>
    %c193 = arith.constant 193 : index
    %c0_10 = arith.constant 0 : index
    %10 = vector.load %arg3[%c193, %c0_10] : memref<728x128xf32, #tpu.memory_space<vmem>>, vector<1x32xf32>
    %c194 = arith.constant 194 : index
    %c0_11 = arith.constant 0 : index
    %11 = vector.load %arg3[%c194, %c0_11] : memref<728x128xf32, #tpu.memory_space<vmem>>, vector<1x32xf32>
    %cst_12 = arith.constant dense<0.000000e+00> : vector<2x8x96xf32>
    %12 = tpu.matmul %1, %0, %cst_12 {dimension_numbers = #tpu.dot_dimension_numbers<[2], [1], [1], [2], [0, 0, 0, 1, 1, 2], [0], [0]>} : vector<2x8x8xf32>, vector<2x8x96xf32>, vector<2x8x96xf32> -> vector<2x8x96xf32>
    %13 = vector.broadcast %7 : vector<2x8x1xf32> to vector<2x8x96xf32>
    %14 = arith.mulf %12, %13 : vector<2x8x96xf32>
    %15 = tpu.concatenate %14, %0 in 2 : vector<2x8x96xf32>, vector<2x8x96xf32> -> vector<2x8x192xf32>
    %16 = vector.shape_cast %15 : vector<2x8x192xf32> to vector<16x192xf32>
    %cst_13 = arith.constant dense<0.000000e+00> : vector<16x32xf32>
    %17 = tpu.matmul %16, %8, %cst_13 {dimension_numbers = #tpu.dot_dimension_numbers<[1], [0], [0], [1], [0, 0, 1, 1], [], []>} : vector<16x192xf32>, vector<192x32xf32>, vector<16x32xf32> -> vector<16x32xf32>
    %18 = vector.shape_cast %17 : vector<16x32xf32> to vector<2x8x32xf32>
    %19 = vector.shape_cast %9 : vector<1x32xf32> to vector<1x1x32xf32>
    %20 = vector.broadcast %19 : vector<1x1x32xf32> to vector<2x8x32xf32>
    %21 = arith.addf %18, %20 : vector<2x8x32xf32>
    %cst_14 = arith.constant 0.000000e+00 : f32
    %22 = vector.broadcast %cst_14 : f32 to vector<2x8x32xf32>
    %23 = arith.maximumf %21, %22 : vector<2x8x32xf32>
    %cst_15 = arith.constant dense<0.000000e+00> : vector<2x32xf32>
    %24 = vector.multi_reduction <add>, %23, %cst_15 [1] : vector<2x8x32xf32> to vector<2x32xf32>
    %25 = vector.shape_cast %24 : vector<2x32xf32> to vector<2x1x32xf32>
    %cst_16 = arith.constant dense<0.000000e+00> : vector<1x32xf32>
    %26 = vector.multi_reduction <add>, %25, %cst_16 [0] : vector<2x1x32xf32> to vector<1x32xf32>
    %27 = vector.shape_cast %26 : vector<1x32xf32> to vector<1x1x32xf32>
    %cst_17 = arith.constant 1.600000e+01 : f32
    %28 = vector.broadcast %cst_17 : f32 to vector<1x1x32xf32>
    %29 = arith.divf %27, %28 : vector<1x1x32xf32>
    %30 = vector.broadcast %29 : vector<1x1x32xf32> to vector<2x8x32xf32>
    %31 = arith.subf %23, %30 : vector<2x8x32xf32>
    %32 = arith.mulf %31, %31 : vector<2x8x32xf32>
    %cst_18 = arith.constant dense<0.000000e+00> : vector<2x32xf32>
    %33 = vector.multi_reduction <add>, %32, %cst_18 [1] : vector<2x8x32xf32> to vector<2x32xf32>
    %34 = vector.shape_cast %33 : vector<2x32xf32> to vector<2x1x32xf32>
    %cst_19 = arith.constant dense<0.000000e+00> : vector<1x32xf32>
    %35 = vector.multi_reduction <add>, %34, %cst_19 [0] : vector<2x1x32xf32> to vector<1x32xf32>
    %36 = vector.shape_cast %35 : vector<1x32xf32> to vector<1x1x32xf32>
    %cst_20 = arith.constant 1.600000e+01 : f32
    %37 = vector.broadcast %cst_20 : f32 to vector<1x1x32xf32>
    %38 = arith.divf %36, %37 : vector<1x1x32xf32>
    %cst_21 = arith.constant 9.99999974E-6 : f32
    %39 = vector.broadcast %cst_21 : f32 to vector<1x1x32xf32>
    %40 = arith.addf %38, %39 : vector<1x1x32xf32>
    %41 = math.rsqrt %40 : vector<1x1x32xf32>
    %42 = vector.broadcast %41 : vector<1x1x32xf32> to vector<2x8x32xf32>
    %43 = arith.mulf %31, %42 : vector<2x8x32xf32>
    %44 = vector.shape_cast %10 : vector<1x32xf32> to vector<1x1x32xf32>
    %45 = vector.broadcast %44 : vector<1x1x32xf32> to vector<2x8x32xf32>
    %46 = arith.mulf %43, %45 : vector<2x8x32xf32>
    %47 = vector.shape_cast %11 : vector<1x32xf32> to vector<1x1x32xf32>
    %48 = vector.broadcast %47 : vector<1x1x32xf32> to vector<2x8x32xf32>
    %49 = arith.addf %46, %48 : vector<2x8x32xf32>
    %c195 = arith.constant 195 : index
    %c0_22 = arith.constant 0 : index
    %50 = vector.load %arg3[%c195, %c0_22] : memref<728x128xf32, #tpu.memory_space<vmem>>, vector<64x32xf32>
    %c259 = arith.constant 259 : index
    %c0_23 = arith.constant 0 : index
    %51 = vector.load %arg3[%c259, %c0_23] : memref<728x128xf32, #tpu.memory_space<vmem>>, vector<1x32xf32>
    %c260 = arith.constant 260 : index
    %c0_24 = arith.constant 0 : index
    %52 = vector.load %arg3[%c260, %c0_24] : memref<728x128xf32, #tpu.memory_space<vmem>>, vector<1x32xf32>
    %c261 = arith.constant 261 : index
    %c0_25 = arith.constant 0 : index
    %53 = vector.load %arg3[%c261, %c0_25] : memref<728x128xf32, #tpu.memory_space<vmem>>, vector<1x32xf32>
    %cst_26 = arith.constant dense<0.000000e+00> : vector<2x8x32xf32>
    %54 = tpu.matmul %1, %49, %cst_26 {dimension_numbers = #tpu.dot_dimension_numbers<[2], [1], [1], [2], [0, 0, 0, 1, 1, 2], [0], [0]>} : vector<2x8x8xf32>, vector<2x8x32xf32>, vector<2x8x32xf32> -> vector<2x8x32xf32>
    %55 = vector.broadcast %7 : vector<2x8x1xf32> to vector<2x8x32xf32>
    %56 = arith.mulf %54, %55 : vector<2x8x32xf32>
    %57 = tpu.concatenate %56, %49 in 2 : vector<2x8x32xf32>, vector<2x8x32xf32> -> vector<2x8x64xf32>
    %58 = vector.shape_cast %57 : vector<2x8x64xf32> to vector<16x64xf32>
    %cst_27 = arith.constant dense<0.000000e+00> : vector<16x32xf32>
    %59 = tpu.matmul %58, %50, %cst_27 {dimension_numbers = #tpu.dot_dimension_numbers<[1], [0], [0], [1], [0, 0, 1, 1], [], []>} : vector<16x64xf32>, vector<64x32xf32>, vector<16x32xf32> -> vector<16x32xf32>
    %60 = vector.shape_cast %59 : vector<16x32xf32> to vector<2x8x32xf32>
    %61 = vector.shape_cast %51 : vector<1x32xf32> to vector<1x1x32xf32>
    %62 = vector.broadcast %61 : vector<1x1x32xf32> to vector<2x8x32xf32>
    %63 = arith.addf %60, %62 : vector<2x8x32xf32>
    %cst_28 = arith.constant 0.000000e+00 : f32
    %64 = vector.broadcast %cst_28 : f32 to vector<2x8x32xf32>
    %65 = arith.maximumf %63, %64 : vector<2x8x32xf32>
    %cst_29 = arith.constant dense<0.000000e+00> : vector<2x32xf32>
    %66 = vector.multi_reduction <add>, %65, %cst_29 [1] : vector<2x8x32xf32> to vector<2x32xf32>
    %67 = vector.shape_cast %66 : vector<2x32xf32> to vector<2x1x32xf32>
    %cst_30 = arith.constant dense<0.000000e+00> : vector<1x32xf32>
    %68 = vector.multi_reduction <add>, %67, %cst_30 [0] : vector<2x1x32xf32> to vector<1x32xf32>
    %69 = vector.shape_cast %68 : vector<1x32xf32> to vector<1x1x32xf32>
    %cst_31 = arith.constant 1.600000e+01 : f32
    %70 = vector.broadcast %cst_31 : f32 to vector<1x1x32xf32>
    %71 = arith.divf %69, %70 : vector<1x1x32xf32>
    %72 = vector.broadcast %71 : vector<1x1x32xf32> to vector<2x8x32xf32>
    %73 = arith.subf %65, %72 : vector<2x8x32xf32>
    %74 = arith.mulf %73, %73 : vector<2x8x32xf32>
    %cst_32 = arith.constant dense<0.000000e+00> : vector<2x32xf32>
    %75 = vector.multi_reduction <add>, %74, %cst_32 [1] : vector<2x8x32xf32> to vector<2x32xf32>
    %76 = vector.shape_cast %75 : vector<2x32xf32> to vector<2x1x32xf32>
    %cst_33 = arith.constant dense<0.000000e+00> : vector<1x32xf32>
    %77 = vector.multi_reduction <add>, %76, %cst_33 [0] : vector<2x1x32xf32> to vector<1x32xf32>
    %78 = vector.shape_cast %77 : vector<1x32xf32> to vector<1x1x32xf32>
    %cst_34 = arith.constant 1.600000e+01 : f32
    %79 = vector.broadcast %cst_34 : f32 to vector<1x1x32xf32>
    %80 = arith.divf %78, %79 : vector<1x1x32xf32>
    %cst_35 = arith.constant 9.99999974E-6 : f32
    %81 = vector.broadcast %cst_35 : f32 to vector<1x1x32xf32>
    %82 = arith.addf %80, %81 : vector<1x1x32xf32>
    %83 = math.rsqrt %82 : vector<1x1x32xf32>
    %84 = vector.broadcast %83 : vector<1x1x32xf32> to vector<2x8x32xf32>
    %85 = arith.mulf %73, %84 : vector<2x8x32xf32>
    %86 = vector.shape_cast %52 : vector<1x32xf32> to vector<1x1x32xf32>
    %87 = vector.broadcast %86 : vector<1x1x32xf32> to vector<2x8x32xf32>
    %88 = arith.mulf %85, %87 : vector<2x8x32xf32>
    %89 = vector.shape_cast %53 : vector<1x32xf32> to vector<1x1x32xf32>
    %90 = vector.broadcast %89 : vector<1x1x32xf32> to vector<2x8x32xf32>
    %91 = arith.addf %88, %90 : vector<2x8x32xf32>
    %c262 = arith.constant 262 : index
    %c0_36 = arith.constant 0 : index
    %92 = vector.load %arg3[%c262, %c0_36] : memref<728x128xf32, #tpu.memory_space<vmem>>, vector<64x2xf32>
    %c326 = arith.constant 326 : index
    %c0_37 = arith.constant 0 : index
    %93 = vector.load %arg3[%c326, %c0_37] : memref<728x128xf32, #tpu.memory_space<vmem>>, vector<1x2xf32>
    %c327 = arith.constant 327 : index
    %c0_38 = arith.constant 0 : index
    %94 = vector.load %arg3[%c327, %c0_38] : memref<728x128xf32, #tpu.memory_space<vmem>>, vector<1x2xf32>
    %c328 = arith.constant 328 : index
    %c0_39 = arith.constant 0 : index
    %95 = vector.load %arg3[%c328, %c0_39] : memref<728x128xf32, #tpu.memory_space<vmem>>, vector<1x2xf32>
    %cst_40 = arith.constant dense<0.000000e+00> : vector<2x8x32xf32>
    %96 = tpu.matmul %1, %91, %cst_40 {dimension_numbers = #tpu.dot_dimension_numbers<[2], [1], [1], [2], [0, 0, 0, 1, 1, 2], [0], [0]>} : vector<2x8x8xf32>, vector<2x8x32xf32>, vector<2x8x32xf32> -> vector<2x8x32xf32>
    %97 = vector.broadcast %7 : vector<2x8x1xf32> to vector<2x8x32xf32>
    %98 = arith.mulf %96, %97 : vector<2x8x32xf32>
    %99 = tpu.concatenate %98, %91 in 2 : vector<2x8x32xf32>, vector<2x8x32xf32> -> vector<2x8x64xf32>
    %100 = vector.shape_cast %99 : vector<2x8x64xf32> to vector<16x64xf32>
    %cst_41 = arith.constant dense<0.000000e+00> : vector<16x2xf32>
    %101 = tpu.matmul %100, %92, %cst_41 {dimension_numbers = #tpu.dot_dimension_numbers<[1], [0], [0], [1], [0, 0, 1, 1], [], []>} : vector<16x64xf32>, vector<64x2xf32>, vector<16x2xf32> -> vector<16x2xf32>
    %102 = vector.shape_cast %101 : vector<16x2xf32> to vector<2x8x2xf32>
    %103 = vector.shape_cast %93 : vector<1x2xf32> to vector<1x1x2xf32>
    %104 = vector.broadcast %103 : vector<1x1x2xf32> to vector<2x8x2xf32>
    %105 = arith.addf %102, %104 : vector<2x8x2xf32>
    %cst_42 = arith.constant 0.000000e+00 : f32
    %106 = vector.broadcast %cst_42 : f32 to vector<2x8x2xf32>
    %107 = arith.maximumf %105, %106 : vector<2x8x2xf32>
    %cst_43 = arith.constant dense<0.000000e+00> : vector<2x2xf32>
    %108 = vector.multi_reduction <add>, %107, %cst_43 [1] : vector<2x8x2xf32> to vector<2x2xf32>
    %109 = vector.shape_cast %108 : vector<2x2xf32> to vector<2x1x2xf32>
    %cst_44 = arith.constant dense<0.000000e+00> : vector<1x2xf32>
    %110 = vector.multi_reduction <add>, %109, %cst_44 [0] : vector<2x1x2xf32> to vector<1x2xf32>
    %111 = vector.shape_cast %110 : vector<1x2xf32> to vector<1x1x2xf32>
    %cst_45 = arith.constant 1.600000e+01 : f32
    %112 = vector.broadcast %cst_45 : f32 to vector<1x1x2xf32>
    %113 = arith.divf %111, %112 : vector<1x1x2xf32>
    %114 = vector.broadcast %113 : vector<1x1x2xf32> to vector<2x8x2xf32>
    %115 = arith.subf %107, %114 : vector<2x8x2xf32>
    %116 = arith.mulf %115, %115 : vector<2x8x2xf32>
    %cst_46 = arith.constant dense<0.000000e+00> : vector<2x2xf32>
    %117 = vector.multi_reduction <add>, %116, %cst_46 [1] : vector<2x8x2xf32> to vector<2x2xf32>
    %118 = vector.shape_cast %117 : vector<2x2xf32> to vector<2x1x2xf32>
    %cst_47 = arith.constant dense<0.000000e+00> : vector<1x2xf32>
    %119 = vector.multi_reduction <add>, %118, %cst_47 [0] : vector<2x1x2xf32> to vector<1x2xf32>
    %120 = vector.shape_cast %119 : vector<1x2xf32> to vector<1x1x2xf32>
    %cst_48 = arith.constant 1.600000e+01 : f32
    %121 = vector.broadcast %cst_48 : f32 to vector<1x1x2xf32>
    %122 = arith.divf %120, %121 : vector<1x1x2xf32>
    %cst_49 = arith.constant 9.99999974E-6 : f32
    %123 = vector.broadcast %cst_49 : f32 to vector<1x1x2xf32>
    %124 = arith.addf %122, %123 : vector<1x1x2xf32>
    %125 = math.rsqrt %124 : vector<1x1x2xf32>
    %126 = vector.broadcast %125 : vector<1x1x2xf32> to vector<2x8x2xf32>
    %127 = arith.mulf %115, %126 : vector<2x8x2xf32>
    %128 = vector.shape_cast %94 : vector<1x2xf32> to vector<1x1x2xf32>
    %129 = vector.broadcast %128 : vector<1x1x2xf32> to vector<2x8x2xf32>
    %130 = arith.mulf %127, %129 : vector<2x8x2xf32>
    %131 = vector.shape_cast %95 : vector<1x2xf32> to vector<1x1x2xf32>
    %132 = vector.broadcast %131 : vector<1x1x2xf32> to vector<2x8x2xf32>
    %133 = arith.addf %130, %132 : vector<2x8x2xf32>
    %134 = tpu.concatenate %49, %91, %133 in 2 : vector<2x8x32xf32>, vector<2x8x32xf32>, vector<2x8x2xf32> -> vector<2x8x66xf32>
    %c329 = arith.constant 329 : index
    %c0_50 = arith.constant 0 : index
    %135 = vector.load %arg3[%c329, %c0_50] : memref<728x128xf32, #tpu.memory_space<vmem>>, vector<66x2xf32>
    %c395 = arith.constant 395 : index
    %c0_51 = arith.constant 0 : index
    %136 = vector.load %arg3[%c395, %c0_51] : memref<728x128xf32, #tpu.memory_space<vmem>>, vector<1x2xf32>
    %137 = vector.shape_cast %134 : vector<2x8x66xf32> to vector<16x66xf32>
    %cst_52 = arith.constant dense<0.000000e+00> : vector<16x2xf32>
    %138 = tpu.matmul %137, %135, %cst_52 {dimension_numbers = #tpu.dot_dimension_numbers<[1], [0], [0], [1], [0, 0, 1, 1], [], []>} : vector<16x66xf32>, vector<66x2xf32>, vector<16x2xf32> -> vector<16x2xf32>
    %139 = vector.shape_cast %138 : vector<16x2xf32> to vector<2x8x2xf32>
    %140 = vector.shape_cast %136 : vector<1x2xf32> to vector<1x1x2xf32>
    %141 = vector.broadcast %140 : vector<1x1x2xf32> to vector<2x8x2xf32>
    %142 = arith.addf %139, %141 : vector<2x8x2xf32>
    %cst_53 = arith.constant 0.000000e+00 : f32
    %143 = vector.broadcast %cst_53 : f32 to vector<2x8x2xf32>
    %144 = arith.maximumf %142, %143 : vector<2x8x2xf32>
    %c396 = arith.constant 396 : index
    %c0_54 = arith.constant 0 : index
    %145 = vector.load %arg3[%c396, %c0_54] : memref<728x128xf32, #tpu.memory_space<vmem>>, vector<192x32xf32>
    %c588 = arith.constant 588 : index
    %c0_55 = arith.constant 0 : index
    %146 = vector.load %arg3[%c588, %c0_55] : memref<728x128xf32, #tpu.memory_space<vmem>>, vector<1x32xf32>
    %c589 = arith.constant 589 : index
    %c0_56 = arith.constant 0 : index
    %147 = vector.load %arg3[%c589, %c0_56] : memref<728x128xf32, #tpu.memory_space<vmem>>, vector<1x32xf32>
    %c590 = arith.constant 590 : index
    %c0_57 = arith.constant 0 : index
    %148 = vector.load %arg3[%c590, %c0_57] : memref<728x128xf32, #tpu.memory_space<vmem>>, vector<1x32xf32>
    %cst_58 = arith.constant dense<0.000000e+00> : vector<2x8x96xf32>
    %149 = tpu.matmul %1, %0, %cst_58 {dimension_numbers = #tpu.dot_dimension_numbers<[2], [1], [1], [2], [0, 0, 0, 1, 1, 2], [0], [0]>} : vector<2x8x8xf32>, vector<2x8x96xf32>, vector<2x8x96xf32> -> vector<2x8x96xf32>
    %150 = vector.broadcast %7 : vector<2x8x1xf32> to vector<2x8x96xf32>
    %151 = arith.mulf %149, %150 : vector<2x8x96xf32>
    %152 = tpu.concatenate %151, %0 in 2 : vector<2x8x96xf32>, vector<2x8x96xf32> -> vector<2x8x192xf32>
    %153 = vector.shape_cast %152 : vector<2x8x192xf32> to vector<16x192xf32>
    %cst_59 = arith.constant dense<0.000000e+00> : vector<16x32xf32>
    %154 = tpu.matmul %153, %145, %cst_59 {dimension_numbers = #tpu.dot_dimension_numbers<[1], [0], [0], [1], [0, 0, 1, 1], [], []>} : vector<16x192xf32>, vector<192x32xf32>, vector<16x32xf32> -> vector<16x32xf32>
    %155 = vector.shape_cast %154 : vector<16x32xf32> to vector<2x8x32xf32>
    %156 = vector.shape_cast %146 : vector<1x32xf32> to vector<1x1x32xf32>
    %157 = vector.broadcast %156 : vector<1x1x32xf32> to vector<2x8x32xf32>
    %158 = arith.addf %155, %157 : vector<2x8x32xf32>
    %cst_60 = arith.constant 0.000000e+00 : f32
    %159 = vector.broadcast %cst_60 : f32 to vector<2x8x32xf32>
    %160 = arith.maximumf %158, %159 : vector<2x8x32xf32>
    %cst_61 = arith.constant dense<0.000000e+00> : vector<2x32xf32>
    %161 = vector.multi_reduction <add>, %160, %cst_61 [1] : vector<2x8x32xf32> to vector<2x32xf32>
    %162 = vector.shape_cast %161 : vector<2x32xf32> to vector<2x1x32xf32>
    %cst_62 = arith.constant dense<0.000000e+00> : vector<1x32xf32>
    %163 = vector.multi_reduction <add>, %162, %cst_62 [0] : vector<2x1x32xf32> to vector<1x32xf32>
    %164 = vector.shape_cast %163 : vector<1x32xf32> to vector<1x1x32xf32>
    %cst_63 = arith.constant 1.600000e+01 : f32
    %165 = vector.broadcast %cst_63 : f32 to vector<1x1x32xf32>
    %166 = arith.divf %164, %165 : vector<1x1x32xf32>
    %167 = vector.broadcast %166 : vector<1x1x32xf32> to vector<2x8x32xf32>
    %168 = arith.subf %160, %167 : vector<2x8x32xf32>
    %169 = arith.mulf %168, %168 : vector<2x8x32xf32>
    %cst_64 = arith.constant dense<0.000000e+00> : vector<2x32xf32>
    %170 = vector.multi_reduction <add>, %169, %cst_64 [1] : vector<2x8x32xf32> to vector<2x32xf32>
    %171 = vector.shape_cast %170 : vector<2x32xf32> to vector<2x1x32xf32>
    %cst_65 = arith.constant dense<0.000000e+00> : vector<1x32xf32>
    %172 = vector.multi_reduction <add>, %171, %cst_65 [0] : vector<2x1x32xf32> to vector<1x32xf32>
    %173 = vector.shape_cast %172 : vector<1x32xf32> to vector<1x1x32xf32>
    %cst_66 = arith.constant 1.600000e+01 : f32
    %174 = vector.broadcast %cst_66 : f32 to vector<1x1x32xf32>
    %175 = arith.divf %173, %174 : vector<1x1x32xf32>
    %cst_67 = arith.constant 9.99999974E-6 : f32
    %176 = vector.broadcast %cst_67 : f32 to vector<1x1x32xf32>
    %177 = arith.addf %175, %176 : vector<1x1x32xf32>
    %178 = math.rsqrt %177 : vector<1x1x32xf32>
    %179 = vector.broadcast %178 : vector<1x1x32xf32> to vector<2x8x32xf32>
    %180 = arith.mulf %168, %179 : vector<2x8x32xf32>
    %181 = vector.shape_cast %147 : vector<1x32xf32> to vector<1x1x32xf32>
    %182 = vector.broadcast %181 : vector<1x1x32xf32> to vector<2x8x32xf32>
    %183 = arith.mulf %180, %182 : vector<2x8x32xf32>
    %184 = vector.shape_cast %148 : vector<1x32xf32> to vector<1x1x32xf32>
    %185 = vector.broadcast %184 : vector<1x1x32xf32> to vector<2x8x32xf32>
    %186 = arith.addf %183, %185 : vector<2x8x32xf32>
    %c591 = arith.constant 591 : index
    %c0_68 = arith.constant 0 : index
    %187 = vector.load %arg3[%c591, %c0_68] : memref<728x128xf32, #tpu.memory_space<vmem>>, vector<64x32xf32>
    %c655 = arith.constant 655 : index
    %c0_69 = arith.constant 0 : index
    %188 = vector.load %arg3[%c655, %c0_69] : memref<728x128xf32, #tpu.memory_space<vmem>>, vector<1x32xf32>
    %c656 = arith.constant 656 : index
    %c0_70 = arith.constant 0 : index
    %189 = vector.load %arg3[%c656, %c0_70] : memref<728x128xf32, #tpu.memory_space<vmem>>, vector<1x32xf32>
    %c657 = arith.constant 657 : index
    %c0_71 = arith.constant 0 : index
    %190 = vector.load %arg3[%c657, %c0_71] : memref<728x128xf32, #tpu.memory_space<vmem>>, vector<1x32xf32>
    %cst_72 = arith.constant dense<0.000000e+00> : vector<2x8x32xf32>
    %191 = tpu.matmul %1, %186, %cst_72 {dimension_numbers = #tpu.dot_dimension_numbers<[2], [1], [1], [2], [0, 0, 0, 1, 1, 2], [0], [0]>} : vector<2x8x8xf32>, vector<2x8x32xf32>, vector<2x8x32xf32> -> vector<2x8x32xf32>
    %192 = vector.broadcast %7 : vector<2x8x1xf32> to vector<2x8x32xf32>
    %193 = arith.mulf %191, %192 : vector<2x8x32xf32>
    %194 = tpu.concatenate %193, %186 in 2 : vector<2x8x32xf32>, vector<2x8x32xf32> -> vector<2x8x64xf32>
    %195 = vector.shape_cast %194 : vector<2x8x64xf32> to vector<16x64xf32>
    %cst_73 = arith.constant dense<0.000000e+00> : vector<16x32xf32>
    %196 = tpu.matmul %195, %187, %cst_73 {dimension_numbers = #tpu.dot_dimension_numbers<[1], [0], [0], [1], [0, 0, 1, 1], [], []>} : vector<16x64xf32>, vector<64x32xf32>, vector<16x32xf32> -> vector<16x32xf32>
    %197 = vector.shape_cast %196 : vector<16x32xf32> to vector<2x8x32xf32>
    %198 = vector.shape_cast %188 : vector<1x32xf32> to vector<1x1x32xf32>
    %199 = vector.broadcast %198 : vector<1x1x32xf32> to vector<2x8x32xf32>
    %200 = arith.addf %197, %199 : vector<2x8x32xf32>
    %cst_74 = arith.constant 0.000000e+00 : f32
    %201 = vector.broadcast %cst_74 : f32 to vector<2x8x32xf32>
    %202 = arith.maximumf %200, %201 : vector<2x8x32xf32>
    %cst_75 = arith.constant dense<0.000000e+00> : vector<2x32xf32>
    %203 = vector.multi_reduction <add>, %202, %cst_75 [1] : vector<2x8x32xf32> to vector<2x32xf32>
    %204 = vector.shape_cast %203 : vector<2x32xf32> to vector<2x1x32xf32>
    %cst_76 = arith.constant dense<0.000000e+00> : vector<1x32xf32>
    %205 = vector.multi_reduction <add>, %204, %cst_76 [0] : vector<2x1x32xf32> to vector<1x32xf32>
    %206 = vector.shape_cast %205 : vector<1x32xf32> to vector<1x1x32xf32>
    %cst_77 = arith.constant 1.600000e+01 : f32
    %207 = vector.broadcast %cst_77 : f32 to vector<1x1x32xf32>
    %208 = arith.divf %206, %207 : vector<1x1x32xf32>
    %209 = vector.broadcast %208 : vector<1x1x32xf32> to vector<2x8x32xf32>
    %210 = arith.subf %202, %209 : vector<2x8x32xf32>
    %211 = arith.mulf %210, %210 : vector<2x8x32xf32>
    %cst_78 = arith.constant dense<0.000000e+00> : vector<2x32xf32>
    %212 = vector.multi_reduction <add>, %211, %cst_78 [1] : vector<2x8x32xf32> to vector<2x32xf32>
    %213 = vector.shape_cast %212 : vector<2x32xf32> to vector<2x1x32xf32>
    %cst_79 = arith.constant dense<0.000000e+00> : vector<1x32xf32>
    %214 = vector.multi_reduction <add>, %213, %cst_79 [0] : vector<2x1x32xf32> to vector<1x32xf32>
    %215 = vector.shape_cast %214 : vector<1x32xf32> to vector<1x1x32xf32>
    %cst_80 = arith.constant 1.600000e+01 : f32
    %216 = vector.broadcast %cst_80 : f32 to vector<1x1x32xf32>
    %217 = arith.divf %215, %216 : vector<1x1x32xf32>
    %cst_81 = arith.constant 9.99999974E-6 : f32
    %218 = vector.broadcast %cst_81 : f32 to vector<1x1x32xf32>
    %219 = arith.addf %217, %218 : vector<1x1x32xf32>
    %220 = math.rsqrt %219 : vector<1x1x32xf32>
    %221 = vector.broadcast %220 : vector<1x1x32xf32> to vector<2x8x32xf32>
    %222 = arith.mulf %210, %221 : vector<2x8x32xf32>
    %223 = vector.shape_cast %189 : vector<1x32xf32> to vector<1x1x32xf32>
    %224 = vector.broadcast %223 : vector<1x1x32xf32> to vector<2x8x32xf32>
    %225 = arith.mulf %222, %224 : vector<2x8x32xf32>
    %226 = vector.shape_cast %190 : vector<1x32xf32> to vector<1x1x32xf32>
    %227 = vector.broadcast %226 : vector<1x1x32xf32> to vector<2x8x32xf32>
    %228 = arith.addf %225, %227 : vector<2x8x32xf32>
    %c658 = arith.constant 658 : index
    %c0_82 = arith.constant 0 : index
    %229 = vector.load %arg3[%c658, %c0_82] : memref<728x128xf32, #tpu.memory_space<vmem>>, vector<64x32xf32>
    %c722 = arith.constant 722 : index
    %c0_83 = arith.constant 0 : index
    %230 = vector.load %arg3[%c722, %c0_83] : memref<728x128xf32, #tpu.memory_space<vmem>>, vector<1x32xf32>
    %c723 = arith.constant 723 : index
    %c0_84 = arith.constant 0 : index
    %231 = vector.load %arg3[%c723, %c0_84] : memref<728x128xf32, #tpu.memory_space<vmem>>, vector<1x32xf32>
    %c724 = arith.constant 724 : index
    %c0_85 = arith.constant 0 : index
    %232 = vector.load %arg3[%c724, %c0_85] : memref<728x128xf32, #tpu.memory_space<vmem>>, vector<1x32xf32>
    %cst_86 = arith.constant dense<0.000000e+00> : vector<2x8x32xf32>
    %233 = tpu.matmul %1, %228, %cst_86 {dimension_numbers = #tpu.dot_dimension_numbers<[2], [1], [1], [2], [0, 0, 0, 1, 1, 2], [0], [0]>} : vector<2x8x8xf32>, vector<2x8x32xf32>, vector<2x8x32xf32> -> vector<2x8x32xf32>
    %234 = vector.broadcast %7 : vector<2x8x1xf32> to vector<2x8x32xf32>
    %235 = arith.mulf %233, %234 : vector<2x8x32xf32>
    %236 = tpu.concatenate %235, %228 in 2 : vector<2x8x32xf32>, vector<2x8x32xf32> -> vector<2x8x64xf32>
    %237 = vector.shape_cast %236 : vector<2x8x64xf32> to vector<16x64xf32>
    %cst_87 = arith.constant dense<0.000000e+00> : vector<16x32xf32>
    %238 = tpu.matmul %237, %229, %cst_87 {dimension_numbers = #tpu.dot_dimension_numbers<[1], [0], [0], [1], [0, 0, 1, 1], [], []>} : vector<16x64xf32>, vector<64x32xf32>, vector<16x32xf32> -> vector<16x32xf32>
    %239 = vector.shape_cast %238 : vector<16x32xf32> to vector<2x8x32xf32>
    %240 = vector.shape_cast %230 : vector<1x32xf32> to vector<1x1x32xf32>
    %241 = vector.broadcast %240 : vector<1x1x32xf32> to vector<2x8x32xf32>
    %242 = arith.addf %239, %241 : vector<2x8x32xf32>
    %cst_88 = arith.constant 0.000000e+00 : f32
    %243 = vector.broadcast %cst_88 : f32 to vector<2x8x32xf32>
    %244 = arith.maximumf %242, %243 : vector<2x8x32xf32>
    %cst_89 = arith.constant dense<0.000000e+00> : vector<2x32xf32>
    %245 = vector.multi_reduction <add>, %244, %cst_89 [1] : vector<2x8x32xf32> to vector<2x32xf32>
    %246 = vector.shape_cast %245 : vector<2x32xf32> to vector<2x1x32xf32>
    %cst_90 = arith.constant dense<0.000000e+00> : vector<1x32xf32>
    %247 = vector.multi_reduction <add>, %246, %cst_90 [0] : vector<2x1x32xf32> to vector<1x32xf32>
    %248 = vector.shape_cast %247 : vector<1x32xf32> to vector<1x1x32xf32>
    %cst_91 = arith.constant 1.600000e+01 : f32
    %249 = vector.broadcast %cst_91 : f32 to vector<1x1x32xf32>
    %250 = arith.divf %248, %249 : vector<1x1x32xf32>
    %251 = vector.broadcast %250 : vector<1x1x32xf32> to vector<2x8x32xf32>
    %252 = arith.subf %244, %251 : vector<2x8x32xf32>
    %253 = arith.mulf %252, %252 : vector<2x8x32xf32>
    %cst_92 = arith.constant dense<0.000000e+00> : vector<2x32xf32>
    %254 = vector.multi_reduction <add>, %253, %cst_92 [1] : vector<2x8x32xf32> to vector<2x32xf32>
    %255 = vector.shape_cast %254 : vector<2x32xf32> to vector<2x1x32xf32>
    %cst_93 = arith.constant dense<0.000000e+00> : vector<1x32xf32>
    %256 = vector.multi_reduction <add>, %255, %cst_93 [0] : vector<2x1x32xf32> to vector<1x32xf32>
    %257 = vector.shape_cast %256 : vector<1x32xf32> to vector<1x1x32xf32>
    %cst_94 = arith.constant 1.600000e+01 : f32
    %258 = vector.broadcast %cst_94 : f32 to vector<1x1x32xf32>
    %259 = arith.divf %257, %258 : vector<1x1x32xf32>
    %cst_95 = arith.constant 9.99999974E-6 : f32
    %260 = vector.broadcast %cst_95 : f32 to vector<1x1x32xf32>
    %261 = arith.addf %259, %260 : vector<1x1x32xf32>
    %262 = math.rsqrt %261 : vector<1x1x32xf32>
    %263 = vector.broadcast %262 : vector<1x1x32xf32> to vector<2x8x32xf32>
    %264 = arith.mulf %252, %263 : vector<2x8x32xf32>
    %265 = vector.shape_cast %231 : vector<1x32xf32> to vector<1x1x32xf32>
    %266 = vector.broadcast %265 : vector<1x1x32xf32> to vector<2x8x32xf32>
    %267 = arith.mulf %264, %266 : vector<2x8x32xf32>
    %268 = vector.shape_cast %232 : vector<1x32xf32> to vector<1x1x32xf32>
    %269 = vector.broadcast %268 : vector<1x1x32xf32> to vector<2x8x32xf32>
    %270 = arith.addf %267, %269 : vector<2x8x32xf32>
    %271 = tpu.concatenate %186, %228, %270 in 2 : vector<2x8x32xf32>, vector<2x8x32xf32>, vector<2x8x32xf32> -> vector<2x8x96xf32>
    %cst_96 = arith.constant dense<0xFF800000> : vector<2x8xf32>
    %272 = vector.multi_reduction <maximumf>, %144, %cst_96 [2] : vector<2x8x2xf32> to vector<2x8xf32>
    %273 = vector.shape_cast %272 : vector<2x8xf32> to vector<2x8x1xf32>
    %274 = vector.broadcast %273 : vector<2x8x1xf32> to vector<2x8x2xf32>
    %275 = arith.subf %144, %274 : vector<2x8x2xf32>
    %276 = math.exp %275 : vector<2x8x2xf32>
    %cst_97 = arith.constant dense<0.000000e+00> : vector<2x8xf32>
    %277 = vector.multi_reduction <add>, %276, %cst_97 [2] : vector<2x8x2xf32> to vector<2x8xf32>
    %278 = vector.shape_cast %277 : vector<2x8xf32> to vector<2x8x1xf32>
    %279 = vector.broadcast %278 : vector<2x8x1xf32> to vector<2x8x2xf32>
    %280 = arith.divf %276, %279 : vector<2x8x2xf32>
    %cst_98 = arith.constant dense<0.000000e+00> : vector<2x2x96xf32>
    %281 = tpu.matmul %280, %271, %cst_98 {dimension_numbers = #tpu.dot_dimension_numbers<[1], [1], [2], [2], [0, 0, 0, 2, 1, 2], [0], [0]>} : vector<2x8x2xf32>, vector<2x8x96xf32>, vector<2x2x96xf32> -> vector<2x2x96xf32>
    %cst_99 = arith.constant dense<0.000000e+00> : vector<2x2x8xf32>
    %282 = tpu.matmul %280, %1, %cst_99 {dimension_numbers = #tpu.dot_dimension_numbers<[1], [1], [2], [2], [0, 0, 0, 2, 1, 2], [0], [0]>} : vector<2x8x2xf32>, vector<2x8x8xf32>, vector<2x2x8xf32> -> vector<2x2x8xf32>
    %cst_100 = arith.constant dense<0.000000e+00> : vector<2x2x2xf32>
    %283 = tpu.matmul %282, %280, %cst_100 {dimension_numbers = #tpu.dot_dimension_numbers<[2], [1], [1], [2], [0, 0, 0, 1, 1, 2], [0], [0]>} : vector<2x2x8xf32>, vector<2x8x2xf32>, vector<2x2x2xf32> -> vector<2x2x2xf32>
    %cst_101 = arith.constant dense<0.000000e+00> : vector<2x2x2xf32>
    %284 = tpu.matmul %280, %280, %cst_101 {dimension_numbers = #tpu.dot_dimension_numbers<[1], [1], [2], [2], [0, 0, 0, 2, 1, 2], [0], [0]>} : vector<2x8x2xf32>, vector<2x8x2xf32>, vector<2x2x2xf32> -> vector<2x2x2xf32>
    %285 = tpu.iota {dimensions = array<i32: 0>} : vector<2x2xi32>
    %286 = tpu.iota {dimensions = array<i32: 1>} : vector<2x2xi32>
    %287 = arith.cmpi eq, %285, %286 : vector<2x2xi32>
    %288 = arith.extui %287 : vector<2x2xi1> to vector<2x2xi32>
    %289 = arith.sitofp %288 : vector<2x2xi32> to vector<2x2xf32>
    %290 = arith.mulf %1, %1 : vector<2x8x8xf32>
    %cst_102 = arith.constant dense<0.000000e+00> : vector<8x8xf32>
    %291 = vector.multi_reduction <add>, %290, %cst_102 [0] : vector<2x8x8xf32> to vector<8x8xf32>
    %cst_103 = arith.constant dense<0.000000e+00> : vector<8xf32>
    %292 = vector.multi_reduction <add>, %291, %cst_103 [1] : vector<8x8xf32> to vector<8xf32>
    %293 = vector.shape_cast %292 : vector<8xf32> to vector<8x1xf32>
    %cst_104 = arith.constant dense<0.000000e+00> : vector<1xf32>
    %294 = vector.multi_reduction <add>, %293, %cst_104 [0] : vector<8x1xf32> to vector<1xf32>
    %295 = vector.shape_cast %294 : vector<1xf32> to vector<1x1xf32>
    %296 = vector.shape_cast %289 : vector<2x2xf32> to vector<1x2x2xf32>
    %297 = vector.broadcast %296 : vector<1x2x2xf32> to vector<2x2x2xf32>
    %298 = arith.mulf %283, %297 : vector<2x2x2xf32>
    %cst_105 = arith.constant dense<0.000000e+00> : vector<2x2xf32>
    %299 = vector.multi_reduction <add>, %298, %cst_105 [0] : vector<2x2x2xf32> to vector<2x2xf32>
    %cst_106 = arith.constant dense<0.000000e+00> : vector<2xf32>
    %300 = vector.multi_reduction <add>, %299, %cst_106 [1] : vector<2x2xf32> to vector<2xf32>
    %301 = vector.shape_cast %300 : vector<2xf32> to vector<2x1xf32>
    %cst_107 = arith.constant dense<0.000000e+00> : vector<1xf32>
    %302 = vector.multi_reduction <add>, %301, %cst_107 [0] : vector<2x1xf32> to vector<1xf32>
    %303 = vector.shape_cast %302 : vector<1xf32> to vector<1x1xf32>
    %cst_108 = arith.constant 2.000000e+00 : f32
    %304 = vector.broadcast %cst_108 : f32 to vector<1x1xf32>
    %305 = arith.mulf %304, %303 : vector<1x1xf32>
    %306 = arith.subf %295, %305 : vector<1x1xf32>
    %307 = arith.mulf %284, %284 : vector<2x2x2xf32>
    %cst_109 = arith.constant dense<0.000000e+00> : vector<2x2xf32>
    %308 = vector.multi_reduction <add>, %307, %cst_109 [0] : vector<2x2x2xf32> to vector<2x2xf32>
    %cst_110 = arith.constant dense<0.000000e+00> : vector<2xf32>
    %309 = vector.multi_reduction <add>, %308, %cst_110 [1] : vector<2x2xf32> to vector<2xf32>
    %310 = vector.shape_cast %309 : vector<2xf32> to vector<2x1xf32>
    %cst_111 = arith.constant dense<0.000000e+00> : vector<1xf32>
    %311 = vector.multi_reduction <add>, %310, %cst_111 [0] : vector<2x1xf32> to vector<1xf32>
    %312 = vector.shape_cast %311 : vector<1xf32> to vector<1x1xf32>
    %313 = arith.addf %306, %312 : vector<1x1xf32>
    %cst_112 = arith.constant 0.000000e+00 : f32
    %314 = vector.broadcast %cst_112 : f32 to vector<2x8x2xf32>
    %315 = arith.subf %314, %280 : vector<2x8x2xf32>
    %cst_113 = arith.constant 1.000000e-15 : f32
    %316 = vector.broadcast %cst_113 : f32 to vector<2x8x2xf32>
    %317 = arith.addf %280, %316 : vector<2x8x2xf32>
    %318 = math.log %317 : vector<2x8x2xf32>
    %319 = arith.mulf %315, %318 : vector<2x8x2xf32>
    %cst_114 = arith.constant dense<0.000000e+00> : vector<8x2xf32>
    %320 = vector.multi_reduction <add>, %319, %cst_114 [0] : vector<2x8x2xf32> to vector<8x2xf32>
    %cst_115 = arith.constant dense<0.000000e+00> : vector<8xf32>
    %321 = vector.multi_reduction <add>, %320, %cst_115 [1] : vector<8x2xf32> to vector<8xf32>
    %322 = vector.shape_cast %321 : vector<8xf32> to vector<8x1xf32>
    %cst_116 = arith.constant dense<0.000000e+00> : vector<1xf32>
    %323 = vector.multi_reduction <add>, %322, %cst_116 [0] : vector<8x1xf32> to vector<1xf32>
    %324 = vector.shape_cast %323 : vector<1xf32> to vector<1x1xf32>
    %325 = tpu.iota {dimensions = array<i32: 0>} : vector<8x128xi32>
    %326 = tpu.iota {dimensions = array<i32: 1>} : vector<8x128xi32>
    %c0_i32 = arith.constant 0 : i32
    %327 = vector.broadcast %c0_i32 : i32 to vector<8x128xi32>
    %328 = arith.cmpi eq, %325, %327 : vector<8x128xi32>
    %c0_i32_117 = arith.constant 0 : i32
    %329 = vector.broadcast %c0_i32_117 : i32 to vector<8x128xi32>
    %330 = arith.cmpi eq, %326, %329 : vector<8x128xi32>
    %331 = arith.andi %328, %330 : vector<8x128xi1>
    %c0_i32_118 = arith.constant 0 : i32
    %332 = vector.broadcast %c0_i32_118 : i32 to vector<8x128xi32>
    %333 = arith.cmpi eq, %325, %332 : vector<8x128xi32>
    %c1_i32 = arith.constant 1 : i32
    %334 = vector.broadcast %c1_i32 : i32 to vector<8x128xi32>
    %335 = arith.cmpi eq, %326, %334 : vector<8x128xi32>
    %336 = arith.andi %333, %335 : vector<8x128xi1>
    %cst_119 = arith.constant 0.000000e+00 : f32
    %337 = vector.shape_cast %324 : vector<1x1xf32> to vector<1x1xf32>
    %338 = vector.broadcast %337 : vector<1x1xf32> to vector<8x128xf32>
    %339 = vector.broadcast %cst_119 : f32 to vector<8x128xf32>
    %340 = arith.select %336, %338, %339 : vector<8x128xi1>, vector<8x128xf32>
    %341 = vector.shape_cast %313 : vector<1x1xf32> to vector<1x1xf32>
    %342 = vector.broadcast %341 : vector<1x1xf32> to vector<8x128xf32>
    %343 = arith.select %331, %342, %340 : vector<8x128xi1>, vector<8x128xf32>
    %c0_120 = arith.constant 0 : index
    %c0_121 = arith.constant 0 : index
    %c0_122 = arith.constant 0 : index
    %344 = vector.load %arg4[%c0_120, %c0_121, %c0_122] : memref<2x2x96xf32, #tpu.memory_space<vmem>>, vector<2x2x96xf32>
    tpu.vector_store %arg4[%c0_120, %c0_121, %c0_122], %281 {strides = array<i32>} : memref<2x2x96xf32, #tpu.memory_space<vmem>>, vector<2x2x96xf32>,
    %c0_123 = arith.constant 0 : index
    %c0_124 = arith.constant 0 : index
    %c0_125 = arith.constant 0 : index
    %345 = vector.load %arg5[%c0_123, %c0_124, %c0_125] : memref<2x2x2xf32, #tpu.memory_space<vmem>>, vector<2x2x2xf32>
    tpu.vector_store %arg5[%c0_123, %c0_124, %c0_125], %283 {strides = array<i32>} : memref<2x2x2xf32, #tpu.memory_space<vmem>>, vector<2x2x2xf32>,
    %c0_126 = arith.constant 0 : index
    %c0_127 = arith.constant 0 : index
    %346 = vector.load %arg6[%c0_126, %c0_127] : memref<8x128xf32, #tpu.memory_space<vmem>>, vector<8x128xf32>
    tpu.vector_store %arg6[%c0_126, %c0_127], %343 {strides = array<i32>} : memref<8x128xf32, #tpu.memory_space<vmem>>, vector<8x128xf32>,
    return
  }
  func.func @transform_0(%arg0: i32) -> (i32, i32, i32) {
    %c0_i32 = arith.constant 0 : i32
    %c0_i32_0 = arith.constant 0 : i32
    %c0_i32_1 = arith.constant 0 : i32
    %c0_i32_2 = arith.constant 0 : i32
    return %c0_i32, %c0_i32_0, %c0_i32_1 : i32, i32, i32
  }
  func.func @transform_1(%arg0: i32) -> (i32, i32, i32) {
    %c0_i32 = arith.constant 0 : i32
    %c0_i32_0 = arith.constant 0 : i32
    %c0_i32_1 = arith.constant 0 : i32
    %c0_i32_2 = arith.constant 0 : i32
    return %c0_i32, %c0_i32_0, %c0_i32_1 : i32, i32, i32
  }
  func.func @transform_2(%arg0: i32) -> (i32, i32) {
    %c0_i32 = arith.constant 0 : i32
    %c0_i32_0 = arith.constant 0 : i32
    %c0_i32_1 = arith.constant 0 : i32
    return %c0_i32, %c0_i32_0 : i32, i32
  }
  func.func @transform_3(%arg0: i32) -> (i32, i32, i32) {
    %c0_i32 = arith.constant 0 : i32
    %c0_i32_0 = arith.constant 0 : i32
    %c0_i32_1 = arith.constant 0 : i32
    %c0_i32_2 = arith.constant 0 : i32
    return %c0_i32, %c0_i32_0, %c0_i32_1 : i32, i32, i32
  }
  func.func @transform_4(%arg0: i32) -> (i32, i32, i32) {
    %c0_i32 = arith.constant 0 : i32
    %c0_i32_0 = arith.constant 0 : i32
    %c0_i32_1 = arith.constant 0 : i32
    %c0_i32_2 = arith.constant 0 : i32
    return %c0_i32, %c0_i32_0, %c0_i32_1 : i32, i32, i32
  }
  func.func @transform_5(%arg0: i32) -> (i32, i32) {
    %c0_i32 = arith.constant 0 : i32
    %c0_i32_0 = arith.constant 0 : i32
    %c0_i32_1 = arith.constant 0 : i32
    return %c0_i32, %c0_i32_0 : i32, i32
  }
}

module attributes {stable_mosaic.version = 11 : i64} {
  func.func @kernel(%arg0: i32, %arg1: memref<2x32x6xf32, #tpu.memory_space<vmem>>, %arg2: memref<2x32x32xf32, #tpu.memory_space<vmem>>, %arg3: memref<2x32x1xf32, #tpu.memory_space<vmem>>, %arg4: memref<376x128xf32, #tpu.memory_space<vmem>>, %arg5: memref<2x8x96xf32, #tpu.memory_space<vmem>>, %arg6: memref<2x8x8xf32, #tpu.memory_space<vmem>>, %arg7: memref<8x128xf32, #tpu.memory_space<vmem>>) attributes {dimension_semantics = [#tpu.dimension_semantics<arbitrary>], iteration_bounds = array<i64: 1>, scalar_prefetch = 0 : i64, scratch_operands = 0 : i64, tpu.core_type = #tpu.core_type<tc>, window_params = [{pipeline_mode = #tpu.pipeline_mode<synchronous>, transform_indices = @transform_0, window_bounds = array<i64: 2, 32, 6>}, {pipeline_mode = #tpu.pipeline_mode<synchronous>, transform_indices = @transform_1, window_bounds = array<i64: 2, 32, 32>}, {pipeline_mode = #tpu.pipeline_mode<synchronous>, transform_indices = @transform_2, window_bounds = array<i64: 2, 32, 1>}, {pipeline_mode = #tpu.pipeline_mode<synchronous>, transform_indices = @transform_3, window_bounds = array<i64: 376, 128>}, {pipeline_mode = #tpu.pipeline_mode<synchronous>, transform_indices = @transform_4, window_bounds = array<i64: 2, 8, 96>}, {pipeline_mode = #tpu.pipeline_mode<synchronous>, transform_indices = @transform_5, window_bounds = array<i64: 2, 8, 8>}, {pipeline_mode = #tpu.pipeline_mode<synchronous>, transform_indices = @transform_6, window_bounds = array<i64: 8, 128>}]} {
    %c0 = arith.constant 0 : index
    %c0_0 = arith.constant 0 : index
    %c0_1 = arith.constant 0 : index
    %0 = vector.load %arg3[%c0, %c0_0, %c0_1] : memref<2x32x1xf32, #tpu.memory_space<vmem>>, vector<2x32x1xf32>
    %c0_2 = arith.constant 0 : index
    %c0_3 = arith.constant 0 : index
    %c0_4 = arith.constant 0 : index
    %1 = vector.load %arg1[%c0_2, %c0_3, %c0_4] : memref<2x32x6xf32, #tpu.memory_space<vmem>>, vector<2x32x6xf32>
    %c0_5 = arith.constant 0 : index
    %c0_6 = arith.constant 0 : index
    %c0_7 = arith.constant 0 : index
    %2 = vector.load %arg2[%c0_5, %c0_6, %c0_7] : memref<2x32x32xf32, #tpu.memory_space<vmem>>, vector<2x32x32xf32>
    %cst = arith.constant dense<0.000000e+00> : vector<2x32xf32>
    %3 = vector.multi_reduction <add>, %2, %cst [2] : vector<2x32x32xf32> to vector<2x32xf32>
    %4 = vector.shape_cast %3 : vector<2x32xf32> to vector<2x32x1xf32>
    %cst_8 = arith.constant 1.000000e+00 : f32
    %5 = vector.broadcast %cst_8 : f32 to vector<2x32x1xf32>
    %6 = arith.maximumf %4, %5 : vector<2x32x1xf32>
    %cst_9 = arith.constant 1.000000e+00 : f32
    %7 = vector.broadcast %cst_9 : f32 to vector<2x32x1xf32>
    %8 = arith.divf %7, %6 : vector<2x32x1xf32>
    %c0_10 = arith.constant 0 : index
    %c0_11 = arith.constant 0 : index
    %9 = vector.load %arg4[%c0_10, %c0_11] : memref<376x128xf32, #tpu.memory_space<vmem>>, vector<12x32xf32>
    %c12 = arith.constant 12 : index
    %c0_12 = arith.constant 0 : index
    %10 = vector.load %arg4[%c12, %c0_12] : memref<376x128xf32, #tpu.memory_space<vmem>>, vector<1x32xf32>
    %c13 = arith.constant 13 : index
    %c0_13 = arith.constant 0 : index
    %11 = vector.load %arg4[%c13, %c0_13] : memref<376x128xf32, #tpu.memory_space<vmem>>, vector<1x32xf32>
    %c14 = arith.constant 14 : index
    %c0_14 = arith.constant 0 : index
    %12 = vector.load %arg4[%c14, %c0_14] : memref<376x128xf32, #tpu.memory_space<vmem>>, vector<1x32xf32>
    %cst_15 = arith.constant dense<0.000000e+00> : vector<2x32x6xf32>
    %13 = tpu.matmul %2, %1, %cst_15 {dimension_numbers = #tpu.dot_dimension_numbers<[2], [1], [1], [2], [0, 0, 0, 1, 1, 2], [0], [0]>} : vector<2x32x32xf32>, vector<2x32x6xf32>, vector<2x32x6xf32> -> vector<2x32x6xf32>
    %14 = vector.broadcast %8 : vector<2x32x1xf32> to vector<2x32x6xf32>
    %15 = arith.mulf %13, %14 : vector<2x32x6xf32>
    %16 = tpu.concatenate %15, %1 in 2 : vector<2x32x6xf32>, vector<2x32x6xf32> -> vector<2x32x12xf32>
    %17 = vector.shape_cast %16 : vector<2x32x12xf32> to vector<64x12xf32>
    %cst_16 = arith.constant dense<0.000000e+00> : vector<64x32xf32>
    %18 = tpu.matmul %17, %9, %cst_16 {dimension_numbers = #tpu.dot_dimension_numbers<[1], [0], [0], [1], [0, 0, 1, 1], [], []>} : vector<64x12xf32>, vector<12x32xf32>, vector<64x32xf32> -> vector<64x32xf32>
    %19 = vector.shape_cast %18 : vector<64x32xf32> to vector<2x32x32xf32>
    %20 = vector.shape_cast %10 : vector<1x32xf32> to vector<1x1x32xf32>
    %21 = vector.broadcast %20 : vector<1x1x32xf32> to vector<2x32x32xf32>
    %22 = arith.addf %19, %21 : vector<2x32x32xf32>
    %23 = vector.broadcast %0 : vector<2x32x1xf32> to vector<2x32x32xf32>
    %24 = arith.mulf %22, %23 : vector<2x32x32xf32>
    %cst_17 = arith.constant 0.000000e+00 : f32
    %25 = vector.broadcast %cst_17 : f32 to vector<2x32x32xf32>
    %26 = arith.maximumf %24, %25 : vector<2x32x32xf32>
    %cst_18 = arith.constant dense<0.000000e+00> : vector<2x32xf32>
    %27 = vector.multi_reduction <add>, %26, %cst_18 [1] : vector<2x32x32xf32> to vector<2x32xf32>
    %28 = vector.shape_cast %27 : vector<2x32xf32> to vector<2x1x32xf32>
    %cst_19 = arith.constant dense<0.000000e+00> : vector<1x32xf32>
    %29 = vector.multi_reduction <add>, %28, %cst_19 [0] : vector<2x1x32xf32> to vector<1x32xf32>
    %30 = vector.shape_cast %29 : vector<1x32xf32> to vector<1x1x32xf32>
    %cst_20 = arith.constant 6.400000e+01 : f32
    %31 = vector.broadcast %cst_20 : f32 to vector<1x1x32xf32>
    %32 = arith.divf %30, %31 : vector<1x1x32xf32>
    %33 = vector.broadcast %32 : vector<1x1x32xf32> to vector<2x32x32xf32>
    %34 = arith.subf %26, %33 : vector<2x32x32xf32>
    %35 = arith.mulf %34, %34 : vector<2x32x32xf32>
    %cst_21 = arith.constant dense<0.000000e+00> : vector<2x32xf32>
    %36 = vector.multi_reduction <add>, %35, %cst_21 [1] : vector<2x32x32xf32> to vector<2x32xf32>
    %37 = vector.shape_cast %36 : vector<2x32xf32> to vector<2x1x32xf32>
    %cst_22 = arith.constant dense<0.000000e+00> : vector<1x32xf32>
    %38 = vector.multi_reduction <add>, %37, %cst_22 [0] : vector<2x1x32xf32> to vector<1x32xf32>
    %39 = vector.shape_cast %38 : vector<1x32xf32> to vector<1x1x32xf32>
    %cst_23 = arith.constant 6.400000e+01 : f32
    %40 = vector.broadcast %cst_23 : f32 to vector<1x1x32xf32>
    %41 = arith.divf %39, %40 : vector<1x1x32xf32>
    %cst_24 = arith.constant 9.99999974E-6 : f32
    %42 = vector.broadcast %cst_24 : f32 to vector<1x1x32xf32>
    %43 = arith.addf %41, %42 : vector<1x1x32xf32>
    %44 = math.rsqrt %43 : vector<1x1x32xf32>
    %45 = vector.broadcast %44 : vector<1x1x32xf32> to vector<2x32x32xf32>
    %46 = arith.mulf %34, %45 : vector<2x32x32xf32>
    %47 = vector.shape_cast %11 : vector<1x32xf32> to vector<1x1x32xf32>
    %48 = vector.broadcast %47 : vector<1x1x32xf32> to vector<2x32x32xf32>
    %49 = arith.mulf %46, %48 : vector<2x32x32xf32>
    %50 = vector.shape_cast %12 : vector<1x32xf32> to vector<1x1x32xf32>
    %51 = vector.broadcast %50 : vector<1x1x32xf32> to vector<2x32x32xf32>
    %52 = arith.addf %49, %51 : vector<2x32x32xf32>
    %c15 = arith.constant 15 : index
    %c0_25 = arith.constant 0 : index
    %53 = vector.load %arg4[%c15, %c0_25] : memref<376x128xf32, #tpu.memory_space<vmem>>, vector<64x32xf32>
    %c79 = arith.constant 79 : index
    %c0_26 = arith.constant 0 : index
    %54 = vector.load %arg4[%c79, %c0_26] : memref<376x128xf32, #tpu.memory_space<vmem>>, vector<1x32xf32>
    %c80 = arith.constant 80 : index
    %c0_27 = arith.constant 0 : index
    %55 = vector.load %arg4[%c80, %c0_27] : memref<376x128xf32, #tpu.memory_space<vmem>>, vector<1x32xf32>
    %c81 = arith.constant 81 : index
    %c0_28 = arith.constant 0 : index
    %56 = vector.load %arg4[%c81, %c0_28] : memref<376x128xf32, #tpu.memory_space<vmem>>, vector<1x32xf32>
    %cst_29 = arith.constant dense<0.000000e+00> : vector<2x32x32xf32>
    %57 = tpu.matmul %2, %52, %cst_29 {dimension_numbers = #tpu.dot_dimension_numbers<[2], [1], [1], [2], [0, 0, 0, 1, 1, 2], [0], [0]>} : vector<2x32x32xf32>, vector<2x32x32xf32>, vector<2x32x32xf32> -> vector<2x32x32xf32>
    %58 = vector.broadcast %8 : vector<2x32x1xf32> to vector<2x32x32xf32>
    %59 = arith.mulf %57, %58 : vector<2x32x32xf32>
    %60 = tpu.concatenate %59, %52 in 2 : vector<2x32x32xf32>, vector<2x32x32xf32> -> vector<2x32x64xf32>
    %61 = vector.shape_cast %60 : vector<2x32x64xf32> to vector<64x64xf32>
    %cst_30 = arith.constant dense<0.000000e+00> : vector<64x32xf32>
    %62 = tpu.matmul %61, %53, %cst_30 {dimension_numbers = #tpu.dot_dimension_numbers<[1], [0], [0], [1], [0, 0, 1, 1], [], []>} : vector<64x64xf32>, vector<64x32xf32>, vector<64x32xf32> -> vector<64x32xf32>
    %63 = vector.shape_cast %62 : vector<64x32xf32> to vector<2x32x32xf32>
    %64 = vector.shape_cast %54 : vector<1x32xf32> to vector<1x1x32xf32>
    %65 = vector.broadcast %64 : vector<1x1x32xf32> to vector<2x32x32xf32>
    %66 = arith.addf %63, %65 : vector<2x32x32xf32>
    %67 = vector.broadcast %0 : vector<2x32x1xf32> to vector<2x32x32xf32>
    %68 = arith.mulf %66, %67 : vector<2x32x32xf32>
    %cst_31 = arith.constant 0.000000e+00 : f32
    %69 = vector.broadcast %cst_31 : f32 to vector<2x32x32xf32>
    %70 = arith.maximumf %68, %69 : vector<2x32x32xf32>
    %cst_32 = arith.constant dense<0.000000e+00> : vector<2x32xf32>
    %71 = vector.multi_reduction <add>, %70, %cst_32 [1] : vector<2x32x32xf32> to vector<2x32xf32>
    %72 = vector.shape_cast %71 : vector<2x32xf32> to vector<2x1x32xf32>
    %cst_33 = arith.constant dense<0.000000e+00> : vector<1x32xf32>
    %73 = vector.multi_reduction <add>, %72, %cst_33 [0] : vector<2x1x32xf32> to vector<1x32xf32>
    %74 = vector.shape_cast %73 : vector<1x32xf32> to vector<1x1x32xf32>
    %cst_34 = arith.constant 6.400000e+01 : f32
    %75 = vector.broadcast %cst_34 : f32 to vector<1x1x32xf32>
    %76 = arith.divf %74, %75 : vector<1x1x32xf32>
    %77 = vector.broadcast %76 : vector<1x1x32xf32> to vector<2x32x32xf32>
    %78 = arith.subf %70, %77 : vector<2x32x32xf32>
    %79 = arith.mulf %78, %78 : vector<2x32x32xf32>
    %cst_35 = arith.constant dense<0.000000e+00> : vector<2x32xf32>
    %80 = vector.multi_reduction <add>, %79, %cst_35 [1] : vector<2x32x32xf32> to vector<2x32xf32>
    %81 = vector.shape_cast %80 : vector<2x32xf32> to vector<2x1x32xf32>
    %cst_36 = arith.constant dense<0.000000e+00> : vector<1x32xf32>
    %82 = vector.multi_reduction <add>, %81, %cst_36 [0] : vector<2x1x32xf32> to vector<1x32xf32>
    %83 = vector.shape_cast %82 : vector<1x32xf32> to vector<1x1x32xf32>
    %cst_37 = arith.constant 6.400000e+01 : f32
    %84 = vector.broadcast %cst_37 : f32 to vector<1x1x32xf32>
    %85 = arith.divf %83, %84 : vector<1x1x32xf32>
    %cst_38 = arith.constant 9.99999974E-6 : f32
    %86 = vector.broadcast %cst_38 : f32 to vector<1x1x32xf32>
    %87 = arith.addf %85, %86 : vector<1x1x32xf32>
    %88 = math.rsqrt %87 : vector<1x1x32xf32>
    %89 = vector.broadcast %88 : vector<1x1x32xf32> to vector<2x32x32xf32>
    %90 = arith.mulf %78, %89 : vector<2x32x32xf32>
    %91 = vector.shape_cast %55 : vector<1x32xf32> to vector<1x1x32xf32>
    %92 = vector.broadcast %91 : vector<1x1x32xf32> to vector<2x32x32xf32>
    %93 = arith.mulf %90, %92 : vector<2x32x32xf32>
    %94 = vector.shape_cast %56 : vector<1x32xf32> to vector<1x1x32xf32>
    %95 = vector.broadcast %94 : vector<1x1x32xf32> to vector<2x32x32xf32>
    %96 = arith.addf %93, %95 : vector<2x32x32xf32>
    %c82 = arith.constant 82 : index
    %c0_39 = arith.constant 0 : index
    %97 = vector.load %arg4[%c82, %c0_39] : memref<376x128xf32, #tpu.memory_space<vmem>>, vector<64x8xf32>
    %c146 = arith.constant 146 : index
    %c0_40 = arith.constant 0 : index
    %98 = vector.load %arg4[%c146, %c0_40] : memref<376x128xf32, #tpu.memory_space<vmem>>, vector<1x8xf32>
    %c147 = arith.constant 147 : index
    %c0_41 = arith.constant 0 : index
    %99 = vector.load %arg4[%c147, %c0_41] : memref<376x128xf32, #tpu.memory_space<vmem>>, vector<1x8xf32>
    %c148 = arith.constant 148 : index
    %c0_42 = arith.constant 0 : index
    %100 = vector.load %arg4[%c148, %c0_42] : memref<376x128xf32, #tpu.memory_space<vmem>>, vector<1x8xf32>
    %cst_43 = arith.constant dense<0.000000e+00> : vector<2x32x32xf32>
    %101 = tpu.matmul %2, %96, %cst_43 {dimension_numbers = #tpu.dot_dimension_numbers<[2], [1], [1], [2], [0, 0, 0, 1, 1, 2], [0], [0]>} : vector<2x32x32xf32>, vector<2x32x32xf32>, vector<2x32x32xf32> -> vector<2x32x32xf32>
    %102 = vector.broadcast %8 : vector<2x32x1xf32> to vector<2x32x32xf32>
    %103 = arith.mulf %101, %102 : vector<2x32x32xf32>
    %104 = tpu.concatenate %103, %96 in 2 : vector<2x32x32xf32>, vector<2x32x32xf32> -> vector<2x32x64xf32>
    %105 = vector.shape_cast %104 : vector<2x32x64xf32> to vector<64x64xf32>
    %cst_44 = arith.constant dense<0.000000e+00> : vector<64x8xf32>
    %106 = tpu.matmul %105, %97, %cst_44 {dimension_numbers = #tpu.dot_dimension_numbers<[1], [0], [0], [1], [0, 0, 1, 1], [], []>} : vector<64x64xf32>, vector<64x8xf32>, vector<64x8xf32> -> vector<64x8xf32>
    %107 = vector.shape_cast %106 : vector<64x8xf32> to vector<2x32x8xf32>
    %108 = vector.shape_cast %98 : vector<1x8xf32> to vector<1x1x8xf32>
    %109 = vector.broadcast %108 : vector<1x1x8xf32> to vector<2x32x8xf32>
    %110 = arith.addf %107, %109 : vector<2x32x8xf32>
    %111 = vector.broadcast %0 : vector<2x32x1xf32> to vector<2x32x8xf32>
    %112 = arith.mulf %110, %111 : vector<2x32x8xf32>
    %cst_45 = arith.constant 0.000000e+00 : f32
    %113 = vector.broadcast %cst_45 : f32 to vector<2x32x8xf32>
    %114 = arith.maximumf %112, %113 : vector<2x32x8xf32>
    %cst_46 = arith.constant dense<0.000000e+00> : vector<2x8xf32>
    %115 = vector.multi_reduction <add>, %114, %cst_46 [1] : vector<2x32x8xf32> to vector<2x8xf32>
    %116 = vector.shape_cast %115 : vector<2x8xf32> to vector<2x1x8xf32>
    %cst_47 = arith.constant dense<0.000000e+00> : vector<1x8xf32>
    %117 = vector.multi_reduction <add>, %116, %cst_47 [0] : vector<2x1x8xf32> to vector<1x8xf32>
    %118 = vector.shape_cast %117 : vector<1x8xf32> to vector<1x1x8xf32>
    %cst_48 = arith.constant 6.400000e+01 : f32
    %119 = vector.broadcast %cst_48 : f32 to vector<1x1x8xf32>
    %120 = arith.divf %118, %119 : vector<1x1x8xf32>
    %121 = vector.broadcast %120 : vector<1x1x8xf32> to vector<2x32x8xf32>
    %122 = arith.subf %114, %121 : vector<2x32x8xf32>
    %123 = arith.mulf %122, %122 : vector<2x32x8xf32>
    %cst_49 = arith.constant dense<0.000000e+00> : vector<2x8xf32>
    %124 = vector.multi_reduction <add>, %123, %cst_49 [1] : vector<2x32x8xf32> to vector<2x8xf32>
    %125 = vector.shape_cast %124 : vector<2x8xf32> to vector<2x1x8xf32>
    %cst_50 = arith.constant dense<0.000000e+00> : vector<1x8xf32>
    %126 = vector.multi_reduction <add>, %125, %cst_50 [0] : vector<2x1x8xf32> to vector<1x8xf32>
    %127 = vector.shape_cast %126 : vector<1x8xf32> to vector<1x1x8xf32>
    %cst_51 = arith.constant 6.400000e+01 : f32
    %128 = vector.broadcast %cst_51 : f32 to vector<1x1x8xf32>
    %129 = arith.divf %127, %128 : vector<1x1x8xf32>
    %cst_52 = arith.constant 9.99999974E-6 : f32
    %130 = vector.broadcast %cst_52 : f32 to vector<1x1x8xf32>
    %131 = arith.addf %129, %130 : vector<1x1x8xf32>
    %132 = math.rsqrt %131 : vector<1x1x8xf32>
    %133 = vector.broadcast %132 : vector<1x1x8xf32> to vector<2x32x8xf32>
    %134 = arith.mulf %122, %133 : vector<2x32x8xf32>
    %135 = vector.shape_cast %99 : vector<1x8xf32> to vector<1x1x8xf32>
    %136 = vector.broadcast %135 : vector<1x1x8xf32> to vector<2x32x8xf32>
    %137 = arith.mulf %134, %136 : vector<2x32x8xf32>
    %138 = vector.shape_cast %100 : vector<1x8xf32> to vector<1x1x8xf32>
    %139 = vector.broadcast %138 : vector<1x1x8xf32> to vector<2x32x8xf32>
    %140 = arith.addf %137, %139 : vector<2x32x8xf32>
    %141 = tpu.concatenate %52, %96, %140 in 2 : vector<2x32x32xf32>, vector<2x32x32xf32>, vector<2x32x8xf32> -> vector<2x32x72xf32>
    %c149 = arith.constant 149 : index
    %c0_53 = arith.constant 0 : index
    %142 = vector.load %arg4[%c149, %c0_53] : memref<376x128xf32, #tpu.memory_space<vmem>>, vector<72x8xf32>
    %c221 = arith.constant 221 : index
    %c0_54 = arith.constant 0 : index
    %143 = vector.load %arg4[%c221, %c0_54] : memref<376x128xf32, #tpu.memory_space<vmem>>, vector<1x8xf32>
    %144 = vector.shape_cast %141 : vector<2x32x72xf32> to vector<64x72xf32>
    %cst_55 = arith.constant dense<0.000000e+00> : vector<64x8xf32>
    %145 = tpu.matmul %144, %142, %cst_55 {dimension_numbers = #tpu.dot_dimension_numbers<[1], [0], [0], [1], [0, 0, 1, 1], [], []>} : vector<64x72xf32>, vector<72x8xf32>, vector<64x8xf32> -> vector<64x8xf32>
    %146 = vector.shape_cast %145 : vector<64x8xf32> to vector<2x32x8xf32>
    %147 = vector.shape_cast %143 : vector<1x8xf32> to vector<1x1x8xf32>
    %148 = vector.broadcast %147 : vector<1x1x8xf32> to vector<2x32x8xf32>
    %149 = arith.addf %146, %148 : vector<2x32x8xf32>
    %cst_56 = arith.constant 0.000000e+00 : f32
    %150 = vector.broadcast %cst_56 : f32 to vector<2x32x8xf32>
    %151 = arith.maximumf %149, %150 : vector<2x32x8xf32>
    %c222 = arith.constant 222 : index
    %c0_57 = arith.constant 0 : index
    %152 = vector.load %arg4[%c222, %c0_57] : memref<376x128xf32, #tpu.memory_space<vmem>>, vector<12x32xf32>
    %c234 = arith.constant 234 : index
    %c0_58 = arith.constant 0 : index
    %153 = vector.load %arg4[%c234, %c0_58] : memref<376x128xf32, #tpu.memory_space<vmem>>, vector<1x32xf32>
    %c235 = arith.constant 235 : index
    %c0_59 = arith.constant 0 : index
    %154 = vector.load %arg4[%c235, %c0_59] : memref<376x128xf32, #tpu.memory_space<vmem>>, vector<1x32xf32>
    %c236 = arith.constant 236 : index
    %c0_60 = arith.constant 0 : index
    %155 = vector.load %arg4[%c236, %c0_60] : memref<376x128xf32, #tpu.memory_space<vmem>>, vector<1x32xf32>
    %cst_61 = arith.constant dense<0.000000e+00> : vector<2x32x6xf32>
    %156 = tpu.matmul %2, %1, %cst_61 {dimension_numbers = #tpu.dot_dimension_numbers<[2], [1], [1], [2], [0, 0, 0, 1, 1, 2], [0], [0]>} : vector<2x32x32xf32>, vector<2x32x6xf32>, vector<2x32x6xf32> -> vector<2x32x6xf32>
    %157 = vector.broadcast %8 : vector<2x32x1xf32> to vector<2x32x6xf32>
    %158 = arith.mulf %156, %157 : vector<2x32x6xf32>
    %159 = tpu.concatenate %158, %1 in 2 : vector<2x32x6xf32>, vector<2x32x6xf32> -> vector<2x32x12xf32>
    %160 = vector.shape_cast %159 : vector<2x32x12xf32> to vector<64x12xf32>
    %cst_62 = arith.constant dense<0.000000e+00> : vector<64x32xf32>
    %161 = tpu.matmul %160, %152, %cst_62 {dimension_numbers = #tpu.dot_dimension_numbers<[1], [0], [0], [1], [0, 0, 1, 1], [], []>} : vector<64x12xf32>, vector<12x32xf32>, vector<64x32xf32> -> vector<64x32xf32>
    %162 = vector.shape_cast %161 : vector<64x32xf32> to vector<2x32x32xf32>
    %163 = vector.shape_cast %153 : vector<1x32xf32> to vector<1x1x32xf32>
    %164 = vector.broadcast %163 : vector<1x1x32xf32> to vector<2x32x32xf32>
    %165 = arith.addf %162, %164 : vector<2x32x32xf32>
    %166 = vector.broadcast %0 : vector<2x32x1xf32> to vector<2x32x32xf32>
    %167 = arith.mulf %165, %166 : vector<2x32x32xf32>
    %cst_63 = arith.constant 0.000000e+00 : f32
    %168 = vector.broadcast %cst_63 : f32 to vector<2x32x32xf32>
    %169 = arith.maximumf %167, %168 : vector<2x32x32xf32>
    %cst_64 = arith.constant dense<0.000000e+00> : vector<2x32xf32>
    %170 = vector.multi_reduction <add>, %169, %cst_64 [1] : vector<2x32x32xf32> to vector<2x32xf32>
    %171 = vector.shape_cast %170 : vector<2x32xf32> to vector<2x1x32xf32>
    %cst_65 = arith.constant dense<0.000000e+00> : vector<1x32xf32>
    %172 = vector.multi_reduction <add>, %171, %cst_65 [0] : vector<2x1x32xf32> to vector<1x32xf32>
    %173 = vector.shape_cast %172 : vector<1x32xf32> to vector<1x1x32xf32>
    %cst_66 = arith.constant 6.400000e+01 : f32
    %174 = vector.broadcast %cst_66 : f32 to vector<1x1x32xf32>
    %175 = arith.divf %173, %174 : vector<1x1x32xf32>
    %176 = vector.broadcast %175 : vector<1x1x32xf32> to vector<2x32x32xf32>
    %177 = arith.subf %169, %176 : vector<2x32x32xf32>
    %178 = arith.mulf %177, %177 : vector<2x32x32xf32>
    %cst_67 = arith.constant dense<0.000000e+00> : vector<2x32xf32>
    %179 = vector.multi_reduction <add>, %178, %cst_67 [1] : vector<2x32x32xf32> to vector<2x32xf32>
    %180 = vector.shape_cast %179 : vector<2x32xf32> to vector<2x1x32xf32>
    %cst_68 = arith.constant dense<0.000000e+00> : vector<1x32xf32>
    %181 = vector.multi_reduction <add>, %180, %cst_68 [0] : vector<2x1x32xf32> to vector<1x32xf32>
    %182 = vector.shape_cast %181 : vector<1x32xf32> to vector<1x1x32xf32>
    %cst_69 = arith.constant 6.400000e+01 : f32
    %183 = vector.broadcast %cst_69 : f32 to vector<1x1x32xf32>
    %184 = arith.divf %182, %183 : vector<1x1x32xf32>
    %cst_70 = arith.constant 9.99999974E-6 : f32
    %185 = vector.broadcast %cst_70 : f32 to vector<1x1x32xf32>
    %186 = arith.addf %184, %185 : vector<1x1x32xf32>
    %187 = math.rsqrt %186 : vector<1x1x32xf32>
    %188 = vector.broadcast %187 : vector<1x1x32xf32> to vector<2x32x32xf32>
    %189 = arith.mulf %177, %188 : vector<2x32x32xf32>
    %190 = vector.shape_cast %154 : vector<1x32xf32> to vector<1x1x32xf32>
    %191 = vector.broadcast %190 : vector<1x1x32xf32> to vector<2x32x32xf32>
    %192 = arith.mulf %189, %191 : vector<2x32x32xf32>
    %193 = vector.shape_cast %155 : vector<1x32xf32> to vector<1x1x32xf32>
    %194 = vector.broadcast %193 : vector<1x1x32xf32> to vector<2x32x32xf32>
    %195 = arith.addf %192, %194 : vector<2x32x32xf32>
    %c237 = arith.constant 237 : index
    %c0_71 = arith.constant 0 : index
    %196 = vector.load %arg4[%c237, %c0_71] : memref<376x128xf32, #tpu.memory_space<vmem>>, vector<64x32xf32>
    %c301 = arith.constant 301 : index
    %c0_72 = arith.constant 0 : index
    %197 = vector.load %arg4[%c301, %c0_72] : memref<376x128xf32, #tpu.memory_space<vmem>>, vector<1x32xf32>
    %c302 = arith.constant 302 : index
    %c0_73 = arith.constant 0 : index
    %198 = vector.load %arg4[%c302, %c0_73] : memref<376x128xf32, #tpu.memory_space<vmem>>, vector<1x32xf32>
    %c303 = arith.constant 303 : index
    %c0_74 = arith.constant 0 : index
    %199 = vector.load %arg4[%c303, %c0_74] : memref<376x128xf32, #tpu.memory_space<vmem>>, vector<1x32xf32>
    %cst_75 = arith.constant dense<0.000000e+00> : vector<2x32x32xf32>
    %200 = tpu.matmul %2, %195, %cst_75 {dimension_numbers = #tpu.dot_dimension_numbers<[2], [1], [1], [2], [0, 0, 0, 1, 1, 2], [0], [0]>} : vector<2x32x32xf32>, vector<2x32x32xf32>, vector<2x32x32xf32> -> vector<2x32x32xf32>
    %201 = vector.broadcast %8 : vector<2x32x1xf32> to vector<2x32x32xf32>
    %202 = arith.mulf %200, %201 : vector<2x32x32xf32>
    %203 = tpu.concatenate %202, %195 in 2 : vector<2x32x32xf32>, vector<2x32x32xf32> -> vector<2x32x64xf32>
    %204 = vector.shape_cast %203 : vector<2x32x64xf32> to vector<64x64xf32>
    %cst_76 = arith.constant dense<0.000000e+00> : vector<64x32xf32>
    %205 = tpu.matmul %204, %196, %cst_76 {dimension_numbers = #tpu.dot_dimension_numbers<[1], [0], [0], [1], [0, 0, 1, 1], [], []>} : vector<64x64xf32>, vector<64x32xf32>, vector<64x32xf32> -> vector<64x32xf32>
    %206 = vector.shape_cast %205 : vector<64x32xf32> to vector<2x32x32xf32>
    %207 = vector.shape_cast %197 : vector<1x32xf32> to vector<1x1x32xf32>
    %208 = vector.broadcast %207 : vector<1x1x32xf32> to vector<2x32x32xf32>
    %209 = arith.addf %206, %208 : vector<2x32x32xf32>
    %210 = vector.broadcast %0 : vector<2x32x1xf32> to vector<2x32x32xf32>
    %211 = arith.mulf %209, %210 : vector<2x32x32xf32>
    %cst_77 = arith.constant 0.000000e+00 : f32
    %212 = vector.broadcast %cst_77 : f32 to vector<2x32x32xf32>
    %213 = arith.maximumf %211, %212 : vector<2x32x32xf32>
    %cst_78 = arith.constant dense<0.000000e+00> : vector<2x32xf32>
    %214 = vector.multi_reduction <add>, %213, %cst_78 [1] : vector<2x32x32xf32> to vector<2x32xf32>
    %215 = vector.shape_cast %214 : vector<2x32xf32> to vector<2x1x32xf32>
    %cst_79 = arith.constant dense<0.000000e+00> : vector<1x32xf32>
    %216 = vector.multi_reduction <add>, %215, %cst_79 [0] : vector<2x1x32xf32> to vector<1x32xf32>
    %217 = vector.shape_cast %216 : vector<1x32xf32> to vector<1x1x32xf32>
    %cst_80 = arith.constant 6.400000e+01 : f32
    %218 = vector.broadcast %cst_80 : f32 to vector<1x1x32xf32>
    %219 = arith.divf %217, %218 : vector<1x1x32xf32>
    %220 = vector.broadcast %219 : vector<1x1x32xf32> to vector<2x32x32xf32>
    %221 = arith.subf %213, %220 : vector<2x32x32xf32>
    %222 = arith.mulf %221, %221 : vector<2x32x32xf32>
    %cst_81 = arith.constant dense<0.000000e+00> : vector<2x32xf32>
    %223 = vector.multi_reduction <add>, %222, %cst_81 [1] : vector<2x32x32xf32> to vector<2x32xf32>
    %224 = vector.shape_cast %223 : vector<2x32xf32> to vector<2x1x32xf32>
    %cst_82 = arith.constant dense<0.000000e+00> : vector<1x32xf32>
    %225 = vector.multi_reduction <add>, %224, %cst_82 [0] : vector<2x1x32xf32> to vector<1x32xf32>
    %226 = vector.shape_cast %225 : vector<1x32xf32> to vector<1x1x32xf32>
    %cst_83 = arith.constant 6.400000e+01 : f32
    %227 = vector.broadcast %cst_83 : f32 to vector<1x1x32xf32>
    %228 = arith.divf %226, %227 : vector<1x1x32xf32>
    %cst_84 = arith.constant 9.99999974E-6 : f32
    %229 = vector.broadcast %cst_84 : f32 to vector<1x1x32xf32>
    %230 = arith.addf %228, %229 : vector<1x1x32xf32>
    %231 = math.rsqrt %230 : vector<1x1x32xf32>
    %232 = vector.broadcast %231 : vector<1x1x32xf32> to vector<2x32x32xf32>
    %233 = arith.mulf %221, %232 : vector<2x32x32xf32>
    %234 = vector.shape_cast %198 : vector<1x32xf32> to vector<1x1x32xf32>
    %235 = vector.broadcast %234 : vector<1x1x32xf32> to vector<2x32x32xf32>
    %236 = arith.mulf %233, %235 : vector<2x32x32xf32>
    %237 = vector.shape_cast %199 : vector<1x32xf32> to vector<1x1x32xf32>
    %238 = vector.broadcast %237 : vector<1x1x32xf32> to vector<2x32x32xf32>
    %239 = arith.addf %236, %238 : vector<2x32x32xf32>
    %c304 = arith.constant 304 : index
    %c0_85 = arith.constant 0 : index
    %240 = vector.load %arg4[%c304, %c0_85] : memref<376x128xf32, #tpu.memory_space<vmem>>, vector<64x32xf32>
    %c368 = arith.constant 368 : index
    %c0_86 = arith.constant 0 : index
    %241 = vector.load %arg4[%c368, %c0_86] : memref<376x128xf32, #tpu.memory_space<vmem>>, vector<1x32xf32>
    %c369 = arith.constant 369 : index
    %c0_87 = arith.constant 0 : index
    %242 = vector.load %arg4[%c369, %c0_87] : memref<376x128xf32, #tpu.memory_space<vmem>>, vector<1x32xf32>
    %c370 = arith.constant 370 : index
    %c0_88 = arith.constant 0 : index
    %243 = vector.load %arg4[%c370, %c0_88] : memref<376x128xf32, #tpu.memory_space<vmem>>, vector<1x32xf32>
    %cst_89 = arith.constant dense<0.000000e+00> : vector<2x32x32xf32>
    %244 = tpu.matmul %2, %239, %cst_89 {dimension_numbers = #tpu.dot_dimension_numbers<[2], [1], [1], [2], [0, 0, 0, 1, 1, 2], [0], [0]>} : vector<2x32x32xf32>, vector<2x32x32xf32>, vector<2x32x32xf32> -> vector<2x32x32xf32>
    %245 = vector.broadcast %8 : vector<2x32x1xf32> to vector<2x32x32xf32>
    %246 = arith.mulf %244, %245 : vector<2x32x32xf32>
    %247 = tpu.concatenate %246, %239 in 2 : vector<2x32x32xf32>, vector<2x32x32xf32> -> vector<2x32x64xf32>
    %248 = vector.shape_cast %247 : vector<2x32x64xf32> to vector<64x64xf32>
    %cst_90 = arith.constant dense<0.000000e+00> : vector<64x32xf32>
    %249 = tpu.matmul %248, %240, %cst_90 {dimension_numbers = #tpu.dot_dimension_numbers<[1], [0], [0], [1], [0, 0, 1, 1], [], []>} : vector<64x64xf32>, vector<64x32xf32>, vector<64x32xf32> -> vector<64x32xf32>
    %250 = vector.shape_cast %249 : vector<64x32xf32> to vector<2x32x32xf32>
    %251 = vector.shape_cast %241 : vector<1x32xf32> to vector<1x1x32xf32>
    %252 = vector.broadcast %251 : vector<1x1x32xf32> to vector<2x32x32xf32>
    %253 = arith.addf %250, %252 : vector<2x32x32xf32>
    %254 = vector.broadcast %0 : vector<2x32x1xf32> to vector<2x32x32xf32>
    %255 = arith.mulf %253, %254 : vector<2x32x32xf32>
    %cst_91 = arith.constant 0.000000e+00 : f32
    %256 = vector.broadcast %cst_91 : f32 to vector<2x32x32xf32>
    %257 = arith.maximumf %255, %256 : vector<2x32x32xf32>
    %cst_92 = arith.constant dense<0.000000e+00> : vector<2x32xf32>
    %258 = vector.multi_reduction <add>, %257, %cst_92 [1] : vector<2x32x32xf32> to vector<2x32xf32>
    %259 = vector.shape_cast %258 : vector<2x32xf32> to vector<2x1x32xf32>
    %cst_93 = arith.constant dense<0.000000e+00> : vector<1x32xf32>
    %260 = vector.multi_reduction <add>, %259, %cst_93 [0] : vector<2x1x32xf32> to vector<1x32xf32>
    %261 = vector.shape_cast %260 : vector<1x32xf32> to vector<1x1x32xf32>
    %cst_94 = arith.constant 6.400000e+01 : f32
    %262 = vector.broadcast %cst_94 : f32 to vector<1x1x32xf32>
    %263 = arith.divf %261, %262 : vector<1x1x32xf32>
    %264 = vector.broadcast %263 : vector<1x1x32xf32> to vector<2x32x32xf32>
    %265 = arith.subf %257, %264 : vector<2x32x32xf32>
    %266 = arith.mulf %265, %265 : vector<2x32x32xf32>
    %cst_95 = arith.constant dense<0.000000e+00> : vector<2x32xf32>
    %267 = vector.multi_reduction <add>, %266, %cst_95 [1] : vector<2x32x32xf32> to vector<2x32xf32>
    %268 = vector.shape_cast %267 : vector<2x32xf32> to vector<2x1x32xf32>
    %cst_96 = arith.constant dense<0.000000e+00> : vector<1x32xf32>
    %269 = vector.multi_reduction <add>, %268, %cst_96 [0] : vector<2x1x32xf32> to vector<1x32xf32>
    %270 = vector.shape_cast %269 : vector<1x32xf32> to vector<1x1x32xf32>
    %cst_97 = arith.constant 6.400000e+01 : f32
    %271 = vector.broadcast %cst_97 : f32 to vector<1x1x32xf32>
    %272 = arith.divf %270, %271 : vector<1x1x32xf32>
    %cst_98 = arith.constant 9.99999974E-6 : f32
    %273 = vector.broadcast %cst_98 : f32 to vector<1x1x32xf32>
    %274 = arith.addf %272, %273 : vector<1x1x32xf32>
    %275 = math.rsqrt %274 : vector<1x1x32xf32>
    %276 = vector.broadcast %275 : vector<1x1x32xf32> to vector<2x32x32xf32>
    %277 = arith.mulf %265, %276 : vector<2x32x32xf32>
    %278 = vector.shape_cast %242 : vector<1x32xf32> to vector<1x1x32xf32>
    %279 = vector.broadcast %278 : vector<1x1x32xf32> to vector<2x32x32xf32>
    %280 = arith.mulf %277, %279 : vector<2x32x32xf32>
    %281 = vector.shape_cast %243 : vector<1x32xf32> to vector<1x1x32xf32>
    %282 = vector.broadcast %281 : vector<1x1x32xf32> to vector<2x32x32xf32>
    %283 = arith.addf %280, %282 : vector<2x32x32xf32>
    %284 = tpu.concatenate %195, %239, %283 in 2 : vector<2x32x32xf32>, vector<2x32x32xf32>, vector<2x32x32xf32> -> vector<2x32x96xf32>
    %cst_99 = arith.constant dense<0xFF800000> : vector<2x32xf32>
    %285 = vector.multi_reduction <maximumf>, %151, %cst_99 [2] : vector<2x32x8xf32> to vector<2x32xf32>
    %286 = vector.shape_cast %285 : vector<2x32xf32> to vector<2x32x1xf32>
    %287 = vector.broadcast %286 : vector<2x32x1xf32> to vector<2x32x8xf32>
    %288 = arith.subf %151, %287 : vector<2x32x8xf32>
    %289 = math.exp %288 : vector<2x32x8xf32>
    %cst_100 = arith.constant dense<0.000000e+00> : vector<2x32xf32>
    %290 = vector.multi_reduction <add>, %289, %cst_100 [2] : vector<2x32x8xf32> to vector<2x32xf32>
    %291 = vector.shape_cast %290 : vector<2x32xf32> to vector<2x32x1xf32>
    %292 = vector.broadcast %291 : vector<2x32x1xf32> to vector<2x32x8xf32>
    %293 = arith.divf %289, %292 : vector<2x32x8xf32>
    %294 = vector.broadcast %0 : vector<2x32x1xf32> to vector<2x32x96xf32>
    %295 = arith.mulf %284, %294 : vector<2x32x96xf32>
    %296 = vector.broadcast %0 : vector<2x32x1xf32> to vector<2x32x8xf32>
    %297 = arith.mulf %293, %296 : vector<2x32x8xf32>
    %cst_101 = arith.constant dense<0.000000e+00> : vector<2x8x96xf32>
    %298 = tpu.matmul %297, %295, %cst_101 {dimension_numbers = #tpu.dot_dimension_numbers<[1], [1], [2], [2], [0, 0, 0, 2, 1, 2], [0], [0]>} : vector<2x32x8xf32>, vector<2x32x96xf32>, vector<2x8x96xf32> -> vector<2x8x96xf32>
    %cst_102 = arith.constant dense<0.000000e+00> : vector<2x8x32xf32>
    %299 = tpu.matmul %297, %2, %cst_102 {dimension_numbers = #tpu.dot_dimension_numbers<[1], [1], [2], [2], [0, 0, 0, 2, 1, 2], [0], [0]>} : vector<2x32x8xf32>, vector<2x32x32xf32>, vector<2x8x32xf32> -> vector<2x8x32xf32>
    %cst_103 = arith.constant dense<0.000000e+00> : vector<2x8x8xf32>
    %300 = tpu.matmul %299, %297, %cst_103 {dimension_numbers = #tpu.dot_dimension_numbers<[2], [1], [1], [2], [0, 0, 0, 1, 1, 2], [0], [0]>} : vector<2x8x32xf32>, vector<2x32x8xf32>, vector<2x8x8xf32> -> vector<2x8x8xf32>
    %cst_104 = arith.constant dense<0.000000e+00> : vector<2x8x8xf32>
    %301 = tpu.matmul %297, %297, %cst_104 {dimension_numbers = #tpu.dot_dimension_numbers<[1], [1], [2], [2], [0, 0, 0, 2, 1, 2], [0], [0]>} : vector<2x32x8xf32>, vector<2x32x8xf32>, vector<2x8x8xf32> -> vector<2x8x8xf32>
    %302 = tpu.iota {dimensions = array<i32: 0>} : vector<8x8xi32>
    %303 = tpu.iota {dimensions = array<i32: 1>} : vector<8x8xi32>
    %304 = arith.cmpi eq, %302, %303 : vector<8x8xi32>
    %305 = arith.extui %304 : vector<8x8xi1> to vector<8x8xi32>
    %306 = arith.sitofp %305 : vector<8x8xi32> to vector<8x8xf32>
    %307 = arith.mulf %2, %2 : vector<2x32x32xf32>
    %cst_105 = arith.constant dense<0.000000e+00> : vector<32x32xf32>
    %308 = vector.multi_reduction <add>, %307, %cst_105 [0] : vector<2x32x32xf32> to vector<32x32xf32>
    %cst_106 = arith.constant dense<0.000000e+00> : vector<32xf32>
    %309 = vector.multi_reduction <add>, %308, %cst_106 [1] : vector<32x32xf32> to vector<32xf32>
    %310 = vector.shape_cast %309 : vector<32xf32> to vector<32x1xf32>
    %cst_107 = arith.constant dense<0.000000e+00> : vector<1xf32>
    %311 = vector.multi_reduction <add>, %310, %cst_107 [0] : vector<32x1xf32> to vector<1xf32>
    %312 = vector.shape_cast %311 : vector<1xf32> to vector<1x1xf32>
    %313 = vector.shape_cast %306 : vector<8x8xf32> to vector<1x8x8xf32>
    %314 = vector.broadcast %313 : vector<1x8x8xf32> to vector<2x8x8xf32>
    %315 = arith.mulf %300, %314 : vector<2x8x8xf32>
    %cst_108 = arith.constant dense<0.000000e+00> : vector<8x8xf32>
    %316 = vector.multi_reduction <add>, %315, %cst_108 [0] : vector<2x8x8xf32> to vector<8x8xf32>
    %cst_109 = arith.constant dense<0.000000e+00> : vector<8xf32>
    %317 = vector.multi_reduction <add>, %316, %cst_109 [1] : vector<8x8xf32> to vector<8xf32>
    %318 = vector.shape_cast %317 : vector<8xf32> to vector<8x1xf32>
    %cst_110 = arith.constant dense<0.000000e+00> : vector<1xf32>
    %319 = vector.multi_reduction <add>, %318, %cst_110 [0] : vector<8x1xf32> to vector<1xf32>
    %320 = vector.shape_cast %319 : vector<1xf32> to vector<1x1xf32>
    %cst_111 = arith.constant 2.000000e+00 : f32
    %321 = vector.broadcast %cst_111 : f32 to vector<1x1xf32>
    %322 = arith.mulf %321, %320 : vector<1x1xf32>
    %323 = arith.subf %312, %322 : vector<1x1xf32>
    %324 = arith.mulf %301, %301 : vector<2x8x8xf32>
    %cst_112 = arith.constant dense<0.000000e+00> : vector<8x8xf32>
    %325 = vector.multi_reduction <add>, %324, %cst_112 [0] : vector<2x8x8xf32> to vector<8x8xf32>
    %cst_113 = arith.constant dense<0.000000e+00> : vector<8xf32>
    %326 = vector.multi_reduction <add>, %325, %cst_113 [1] : vector<8x8xf32> to vector<8xf32>
    %327 = vector.shape_cast %326 : vector<8xf32> to vector<8x1xf32>
    %cst_114 = arith.constant dense<0.000000e+00> : vector<1xf32>
    %328 = vector.multi_reduction <add>, %327, %cst_114 [0] : vector<8x1xf32> to vector<1xf32>
    %329 = vector.shape_cast %328 : vector<1xf32> to vector<1x1xf32>
    %330 = arith.addf %323, %329 : vector<1x1xf32>
    %cst_115 = arith.constant 0.000000e+00 : f32
    %331 = vector.broadcast %cst_115 : f32 to vector<2x32x8xf32>
    %332 = arith.subf %331, %297 : vector<2x32x8xf32>
    %cst_116 = arith.constant 1.000000e-15 : f32
    %333 = vector.broadcast %cst_116 : f32 to vector<2x32x8xf32>
    %334 = arith.addf %297, %333 : vector<2x32x8xf32>
    %335 = math.log %334 : vector<2x32x8xf32>
    %336 = arith.mulf %332, %335 : vector<2x32x8xf32>
    %cst_117 = arith.constant dense<0.000000e+00> : vector<32x8xf32>
    %337 = vector.multi_reduction <add>, %336, %cst_117 [0] : vector<2x32x8xf32> to vector<32x8xf32>
    %cst_118 = arith.constant dense<0.000000e+00> : vector<32xf32>
    %338 = vector.multi_reduction <add>, %337, %cst_118 [1] : vector<32x8xf32> to vector<32xf32>
    %339 = vector.shape_cast %338 : vector<32xf32> to vector<32x1xf32>
    %cst_119 = arith.constant dense<0.000000e+00> : vector<1xf32>
    %340 = vector.multi_reduction <add>, %339, %cst_119 [0] : vector<32x1xf32> to vector<1xf32>
    %341 = vector.shape_cast %340 : vector<1xf32> to vector<1x1xf32>
    %342 = tpu.iota {dimensions = array<i32: 0>} : vector<8x128xi32>
    %343 = tpu.iota {dimensions = array<i32: 1>} : vector<8x128xi32>
    %c0_i32 = arith.constant 0 : i32
    %344 = vector.broadcast %c0_i32 : i32 to vector<8x128xi32>
    %345 = arith.cmpi eq, %342, %344 : vector<8x128xi32>
    %c0_i32_120 = arith.constant 0 : i32
    %346 = vector.broadcast %c0_i32_120 : i32 to vector<8x128xi32>
    %347 = arith.cmpi eq, %343, %346 : vector<8x128xi32>
    %348 = arith.andi %345, %347 : vector<8x128xi1>
    %c0_i32_121 = arith.constant 0 : i32
    %349 = vector.broadcast %c0_i32_121 : i32 to vector<8x128xi32>
    %350 = arith.cmpi eq, %342, %349 : vector<8x128xi32>
    %c1_i32 = arith.constant 1 : i32
    %351 = vector.broadcast %c1_i32 : i32 to vector<8x128xi32>
    %352 = arith.cmpi eq, %343, %351 : vector<8x128xi32>
    %353 = arith.andi %350, %352 : vector<8x128xi1>
    %cst_122 = arith.constant 0.000000e+00 : f32
    %354 = vector.shape_cast %341 : vector<1x1xf32> to vector<1x1xf32>
    %355 = vector.broadcast %354 : vector<1x1xf32> to vector<8x128xf32>
    %356 = vector.broadcast %cst_122 : f32 to vector<8x128xf32>
    %357 = arith.select %353, %355, %356 : vector<8x128xi1>, vector<8x128xf32>
    %358 = vector.shape_cast %330 : vector<1x1xf32> to vector<1x1xf32>
    %359 = vector.broadcast %358 : vector<1x1xf32> to vector<8x128xf32>
    %360 = arith.select %348, %359, %357 : vector<8x128xi1>, vector<8x128xf32>
    %c0_123 = arith.constant 0 : index
    %c0_124 = arith.constant 0 : index
    %c0_125 = arith.constant 0 : index
    %361 = vector.load %arg5[%c0_123, %c0_124, %c0_125] : memref<2x8x96xf32, #tpu.memory_space<vmem>>, vector<2x8x96xf32>
    tpu.vector_store %arg5[%c0_123, %c0_124, %c0_125], %298 {strides = array<i32>} : memref<2x8x96xf32, #tpu.memory_space<vmem>>, vector<2x8x96xf32>,
    %c0_126 = arith.constant 0 : index
    %c0_127 = arith.constant 0 : index
    %c0_128 = arith.constant 0 : index
    %362 = vector.load %arg6[%c0_126, %c0_127, %c0_128] : memref<2x8x8xf32, #tpu.memory_space<vmem>>, vector<2x8x8xf32>
    tpu.vector_store %arg6[%c0_126, %c0_127, %c0_128], %300 {strides = array<i32>} : memref<2x8x8xf32, #tpu.memory_space<vmem>>, vector<2x8x8xf32>,
    %c0_129 = arith.constant 0 : index
    %c0_130 = arith.constant 0 : index
    %363 = vector.load %arg7[%c0_129, %c0_130] : memref<8x128xf32, #tpu.memory_space<vmem>>, vector<8x128xf32>
    tpu.vector_store %arg7[%c0_129, %c0_130], %360 {strides = array<i32>} : memref<8x128xf32, #tpu.memory_space<vmem>>, vector<8x128xf32>,
    return
  }
  func.func @transform_0(%arg0: i32) -> (i32, i32, i32) {
    %c0_i32 = arith.constant 0 : i32
    %c0_i32_0 = arith.constant 0 : i32
    %c0_i32_1 = arith.constant 0 : i32
    %c0_i32_2 = arith.constant 0 : i32
    return %c0_i32, %c0_i32_0, %c0_i32_1 : i32, i32, i32
  }
  func.func @transform_1(%arg0: i32) -> (i32, i32, i32) {
    %c0_i32 = arith.constant 0 : i32
    %c0_i32_0 = arith.constant 0 : i32
    %c0_i32_1 = arith.constant 0 : i32
    %c0_i32_2 = arith.constant 0 : i32
    return %c0_i32, %c0_i32_0, %c0_i32_1 : i32, i32, i32
  }
  func.func @transform_2(%arg0: i32) -> (i32, i32, i32) {
    %c0_i32 = arith.constant 0 : i32
    %c0_i32_0 = arith.constant 0 : i32
    %c0_i32_1 = arith.constant 0 : i32
    %c0_i32_2 = arith.constant 0 : i32
    return %c0_i32, %c0_i32_0, %c0_i32_1 : i32, i32, i32
  }
  func.func @transform_3(%arg0: i32) -> (i32, i32) {
    %c0_i32 = arith.constant 0 : i32
    %c0_i32_0 = arith.constant 0 : i32
    %c0_i32_1 = arith.constant 0 : i32
    return %c0_i32, %c0_i32_0 : i32, i32
  }
  func.func @transform_4(%arg0: i32) -> (i32, i32, i32) {
    %c0_i32 = arith.constant 0 : i32
    %c0_i32_0 = arith.constant 0 : i32
    %c0_i32_1 = arith.constant 0 : i32
    %c0_i32_2 = arith.constant 0 : i32
    return %c0_i32, %c0_i32_0, %c0_i32_1 : i32, i32, i32
  }
  func.func @transform_5(%arg0: i32) -> (i32, i32, i32) {
    %c0_i32 = arith.constant 0 : i32
    %c0_i32_0 = arith.constant 0 : i32
    %c0_i32_1 = arith.constant 0 : i32
    %c0_i32_2 = arith.constant 0 : i32
    return %c0_i32, %c0_i32_0, %c0_i32_1 : i32, i32, i32
  }
  func.func @transform_6(%arg0: i32) -> (i32, i32) {
    %c0_i32 = arith.constant 0 : i32
    %c0_i32_0 = arith.constant 0 : i32
    %c0_i32_1 = arith.constant 0 : i32
    return %c0_i32, %c0_i32_0 : i32, i32
  }
}

module attributes {stable_mosaic.version = 11 : i64} {
  func.func @kernel(%arg0: i32, %arg1: memref<2x2x96xf32, #tpu.memory_space<vmem>>, %arg2: memref<2x2x2xf32, #tpu.memory_space<vmem>>, %arg3: memref<464x128xf32, #tpu.memory_space<vmem>>, %arg4: memref<2x4xf32, #tpu.memory_space<vmem>>) attributes {dimension_semantics = [#tpu.dimension_semantics<arbitrary>], iteration_bounds = array<i64: 1>, scalar_prefetch = 0 : i64, scratch_operands = 0 : i64, tpu.core_type = #tpu.core_type<tc>, window_params = [{pipeline_mode = #tpu.pipeline_mode<synchronous>, transform_indices = @transform_0, window_bounds = array<i64: 2, 2, 96>}, {pipeline_mode = #tpu.pipeline_mode<synchronous>, transform_indices = @transform_1, window_bounds = array<i64: 2, 2, 2>}, {pipeline_mode = #tpu.pipeline_mode<synchronous>, transform_indices = @transform_2, window_bounds = array<i64: 464, 128>}, {pipeline_mode = #tpu.pipeline_mode<synchronous>, transform_indices = @transform_3, window_bounds = array<i64: 2, 4>}]} {
    %c0 = arith.constant 0 : index
    %c0_0 = arith.constant 0 : index
    %c0_1 = arith.constant 0 : index
    %0 = vector.load %arg1[%c0, %c0_0, %c0_1] : memref<2x2x96xf32, #tpu.memory_space<vmem>>, vector<2x2x96xf32>
    %c0_2 = arith.constant 0 : index
    %c0_3 = arith.constant 0 : index
    %c0_4 = arith.constant 0 : index
    %1 = vector.load %arg2[%c0_2, %c0_3, %c0_4] : memref<2x2x2xf32, #tpu.memory_space<vmem>>, vector<2x2x2xf32>
    %cst = arith.constant dense<0.000000e+00> : vector<2x2xf32>
    %2 = vector.multi_reduction <add>, %1, %cst [2] : vector<2x2x2xf32> to vector<2x2xf32>
    %3 = vector.shape_cast %2 : vector<2x2xf32> to vector<2x2x1xf32>
    %cst_5 = arith.constant 1.000000e+00 : f32
    %4 = vector.broadcast %cst_5 : f32 to vector<2x2x1xf32>
    %5 = arith.maximumf %3, %4 : vector<2x2x1xf32>
    %cst_6 = arith.constant 1.000000e+00 : f32
    %6 = vector.broadcast %cst_6 : f32 to vector<2x2x1xf32>
    %7 = arith.divf %6, %5 : vector<2x2x1xf32>
    %c0_7 = arith.constant 0 : index
    %c0_8 = arith.constant 0 : index
    %8 = vector.load %arg3[%c0_7, %c0_8] : memref<464x128xf32, #tpu.memory_space<vmem>>, vector<192x32xf32>
    %c192 = arith.constant 192 : index
    %c0_9 = arith.constant 0 : index
    %9 = vector.load %arg3[%c192, %c0_9] : memref<464x128xf32, #tpu.memory_space<vmem>>, vector<1x32xf32>
    %c193 = arith.constant 193 : index
    %c0_10 = arith.constant 0 : index
    %10 = vector.load %arg3[%c193, %c0_10] : memref<464x128xf32, #tpu.memory_space<vmem>>, vector<1x32xf32>
    %c194 = arith.constant 194 : index
    %c0_11 = arith.constant 0 : index
    %11 = vector.load %arg3[%c194, %c0_11] : memref<464x128xf32, #tpu.memory_space<vmem>>, vector<1x32xf32>
    %cst_12 = arith.constant dense<0.000000e+00> : vector<2x2x96xf32>
    %12 = tpu.matmul %1, %0, %cst_12 {dimension_numbers = #tpu.dot_dimension_numbers<[2], [1], [1], [2], [0, 0, 0, 1, 1, 2], [0], [0]>} : vector<2x2x2xf32>, vector<2x2x96xf32>, vector<2x2x96xf32> -> vector<2x2x96xf32>
    %13 = vector.broadcast %7 : vector<2x2x1xf32> to vector<2x2x96xf32>
    %14 = arith.mulf %12, %13 : vector<2x2x96xf32>
    %15 = tpu.concatenate %14, %0 in 2 : vector<2x2x96xf32>, vector<2x2x96xf32> -> vector<2x2x192xf32>
    %16 = vector.shape_cast %15 : vector<2x2x192xf32> to vector<4x192xf32>
    %cst_13 = arith.constant dense<0.000000e+00> : vector<4x32xf32>
    %17 = tpu.matmul %16, %8, %cst_13 {dimension_numbers = #tpu.dot_dimension_numbers<[1], [0], [0], [1], [0, 0, 1, 1], [], []>} : vector<4x192xf32>, vector<192x32xf32>, vector<4x32xf32> -> vector<4x32xf32>
    %18 = vector.shape_cast %17 : vector<4x32xf32> to vector<2x2x32xf32>
    %19 = vector.shape_cast %9 : vector<1x32xf32> to vector<1x1x32xf32>
    %20 = vector.broadcast %19 : vector<1x1x32xf32> to vector<2x2x32xf32>
    %21 = arith.addf %18, %20 : vector<2x2x32xf32>
    %cst_14 = arith.constant 0.000000e+00 : f32
    %22 = vector.broadcast %cst_14 : f32 to vector<2x2x32xf32>
    %23 = arith.maximumf %21, %22 : vector<2x2x32xf32>
    %cst_15 = arith.constant dense<0.000000e+00> : vector<2x32xf32>
    %24 = vector.multi_reduction <add>, %23, %cst_15 [1] : vector<2x2x32xf32> to vector<2x32xf32>
    %25 = vector.shape_cast %24 : vector<2x32xf32> to vector<2x1x32xf32>
    %cst_16 = arith.constant dense<0.000000e+00> : vector<1x32xf32>
    %26 = vector.multi_reduction <add>, %25, %cst_16 [0] : vector<2x1x32xf32> to vector<1x32xf32>
    %27 = vector.shape_cast %26 : vector<1x32xf32> to vector<1x1x32xf32>
    %cst_17 = arith.constant 4.000000e+00 : f32
    %28 = vector.broadcast %cst_17 : f32 to vector<1x1x32xf32>
    %29 = arith.divf %27, %28 : vector<1x1x32xf32>
    %30 = vector.broadcast %29 : vector<1x1x32xf32> to vector<2x2x32xf32>
    %31 = arith.subf %23, %30 : vector<2x2x32xf32>
    %32 = arith.mulf %31, %31 : vector<2x2x32xf32>
    %cst_18 = arith.constant dense<0.000000e+00> : vector<2x32xf32>
    %33 = vector.multi_reduction <add>, %32, %cst_18 [1] : vector<2x2x32xf32> to vector<2x32xf32>
    %34 = vector.shape_cast %33 : vector<2x32xf32> to vector<2x1x32xf32>
    %cst_19 = arith.constant dense<0.000000e+00> : vector<1x32xf32>
    %35 = vector.multi_reduction <add>, %34, %cst_19 [0] : vector<2x1x32xf32> to vector<1x32xf32>
    %36 = vector.shape_cast %35 : vector<1x32xf32> to vector<1x1x32xf32>
    %cst_20 = arith.constant 4.000000e+00 : f32
    %37 = vector.broadcast %cst_20 : f32 to vector<1x1x32xf32>
    %38 = arith.divf %36, %37 : vector<1x1x32xf32>
    %cst_21 = arith.constant 9.99999974E-6 : f32
    %39 = vector.broadcast %cst_21 : f32 to vector<1x1x32xf32>
    %40 = arith.addf %38, %39 : vector<1x1x32xf32>
    %41 = math.rsqrt %40 : vector<1x1x32xf32>
    %42 = vector.broadcast %41 : vector<1x1x32xf32> to vector<2x2x32xf32>
    %43 = arith.mulf %31, %42 : vector<2x2x32xf32>
    %44 = vector.shape_cast %10 : vector<1x32xf32> to vector<1x1x32xf32>
    %45 = vector.broadcast %44 : vector<1x1x32xf32> to vector<2x2x32xf32>
    %46 = arith.mulf %43, %45 : vector<2x2x32xf32>
    %47 = vector.shape_cast %11 : vector<1x32xf32> to vector<1x1x32xf32>
    %48 = vector.broadcast %47 : vector<1x1x32xf32> to vector<2x2x32xf32>
    %49 = arith.addf %46, %48 : vector<2x2x32xf32>
    %c195 = arith.constant 195 : index
    %c0_22 = arith.constant 0 : index
    %50 = vector.load %arg3[%c195, %c0_22] : memref<464x128xf32, #tpu.memory_space<vmem>>, vector<64x32xf32>
    %c259 = arith.constant 259 : index
    %c0_23 = arith.constant 0 : index
    %51 = vector.load %arg3[%c259, %c0_23] : memref<464x128xf32, #tpu.memory_space<vmem>>, vector<1x32xf32>
    %c260 = arith.constant 260 : index
    %c0_24 = arith.constant 0 : index
    %52 = vector.load %arg3[%c260, %c0_24] : memref<464x128xf32, #tpu.memory_space<vmem>>, vector<1x32xf32>
    %c261 = arith.constant 261 : index
    %c0_25 = arith.constant 0 : index
    %53 = vector.load %arg3[%c261, %c0_25] : memref<464x128xf32, #tpu.memory_space<vmem>>, vector<1x32xf32>
    %cst_26 = arith.constant dense<0.000000e+00> : vector<2x2x32xf32>
    %54 = tpu.matmul %1, %49, %cst_26 {dimension_numbers = #tpu.dot_dimension_numbers<[2], [1], [1], [2], [0, 0, 0, 1, 1, 2], [0], [0]>} : vector<2x2x2xf32>, vector<2x2x32xf32>, vector<2x2x32xf32> -> vector<2x2x32xf32>
    %55 = vector.broadcast %7 : vector<2x2x1xf32> to vector<2x2x32xf32>
    %56 = arith.mulf %54, %55 : vector<2x2x32xf32>
    %57 = tpu.concatenate %56, %49 in 2 : vector<2x2x32xf32>, vector<2x2x32xf32> -> vector<2x2x64xf32>
    %58 = vector.shape_cast %57 : vector<2x2x64xf32> to vector<4x64xf32>
    %cst_27 = arith.constant dense<0.000000e+00> : vector<4x32xf32>
    %59 = tpu.matmul %58, %50, %cst_27 {dimension_numbers = #tpu.dot_dimension_numbers<[1], [0], [0], [1], [0, 0, 1, 1], [], []>} : vector<4x64xf32>, vector<64x32xf32>, vector<4x32xf32> -> vector<4x32xf32>
    %60 = vector.shape_cast %59 : vector<4x32xf32> to vector<2x2x32xf32>
    %61 = vector.shape_cast %51 : vector<1x32xf32> to vector<1x1x32xf32>
    %62 = vector.broadcast %61 : vector<1x1x32xf32> to vector<2x2x32xf32>
    %63 = arith.addf %60, %62 : vector<2x2x32xf32>
    %cst_28 = arith.constant 0.000000e+00 : f32
    %64 = vector.broadcast %cst_28 : f32 to vector<2x2x32xf32>
    %65 = arith.maximumf %63, %64 : vector<2x2x32xf32>
    %cst_29 = arith.constant dense<0.000000e+00> : vector<2x32xf32>
    %66 = vector.multi_reduction <add>, %65, %cst_29 [1] : vector<2x2x32xf32> to vector<2x32xf32>
    %67 = vector.shape_cast %66 : vector<2x32xf32> to vector<2x1x32xf32>
    %cst_30 = arith.constant dense<0.000000e+00> : vector<1x32xf32>
    %68 = vector.multi_reduction <add>, %67, %cst_30 [0] : vector<2x1x32xf32> to vector<1x32xf32>
    %69 = vector.shape_cast %68 : vector<1x32xf32> to vector<1x1x32xf32>
    %cst_31 = arith.constant 4.000000e+00 : f32
    %70 = vector.broadcast %cst_31 : f32 to vector<1x1x32xf32>
    %71 = arith.divf %69, %70 : vector<1x1x32xf32>
    %72 = vector.broadcast %71 : vector<1x1x32xf32> to vector<2x2x32xf32>
    %73 = arith.subf %65, %72 : vector<2x2x32xf32>
    %74 = arith.mulf %73, %73 : vector<2x2x32xf32>
    %cst_32 = arith.constant dense<0.000000e+00> : vector<2x32xf32>
    %75 = vector.multi_reduction <add>, %74, %cst_32 [1] : vector<2x2x32xf32> to vector<2x32xf32>
    %76 = vector.shape_cast %75 : vector<2x32xf32> to vector<2x1x32xf32>
    %cst_33 = arith.constant dense<0.000000e+00> : vector<1x32xf32>
    %77 = vector.multi_reduction <add>, %76, %cst_33 [0] : vector<2x1x32xf32> to vector<1x32xf32>
    %78 = vector.shape_cast %77 : vector<1x32xf32> to vector<1x1x32xf32>
    %cst_34 = arith.constant 4.000000e+00 : f32
    %79 = vector.broadcast %cst_34 : f32 to vector<1x1x32xf32>
    %80 = arith.divf %78, %79 : vector<1x1x32xf32>
    %cst_35 = arith.constant 9.99999974E-6 : f32
    %81 = vector.broadcast %cst_35 : f32 to vector<1x1x32xf32>
    %82 = arith.addf %80, %81 : vector<1x1x32xf32>
    %83 = math.rsqrt %82 : vector<1x1x32xf32>
    %84 = vector.broadcast %83 : vector<1x1x32xf32> to vector<2x2x32xf32>
    %85 = arith.mulf %73, %84 : vector<2x2x32xf32>
    %86 = vector.shape_cast %52 : vector<1x32xf32> to vector<1x1x32xf32>
    %87 = vector.broadcast %86 : vector<1x1x32xf32> to vector<2x2x32xf32>
    %88 = arith.mulf %85, %87 : vector<2x2x32xf32>
    %89 = vector.shape_cast %53 : vector<1x32xf32> to vector<1x1x32xf32>
    %90 = vector.broadcast %89 : vector<1x1x32xf32> to vector<2x2x32xf32>
    %91 = arith.addf %88, %90 : vector<2x2x32xf32>
    %c262 = arith.constant 262 : index
    %c0_36 = arith.constant 0 : index
    %92 = vector.load %arg3[%c262, %c0_36] : memref<464x128xf32, #tpu.memory_space<vmem>>, vector<64x32xf32>
    %c326 = arith.constant 326 : index
    %c0_37 = arith.constant 0 : index
    %93 = vector.load %arg3[%c326, %c0_37] : memref<464x128xf32, #tpu.memory_space<vmem>>, vector<1x32xf32>
    %c327 = arith.constant 327 : index
    %c0_38 = arith.constant 0 : index
    %94 = vector.load %arg3[%c327, %c0_38] : memref<464x128xf32, #tpu.memory_space<vmem>>, vector<1x32xf32>
    %c328 = arith.constant 328 : index
    %c0_39 = arith.constant 0 : index
    %95 = vector.load %arg3[%c328, %c0_39] : memref<464x128xf32, #tpu.memory_space<vmem>>, vector<1x32xf32>
    %cst_40 = arith.constant dense<0.000000e+00> : vector<2x2x32xf32>
    %96 = tpu.matmul %1, %91, %cst_40 {dimension_numbers = #tpu.dot_dimension_numbers<[2], [1], [1], [2], [0, 0, 0, 1, 1, 2], [0], [0]>} : vector<2x2x2xf32>, vector<2x2x32xf32>, vector<2x2x32xf32> -> vector<2x2x32xf32>
    %97 = vector.broadcast %7 : vector<2x2x1xf32> to vector<2x2x32xf32>
    %98 = arith.mulf %96, %97 : vector<2x2x32xf32>
    %99 = tpu.concatenate %98, %91 in 2 : vector<2x2x32xf32>, vector<2x2x32xf32> -> vector<2x2x64xf32>
    %100 = vector.shape_cast %99 : vector<2x2x64xf32> to vector<4x64xf32>
    %cst_41 = arith.constant dense<0.000000e+00> : vector<4x32xf32>
    %101 = tpu.matmul %100, %92, %cst_41 {dimension_numbers = #tpu.dot_dimension_numbers<[1], [0], [0], [1], [0, 0, 1, 1], [], []>} : vector<4x64xf32>, vector<64x32xf32>, vector<4x32xf32> -> vector<4x32xf32>
    %102 = vector.shape_cast %101 : vector<4x32xf32> to vector<2x2x32xf32>
    %103 = vector.shape_cast %93 : vector<1x32xf32> to vector<1x1x32xf32>
    %104 = vector.broadcast %103 : vector<1x1x32xf32> to vector<2x2x32xf32>
    %105 = arith.addf %102, %104 : vector<2x2x32xf32>
    %cst_42 = arith.constant 0.000000e+00 : f32
    %106 = vector.broadcast %cst_42 : f32 to vector<2x2x32xf32>
    %107 = arith.maximumf %105, %106 : vector<2x2x32xf32>
    %cst_43 = arith.constant dense<0.000000e+00> : vector<2x32xf32>
    %108 = vector.multi_reduction <add>, %107, %cst_43 [1] : vector<2x2x32xf32> to vector<2x32xf32>
    %109 = vector.shape_cast %108 : vector<2x32xf32> to vector<2x1x32xf32>
    %cst_44 = arith.constant dense<0.000000e+00> : vector<1x32xf32>
    %110 = vector.multi_reduction <add>, %109, %cst_44 [0] : vector<2x1x32xf32> to vector<1x32xf32>
    %111 = vector.shape_cast %110 : vector<1x32xf32> to vector<1x1x32xf32>
    %cst_45 = arith.constant 4.000000e+00 : f32
    %112 = vector.broadcast %cst_45 : f32 to vector<1x1x32xf32>
    %113 = arith.divf %111, %112 : vector<1x1x32xf32>
    %114 = vector.broadcast %113 : vector<1x1x32xf32> to vector<2x2x32xf32>
    %115 = arith.subf %107, %114 : vector<2x2x32xf32>
    %116 = arith.mulf %115, %115 : vector<2x2x32xf32>
    %cst_46 = arith.constant dense<0.000000e+00> : vector<2x32xf32>
    %117 = vector.multi_reduction <add>, %116, %cst_46 [1] : vector<2x2x32xf32> to vector<2x32xf32>
    %118 = vector.shape_cast %117 : vector<2x32xf32> to vector<2x1x32xf32>
    %cst_47 = arith.constant dense<0.000000e+00> : vector<1x32xf32>
    %119 = vector.multi_reduction <add>, %118, %cst_47 [0] : vector<2x1x32xf32> to vector<1x32xf32>
    %120 = vector.shape_cast %119 : vector<1x32xf32> to vector<1x1x32xf32>
    %cst_48 = arith.constant 4.000000e+00 : f32
    %121 = vector.broadcast %cst_48 : f32 to vector<1x1x32xf32>
    %122 = arith.divf %120, %121 : vector<1x1x32xf32>
    %cst_49 = arith.constant 9.99999974E-6 : f32
    %123 = vector.broadcast %cst_49 : f32 to vector<1x1x32xf32>
    %124 = arith.addf %122, %123 : vector<1x1x32xf32>
    %125 = math.rsqrt %124 : vector<1x1x32xf32>
    %126 = vector.broadcast %125 : vector<1x1x32xf32> to vector<2x2x32xf32>
    %127 = arith.mulf %115, %126 : vector<2x2x32xf32>
    %128 = vector.shape_cast %94 : vector<1x32xf32> to vector<1x1x32xf32>
    %129 = vector.broadcast %128 : vector<1x1x32xf32> to vector<2x2x32xf32>
    %130 = arith.mulf %127, %129 : vector<2x2x32xf32>
    %131 = vector.shape_cast %95 : vector<1x32xf32> to vector<1x1x32xf32>
    %132 = vector.broadcast %131 : vector<1x1x32xf32> to vector<2x2x32xf32>
    %133 = arith.addf %130, %132 : vector<2x2x32xf32>
    %134 = tpu.concatenate %49, %91, %133 in 2 : vector<2x2x32xf32>, vector<2x2x32xf32>, vector<2x2x32xf32> -> vector<2x2x96xf32>
    %c329 = arith.constant 329 : index
    %c0_50 = arith.constant 0 : index
    %135 = vector.load %arg3[%c329, %c0_50] : memref<464x128xf32, #tpu.memory_space<vmem>>, vector<96x32xf32>
    %c425 = arith.constant 425 : index
    %c0_51 = arith.constant 0 : index
    %136 = vector.load %arg3[%c425, %c0_51] : memref<464x128xf32, #tpu.memory_space<vmem>>, vector<1x32xf32>
    %c426 = arith.constant 426 : index
    %c0_52 = arith.constant 0 : index
    %137 = vector.load %arg3[%c426, %c0_52] : memref<464x128xf32, #tpu.memory_space<vmem>>, vector<32x4xf32>
    %c458 = arith.constant 458 : index
    %c0_53 = arith.constant 0 : index
    %138 = vector.load %arg3[%c458, %c0_53] : memref<464x128xf32, #tpu.memory_space<vmem>>, vector<1x4xf32>
    %cst_54 = arith.constant dense<0.000000e+00> : vector<2x96xf32>
    %139 = vector.multi_reduction <add>, %134, %cst_54 [1] : vector<2x2x96xf32> to vector<2x96xf32>
    %cst_55 = arith.constant 2.000000e+00 : f32
    %140 = vector.broadcast %cst_55 : f32 to vector<2x96xf32>
    %141 = arith.divf %139, %140 : vector<2x96xf32>
    %cst_56 = arith.constant dense<0.000000e+00> : vector<2x32xf32>
    %142 = tpu.matmul %141, %135, %cst_56 {dimension_numbers = #tpu.dot_dimension_numbers<[1], [0], [0], [1], [0, 0, 1, 1], [], []>} : vector<2x96xf32>, vector<96x32xf32>, vector<2x32xf32> -> vector<2x32xf32>
    %143 = vector.broadcast %136 : vector<1x32xf32> to vector<2x32xf32>
    %144 = arith.addf %142, %143 : vector<2x32xf32>
    %cst_57 = arith.constant 0.000000e+00 : f32
    %145 = vector.broadcast %cst_57 : f32 to vector<2x32xf32>
    %146 = arith.maximumf %144, %145 : vector<2x32xf32>
    %cst_58 = arith.constant dense<0.000000e+00> : vector<2x4xf32>
    %147 = tpu.matmul %146, %137, %cst_58 {dimension_numbers = #tpu.dot_dimension_numbers<[1], [0], [0], [1], [0, 0, 1, 1], [], []>} : vector<2x32xf32>, vector<32x4xf32>, vector<2x4xf32> -> vector<2x4xf32>
    %148 = vector.broadcast %138 : vector<1x4xf32> to vector<2x4xf32>
    %149 = arith.addf %147, %148 : vector<2x4xf32>
    %cst_59 = arith.constant dense<0xFF800000> : vector<2xf32>
    %150 = vector.multi_reduction <maximumf>, %149, %cst_59 [1] : vector<2x4xf32> to vector<2xf32>
    %151 = vector.shape_cast %150 : vector<2xf32> to vector<2x1xf32>
    %152 = vector.broadcast %151 : vector<2x1xf32> to vector<2x4xf32>
    %153 = arith.subf %149, %152 : vector<2x4xf32>
    %154 = math.exp %153 : vector<2x4xf32>
    %cst_60 = arith.constant dense<0.000000e+00> : vector<2xf32>
    %155 = vector.multi_reduction <add>, %154, %cst_60 [1] : vector<2x4xf32> to vector<2xf32>
    %156 = vector.shape_cast %155 : vector<2xf32> to vector<2x1xf32>
    %157 = math.log %156 : vector<2x1xf32>
    %158 = arith.addf %157, %151 : vector<2x1xf32>
    %159 = vector.broadcast %158 : vector<2x1xf32> to vector<2x4xf32>
    %160 = arith.subf %149, %159 : vector<2x4xf32>
    %c0_61 = arith.constant 0 : index
    %c0_62 = arith.constant 0 : index
    %161 = vector.load %arg4[%c0_61, %c0_62] : memref<2x4xf32, #tpu.memory_space<vmem>>, vector<2x4xf32>
    tpu.vector_store %arg4[%c0_61, %c0_62], %160 {strides = array<i32>} : memref<2x4xf32, #tpu.memory_space<vmem>>, vector<2x4xf32>,
    return
  }
  func.func @transform_0(%arg0: i32) -> (i32, i32, i32) {
    %c0_i32 = arith.constant 0 : i32
    %c0_i32_0 = arith.constant 0 : i32
    %c0_i32_1 = arith.constant 0 : i32
    %c0_i32_2 = arith.constant 0 : i32
    return %c0_i32, %c0_i32_0, %c0_i32_1 : i32, i32, i32
  }
  func.func @transform_1(%arg0: i32) -> (i32, i32, i32) {
    %c0_i32 = arith.constant 0 : i32
    %c0_i32_0 = arith.constant 0 : i32
    %c0_i32_1 = arith.constant 0 : i32
    %c0_i32_2 = arith.constant 0 : i32
    return %c0_i32, %c0_i32_0, %c0_i32_1 : i32, i32, i32
  }
  func.func @transform_2(%arg0: i32) -> (i32, i32) {
    %c0_i32 = arith.constant 0 : i32
    %c0_i32_0 = arith.constant 0 : i32
    %c0_i32_1 = arith.constant 0 : i32
    return %c0_i32, %c0_i32_0 : i32, i32
  }
  func.func @transform_3(%arg0: i32) -> (i32, i32) {
    %c0_i32 = arith.constant 0 : i32
    %c0_i32_0 = arith.constant 0 : i32
    %c0_i32_1 = arith.constant 0 : i32
    return %c0_i32, %c0_i32_0 : i32, i32
  }
}

</mosaic_0001>

<llo_original>
// kernel: net_forward.5
$region0: #{net_forward.5}
  #allocation0 [shape = 'u32[]', space=smem, size = 0x4, offset = 0x4, fixed_abs, tag = 'smem constant byte address 0x4 - core index']
  #allocation1 [shape = 'u32[144,128]{1,0:T(1,128)}', space=vmem, size = 0x12000, scoped, tag = 'internal scratch']
  %s0 = inlined_call_operand.vmem [shape: f32[2,2,96], index: 0, kind: input, shape index: {}]
  %s1 = inlined_call_operand.vmem [shape: f32[2,2,2], index: 1, kind: input, shape index: {}]
  %s2 = inlined_call_operand.vmem [shape: f32[464,128], index: 2, kind: input, shape index: {}]
  %s3 = inlined_call_operand.hbm [shape: f32[2,4], index: 3, kind: output, shape index: {}]
  %s4 = sld [smem:[#allocation0]]
  $region22: #{net_forward.5} parent=0
    _
  %s6 = ssub.s32 1, %s4
  %s7 = scalar_select 0, %s6, %s4
  $region1: #{net_forward.5} parent=0
    #allocation2 [shape = 'u8[1024]{0}', space=vmem, size = 0x400, scoped, tag = 'output window, operand 0, single buffered']
    #allocation3 [shape = 's32[1]{0}', space=sflag, size = 0x4, scoped, tag = 'scoped memory for net_forward.5']
    %8 = vsyncpa [#allocation3], 0
    // Predicated region
    $region2: #{net_forward.5} parent=1 // pred_check
      _
    $region3: #{net_forward.5} parent=1 // pred_check_branch
      %10 = sbr.rel (0) target = $region5
    $region4: #{net_forward.5} parent=1 // pred_region
      _
    $region5: #{net_forward.5} parent=1 // pred_fallthru
      _
    // Predicated region
    $region6: #{net_forward.5} parent=1 // pred_check
      _
    $region7: #{net_forward.5} parent=1 // pred_check_branch
      %12 = sbr.rel (0) target = $region9
    $region8: #{net_forward.5} parent=1 // pred_region
      _
    $region9: #{net_forward.5} parent=1 // pred_fallthru
      _
    // Predicated region
    $region10: #{net_forward.5} parent=1 // pred_check
      _
    $region11: #{net_forward.5} parent=1 // pred_check_branch
      %14 = sbr.rel (0) target = $region13
    $region12: #{net_forward.5} parent=1 // pred_region
      _
    $region13: #{net_forward.5} parent=1 // pred_fallthru
      _
    %v15 = vld [vmem:[%s0] sm:$0x3]
    %v16 = vld [vmem:[%s0 + $0x2] sm:$0x3]
    %v17 = vld [vmem:[%s1] sm:$0x3]
    %v18 = vld [vmem:[%s1 + $0x2] sm:$0x3]
    %vm19 = vcmask 9216
    %v20 = vsel %vm19, %v17, 0.0
    %21 = vadd.xlane.f32.xlu0 %v20
    %v22 = vpop.xlane.xlu0 %21
    %v23 = vsel %vm19, %v18, 0.0
    %24 = vadd.xlane.f32.xlu0 %v23
    %v25 = vpop.xlane.xlu0 %24
    %v26 = vmax.f32 %v22, 1.0
    %v27 = vmax.f32 %v25, 1.0
    %v28 = vrcp.pop %v26
    %v29 = vmul.f32 1.0, %v28
    %v30 = vrcp.pop %v27
    %v31 = vmul.f32 1.0, %v30
    %v32 = vld [vmem:[%s2] sm:$0xff]
    %v33 = vld [vmem:[%s2 + $0x8] sm:$0xff]
    %v34 = vld [vmem:[%s2 + $0x10] sm:$0xff]
    %v35 = vld [vmem:[%s2 + $0x18] sm:$0xff]
    %v36 = vld [vmem:[%s2 + $0x20] sm:$0xff]
    %v37 = vld [vmem:[%s2 + $0x28] sm:$0xff]
    %v38 = vld [vmem:[%s2 + $0x30] sm:$0xff]
    %v39 = vld [vmem:[%s2 + $0x38] sm:$0xff]
    %v40 = vld [vmem:[%s2 + $0x40] sm:$0xff]
    %v41 = vld [vmem:[%s2 + $0x48] sm:$0xff]
    %v42 = vld [vmem:[%s2 + $0x50] sm:$0xff]
    %v43 = vld [vmem:[%s2 + $0x58] sm:$0xff]
    %v44 = vld [vmem:[%s2 + $0x60] sm:$0xff]
    %v45 = vld [vmem:[%s2 + $0x68] sm:$0xff]
    %v46 = vld [vmem:[%s2 + $0x70] sm:$0xff]
    %v47 = vld [vmem:[%s2 + $0x78] sm:$0xff]
    %v48 = vld [vmem:[%s2 + $0x80] sm:$0xff]
    %v49 = vld [vmem:[%s2 + $0x88] sm:$0xff]
    %v50 = vld [vmem:[%s2 + $0x90] sm:$0xff]
    %v51 = vld [vmem:[%s2 + $0x98] sm:$0xff]
    %v52 = vld [vmem:[%s2 + $0xa0] sm:$0xff]
    %v53 = vld [vmem:[%s2 + $0xa8] sm:$0xff]
    %v54 = vld [vmem:[%s2 + $0xb0] sm:$0xff]
    %v55 = vld [vmem:[%s2 + $0xb8] sm:$0xff]
    %v56 = vld [vmem:[%s2 + $0xc0] sm:$0x1]
    %v57 = vld [vmem:[%s2 + $0xc1] sm:$0x1]
    %v58 = vld [vmem:[%s2 + $0xc2] sm:$0x1]
    %vm59 = vcmask 15360
    %v61 = vsel %vm59, %v17, 0
    %vm63 = vcmask 1041408
    %v65 = vsel %vm63, %v15, 0
    %67 = vmatprep.subr.mxu0 0.0
    %68 = vmatpush1.msra.mxu0 0.0
    %69 = vmatprep.subr.mxu0 0.0
    %70 = vmatpush1.msra.mxu0 0.0
    %71 = vmatprep.subr.mxu0 0.0
    %72 = vmatpush1.msra.mxu0 0.0
    %73 = vmatprep.subr.mxu0 0.0
    %74 = vmatpush1.msra.mxu0 0.0
    %75 = vmatprep.subr.mxu0 0.0
    %76 = vmatpush1.msra.mxu0 0.0
    %77 = vmatprep.subr.mxu0 0.0
    %78 = vmatpush1.msra.mxu0 0.0
    %79 = vmatprep.subr.mxu0 0.0
    %80 = vmatpush1.msra.mxu0 0.0
    %81 = vmatprep.subr.mxu0 0.0
    %82 = vmatpush1.msra.mxu0 0.0
    %83 = vmatprep.subr.mxu0 0.0
    %84 = vmatpush1.msra.mxu0 0.0
    %85 = vmatprep.subr.mxu0 0.0
    %86 = vmatpush1.msra.mxu0 0.0
    %87 = vmatprep.subr.mxu0 0.0
    %88 = vmatpush1.msra.mxu0 0.0
    %89 = vmatprep.subr.mxu0 0.0
    %90 = vmatpush1.msra.mxu0 0.0
    %91 = vmatprep.subr.mxu0 0.0
    %92 = vmatpush1.msra.mxu0 0.0
    %93 = vmatprep.subr.mxu0 0.0
    %94 = vmatpush1.msra.mxu0 0.0
    %95 = vmatprep.subr.mxu0 0.0
    %96 = vmatpush1.msra.mxu0 0.0
    %97 = vmatprep.subr.mxu0 0.0
    %98 = vmatpush1.msra.mxu0 %v65
    %99 = vmatprep.subr.mxu0 0.0
    %100 = vmatpush2.msra.mxu0 0.0
    %101 = vmatprep.subr.mxu0 0.0
    %102 = vmatpush2.msra.mxu0 0.0
    %103 = vmatprep.subr.mxu0 0.0
    %104 = vmatpush2.msra.mxu0 0.0
    %105 = vmatprep.subr.mxu0 0.0
    %106 = vmatpush2.msra.mxu0 0.0
    %107 = vmatprep.subr.mxu0 0.0
    %108 = vmatpush2.msra.mxu0 0.0
    %109 = vmatprep.subr.mxu0 0.0
    %110 = vmatpush2.msra.mxu0 0.0
    %111 = vmatprep.subr.mxu0 0.0
    %112 = vmatpush2.msra.mxu0 0.0
    %113 = vmatprep.subr.mxu0 0.0
    %114 = vmatpush2.msra.mxu0 0.0
    %115 = vmatprep.subr.mxu0 0.0
    %116 = vmatpush2.msra.mxu0 0.0
    %117 = vmatprep.subr.mxu0 0.0
    %118 = vmatpush2.msra.mxu0 0.0
    %119 = vmatprep.subr.mxu0 0.0
    %120 = vmatpush2.msra.mxu0 0.0
    %121 = vmatprep.subr.mxu0 0.0
    %122 = vmatpush2.msra.mxu0 0.0
    %123 = vmatprep.subr.mxu0 0.0
    %124 = vmatpush2.msra.mxu0 0.0
    %125 = vmatprep.subr.mxu0 0.0
    %126 = vmatpush2.msra.mxu0 0.0
    %127 = vmatprep.subr.mxu0 0.0
    %128 = vmatpush2.msra.mxu0 0.0
    %129 = vmatprep.subr.mxu0 0.0
    %130 = vmatpush2.msra.mxu0 0.0
    %131 = vmatprep.mubr.f32.mxu0 0.0
    %132 = vmatmul.mubr.f32.gmra.mxu0 %v61
    %v133 = vpop.f32.mrf.mxu0
    %v134 = vadd.f32 0.0, %v133
    %v135 = vpop.f32.mrf.mxu0
    %136 = vdwg.mxu0
    %v138 = vsel %vm59, %v18, 0
    %v141 = vsel %vm63, %v16, 0
    %143 = vmatprep.subr.mxu0 0.0
    %144 = vmatpush1.msra.mxu0 0.0
    %145 = vmatprep.subr.mxu0 0.0
    %146 = vmatpush1.msra.mxu0 0.0
    %147 = vmatprep.subr.mxu0 0.0
    %148 = vmatpush1.msra.mxu0 0.0
    %149 = vmatprep.subr.mxu0 0.0
    %150 = vmatpush1.msra.mxu0 0.0
    %151 = vmatprep.subr.mxu0 0.0
    %152 = vmatpush1.msra.mxu0 0.0
    %153 = vmatprep.subr.mxu0 0.0
    %154 = vmatpush1.msra.mxu0 0.0
    %155 = vmatprep.subr.mxu0 0.0
    %156 = vmatpush1.msra.mxu0 0.0
    %157 = vmatprep.subr.mxu0 0.0
    %158 = vmatpush1.msra.mxu0 0.0
    %159 = vmatprep.subr.mxu0 0.0
    %160 = vmatpush1.msra.mxu0 0.0
    %161 = vmatprep.subr.mxu0 0.0
    %162 = vmatpush1.msra.mxu0 0.0
    %163 = vmatprep.subr.mxu0 0.0
    %164 = vmatpush1.msra.mxu0 0.0
    %165 = vmatprep.subr.mxu0 0.0
    %166 = vmatpush1.msra.mxu0 0.0
    %167 = vmatprep.subr.mxu0 0.0
    %168 = vmatpush1.msra.mxu0 0.0
    %169 = vmatprep.subr.mxu0 0.0
    %170 = vmatpush1.msra.mxu0 0.0
    %171 = vmatprep.subr.mxu0 0.0
    %172 = vmatpush1.msra.mxu0 0.0
    %173 = vmatprep.subr.mxu0 0.0
    %174 = vmatpush1.msra.mxu0 %v141
    %175 = vmatprep.subr.mxu0 0.0
    %176 = vmatpush2.msra.mxu0 0.0
    %177 = vmatprep.subr.mxu0 0.0
    %178 = vmatpush2.msra.mxu0 0.0
    %179 = vmatprep.subr.mxu0 0.0
    %180 = vmatpush2.msra.mxu0 0.0
    %181 = vmatprep.subr.mxu0 0.0
    %182 = vmatpush2.msra.mxu0 0.0
    %183 = vmatprep.subr.mxu0 0.0
    %184 = vmatpush2.msra.mxu0 0.0
    %185 = vmatprep.subr.mxu0 0.0
    %186 = vmatpush2.msra.mxu0 0.0
    %187 = vmatprep.subr.mxu0 0.0
    %188 = vmatpush2.msra.mxu0 0.0
    %189 = vmatprep.subr.mxu0 0.0
    %190 = vmatpush2.msra.mxu0 0.0
    %191 = vmatprep.subr.mxu0 0.0
    %192 = vmatpush2.msra.mxu0 0.0
    %193 = vmatprep.subr.mxu0 0.0
    %194 = vmatpush2.msra.mxu0 0.0
    %195 = vmatprep.subr.mxu0 0.0
    %196 = vmatpush2.msra.mxu0 0.0
    %197 = vmatprep.subr.mxu0 0.0
    %198 = vmatpush2.msra.mxu0 0.0
    %199 = vmatprep.subr.mxu0 0.0
    %200 = vmatpush2.msra.mxu0 0.0
    %201 = vmatprep.subr.mxu0 0.0
    %202 = vmatpush2.msra.mxu0 0.0
    %203 = vmatprep.subr.mxu0 0.0
    %204 = vmatpush2.msra.mxu0 0.0
    %205 = vmatprep.subr.mxu0 0.0
    %206 = vmatpush2.msra.mxu0 0.0
    %207 = vmatprep.mubr.f32.mxu0 0.0
    %208 = vmatmul.mubr.f32.gmra.mxu0 %v138
    %v209 = vpop.f32.mrf.mxu0
    %v210 = vadd.f32 0.0, %v209
    %v211 = vpop.f32.mrf.mxu0
    %212 = vdwg.mxu0
    %v213 = vmul.f32 %v134, %v29
    %v214 = vmul.f32 %v210, %v31
    %215 = vrot.lane.b32.xlu0 %v15, 96
    %v216 = vpop.permute.xlu0 %215
    %217 = vrot.lane.b32.xlu0 %v16, 96
    %v218 = vpop.permute.xlu0 %217
    %vm221 = vcmask 785408
    %v222 = vsel %vm221, %v213, %v216
    %v223 = vsel %vm221, %v214, %v218
    %v226 = vcombine.low %v222, %v216
    %v228 = vunpack.c.l.s4 1983009808
    %v229 = vunpack.c.0.s8 %v228
    %v230 = vlaneseq
    %v231 = vshrl.u32 %v230, 7
    %v232 = vsub.s32 %v229, %v231
    %v233 = vrot.slane %v226, %v232
    %v234 = vcombine.low %v223, %v218
    %v236 = vunpack.c.l.s4 1983009808
    %v237 = vunpack.c.0.s8 %v236
    %v238 = vlaneseq
    %v239 = vshrl.u32 %v238, 7
    %v240 = vsub.s32 %v237, %v239
    %v241 = vrot.slane %v234, %v240
    %v242 = vcombine.low %v233, %v241
    %v244 = vunpack.c.l.s4 1983009808
    %v245 = vunpack.c.0.s8 %v244
    %v246 = vlaneseq
    %v247 = vshrl.u32 %v246, 7
    %v248 = vsub.s32 %v245, %v247
    %v249 = vrot.slane %v242, %v248
    %v250 = vcombine.high %v249, %v249
    %vm252 = vcmask 523264
    %v253 = vsel %vm252, %v250, 0
    %255 = vmatprep.subr.mxu0 0.0
    %256 = vmatpush1.msra.mxu0 %v47
    %257 = vmatprep.subr.mxu0 0.0
    %258 = vmatpush1.msra.mxu0 %v46
    %259 = vmatprep.subr.mxu0 0.0
    %260 = vmatpush1.msra.mxu0 %v45
    %261 = vmatprep.subr.mxu0 0.0
    %262 = vmatpush1.msra.mxu0 %v44
    %263 = vmatprep.subr.mxu0 0.0
    %264 = vmatpush1.msra.mxu0 %v43
    %265 = vmatprep.subr.mxu0 0.0
    %266 = vmatpush1.msra.mxu0 %v42
    %267 = vmatprep.subr.mxu0 0.0
    %268 = vmatpush1.msra.mxu0 %v41
    %269 = vmatprep.subr.mxu0 0.0
    %270 = vmatpush1.msra.mxu0 %v40
    %271 = vmatprep.subr.mxu0 0.0
    %272 = vmatpush1.msra.mxu0 %v39
    %273 = vmatprep.subr.mxu0 0.0
    %274 = vmatpush1.msra.mxu0 %v38
    %275 = vmatprep.subr.mxu0 0.0
    %276 = vmatpush1.msra.mxu0 %v37
    %277 = vmatprep.subr.mxu0 0.0
    %278 = vmatpush1.msra.mxu0 %v36
    %279 = vmatprep.subr.mxu0 0.0
    %280 = vmatpush1.msra.mxu0 %v35
    %281 = vmatprep.subr.mxu0 0.0
    %282 = vmatpush1.msra.mxu0 %v34
    %283 = vmatprep.subr.mxu0 0.0
    %284 = vmatpush1.msra.mxu0 %v33
    %285 = vmatprep.subr.mxu0 0.0
    %286 = vmatpush1.msra.mxu0 %v32
    %287 = vmatprep.subr.mxu0 0.0
    %288 = vmatpush2.msra.mxu0 0.0
    %289 = vmatprep.subr.mxu0 0.0
    %290 = vmatpush2.msra.mxu0 0.0
    %291 = vmatprep.subr.mxu0 0.0
    %292 = vmatpush2.msra.mxu0 0.0
    %293 = vmatprep.subr.mxu0 0.0
    %294 = vmatpush2.msra.mxu0 0.0
    %295 = vmatprep.subr.mxu0 0.0
    %296 = vmatpush2.msra.mxu0 0.0
    %297 = vmatprep.subr.mxu0 0.0
    %298 = vmatpush2.msra.mxu0 0.0
    %299 = vmatprep.subr.mxu0 0.0
    %300 = vmatpush2.msra.mxu0 0.0
    %301 = vmatprep.subr.mxu0 0.0
    %302 = vmatpush2.msra.mxu0 0.0
    %303 = vmatprep.subr.mxu0 0.0
    %304 = vmatpush2.msra.mxu0 %v55
    %305 = vmatprep.subr.mxu0 0.0
    %306 = vmatpush2.msra.mxu0 %v54
    %307 = vmatprep.subr.mxu0 0.0
    %308 = vmatpush2.msra.mxu0 %v53
    %309 = vmatprep.subr.mxu0 0.0
    %310 = vmatpush2.msra.mxu0 %v52
    %311 = vmatprep.subr.mxu0 0.0
    %312 = vmatpush2.msra.mxu0 %v51
    %313 = vmatprep.subr.mxu0 0.0
    %314 = vmatpush2.msra.mxu0 %v50
    %315 = vmatprep.subr.mxu0 0.0
    %316 = vmatpush2.msra.mxu0 %v49
    %317 = vmatprep.subr.mxu0 0.0
    %318 = vmatpush2.msra.mxu0 %v48
    %319 = vmatprep.mubr.f32.mxu0 %v253
    %320 = vmatmul.mubr.f32.gmra.mxu0 %v249
    %v321 = vpop.f32.mrf.mxu0
    %v322 = vadd.f32 0.0, %v321
    %v323 = vpop.f32.mrf.mxu0
    %324 = vdwg.mxu0
    %v327 = vunpack.c.l.s4 1983009808
    %v328 = vunpack.c.0.s8 %v327
    %v329 = vlaneseq
    %v330 = vshrl.u32 %v329, 7
    %v331 = vsub.s32 %v328, %v330
    %v332 = vrot.slane %v322, %v331
    %v333 = vcombine.high %v332, %v332
    %v336 = vlaneseq
    %v337 = vshrl.u32 %v336, 7
    %v338 = vsub.s32 0, %v337
    %v339 = vrot.slane %v56, %v338
    %v340 = vadd.f32 %v332, %v339
    %v341 = vadd.f32 %v333, %v339
    %v342 = vmax.f32 %v340, 0.0
    %v343 = vmax.f32 %v341, 0.0
    %vm344 = vcmask 254976
    %v345 = vsel %vm344, %v342, 0.0
    %v346 = vrot.slane %v345, 4
    %v347 = vadd.f32 %v345, %v346
    %v348 = vrot.slane %v347, 2
    %v349 = vadd.f32 %v347, %v348
    %v350 = vrot.slane %v349, 1
    %v351 = vadd.f32 %v349, %v350
    %v352 = vsel %vm344, %v343, 0.0
    %v353 = vrot.slane %v352, 4
    %v354 = vadd.f32 %v352, %v353
    %v355 = vrot.slane %v354, 2
    %v356 = vadd.f32 %v354, %v355
    %v357 = vrot.slane %v356, 1
    %v358 = vadd.f32 %v356, %v357
    %vm359 = vcmask 261120
    %v360 = vsel %vm359, %v351, 0.0
    %v361 = vsel %vm359, %v358, 0.0
    %v362 = vadd.f32 %v360, %v361
    %v363 = vrcp.pop 4.0
    %v364 = vmul.f32 %v362, %v363
    %v365 = vsub.f32 %v342, %v364
    %v366 = vsub.f32 %v343, %v364
    %v367 = vmul.f32 %v365, %v365
    %v368 = vmul.f32 %v366, %v366
    %v369 = vsel %vm344, %v367, 0.0
    %v370 = vrot.slane %v369, 4
    %v371 = vadd.f32 %v369, %v370
    %v372 = vrot.slane %v371, 2
    %v373 = vadd.f32 %v371, %v372
    %v374 = vrot.slane %v373, 1
    %v375 = vadd.f32 %v373, %v374
    %v376 = vsel %vm344, %v368, 0.0
    %v377 = vrot.slane %v376, 4
    %v378 = vadd.f32 %v376, %v377
    %v379 = vrot.slane %v378, 2
    %v380 = vadd.f32 %v378, %v379
    %v381 = vrot.slane %v380, 1
    %v382 = vadd.f32 %v380, %v381
    %v383 = vsel %vm359, %v375, 0.0
    %v384 = vsel %vm359, %v382, 0.0
    %v385 = vadd.f32 %v383, %v384
    %v386 = vmul.f32 %v385, %v363
    %v387 = vadd.f32 %v386, 1e-05
    %v388 = vrsqrt.pop %v387
    %v389 = vmul.f32 %v365, %v388
    %v390 = vmul.f32 %v366, %v388
    %v391 = vlaneseq
    %v392 = vshrl.u32 %v391, 7
    %v393 = vsub.s32 0, %v392
    %v394 = vrot.slane %v57, %v393
    %v395 = vmul.f32 %v389, %v394
    %v396 = vmul.f32 %v390, %v394
    %v397 = vlaneseq
    %v398 = vshrl.u32 %v397, 7
    %v399 = vsub.s32 0, %v398
    %v400 = vrot.slane %v58, %v399
    %v401 = vadd.f32 %v395, %v400
    %v402 = vadd.f32 %v396, %v400
    %v403 = vld [vmem:[%s2 + $0xc3] sm:$0xff]
    %v404 = vld [vmem:[%s2 + $0xcb] sm:$0xff]
    %v405 = vld [vmem:[%s2 + $0xd3] sm:$0xff]
    %v406 = vld [vmem:[%s2 + $0xdb] sm:$0xff]
    %v407 = vld [vmem:[%s2 + $0xe3] sm:$0xff]
    %v408 = vld [vmem:[%s2 + $0xeb] sm:$0xff]
    %v409 = vld [vmem:[%s2 + $0xf3] sm:$0xff]
    %v410 = vld [vmem:[%s2 + $0xfb] sm:$0xff]
    %v411 = vld [vmem:[%s2 + $0x103] sm:$0x1]
    %v412 = vld [vmem:[%s2 + $0x104] sm:$0x1]
    %v413 = vld [vmem:[%s2 + $0x105] sm:$0x1]
    %v415 = vsel %vm63, %v401, 0
    %417 = vmatprep.subr.mxu0 0.0
    %418 = vmatpush1.msra.mxu0 0.0
    %419 = vmatprep.subr.mxu0 0.0
    %420 = vmatpush1.msra.mxu0 0.0
    %421 = vmatprep.subr.mxu0 0.0
    %422 = vmatpush1.msra.mxu0 0.0
    %423 = vmatprep.subr.mxu0 0.0
    %424 = vmatpush1.msra.mxu0 0.0
    %425 = vmatprep.subr.mxu0 0.0
    %426 = vmatpush1.msra.mxu0 0.0
    %427 = vmatprep.subr.mxu0 0.0
    %428 = vmatpush1.msra.mxu0 0.0
    %429 = vmatprep.subr.mxu0 0.0
    %430 = vmatpush1.msra.mxu0 0.0
    %431 = vmatprep.subr.mxu0 0.0
    %432 = vmatpush1.msra.mxu0 0.0
    %433 = vmatprep.subr.mxu0 0.0
    %434 = vmatpush1.msra.mxu0 0.0
    %435 = vmatprep.subr.mxu0 0.0
    %436 = vmatpush1.msra.mxu0 0.0
    %437 = vmatprep.subr.mxu0 0.0
    %438 = vmatpush1.msra.mxu0 0.0
    %439 = vmatprep.subr.mxu0 0.0
    %440 = vmatpush1.msra.mxu0 0.0
    %441 = vmatprep.subr.mxu0 0.0
    %442 = vmatpush1.msra.mxu0 0.0
    %443 = vmatprep.subr.mxu0 0.0
    %444 = vmatpush1.msra.mxu0 0.0
    %445 = vmatprep.subr.mxu0 0.0
    %446 = vmatpush1.msra.mxu0 0.0
    %447 = vmatprep.subr.mxu0 0.0
    %448 = vmatpush1.msra.mxu0 %v415
    %449 = vmatprep.subr.mxu0 0.0
    %450 = vmatpush2.msra.mxu0 0.0
    %451 = vmatprep.subr.mxu0 0.0
    %452 = vmatpush2.msra.mxu0 0.0
    %453 = vmatprep.subr.mxu0 0.0
    %454 = vmatpush2.msra.mxu0 0.0
    %455 = vmatprep.subr.mxu0 0.0
    %456 = vmatpush2.msra.mxu0 0.0
    %457 = vmatprep.subr.mxu0 0.0
    %458 = vmatpush2.msra.mxu0 0.0
    %459 = vmatprep.subr.mxu0 0.0
    %460 = vmatpush2.msra.mxu0 0.0
    %461 = vmatprep.subr.mxu0 0.0
    %462 = vmatpush2.msra.mxu0 0.0
    %463 = vmatprep.subr.mxu0 0.0
    %464 = vmatpush2.msra.mxu0 0.0
    %465 = vmatprep.subr.mxu0 0.0
    %466 = vmatpush2.msra.mxu0 0.0
    %467 = vmatprep.subr.mxu0 0.0
    %468 = vmatpush2.msra.mxu0 0.0
    %469 = vmatprep.subr.mxu0 0.0
    %470 = vmatpush2.msra.mxu0 0.0
    %471 = vmatprep.subr.mxu0 0.0
    %472 = vmatpush2.msra.mxu0 0.0
    %473 = vmatprep.subr.mxu0 0.0
    %474 = vmatpush2.msra.mxu0 0.0
    %475 = vmatprep.subr.mxu0 0.0
    %476 = vmatpush2.msra.mxu0 0.0
    %477 = vmatprep.subr.mxu0 0.0
    %478 = vmatpush2.msra.mxu0 0.0
    %479 = vmatprep.subr.mxu0 0.0
    %480 = vmatpush2.msra.mxu0 0.0
    %481 = vmatprep.mubr.f32.mxu0 0.0
    %482 = vmatmul.mubr.f32.gmra.mxu0 %v61
    %v483 = vpop.f32.mrf.mxu0
    %v484 = vadd.f32 0.0, %v483
    %v485 = vpop.f32.mrf.mxu0
    %486 = vdwg.mxu0
    %v488 = vsel %vm63, %v402, 0
    %490 = vmatprep.subr.mxu0 0.0
    %491 = vmatpush1.msra.mxu0 0.0
    %492 = vmatprep.subr.mxu0 0.0
    %493 = vmatpush1.msra.mxu0 0.0
    %494 = vmatprep.subr.mxu0 0.0
    %495 = vmatpush1.msra.mxu0 0.0
    %496 = vmatprep.subr.mxu0 0.0
    %497 = vmatpush1.msra.mxu0 0.0
    %498 = vmatprep.subr.mxu0 0.0
    %499 = vmatpush1.msra.mxu0 0.0
    %500 = vmatprep.subr.mxu0 0.0
    %501 = vmatpush1.msra.mxu0 0.0
    %502 = vmatprep.subr.mxu0 0.0
    %503 = vmatpush1.msra.mxu0 0.0
    %504 = vmatprep.subr.mxu0 0.0
    %505 = vmatpush1.msra.mxu0 0.0
    %506 = vmatprep.subr.mxu0 0.0
    %507 = vmatpush1.msra.mxu0 0.0
    %508 = vmatprep.subr.mxu0 0.0
    %509 = vmatpush1.msra.mxu0 0.0
    %510 = vmatprep.subr.mxu0 0.0
    %511 = vmatpush1.msra.mxu0 0.0
    %512 = vmatprep.subr.mxu0 0.0
    %513 = vmatpush1.msra.mxu0 0.0
    %514 = vmatprep.subr.mxu0 0.0
    %515 = vmatpush1.msra.mxu0 0.0
    %516 = vmatprep.subr.mxu0 0.0
    %517 = vmatpush1.msra.mxu0 0.0
    %518 = vmatprep.subr.mxu0 0.0
    %519 = vmatpush1.msra.mxu0 0.0
    %520 = vmatprep.subr.mxu0 0.0
    %521 = vmatpush1.msra.mxu0 %v488
    %522 = vmatprep.subr.mxu0 0.0
    %523 = vmatpush2.msra.mxu0 0.0
    %524 = vmatprep.subr.mxu0 0.0
    %525 = vmatpush2.msra.mxu0 0.0
    %526 = vmatprep.subr.mxu0 0.0
    %527 = vmatpush2.msra.mxu0 0.0
    %528 = vmatprep.subr.mxu0 0.0
    %529 = vmatpush2.msra.mxu0 0.0
    %530 = vmatprep.subr.mxu0 0.0
    %531 = vmatpush2.msra.mxu0 0.0
    %532 = vmatprep.subr.mxu0 0.0
    %533 = vmatpush2.msra.mxu0 0.0
    %534 = vmatprep.subr.mxu0 0.0
    %535 = vmatpush2.msra.mxu0 0.0
    %536 = vmatprep.subr.mxu0 0.0
    %537 = vmatpush2.msra.mxu0 0.0
    %538 = vmatprep.subr.mxu0 0.0
    %539 = vmatpush2.msra.mxu0 0.0
    %540 = vmatprep.subr.mxu0 0.0
    %541 = vmatpush2.msra.mxu0 0.0
    %542 = vmatprep.subr.mxu0 0.0
    %543 = vmatpush2.msra.mxu0 0.0
    %544 = vmatprep.subr.mxu0 0.0
    %545 = vmatpush2.msra.mxu0 0.0
    %546 = vmatprep.subr.mxu0 0.0
    %547 = vmatpush2.msra.mxu0 0.0
    %548 = vmatprep.subr.mxu0 0.0
    %549 = vmatpush2.msra.mxu0 0.0
    %550 = vmatprep.subr.mxu0 0.0
    %551 = vmatpush2.msra.mxu0 0.0
    %552 = vmatprep.subr.mxu0 0.0
    %553 = vmatpush2.msra.mxu0 0.0
    %554 = vmatprep.mubr.f32.mxu0 0.0
    %555 = vmatmul.mubr.f32.gmra.mxu0 %v138
    %v556 = vpop.f32.mrf.mxu0
    %v557 = vadd.f32 0.0, %v556
    %v558 = vpop.f32.mrf.mxu0
    %559 = vdwg.mxu0
    %v560 = vmul.f32 %v484, %v29
    %v561 = vmul.f32 %v557, %v31
    %v563 = vunpack.c.l.s4 1983009808
    %v564 = vunpack.c.0.s8 %v563
    %v565 = vlaneseq
    %v566 = vshrl.u32 %v565, 7
    %v567 = vsub.s32 %v564, %v566
    %v568 = vrot.slane %v401, %v567
    %v570 = vunpack.c.l.s4 1983009808
    %v571 = vunpack.c.0.s8 %v570
    %v572 = vlaneseq
    %v573 = vshrl.u32 %v572, 7
    %v574 = vsub.s32 %v571, %v573
    %v575 = vrot.slane %v402, %v574
    %576 = vrot.lane.b32.xlu0 %v568, 32
    %v577 = vpop.permute.xlu0 %576
    %578 = vrot.lane.b32.xlu0 %v575, 32
    %v579 = vpop.permute.xlu0 %578
    %v582 = vsel %vm359, %v560, %v577
    %v583 = vsel %vm359, %v561, %v579
    %v586 = vcombine.low %v582, %v583
    %v588 = vunpack.c.l.s4 1983009808
    %v589 = vunpack.c.0.s8 %v588
    %v590 = vlaneseq
    %v591 = vshrl.u32 %v590, 7
    %v592 = vsub.s32 %v589, %v591
    %v593 = vrot.slane %v586, %v592
    %v594 = vsel %vm252, %v593, 0
    %596 = vmatprep.subr.mxu0 0.0
    %597 = vmatpush1.msra.mxu0 0.0
    %598 = vmatprep.subr.mxu0 0.0
    %599 = vmatpush1.msra.mxu0 0.0
    %600 = vmatprep.subr.mxu0 0.0
    %601 = vmatpush1.msra.mxu0 0.0
    %602 = vmatprep.subr.mxu0 0.0
    %603 = vmatpush1.msra.mxu0 0.0
    %604 = vmatprep.subr.mxu0 0.0
    %605 = vmatpush1.msra.mxu0 0.0
    %606 = vmatprep.subr.mxu0 0.0
    %607 = vmatpush1.msra.mxu0 0.0
    %608 = vmatprep.subr.mxu0 0.0
    %609 = vmatpush1.msra.mxu0 0.0
    %610 = vmatprep.subr.mxu0 0.0
    %611 = vmatpush1.msra.mxu0 0.0
    %612 = vmatprep.subr.mxu0 0.0
    %613 = vmatpush1.msra.mxu0 %v410
    %614 = vmatprep.subr.mxu0 0.0
    %615 = vmatpush1.msra.mxu0 %v409
    %616 = vmatprep.subr.mxu0 0.0
    %617 = vmatpush1.msra.mxu0 %v408
    %618 = vmatprep.subr.mxu0 0.0
    %619 = vmatpush1.msra.mxu0 %v407
    %620 = vmatprep.subr.mxu0 0.0
    %621 = vmatpush1.msra.mxu0 %v406
    %622 = vmatprep.subr.mxu0 0.0
    %623 = vmatpush1.msra.mxu0 %v405
    %624 = vmatprep.subr.mxu0 0.0
    %625 = vmatpush1.msra.mxu0 %v404
    %626 = vmatprep.subr.mxu0 0.0
    %627 = vmatpush1.msra.mxu0 %v403
    %628 = vmatprep.subr.mxu0 0.0
    %629 = vmatpush2.msra.mxu0 0.0
    %630 = vmatprep.subr.mxu0 0.0
    %631 = vmatpush2.msra.mxu0 0.0
    %632 = vmatprep.subr.mxu0 0.0
    %633 = vmatpush2.msra.mxu0 0.0
    %634 = vmatprep.subr.mxu0 0.0
    %635 = vmatpush2.msra.mxu0 0.0
    %636 = vmatprep.subr.mxu0 0.0
    %637 = vmatpush2.msra.mxu0 0.0
    %638 = vmatprep.subr.mxu0 0.0
    %639 = vmatpush2.msra.mxu0 0.0
    %640 = vmatprep.subr.mxu0 0.0
    %641 = vmatpush2.msra.mxu0 0.0
    %642 = vmatprep.subr.mxu0 0.0
    %643 = vmatpush2.msra.mxu0 0.0
    %644 = vmatprep.subr.mxu0 0.0
    %645 = vmatpush2.msra.mxu0 0.0
    %646 = vmatprep.subr.mxu0 0.0
    %647 = vmatpush2.msra.mxu0 0.0
    %648 = vmatprep.subr.mxu0 0.0
    %649 = vmatpush2.msra.mxu0 0.0
    %650 = vmatprep.subr.mxu0 0.0
    %651 = vmatpush2.msra.mxu0 0.0
    %652 = vmatprep.subr.mxu0 0.0
    %653 = vmatpush2.msra.mxu0 0.0
    %654 = vmatprep.subr.mxu0 0.0
    %655 = vmatpush2.msra.mxu0 0.0
    %656 = vmatprep.subr.mxu0 0.0
    %657 = vmatpush2.msra.mxu0 0.0
    %658 = vmatprep.subr.mxu0 0.0
    %659 = vmatpush2.msra.mxu0 0.0
    %660 = vmatprep.mubr.f32.mxu0 0.0
    %661 = vmatmul.mubr.f32.gmra.mxu0 %v594
    %v662 = vpop.f32.mrf.mxu0
    %v663 = vadd.f32 0.0, %v662
    %v664 = vpop.f32.mrf.mxu0
    %665 = vdwg.mxu0
    %v668 = vunpack.c.l.s4 1983009808
    %v669 = vunpack.c.0.s8 %v668
    %v670 = vlaneseq
    %v671 = vshrl.u32 %v670, 7
    %v672 = vsub.s32 %v669, %v671
    %v673 = vrot.slane %v663, %v672
    %v674 = vcombine.high %v673, %v673
    %v677 = vlaneseq
    %v678 = vshrl.u32 %v677, 7
    %v679 = vsub.s32 0, %v678
    %v680 = vrot.slane %v411, %v679
    %v681 = vadd.f32 %v673, %v680
    %v682 = vadd.f32 %v674, %v680
    %v683 = vmax.f32 %v681, 0.0
    %v684 = vmax.f32 %v682, 0.0
    %v685 = vsel %vm344, %v683, 0.0
    %v686 = vrot.slane %v685, 4
    %v687 = vadd.f32 %v685, %v686
    %v688 = vrot.slane %v687, 2
    %v689 = vadd.f32 %v687, %v688
    %v690 = vrot.slane %v689, 1
    %v691 = vadd.f32 %v689, %v690
    %v692 = vsel %vm344, %v684, 0.0
    %v693 = vrot.slane %v692, 4
    %v694 = vadd.f32 %v692, %v693
    %v695 = vrot.slane %v694, 2
    %v696 = vadd.f32 %v694, %v695
    %v697 = vrot.slane %v696, 1
    %v698 = vadd.f32 %v696, %v697
    %v699 = vsel %vm359, %v691, 0.0
    %v700 = vsel %vm359, %v698, 0.0
    %v701 = vadd.f32 %v699, %v700
    %v702 = vmul.f32 %v701, %v363
    %v703 = vsub.f32 %v683, %v702
    %v704 = vsub.f32 %v684, %v702
    %v705 = vmul.f32 %v703, %v703
    %v706 = vmul.f32 %v704, %v704
    %v707 = vsel %vm344, %v705, 0.0
    %v708 = vrot.slane %v707, 4
    %v709 = vadd.f32 %v707, %v708
    %v710 = vrot.slane %v709, 2
    %v711 = vadd.f32 %v709, %v710
    %v712 = vrot.slane %v711, 1
    %v713 = vadd.f32 %v711, %v712
    %v714 = vsel %vm344, %v706, 0.0
    %v715 = vrot.slane %v714, 4
    %v716 = vadd.f32 %v714, %v715
    %v717 = vrot.slane %v716, 2
    %v718 = vadd.f32 %v716, %v717
    %v719 = vrot.slane %v718, 1
    %v720 = vadd.f32 %v718, %v719
    %v721 = vsel %vm359, %v713, 0.0
    %v722 = vsel %vm359, %v720, 0.0
    %v723 = vadd.f32 %v721, %v722
    %v724 = vmul.f32 %v723, %v363
    %v725 = vadd.f32 %v724, 1e-05
    %v726 = vrsqrt.pop %v725
    %v727 = vmul.f32 %v703, %v726
    %v728 = vmul.f32 %v704, %v726
    %v729 = vlaneseq
    %v730 = vshrl.u32 %v729, 7
    %v731 = vsub.s32 0, %v730
    %v732 = vrot.slane %v412, %v731
    %v733 = vmul.f32 %v727, %v732
    %v734 = vmul.f32 %v728, %v732
    %v735 = vlaneseq
    %v736 = vshrl.u32 %v735, 7
    %v737 = vsub.s32 0, %v736
    %v738 = vrot.slane %v413, %v737
    %v739 = vadd.f32 %v733, %v738
    %v740 = vadd.f32 %v734, %v738
    %v741 = vld [vmem:[%s2 + $0x106] sm:$0xff]
    %v742 = vld [vmem:[%s2 + $0x10e] sm:$0xff]
    %v743 = vld [vmem:[%s2 + $0x116] sm:$0xff]
    %v744 = vld [vmem:[%s2 + $0x11e] sm:$0xff]
    %v745 = vld [vmem:[%s2 + $0x126] sm:$0xff]
    %v746 = vld [vmem:[%s2 + $0x12e] sm:$0xff]
    %v747 = vld [vmem:[%s2 + $0x136] sm:$0xff]
    %v748 = vld [vmem:[%s2 + $0x13e] sm:$0xff]
    %v749 = vld [vmem:[%s2 + $0x146] sm:$0x1]
    %v750 = vld [vmem:[%s2 + $0x147] sm:$0x1]
    %v751 = vld [vmem:[%s2 + $0x148] sm:$0x1]
    %v753 = vsel %vm63, %v739, 0
    %755 = vmatprep.subr.mxu0 0.0
    %756 = vmatpush1.msra.mxu0 0.0
    %757 = vmatprep.subr.mxu0 0.0
    %758 = vmatpush1.msra.mxu0 0.0
    %759 = vmatprep.subr.mxu0 0.0
    %760 = vmatpush1.msra.mxu0 0.0
    %761 = vmatprep.subr.mxu0 0.0
    %762 = vmatpush1.msra.mxu0 0.0
    %763 = vmatprep.subr.mxu0 0.0
    %764 = vmatpush1.msra.mxu0 0.0
    %765 = vmatprep.subr.mxu0 0.0
    %766 = vmatpush1.msra.mxu0 0.0
    %767 = vmatprep.subr.mxu0 0.0
    %768 = vmatpush1.msra.mxu0 0.0
    %769 = vmatprep.subr.mxu0 0.0
    %770 = vmatpush1.msra.mxu0 0.0
    %771 = vmatprep.subr.mxu0 0.0
    %772 = vmatpush1.msra.mxu0 0.0
    %773 = vmatprep.subr.mxu0 0.0
    %774 = vmatpush1.msra.mxu0 0.0
    %775 = vmatprep.subr.mxu0 0.0
    %776 = vmatpush1.msra.mxu0 0.0
    %777 = vmatprep.subr.mxu0 0.0
    %778 = vmatpush1.msra.mxu0 0.0
    %779 = vmatprep.subr.mxu0 0.0
    %780 = vmatpush1.msra.mxu0 0.0
    %781 = vmatprep.subr.mxu0 0.0
    %782 = vmatpush1.msra.mxu0 0.0
    %783 = vmatprep.subr.mxu0 0.0
    %784 = vmatpush1.msra.mxu0 0.0
    %785 = vmatprep.subr.mxu0 0.0
    %786 = vmatpush1.msra.mxu0 %v753
    %787 = vmatprep.subr.mxu0 0.0
    %788 = vmatpush2.msra.mxu0 0.0
    %789 = vmatprep.subr.mxu0 0.0
    %790 = vmatpush2.msra.mxu0 0.0
    %791 = vmatprep.subr.mxu0 0.0
    %792 = vmatpush2.msra.mxu0 0.0
    %793 = vmatprep.subr.mxu0 0.0
    %794 = vmatpush2.msra.mxu0 0.0
    %795 = vmatprep.subr.mxu0 0.0
    %796 = vmatpush2.msra.mxu0 0.0
    %797 = vmatprep.subr.mxu0 0.0
    %798 = vmatpush2.msra.mxu0 0.0
    %799 = vmatprep.subr.mxu0 0.0
    %800 = vmatpush2.msra.mxu0 0.0
    %801 = vmatprep.subr.mxu0 0.0
    %802 = vmatpush2.msra.mxu0 0.0
    %803 = vmatprep.subr.mxu0 0.0
    %804 = vmatpush2.msra.mxu0 0.0
    %805 = vmatprep.subr.mxu0 0.0
    %806 = vmatpush2.msra.mxu0 0.0
    %807 = vmatprep.subr.mxu0 0.0
    %808 = vmatpush2.msra.mxu0 0.0
    %809 = vmatprep.subr.mxu0 0.0
    %810 = vmatpush2.msra.mxu0 0.0
    %811 = vmatprep.subr.mxu0 0.0
    %812 = vmatpush2.msra.mxu0 0.0
    %813 = vmatprep.subr.mxu0 0.0
    %814 = vmatpush2.msra.mxu0 0.0
    %815 = vmatprep.subr.mxu0 0.0
    %816 = vmatpush2.msra.mxu0 0.0
    %817 = vmatprep.subr.mxu0 0.0
    %818 = vmatpush2.msra.mxu0 0.0
    %819 = vmatprep.mubr.f32.mxu0 0.0
    %820 = vmatmul.mubr.f32.gmra.mxu0 %v61
    %v821 = vpop.f32.mrf.mxu0
    %v822 = vadd.f32 0.0, %v821
    %v823 = vpop.f32.mrf.mxu0
    %824 = vdwg.mxu0
    %v826 = vsel %vm63, %v740, 0
    %828 = vmatprep.subr.mxu0 0.0
    %829 = vmatpush1.msra.mxu0 0.0
    %830 = vmatprep.subr.mxu0 0.0
    %831 = vmatpush1.msra.mxu0 0.0
    %832 = vmatprep.subr.mxu0 0.0
    %833 = vmatpush1.msra.mxu0 0.0
    %834 = vmatprep.subr.mxu0 0.0
    %835 = vmatpush1.msra.mxu0 0.0
    %836 = vmatprep.subr.mxu0 0.0
    %837 = vmatpush1.msra.mxu0 0.0
    %838 = vmatprep.subr.mxu0 0.0
    %839 = vmatpush1.msra.mxu0 0.0
    %840 = vmatprep.subr.mxu0 0.0
    %841 = vmatpush1.msra.mxu0 0.0
    %842 = vmatprep.subr.mxu0 0.0
    %843 = vmatpush1.msra.mxu0 0.0
    %844 = vmatprep.subr.mxu0 0.0
    %845 = vmatpush1.msra.mxu0 0.0
    %846 = vmatprep.subr.mxu0 0.0
    %847 = vmatpush1.msra.mxu0 0.0
    %848 = vmatprep.subr.mxu0 0.0
    %849 = vmatpush1.msra.mxu0 0.0
    %850 = vmatprep.subr.mxu0 0.0
    %851 = vmatpush1.msra.mxu0 0.0
    %852 = vmatprep.subr.mxu0 0.0
    %853 = vmatpush1.msra.mxu0 0.0
    %854 = vmatprep.subr.mxu0 0.0
    %855 = vmatpush1.msra.mxu0 0.0
    %856 = vmatprep.subr.mxu0 0.0
    %857 = vmatpush1.msra.mxu0 0.0
    %858 = vmatprep.subr.mxu0 0.0
    %859 = vmatpush1.msra.mxu0 %v826
    %860 = vmatprep.subr.mxu0 0.0
    %861 = vmatpush2.msra.mxu0 0.0
    %862 = vmatprep.subr.mxu0 0.0
    %863 = vmatpush2.msra.mxu0 0.0
    %864 = vmatprep.subr.mxu0 0.0
    %865 = vmatpush2.msra.mxu0 0.0
    %866 = vmatprep.subr.mxu0 0.0
    %867 = vmatpush2.msra.mxu0 0.0
    %868 = vmatprep.subr.mxu0 0.0
    %869 = vmatpush2.msra.mxu0 0.0
    %870 = vmatprep.subr.mxu0 0.0
    %871 = vmatpush2.msra.mxu0 0.0
    %872 = vmatprep.subr.mxu0 0.0
    %873 = vmatpush2.msra.mxu0 0.0
    %874 = vmatprep.subr.mxu0 0.0
    %875 = vmatpush2.msra.mxu0 0.0
    %876 = vmatprep.subr.mxu0 0.0
    %877 = vmatpush2.msra.mxu0 0.0
    %878 = vmatprep.subr.mxu0 0.0
    %879 = vmatpush2.msra.mxu0 0.0
    %880 = vmatprep.subr.mxu0 0.0
    %881 = vmatpush2.msra.mxu0 0.0
    %882 = vmatprep.subr.mxu0 0.0
    %883 = vmatpush2.msra.mxu0 0.0
    %884 = vmatprep.subr.mxu0 0.0
    %885 = vmatpush2.msra.mxu0 0.0
    %886 = vmatprep.subr.mxu0 0.0
    %887 = vmatpush2.msra.mxu0 0.0
    %888 = vmatprep.subr.mxu0 0.0
    %889 = vmatpush2.msra.mxu0 0.0
    %890 = vmatprep.subr.mxu0 0.0
    %891 = vmatpush2.msra.mxu0 0.0
    %892 = vmatprep.mubr.f32.mxu0 0.0
    %893 = vmatmul.mubr.f32.gmra.mxu0 %v138
    %v894 = vpop.f32.mrf.mxu0
    %v895 = vadd.f32 0.0, %v894
    %v896 = vpop.f32.mrf.mxu0
    %897 = vdwg.mxu0
    %v898 = vmul.f32 %v822, %v29
    %v899 = vmul.f32 %v895, %v31
    %v901 = vunpack.c.l.s4 1983009808
    %v902 = vunpack.c.0.s8 %v901
    %v903 = vlaneseq
    %v904 = vshrl.u32 %v903, 7
    %v905 = vsub.s32 %v902, %v904
    %v906 = vrot.slane %v739, %v905
    %v908 = vunpack.c.l.s4 1983009808
    %v909 = vunpack.c.0.s8 %v908
    %v910 = vlaneseq
    %v911 = vshrl.u32 %v910, 7
    %v912 = vsub.s32 %v909, %v911
    %v913 = vrot.slane %v740, %v912
    %914 = vrot.lane.b32.xlu0 %v906, 32
    %v915 = vpop.permute.xlu0 %914
    %916 = vrot.lane.b32.xlu0 %v913, 32
    %v917 = vpop.permute.xlu0 %916
    %v920 = vsel %vm359, %v898, %v915
    %v921 = vsel %vm359, %v899, %v917
    %v924 = vcombine.low %v920, %v921
    %v926 = vunpack.c.l.s4 1983009808
    %v927 = vunpack.c.0.s8 %v926
    %v928 = vlaneseq
    %v929 = vshrl.u32 %v928, 7
    %v930 = vsub.s32 %v927, %v929
    %v931 = vrot.slane %v924, %v930
    %v932 = vsel %vm252, %v931, 0
    %934 = vmatprep.subr.mxu0 0.0
    %935 = vmatpush1.msra.mxu0 0.0
    %936 = vmatprep.subr.mxu0 0.0
    %937 = vmatpush1.msra.mxu0 0.0
    %938 = vmatprep.subr.mxu0 0.0
    %939 = vmatpush1.msra.mxu0 0.0
    %940 = vmatprep.subr.mxu0 0.0
    %941 = vmatpush1.msra.mxu0 0.0
    %942 = vmatprep.subr.mxu0 0.0
    %943 = vmatpush1.msra.mxu0 0.0
    %944 = vmatprep.subr.mxu0 0.0
    %945 = vmatpush1.msra.mxu0 0.0
    %946 = vmatprep.subr.mxu0 0.0
    %947 = vmatpush1.msra.mxu0 0.0
    %948 = vmatprep.subr.mxu0 0.0
    %949 = vmatpush1.msra.mxu0 0.0
    %950 = vmatprep.subr.mxu0 0.0
    %951 = vmatpush1.msra.mxu0 %v748
    %952 = vmatprep.subr.mxu0 0.0
    %953 = vmatpush1.msra.mxu0 %v747
    %954 = vmatprep.subr.mxu0 0.0
    %955 = vmatpush1.msra.mxu0 %v746
    %956 = vmatprep.subr.mxu0 0.0
    %957 = vmatpush1.msra.mxu0 %v745
    %958 = vmatprep.subr.mxu0 0.0
    %959 = vmatpush1.msra.mxu0 %v744
    %960 = vmatprep.subr.mxu0 0.0
    %961 = vmatpush1.msra.mxu0 %v743
    %962 = vmatprep.subr.mxu0 0.0
    %963 = vmatpush1.msra.mxu0 %v742
    %964 = vmatprep.subr.mxu0 0.0
    %965 = vmatpush1.msra.mxu0 %v741
    %966 = vmatprep.subr.mxu0 0.0
    %967 = vmatpush2.msra.mxu0 0.0
    %968 = vmatprep.subr.mxu0 0.0
    %969 = vmatpush2.msra.mxu0 0.0
    %970 = vmatprep.subr.mxu0 0.0
    %971 = vmatpush2.msra.mxu0 0.0
    %972 = vmatprep.subr.mxu0 0.0
    %973 = vmatpush2.msra.mxu0 0.0
    %974 = vmatprep.subr.mxu0 0.0
    %975 = vmatpush2.msra.mxu0 0.0
    %976 = vmatprep.subr.mxu0 0.0
    %977 = vmatpush2.msra.mxu0 0.0
    %978 = vmatprep.subr.mxu0 0.0
    %979 = vmatpush2.msra.mxu0 0.0
    %980 = vmatprep.subr.mxu0 0.0
    %981 = vmatpush2.msra.mxu0 0.0
    %982 = vmatprep.subr.mxu0 0.0
    %983 = vmatpush2.msra.mxu0 0.0
    %984 = vmatprep.subr.mxu0 0.0
    %985 = vmatpush2.msra.mxu0 0.0
    %986 = vmatprep.subr.mxu0 0.0
    %987 = vmatpush2.msra.mxu0 0.0
    %988 = vmatprep.subr.mxu0 0.0
    %989 = vmatpush2.msra.mxu0 0.0
    %990 = vmatprep.subr.mxu0 0.0
    %991 = vmatpush2.msra.mxu0 0.0
    %992 = vmatprep.subr.mxu0 0.0
    %993 = vmatpush2.msra.mxu0 0.0
    %994 = vmatprep.subr.mxu0 0.0
    %995 = vmatpush2.msra.mxu0 0.0
    %996 = vmatprep.subr.mxu0 0.0
    %997 = vmatpush2.msra.mxu0 0.0
    %998 = vmatprep.mubr.f32.mxu0 0.0
    %999 = vmatmul.mubr.f32.gmra.mxu0 %v932
    %v1000 = vpop.f32.mrf.mxu0
    %v1001 = vadd.f32 0.0, %v1000
    %v1002 = vpop.f32.mrf.mxu0
    %1003 = vdwg.mxu0
    %v1006 = vunpack.c.l.s4 1983009808
    %v1007 = vunpack.c.0.s8 %v1006
    %v1008 = vlaneseq
    %v1009 = vshrl.u32 %v1008, 7
    %v1010 = vsub.s32 %v1007, %v1009
    %v1011 = vrot.slane %v1001, %v1010
    %v1012 = vcombine.high %v1011, %v1011
    %v1015 = vlaneseq
    %v1016 = vshrl.u32 %v1015, 7
    %v1017 = vsub.s32 0, %v1016
    %v1018 = vrot.slane %v749, %v1017
    %v1019 = vadd.f32 %v1011, %v1018
    %v1020 = vadd.f32 %v1012, %v1018
    %v1021 = vmax.f32 %v1019, 0.0
    %v1022 = vmax.f32 %v1020, 0.0
    %v1023 = vsel %vm344, %v1021, 0.0
    %v1024 = vrot.slane %v1023, 4
    %v1025 = vadd.f32 %v1023, %v1024
    %v1026 = vrot.slane %v1025, 2
    %v1027 = vadd.f32 %v1025, %v1026
    %v1028 = vrot.slane %v1027, 1
    %v1029 = vadd.f32 %v1027, %v1028
    %v1030 = vsel %vm344, %v1022, 0.0
    %v1031 = vrot.slane %v1030, 4
    %v1032 = vadd.f32 %v1030, %v1031
    %v1033 = vrot.slane %v1032, 2
    %v1034 = vadd.f32 %v1032, %v1033
    %v1035 = vrot.slane %v1034, 1
    %v1036 = vadd.f32 %v1034, %v1035
    %v1037 = vsel %vm359, %v1029, 0.0
    %v1038 = vsel %vm359, %v1036, 0.0
    %v1039 = vadd.f32 %v1037, %v1038
    %v1040 = vmul.f32 %v1039, %v363
    %v1041 = vsub.f32 %v1021, %v1040
    %v1042 = vsub.f32 %v1022, %v1040
    %v1043 = vmul.f32 %v1041, %v1041
    %v1044 = vmul.f32 %v1042, %v1042
    %v1045 = vsel %vm344, %v1043, 0.0
    %v1046 = vrot.slane %v1045, 4
    %v1047 = vadd.f32 %v1045, %v1046
    %v1048 = vrot.slane %v1047, 2
    %v1049 = vadd.f32 %v1047, %v1048
    %v1050 = vrot.slane %v1049, 1
    %v1051 = vadd.f32 %v1049, %v1050
    %v1052 = vsel %vm344, %v1044, 0.0
    %v1053 = vrot.slane %v1052, 4
    %v1054 = vadd.f32 %v1052, %v1053
    %v1055 = vrot.slane %v1054, 2
    %v1056 = vadd.f32 %v1054, %v1055
    %v1057 = vrot.slane %v1056, 1
    %v1058 = vadd.f32 %v1056, %v1057
    %v1059 = vsel %vm359, %v1051, 0.0
    %v1060 = vsel %vm359, %v1058, 0.0
    %v1061 = vadd.f32 %v1059, %v1060
    %v1062 = vmul.f32 %v1061, %v363
    %v1063 = vadd.f32 %v1062, 1e-05
    %v1064 = vrsqrt.pop %v1063
    %v1065 = vmul.f32 %v1041, %v1064
    %v1066 = vmul.f32 %v1042, %v1064
    %v1067 = vlaneseq
    %v1068 = vshrl.u32 %v1067, 7
    %v1069 = vsub.s32 0, %v1068
    %v1070 = vrot.slane %v750, %v1069
    %v1071 = vmul.f32 %v1065, %v1070
    %v1072 = vmul.f32 %v1066, %v1070
    %v1073 = vlaneseq
    %v1074 = vshrl.u32 %v1073, 7
    %v1075 = vsub.s32 0, %v1074
    %v1076 = vrot.slane %v751, %v1075
    %v1077 = vadd.f32 %v1071, %v1076
    %v1078 = vadd.f32 %v1072, %v1076
    %v1082 = vunpack.c.l.s4 1983009808
    %v1083 = vunpack.c.0.s8 %v1082
    %v1084 = vlaneseq
    %v1085 = vshrl.u32 %v1084, 7
    %v1086 = vsub.s32 %v1083, %v1085
    %v1087 = vrot.slane %v1077, %v1086
    %v1089 = vunpack.c.l.s4 1983009808
    %v1090 = vunpack.c.0.s8 %v1089
    %v1091 = vlaneseq
    %v1092 = vshrl.u32 %v1091, 7
    %v1093 = vsub.s32 %v1090, %v1092
    %v1094 = vrot.slane %v1078, %v1093
    %1095 = vrot.lane.b32.xlu0 %v1087, 64
    %v1096 = vpop.permute.xlu0 %1095
    %1097 = vrot.lane.b32.xlu0 %v1094, 64
    %v1098 = vpop.permute.xlu0 %1097
    %v1101 = vsel %vm359, %v401, %v915
    %v1102 = vsel %vm359, %v402, %v917
    %v1103 = vsel %vm252, %v1101, %v1096
    %v1104 = vsel %vm252, %v1102, %v1098
    %v1105 = vld [vmem:[%s2 + $0x149] sm:$0xff]
    %v1106 = vld [vmem:[%s2 + $0x151] sm:$0xff]
    %v1107 = vld [vmem:[%s2 + $0x159] sm:$0xff]
    %v1108 = vld [vmem:[%s2 + $0x161] sm:$0xff]
    %v1109 = vld [vmem:[%s2 + $0x169] sm:$0xff]
    %v1110 = vld [vmem:[%s2 + $0x171] sm:$0xff]
    %v1111 = vld [vmem:[%s2 + $0x179] sm:$0xff]
    %v1112 = vld [vmem:[%s2 + $0x181] sm:$0xff]
    %v1113 = vld [vmem:[%s2 + $0x189] sm:$0xff]
    %v1114 = vld [vmem:[%s2 + $0x191] sm:$0xff]
    %v1115 = vld [vmem:[%s2 + $0x199] sm:$0xff]
    %v1116 = vld [vmem:[%s2 + $0x1a1] sm:$0xff]
    %v1117 = vld [vmem:[%s2 + $0x1a9] sm:$0x1]
    %v1118 = vld [vmem:[%s2 + $0x1aa] sm:$0xff]
    %v1119 = vld [vmem:[%s2 + $0x1b2] sm:$0xff]
    %v1120 = vld [vmem:[%s2 + $0x1ba] sm:$0xff]
    %v1121 = vld [vmem:[%s2 + $0x1c2] sm:$0xff]
    %v1122 = vld [vmem:[%s2 + $0x1ca] sm:$0x1]
    %vm1123 = vcmask 779264
    %v1124 = vsel %vm1123, %v1103, 0.0
    %v1125 = vrot.slane %v1124, 4
    %v1126 = vadd.f32 %v1124, %v1125
    %v1127 = vrot.slane %v1126, 2
    %v1128 = vadd.f32 %v1126, %v1127
    %v1129 = vrot.slane %v1128, 1
    %v1130 = vadd.f32 %v1128, %v1129
    %v1131 = vsel %vm1123, %v1104, 0.0
    %v1132 = vrot.slane %v1131, 4
    %v1133 = vadd.f32 %v1131, %v1132
    %v1134 = vrot.slane %v1133, 2
    %v1135 = vadd.f32 %v1133, %v1134
    %v1136 = vrot.slane %v1135, 1
    %v1137 = vadd.f32 %v1135, %v1136
    %v1138 = vrcp.pop 2.0
    %v1139 = vmul.f32 %v1130, %v1138
    %v1140 = vmul.f32 %v1137, %v1138
    %v1141 = vlaneseq
    %v1142 = vshrl.u32 %v1141, 7
    %v1143 = vsub.s32 0, %v1142
    %v1144 = vrot.slane %v1117, %v1143
    %vm1147 = vcmask 1041409
    %v1148 = vsel %vm1147, %v1140, %v1139
    %v1149 = vsel %vm221, %v1148, 0
    %1151 = vmatprep.subr.mxu0 0.0
    %1152 = vmatpush1.msra.mxu0 0.0
    %1153 = vmatprep.subr.mxu0 0.0
    %1154 = vmatpush1.msra.mxu0 0.0
    %1155 = vmatprep.subr.mxu0 0.0
    %1156 = vmatpush1.msra.mxu0 0.0
    %1157 = vmatprep.subr.mxu0 0.0
    %1158 = vmatpush1.msra.mxu0 0.0
    %1159 = vmatprep.subr.mxu0 0.0
    %1160 = vmatpush1.msra.mxu0 %v1116
    %1161 = vmatprep.subr.mxu0 0.0
    %1162 = vmatpush1.msra.mxu0 %v1115
    %1163 = vmatprep.subr.mxu0 0.0
    %1164 = vmatpush1.msra.mxu0 %v1114
    %1165 = vmatprep.subr.mxu0 0.0
    %1166 = vmatpush1.msra.mxu0 %v1113
    %1167 = vmatprep.subr.mxu0 0.0
    %1168 = vmatpush1.msra.mxu0 %v1112
    %1169 = vmatprep.subr.mxu0 0.0
    %1170 = vmatpush1.msra.mxu0 %v1111
    %1171 = vmatprep.subr.mxu0 0.0
    %1172 = vmatpush1.msra.mxu0 %v1110
    %1173 = vmatprep.subr.mxu0 0.0
    %1174 = vmatpush1.msra.mxu0 %v1109
    %1175 = vmatprep.subr.mxu0 0.0
    %1176 = vmatpush1.msra.mxu0 %v1108
    %1177 = vmatprep.subr.mxu0 0.0
    %1178 = vmatpush1.msra.mxu0 %v1107
    %1179 = vmatprep.subr.mxu0 0.0
    %1180 = vmatpush1.msra.mxu0 %v1106
    %1181 = vmatprep.subr.mxu0 0.0
    %1182 = vmatpush1.msra.mxu0 %v1105
    %1183 = vmatprep.subr.mxu0 0.0
    %1184 = vmatpush2.msra.mxu0 0.0
    %1185 = vmatprep.subr.mxu0 0.0
    %1186 = vmatpush2.msra.mxu0 0.0
    %1187 = vmatprep.subr.mxu0 0.0
    %1188 = vmatpush2.msra.mxu0 0.0
    %1189 = vmatprep.subr.mxu0 0.0
    %1190 = vmatpush2.msra.mxu0 0.0
    %1191 = vmatprep.subr.mxu0 0.0
    %1192 = vmatpush2.msra.mxu0 0.0
    %1193 = vmatprep.subr.mxu0 0.0
    %1194 = vmatpush2.msra.mxu0 0.0
    %1195 = vmatprep.subr.mxu0 0.0
    %1196 = vmatpush2.msra.mxu0 0.0
    %1197 = vmatprep.subr.mxu0 0.0
    %1198 = vmatpush2.msra.mxu0 0.0
    %1199 = vmatprep.subr.mxu0 0.0
    %1200 = vmatpush2.msra.mxu0 0.0
    %1201 = vmatprep.subr.mxu0 0.0
    %1202 = vmatpush2.msra.mxu0 0.0
    %1203 = vmatprep.subr.mxu0 0.0
    %1204 = vmatpush2.msra.mxu0 0.0
    %1205 = vmatprep.subr.mxu0 0.0
    %1206 = vmatpush2.msra.mxu0 0.0
    %1207 = vmatprep.subr.mxu0 0.0
    %1208 = vmatpush2.msra.mxu0 0.0
    %1209 = vmatprep.subr.mxu0 0.0
    %1210 = vmatpush2.msra.mxu0 0.0
    %1211 = vmatprep.subr.mxu0 0.0
    %1212 = vmatpush2.msra.mxu0 0.0
    %1213 = vmatprep.subr.mxu0 0.0
    %1214 = vmatpush2.msra.mxu0 0.0
    %1215 = vmatprep.mubr.f32.mxu0 0.0
    %1216 = vmatmul.mubr.f32.gmra.mxu0 %v1149
    %v1217 = vpop.f32.mrf.mxu0
    %v1218 = vadd.f32 %v1144, %v1217
    %v1219 = vpop.f32.mrf.mxu0
    %1220 = vdwg.mxu0
    %v1221 = vmax.f32 %v1218, 0.0
    %v1222 = vlaneseq
    %v1223 = vshrl.u32 %v1222, 7
    %v1224 = vsub.s32 0, %v1223
    %v1225 = vrot.slane %v1122, %v1224
    %v1227 = vsel %vm359, %v1221, 0
    %1229 = vmatprep.subr.mxu0 0.0
    %1230 = vmatpush1.msra.mxu0 0.0
    %1231 = vmatprep.subr.mxu0 0.0
    %1232 = vmatpush1.msra.mxu0 0.0
    %1233 = vmatprep.subr.mxu0 0.0
    %1234 = vmatpush1.msra.mxu0 0.0
    %1235 = vmatprep.subr.mxu0 0.0
    %1236 = vmatpush1.msra.mxu0 0.0
    %1237 = vmatprep.subr.mxu0 0.0
    %1238 = vmatpush1.msra.mxu0 0.0
    %1239 = vmatprep.subr.mxu0 0.0
    %1240 = vmatpush1.msra.mxu0 0.0
    %1241 = vmatprep.subr.mxu0 0.0
    %1242 = vmatpush1.msra.mxu0 0.0
    %1243 = vmatprep.subr.mxu0 0.0
    %1244 = vmatpush1.msra.mxu0 0.0
    %1245 = vmatprep.subr.mxu0 0.0
    %1246 = vmatpush1.msra.mxu0 0.0
    %1247 = vmatprep.subr.mxu0 0.0
    %1248 = vmatpush1.msra.mxu0 0.0
    %1249 = vmatprep.subr.mxu0 0.0
    %1250 = vmatpush1.msra.mxu0 0.0
    %1251 = vmatprep.subr.mxu0 0.0
    %1252 = vmatpush1.msra.mxu0 0.0
    %1253 = vmatprep.subr.mxu0 0.0
    %1254 = vmatpush1.msra.mxu0 %v1121
    %1255 = vmatprep.subr.mxu0 0.0
    %1256 = vmatpush1.msra.mxu0 %v1120
    %1257 = vmatprep.subr.mxu0 0.0
    %1258 = vmatpush1.msra.mxu0 %v1119
    %1259 = vmatprep.subr.mxu0 0.0
    %1260 = vmatpush1.msra.mxu0 %v1118
    %1261 = vmatprep.subr.mxu0 0.0
    %1262 = vmatpush2.msra.mxu0 0.0
    %1263 = vmatprep.subr.mxu0 0.0
    %1264 = vmatpush2.msra.mxu0 0.0
    %1265 = vmatprep.subr.mxu0 0.0
    %1266 = vmatpush2.msra.mxu0 0.0
    %1267 = vmatprep.subr.mxu0 0.0
    %1268 = vmatpush2.msra.mxu0 0.0
    %1269 = vmatprep.subr.mxu0 0.0
    %1270 = vmatpush2.msra.mxu0 0.0
    %1271 = vmatprep.subr.mxu0 0.0
    %1272 = vmatpush2.msra.mxu0 0.0
    %1273 = vmatprep.subr.mxu0 0.0
    %1274 = vmatpush2.msra.mxu0 0.0
    %1275 = vmatprep.subr.mxu0 0.0
    %1276 = vmatpush2.msra.mxu0 0.0
    %1277 = vmatprep.subr.mxu0 0.0
    %1278 = vmatpush2.msra.mxu0 0.0
    %1279 = vmatprep.subr.mxu0 0.0
    %1280 = vmatpush2.msra.mxu0 0.0
    %1281 = vmatprep.subr.mxu0 0.0
    %1282 = vmatpush2.msra.mxu0 0.0
    %1283 = vmatprep.subr.mxu0 0.0
    %1284 = vmatpush2.msra.mxu0 0.0
    %1285 = vmatprep.subr.mxu0 0.0
    %1286 = vmatpush2.msra.mxu0 0.0
    %1287 = vmatprep.subr.mxu0 0.0
    %1288 = vmatpush2.msra.mxu0 0.0
    %1289 = vmatprep.subr.mxu0 0.0
    %1290 = vmatpush2.msra.mxu0 0.0
    %1291 = vmatprep.subr.mxu0 0.0
    %1292 = vmatpush2.msra.mxu0 0.0
    %1293 = vmatprep.mubr.f32.mxu0 0.0
    %1294 = vmatmul.mubr.f32.gmra.mxu0 %v1227
    %v1295 = vpop.f32.mrf.mxu0
    %v1296 = vadd.f32 %v1225, %v1295
    %v1297 = vpop.f32.mrf.mxu0
    %1298 = vdwg.mxu0
    %vm1299 = vcmask 25600
    %v1300 = vsel %vm1299, %v1296, -inf
    %1301 = vmax.xlane.f32.xlu0 %v1300
    %v1302 = vpop.xlane.xlu0 %1301
    %v1303 = vsub.f32 %v1296, %v1302
    %v1304 = vmul.f32 %v1303, 1.442695
    %v1305 = vpow.pop %v1304
    %v1306 = vsel %vm1299, %v1305, 0.0
    %1307 = vadd.xlane.f32.xlu0 %v1306
    %v1308 = vpop.xlane.xlu0 %1307
    %v1309 = vlog2.pop %v1308
    %v1310 = vmul.f32 %v1309, 0.6931472
    %v1311 = vadd.f32 %v1310, %v1302
    %v1312 = vsub.f32 %v1296, %v1311
    %1313 = vst.msk [vmem:[#allocation2] sm:$0x3] %vm1299, %v1312
    // Predicated region
    $region14: #{net_forward.5} parent=1 // pred_check
      _
    $region15: #{net_forward.5} parent=1 // pred_check_branch
      %1315 = sbr.rel (0) target = $region17
    $region16: #{net_forward.5} parent=1 // pred_region
      %s1317 = ssub.s32 32, 32
      %1318 = vsyncadd [#allocation3], %s1317
      %s1320 = sshll.u32 [#allocation2], 4
      %s1321 = int_to_ptr.vmem [resolvable:$true] %s1320
      %1323 = dma.vmem_to_hbm [thread:$0]  %s1321, 32, %s3, [#allocation3]
    $region17: #{net_forward.5} parent=1 // pred_fallthru
      _
    // Predicated region
    $region18: #{net_forward.5} parent=1 // pred_check
      _
    $region19: #{net_forward.5} parent=1 // pred_check_branch
      %1325 = sbr.rel (0) target = $region21
    $region20: #{net_forward.5} parent=1 // pred_region
      %1326 = dma.done [#allocation3], 32
    $region21: #{net_forward.5} parent=1 // pred_fallthru
      _
    %1327 = vsyncpa [#allocation3], 1

// kernel: net_forward.4
$region0: #{net_forward.4}
  #allocation0 [shape = 'u32[]', space=smem, size = 0x4, offset = 0x4, fixed_abs, tag = 'smem constant byte address 0x4 - core index']
  #allocation1 [shape = 'u32[144,128]{1,0:T(1,128)}', space=vmem, size = 0x12000, scoped, tag = 'internal scratch']
  %s0 = inlined_call_operand.vmem [shape: f32[2,8,96], index: 0, kind: input, shape index: {}]
  %s1 = inlined_call_operand.vmem [shape: f32[2,8,8], index: 1, kind: input, shape index: {}]
  %s2 = inlined_call_operand.hbm [shape: f32[728,128], index: 2, kind: input, shape index: {}]
  %s3 = inlined_call_operand.vmem [shape: f32[2,2,96], index: 3, kind: output, shape index: {0}]
  %s4 = inlined_call_operand.vmem [shape: f32[2,2,2], index: 4, kind: output, shape index: {1}]
  %s5 = inlined_call_operand.vmem [shape: f32[8,128], index: 5, kind: output, shape index: {2}]
  %6 = xla_tuple %s3, %s4, %s5
  %s7 = sld [smem:[#allocation0]]
  $region42: #{net_forward.4} parent=0
    _
  %s9 = ssub.s32 1, %s7
  %s10 = scalar_select 0, %s9, %s7
  $region1: #{net_forward.4} parent=0
    #allocation2 [shape = 'u8[372736]{0}', space=vmem, size = 0x5b000, scoped, tag = 'input window, operand 2, single buffered']
    #allocation3 [shape = 's32[1]{0}', space=sflag, size = 0x4, scoped, tag = 'scoped memory for net_forward.4']
    %11 = vsyncpa [#allocation3], 0
    // Predicated region
    $region2: #{net_forward.4} parent=1 // pred_check
      _
    $region3: #{net_forward.4} parent=1 // pred_check_branch
      %13 = sbr.rel (0) target = $region5
    $region4: #{net_forward.4} parent=1 // pred_region
      _
    $region5: #{net_forward.4} parent=1 // pred_fallthru
      _
    // Predicated region
    $region6: #{net_forward.4} parent=1 // pred_check
      _
    $region7: #{net_forward.4} parent=1 // pred_check_branch
      %15 = sbr.rel (0) target = $region9
    $region8: #{net_forward.4} parent=1 // pred_region
      _
    $region9: #{net_forward.4} parent=1 // pred_fallthru
      _
    // Predicated region
    $region10: #{net_forward.4} parent=1 // pred_check
      _
    $region11: #{net_forward.4} parent=1 // pred_check_branch
      %17 = sbr.rel (0) target = $region13
    $region12: #{net_forward.4} parent=1 // pred_region
      %s19 = ssub.s32 11648, 11648
      %20 = vsyncadd [#allocation3], %s19
      %s21 = sshll.u32 [#allocation2], 4
      %s22 = int_to_ptr.vmem [resolvable:$true] %s21
      %27 = dma.hbm_to_vmem [thread:$0]  %s2, 11648, %s22, [#allocation3], 128, 128, 8
    $region13: #{net_forward.4} parent=1 // pred_fallthru
      _
    // Predicated region
    $region14: #{net_forward.4} parent=1 // pred_check
      _
    $region15: #{net_forward.4} parent=1 // pred_check_branch
      %29 = sbr.rel (0) target = $region17
    $region16: #{net_forward.4} parent=1 // pred_region
      %30 = dma.done [#allocation3], 11648
    $region17: #{net_forward.4} parent=1 // pred_fallthru
      _
    %v31 = vld [vmem:[%s0] sm:$0xff]
    %v32 = vld [vmem:[%s0 + $0x8] sm:$0xff]
    %v33 = vld [vmem:[%s1] sm:$0xff]
    %v34 = vld [vmem:[%s1 + $0x8] sm:$0xff]
    %vm35 = vcmask 64512
    %v36 = vsel %vm35, %v33, 0.0
    %37 = vadd.xlane.f32.xlu0 %v36
    %v38 = vpop.xlane.xlu0 %37
    %v39 = vsel %vm35, %v34, 0.0
    %40 = vadd.xlane.f32.xlu0 %v39
    %v41 = vpop.xlane.xlu0 %40
    %v42 = vmax.f32 %v38, 1.0
    %v43 = vmax.f32 %v41, 1.0
    %v44 = vrcp.pop %v42
    %v45 = vmul.f32 1.0, %v44
    %v46 = vrcp.pop %v43
    %v47 = vmul.f32 1.0, %v46
    %v48 = vld [vmem:[#allocation2] sm:$0xff]
    %v49 = vld [vmem:[#allocation2 + $0x8] sm:$0xff]
    %v50 = vld [vmem:[#allocation2 + $0x10] sm:$0xff]
    %v51 = vld [vmem:[#allocation2 + $0x18] sm:$0xff]
    %v52 = vld [vmem:[#allocation2 + $0x20] sm:$0xff]
    %v53 = vld [vmem:[#allocation2 + $0x28] sm:$0xff]
    %v54 = vld [vmem:[#allocation2 + $0x30] sm:$0xff]
    %v55 = vld [vmem:[#allocation2 + $0x38] sm:$0xff]
    %v56 = vld [vmem:[#allocation2 + $0x40] sm:$0xff]
    %v57 = vld [vmem:[#allocation2 + $0x48] sm:$0xff]
    %v58 = vld [vmem:[#allocation2 + $0x50] sm:$0xff]
    %v59 = vld [vmem:[#allocation2 + $0x58] sm:$0xff]
    %v60 = vld [vmem:[#allocation2 + $0x60] sm:$0xff]
    %v61 = vld [vmem:[#allocation2 + $0x68] sm:$0xff]
    %v62 = vld [vmem:[#allocation2 + $0x70] sm:$0xff]
    %v63 = vld [vmem:[#allocation2 + $0x78] sm:$0xff]
    %v64 = vld [vmem:[#allocation2 + $0x80] sm:$0xff]
    %v65 = vld [vmem:[#allocation2 + $0x88] sm:$0xff]
    %v66 = vld [vmem:[#allocation2 + $0x90] sm:$0xff]
    %v67 = vld [vmem:[#allocation2 + $0x98] sm:$0xff]
    %v68 = vld [vmem:[#allocation2 + $0xa0] sm:$0xff]
    %v69 = vld [vmem:[#allocation2 + $0xa8] sm:$0xff]
    %v70 = vld [vmem:[#allocation2 + $0xb0] sm:$0xff]
    %v71 = vld [vmem:[#allocation2 + $0xb8] sm:$0xff]
    %v72 = vld [vmem:[#allocation2 + $0xc0] sm:$0x1]
    %v73 = vld [vmem:[#allocation2 + $0xc1] sm:$0x1]
    %v74 = vld [vmem:[#allocation2 + $0xc2] sm:$0x1]
    %v76 = vsel %vm35, %v33, 0
    %78 = vmatprep.subr.mxu0 0.0
    %79 = vmatpush1.msra.mxu0 0.0
    %80 = vmatprep.subr.mxu0 0.0
    %81 = vmatpush1.msra.mxu0 0.0
    %82 = vmatprep.subr.mxu0 0.0
    %83 = vmatpush1.msra.mxu0 0.0
    %84 = vmatprep.subr.mxu0 0.0
    %85 = vmatpush1.msra.mxu0 0.0
    %86 = vmatprep.subr.mxu0 0.0
    %87 = vmatpush1.msra.mxu0 0.0
    %88 = vmatprep.subr.mxu0 0.0
    %89 = vmatpush1.msra.mxu0 0.0
    %90 = vmatprep.subr.mxu0 0.0
    %91 = vmatpush1.msra.mxu0 0.0
    %92 = vmatprep.subr.mxu0 0.0
    %93 = vmatpush1.msra.mxu0 0.0
    %94 = vmatprep.subr.mxu0 0.0
    %95 = vmatpush1.msra.mxu0 0.0
    %96 = vmatprep.subr.mxu0 0.0
    %97 = vmatpush1.msra.mxu0 0.0
    %98 = vmatprep.subr.mxu0 0.0
    %99 = vmatpush1.msra.mxu0 0.0
    %100 = vmatprep.subr.mxu0 0.0
    %101 = vmatpush1.msra.mxu0 0.0
    %102 = vmatprep.subr.mxu0 0.0
    %103 = vmatpush1.msra.mxu0 0.0
    %104 = vmatprep.subr.mxu0 0.0
    %105 = vmatpush1.msra.mxu0 0.0
    %106 = vmatprep.subr.mxu0 0.0
    %107 = vmatpush1.msra.mxu0 0.0
    %108 = vmatprep.subr.mxu0 0.0
    %109 = vmatpush1.msra.mxu0 %v31
    %110 = vmatprep.subr.mxu0 0.0
    %111 = vmatpush2.msra.mxu0 0.0
    %112 = vmatprep.subr.mxu0 0.0
    %113 = vmatpush2.msra.mxu0 0.0
    %114 = vmatprep.subr.mxu0 0.0
    %115 = vmatpush2.msra.mxu0 0.0
    %116 = vmatprep.subr.mxu0 0.0
    %117 = vmatpush2.msra.mxu0 0.0
    %118 = vmatprep.subr.mxu0 0.0
    %119 = vmatpush2.msra.mxu0 0.0
    %120 = vmatprep.subr.mxu0 0.0
    %121 = vmatpush2.msra.mxu0 0.0
    %122 = vmatprep.subr.mxu0 0.0
    %123 = vmatpush2.msra.mxu0 0.0
    %124 = vmatprep.subr.mxu0 0.0
    %125 = vmatpush2.msra.mxu0 0.0
    %126 = vmatprep.subr.mxu0 0.0
    %127 = vmatpush2.msra.mxu0 0.0
    %128 = vmatprep.subr.mxu0 0.0
    %129 = vmatpush2.msra.mxu0 0.0
    %130 = vmatprep.subr.mxu0 0.0
    %131 = vmatpush2.msra.mxu0 0.0
    %132 = vmatprep.subr.mxu0 0.0
    %133 = vmatpush2.msra.mxu0 0.0
    %134 = vmatprep.subr.mxu0 0.0
    %135 = vmatpush2.msra.mxu0 0.0
    %136 = vmatprep.subr.mxu0 0.0
    %137 = vmatpush2.msra.mxu0 0.0
    %138 = vmatprep.subr.mxu0 0.0
    %139 = vmatpush2.msra.mxu0 0.0
    %140 = vmatprep.subr.mxu0 0.0
    %141 = vmatpush2.msra.mxu0 0.0
    %142 = vmatprep.mubr.f32.mxu0 0.0
    %143 = vmatmul.mubr.f32.gmra.mxu0 %v76
    %v144 = vpop.f32.mrf.mxu0
    %v145 = vadd.f32 0.0, %v144
    %v146 = vpop.f32.mrf.mxu0
    %147 = vdwg.mxu0
    %v149 = vsel %vm35, %v34, 0
    %151 = vmatprep.subr.mxu0 0.0
    %152 = vmatpush1.msra.mxu0 0.0
    %153 = vmatprep.subr.mxu0 0.0
    %154 = vmatpush1.msra.mxu0 0.0
    %155 = vmatprep.subr.mxu0 0.0
    %156 = vmatpush1.msra.mxu0 0.0
    %157 = vmatprep.subr.mxu0 0.0
    %158 = vmatpush1.msra.mxu0 0.0
    %159 = vmatprep.subr.mxu0 0.0
    %160 = vmatpush1.msra.mxu0 0.0
    %161 = vmatprep.subr.mxu0 0.0
    %162 = vmatpush1.msra.mxu0 0.0
    %163 = vmatprep.subr.mxu0 0.0
    %164 = vmatpush1.msra.mxu0 0.0
    %165 = vmatprep.subr.mxu0 0.0
    %166 = vmatpush1.msra.mxu0 0.0
    %167 = vmatprep.subr.mxu0 0.0
    %168 = vmatpush1.msra.mxu0 0.0
    %169 = vmatprep.subr.mxu0 0.0
    %170 = vmatpush1.msra.mxu0 0.0
    %171 = vmatprep.subr.mxu0 0.0
    %172 = vmatpush1.msra.mxu0 0.0
    %173 = vmatprep.subr.mxu0 0.0
    %174 = vmatpush1.msra.mxu0 0.0
    %175 = vmatprep.subr.mxu0 0.0
    %176 = vmatpush1.msra.mxu0 0.0
    %177 = vmatprep.subr.mxu0 0.0
    %178 = vmatpush1.msra.mxu0 0.0
    %179 = vmatprep.subr.mxu0 0.0
    %180 = vmatpush1.msra.mxu0 0.0
    %181 = vmatprep.subr.mxu0 0.0
    %182 = vmatpush1.msra.mxu0 %v32
    %183 = vmatprep.subr.mxu0 0.0
    %184 = vmatpush2.msra.mxu0 0.0
    %185 = vmatprep.subr.mxu0 0.0
    %186 = vmatpush2.msra.mxu0 0.0
    %187 = vmatprep.subr.mxu0 0.0
    %188 = vmatpush2.msra.mxu0 0.0
    %189 = vmatprep.subr.mxu0 0.0
    %190 = vmatpush2.msra.mxu0 0.0
    %191 = vmatprep.subr.mxu0 0.0
    %192 = vmatpush2.msra.mxu0 0.0
    %193 = vmatprep.subr.mxu0 0.0
    %194 = vmatpush2.msra.mxu0 0.0
    %195 = vmatprep.subr.mxu0 0.0
    %196 = vmatpush2.msra.mxu0 0.0
    %197 = vmatprep.subr.mxu0 0.0
    %198 = vmatpush2.msra.mxu0 0.0
    %199 = vmatprep.subr.mxu0 0.0
    %200 = vmatpush2.msra.mxu0 0.0
    %201 = vmatprep.subr.mxu0 0.0
    %202 = vmatpush2.msra.mxu0 0.0
    %203 = vmatprep.subr.mxu0 0.0
    %204 = vmatpush2.msra.mxu0 0.0
    %205 = vmatprep.subr.mxu0 0.0
    %206 = vmatpush2.msra.mxu0 0.0
    %207 = vmatprep.subr.mxu0 0.0
    %208 = vmatpush2.msra.mxu0 0.0
    %209 = vmatprep.subr.mxu0 0.0
    %210 = vmatpush2.msra.mxu0 0.0
    %211 = vmatprep.subr.mxu0 0.0
    %212 = vmatpush2.msra.mxu0 0.0
    %213 = vmatprep.subr.mxu0 0.0
    %214 = vmatpush2.msra.mxu0 0.0
    %215 = vmatprep.mubr.f32.mxu0 0.0
    %216 = vmatmul.mubr.f32.gmra.mxu0 %v149
    %v217 = vpop.f32.mrf.mxu0
    %v218 = vadd.f32 0.0, %v217
    %v219 = vpop.f32.mrf.mxu0
    %220 = vdwg.mxu0
    %v221 = vmul.f32 %v145, %v45
    %v222 = vmul.f32 %v218, %v47
    %225 = vrot.lane.b32.xlu0 %v31, 96
    %v226 = vpop.permute.xlu0 %225
    %227 = vrot.lane.b32.xlu0 %v32, 96
    %v228 = vpop.permute.xlu0 %227
    %vm231 = vcmask 785408
    %v232 = vsel %vm231, %v221, %v226
    %v233 = vsel %vm231, %v222, %v228
    %vm234 = vcmask 523264
    %v235 = vsel %vm234, %v226, 0
    %v237 = vsel %vm234, %v228, 0
    %239 = vmatprep.subr.mxu0 0.0
    %240 = vmatpush1.msra.mxu0 %v63
    %241 = vmatprep.subr.mxu0 0.0
    %242 = vmatpush1.msra.mxu0 %v62
    %243 = vmatprep.subr.mxu0 0.0
    %244 = vmatpush1.msra.mxu0 %v61
    %245 = vmatprep.subr.mxu0 0.0
    %246 = vmatpush1.msra.mxu0 %v60
    %247 = vmatprep.subr.mxu0 0.0
    %248 = vmatpush1.msra.mxu0 %v59
    %249 = vmatprep.subr.mxu0 0.0
    %250 = vmatpush1.msra.mxu0 %v58
    %251 = vmatprep.subr.mxu0 0.0
    %252 = vmatpush1.msra.mxu0 %v57
    %253 = vmatprep.subr.mxu0 0.0
    %254 = vmatpush1.msra.mxu0 %v56
    %255 = vmatprep.subr.mxu0 0.0
    %256 = vmatpush1.msra.mxu0 %v55
    %257 = vmatprep.subr.mxu0 0.0
    %258 = vmatpush1.msra.mxu0 %v54
    %259 = vmatprep.subr.mxu0 0.0
    %260 = vmatpush1.msra.mxu0 %v53
    %261 = vmatprep.subr.mxu0 0.0
    %262 = vmatpush1.msra.mxu0 %v52
    %263 = vmatprep.subr.mxu0 0.0
    %264 = vmatpush1.msra.mxu0 %v51
    %265 = vmatprep.subr.mxu0 0.0
    %266 = vmatpush1.msra.mxu0 %v50
    %267 = vmatprep.subr.mxu0 0.0
    %268 = vmatpush1.msra.mxu0 %v49
    %269 = vmatprep.subr.mxu0 0.0
    %270 = vmatpush1.msra.mxu0 %v48
    %271 = vmatprep.subr.mxu0 0.0
    %272 = vmatpush2.msra.mxu0 0.0
    %273 = vmatprep.subr.mxu0 0.0
    %274 = vmatpush2.msra.mxu0 0.0
    %275 = vmatprep.subr.mxu0 0.0
    %276 = vmatpush2.msra.mxu0 0.0
    %277 = vmatprep.subr.mxu0 0.0
    %278 = vmatpush2.msra.mxu0 0.0
    %279 = vmatprep.subr.mxu0 0.0
    %280 = vmatpush2.msra.mxu0 0.0
    %281 = vmatprep.subr.mxu0 0.0
    %282 = vmatpush2.msra.mxu0 0.0
    %283 = vmatprep.subr.mxu0 0.0
    %284 = vmatpush2.msra.mxu0 0.0
    %285 = vmatprep.subr.mxu0 0.0
    %286 = vmatpush2.msra.mxu0 0.0
    %287 = vmatprep.subr.mxu0 0.0
    %288 = vmatpush2.msra.mxu0 %v71
    %289 = vmatprep.subr.mxu0 0.0
    %290 = vmatpush2.msra.mxu0 %v70
    %291 = vmatprep.subr.mxu0 0.0
    %292 = vmatpush2.msra.mxu0 %v69
    %293 = vmatprep.subr.mxu0 0.0
    %294 = vmatpush2.msra.mxu0 %v68
    %295 = vmatprep.subr.mxu0 0.0
    %296 = vmatpush2.msra.mxu0 %v67
    %297 = vmatprep.subr.mxu0 0.0
    %298 = vmatpush2.msra.mxu0 %v66
    %299 = vmatprep.subr.mxu0 0.0
    %300 = vmatpush2.msra.mxu0 %v65
    %301 = vmatprep.subr.mxu0 0.0
    %302 = vmatpush2.msra.mxu0 %v64
    %303 = vmatprep.mubr.f32.mxu0 %v235
    %304 = vmatmul.mubr.f32.gmra.mxu0 %v232
    %v305 = vpop.f32.mrf.mxu0
    %v306 = vadd.f32 0.0, %v305
    %v307 = vpop.f32.mrf.mxu0
    %308 = vmatprep.mubr.f32.mxu0 %v237
    %309 = vmatmul.mubr.f32.gmra.mxu0 %v233
    %v310 = vpop.f32.mrf.mxu0
    %v311 = vadd.f32 0.0, %v310
    %v312 = vpop.f32.mrf.mxu0
    %313 = vdwg.mxu0
    %v314 = vlaneseq
    %v315 = vshrl.u32 %v314, 7
    %v316 = vsub.s32 0, %v315
    %v317 = vrot.slane %v72, %v316
    %v318 = vadd.f32 %v306, %v317
    %v319 = vadd.f32 %v311, %v317
    %v320 = vmax.f32 %v318, 0.0
    %v321 = vmax.f32 %v319, 0.0
    %vm322 = vcmask 261120
    %v323 = vsel %vm322, %v320, 0.0
    %v324 = vrot.slane %v323, 4
    %v325 = vadd.f32 %v323, %v324
    %v326 = vrot.slane %v325, 2
    %v327 = vadd.f32 %v325, %v326
    %v328 = vrot.slane %v327, 1
    %v329 = vadd.f32 %v327, %v328
    %v330 = vsel %vm322, %v321, 0.0
    %v331 = vrot.slane %v330, 4
    %v332 = vadd.f32 %v330, %v331
    %v333 = vrot.slane %v332, 2
    %v334 = vadd.f32 %v332, %v333
    %v335 = vrot.slane %v334, 1
    %v336 = vadd.f32 %v334, %v335
    %v337 = vsel %vm322, %v329, 0.0
    %v338 = vsel %vm322, %v336, 0.0
    %v339 = vadd.f32 %v337, %v338
    %v340 = vrcp.pop 16.0
    %v341 = vmul.f32 %v339, %v340
    %v342 = vsub.f32 %v320, %v341
    %v343 = vsub.f32 %v321, %v341
    %v344 = vmul.f32 %v342, %v342
    %v345 = vmul.f32 %v343, %v343
    %v346 = vsel %vm322, %v344, 0.0
    %v347 = vrot.slane %v346, 4
    %v348 = vadd.f32 %v346, %v347
    %v349 = vrot.slane %v348, 2
    %v350 = vadd.f32 %v348, %v349
    %v351 = vrot.slane %v350, 1
    %v352 = vadd.f32 %v350, %v351
    %v353 = vsel %vm322, %v345, 0.0
    %v354 = vrot.slane %v353, 4
    %v355 = vadd.f32 %v353, %v354
    %v356 = vrot.slane %v355, 2
    %v357 = vadd.f32 %v355, %v356
    %v358 = vrot.slane %v357, 1
    %v359 = vadd.f32 %v357, %v358
    %v360 = vsel %vm322, %v352, 0.0
    %v361 = vsel %vm322, %v359, 0.0
    %v362 = vadd.f32 %v360, %v361
    %v363 = vmul.f32 %v362, %v340
    %v364 = vadd.f32 %v363, 1e-05
    %v365 = vrsqrt.pop %v364
    %v366 = vmul.f32 %v342, %v365
    %v367 = vmul.f32 %v343, %v365
    %v368 = vlaneseq
    %v369 = vshrl.u32 %v368, 7
    %v370 = vsub.s32 0, %v369
    %v371 = vrot.slane %v73, %v370
    %v372 = vmul.f32 %v366, %v371
    %v373 = vmul.f32 %v367, %v371
    %v374 = vlaneseq
    %v375 = vshrl.u32 %v374, 7
    %v376 = vsub.s32 0, %v375
    %v377 = vrot.slane %v74, %v376
    %v378 = vadd.f32 %v372, %v377
    %v379 = vadd.f32 %v373, %v377
    %v380 = vld [vmem:[#allocation2 + $0xc3] sm:$0xff]
    %v381 = vld [vmem:[#allocation2 + $0xcb] sm:$0xff]
    %v382 = vld [vmem:[#allocation2 + $0xd3] sm:$0xff]
    %v383 = vld [vmem:[#allocation2 + $0xdb] sm:$0xff]
    %v384 = vld [vmem:[#allocation2 + $0xe3] sm:$0xff]
    %v385 = vld [vmem:[#allocation2 + $0xeb] sm:$0xff]
    %v386 = vld [vmem:[#allocation2 + $0xf3] sm:$0xff]
    %v387 = vld [vmem:[#allocation2 + $0xfb] sm:$0xff]
    %v388 = vld [vmem:[#allocation2 + $0x103] sm:$0x1]
    %v389 = vld [vmem:[#allocation2 + $0x104] sm:$0x1]
    %v390 = vld [vmem:[#allocation2 + $0x105] sm:$0x1]
    %391 = vmatprep.subr.mxu0 0.0
    %392 = vmatpush1.msra.mxu0 0.0
    %393 = vmatprep.subr.mxu0 0.0
    %394 = vmatpush1.msra.mxu0 0.0
    %395 = vmatprep.subr.mxu0 0.0
    %396 = vmatpush1.msra.mxu0 0.0
    %397 = vmatprep.subr.mxu0 0.0
    %398 = vmatpush1.msra.mxu0 0.0
    %399 = vmatprep.subr.mxu0 0.0
    %400 = vmatpush1.msra.mxu0 0.0
    %401 = vmatprep.subr.mxu0 0.0
    %402 = vmatpush1.msra.mxu0 0.0
    %403 = vmatprep.subr.mxu0 0.0
    %404 = vmatpush1.msra.mxu0 0.0
    %405 = vmatprep.subr.mxu0 0.0
    %406 = vmatpush1.msra.mxu0 0.0
    %407 = vmatprep.subr.mxu0 0.0
    %408 = vmatpush1.msra.mxu0 0.0
    %409 = vmatprep.subr.mxu0 0.0
    %410 = vmatpush1.msra.mxu0 0.0
    %411 = vmatprep.subr.mxu0 0.0
    %412 = vmatpush1.msra.mxu0 0.0
    %413 = vmatprep.subr.mxu0 0.0
    %414 = vmatpush1.msra.mxu0 0.0
    %415 = vmatprep.subr.mxu0 0.0
    %416 = vmatpush1.msra.mxu0 0.0
    %417 = vmatprep.subr.mxu0 0.0
    %418 = vmatpush1.msra.mxu0 0.0
    %419 = vmatprep.subr.mxu0 0.0
    %420 = vmatpush1.msra.mxu0 0.0
    %421 = vmatprep.subr.mxu0 0.0
    %422 = vmatpush1.msra.mxu0 %v378
    %423 = vmatprep.subr.mxu0 0.0
    %424 = vmatpush2.msra.mxu0 0.0
    %425 = vmatprep.subr.mxu0 0.0
    %426 = vmatpush2.msra.mxu0 0.0
    %427 = vmatprep.subr.mxu0 0.0
    %428 = vmatpush2.msra.mxu0 0.0
    %429 = vmatprep.subr.mxu0 0.0
    %430 = vmatpush2.msra.mxu0 0.0
    %431 = vmatprep.subr.mxu0 0.0
    %432 = vmatpush2.msra.mxu0 0.0
    %433 = vmatprep.subr.mxu0 0.0
    %434 = vmatpush2.msra.mxu0 0.0
    %435 = vmatprep.subr.mxu0 0.0
    %436 = vmatpush2.msra.mxu0 0.0
    %437 = vmatprep.subr.mxu0 0.0
    %438 = vmatpush2.msra.mxu0 0.0
    %439 = vmatprep.subr.mxu0 0.0
    %440 = vmatpush2.msra.mxu0 0.0
    %441 = vmatprep.subr.mxu0 0.0
    %442 = vmatpush2.msra.mxu0 0.0
    %443 = vmatprep.subr.mxu0 0.0
    %444 = vmatpush2.msra.mxu0 0.0
    %445 = vmatprep.subr.mxu0 0.0
    %446 = vmatpush2.msra.mxu0 0.0
    %447 = vmatprep.subr.mxu0 0.0
    %448 = vmatpush2.msra.mxu0 0.0
    %449 = vmatprep.subr.mxu0 0.0
    %450 = vmatpush2.msra.mxu0 0.0
    %451 = vmatprep.subr.mxu0 0.0
    %452 = vmatpush2.msra.mxu0 0.0
    %453 = vmatprep.subr.mxu0 0.0
    %454 = vmatpush2.msra.mxu0 0.0
    %455 = vmatprep.mubr.f32.mxu0 0.0
    %456 = vmatmul.mubr.f32.gmra.mxu0 %v76
    %v457 = vpop.f32.mrf.mxu0
    %v458 = vadd.f32 0.0, %v457
    %v459 = vpop.f32.mrf.mxu0
    %460 = vdwg.mxu0
    %461 = vmatprep.subr.mxu0 0.0
    %462 = vmatpush1.msra.mxu0 0.0
    %463 = vmatprep.subr.mxu0 0.0
    %464 = vmatpush1.msra.mxu0 0.0
    %465 = vmatprep.subr.mxu0 0.0
    %466 = vmatpush1.msra.mxu0 0.0
    %467 = vmatprep.subr.mxu0 0.0
    %468 = vmatpush1.msra.mxu0 0.0
    %469 = vmatprep.subr.mxu0 0.0
    %470 = vmatpush1.msra.mxu0 0.0
    %471 = vmatprep.subr.mxu0 0.0
    %472 = vmatpush1.msra.mxu0 0.0
    %473 = vmatprep.subr.mxu0 0.0
    %474 = vmatpush1.msra.mxu0 0.0
    %475 = vmatprep.subr.mxu0 0.0
    %476 = vmatpush1.msra.mxu0 0.0
    %477 = vmatprep.subr.mxu0 0.0
    %478 = vmatpush1.msra.mxu0 0.0
    %479 = vmatprep.subr.mxu0 0.0
    %480 = vmatpush1.msra.mxu0 0.0
    %481 = vmatprep.subr.mxu0 0.0
    %482 = vmatpush1.msra.mxu0 0.0
    %483 = vmatprep.subr.mxu0 0.0
    %484 = vmatpush1.msra.mxu0 0.0
    %485 = vmatprep.subr.mxu0 0.0
    %486 = vmatpush1.msra.mxu0 0.0
    %487 = vmatprep.subr.mxu0 0.0
    %488 = vmatpush1.msra.mxu0 0.0
    %489 = vmatprep.subr.mxu0 0.0
    %490 = vmatpush1.msra.mxu0 0.0
    %491 = vmatprep.subr.mxu0 0.0
    %492 = vmatpush1.msra.mxu0 %v379
    %493 = vmatprep.subr.mxu0 0.0
    %494 = vmatpush2.msra.mxu0 0.0
    %495 = vmatprep.subr.mxu0 0.0
    %496 = vmatpush2.msra.mxu0 0.0
    %497 = vmatprep.subr.mxu0 0.0
    %498 = vmatpush2.msra.mxu0 0.0
    %499 = vmatprep.subr.mxu0 0.0
    %500 = vmatpush2.msra.mxu0 0.0
    %501 = vmatprep.subr.mxu0 0.0
    %502 = vmatpush2.msra.mxu0 0.0
    %503 = vmatprep.subr.mxu0 0.0
    %504 = vmatpush2.msra.mxu0 0.0
    %505 = vmatprep.subr.mxu0 0.0
    %506 = vmatpush2.msra.mxu0 0.0
    %507 = vmatprep.subr.mxu0 0.0
    %508 = vmatpush2.msra.mxu0 0.0
    %509 = vmatprep.subr.mxu0 0.0
    %510 = vmatpush2.msra.mxu0 0.0
    %511 = vmatprep.subr.mxu0 0.0
    %512 = vmatpush2.msra.mxu0 0.0
    %513 = vmatprep.subr.mxu0 0.0
    %514 = vmatpush2.msra.mxu0 0.0
    %515 = vmatprep.subr.mxu0 0.0
    %516 = vmatpush2.msra.mxu0 0.0
    %517 = vmatprep.subr.mxu0 0.0
    %518 = vmatpush2.msra.mxu0 0.0
    %519 = vmatprep.subr.mxu0 0.0
    %520 = vmatpush2.msra.mxu0 0.0
    %521 = vmatprep.subr.mxu0 0.0
    %522 = vmatpush2.msra.mxu0 0.0
    %523 = vmatprep.subr.mxu0 0.0
    %524 = vmatpush2.msra.mxu0 0.0
    %525 = vmatprep.mubr.f32.mxu0 0.0
    %526 = vmatmul.mubr.f32.gmra.mxu0 %v149
    %v527 = vpop.f32.mrf.mxu0
    %v528 = vadd.f32 0.0, %v527
    %v529 = vpop.f32.mrf.mxu0
    %530 = vdwg.mxu0
    %v531 = vmul.f32 %v458, %v45
    %v532 = vmul.f32 %v528, %v47
    %535 = vrot.lane.b32.xlu0 %v378, 32
    %v536 = vpop.permute.xlu0 %535
    %537 = vrot.lane.b32.xlu0 %v379, 32
    %v538 = vpop.permute.xlu0 %537
    %v541 = vsel %vm322, %v531, %v536
    %v542 = vsel %vm322, %v532, %v538
    %v544 = vsel %vm234, %v541, 0
    %v547 = vsel %vm234, %v542, 0
    %549 = vmatprep.subr.mxu0 0.0
    %550 = vmatpush1.msra.mxu0 0.0
    %551 = vmatprep.subr.mxu0 0.0
    %552 = vmatpush1.msra.mxu0 0.0
    %553 = vmatprep.subr.mxu0 0.0
    %554 = vmatpush1.msra.mxu0 0.0
    %555 = vmatprep.subr.mxu0 0.0
    %556 = vmatpush1.msra.mxu0 0.0
    %557 = vmatprep.subr.mxu0 0.0
    %558 = vmatpush1.msra.mxu0 0.0
    %559 = vmatprep.subr.mxu0 0.0
    %560 = vmatpush1.msra.mxu0 0.0
    %561 = vmatprep.subr.mxu0 0.0
    %562 = vmatpush1.msra.mxu0 0.0
    %563 = vmatprep.subr.mxu0 0.0
    %564 = vmatpush1.msra.mxu0 0.0
    %565 = vmatprep.subr.mxu0 0.0
    %566 = vmatpush1.msra.mxu0 %v387
    %567 = vmatprep.subr.mxu0 0.0
    %568 = vmatpush1.msra.mxu0 %v386
    %569 = vmatprep.subr.mxu0 0.0
    %570 = vmatpush1.msra.mxu0 %v385
    %571 = vmatprep.subr.mxu0 0.0
    %572 = vmatpush1.msra.mxu0 %v384
    %573 = vmatprep.subr.mxu0 0.0
    %574 = vmatpush1.msra.mxu0 %v383
    %575 = vmatprep.subr.mxu0 0.0
    %576 = vmatpush1.msra.mxu0 %v382
    %577 = vmatprep.subr.mxu0 0.0
    %578 = vmatpush1.msra.mxu0 %v381
    %579 = vmatprep.subr.mxu0 0.0
    %580 = vmatpush1.msra.mxu0 %v380
    %581 = vmatprep.subr.mxu0 0.0
    %582 = vmatpush2.msra.mxu0 0.0
    %583 = vmatprep.subr.mxu0 0.0
    %584 = vmatpush2.msra.mxu0 0.0
    %585 = vmatprep.subr.mxu0 0.0
    %586 = vmatpush2.msra.mxu0 0.0
    %587 = vmatprep.subr.mxu0 0.0
    %588 = vmatpush2.msra.mxu0 0.0
    %589 = vmatprep.subr.mxu0 0.0
    %590 = vmatpush2.msra.mxu0 0.0
    %591 = vmatprep.subr.mxu0 0.0
    %592 = vmatpush2.msra.mxu0 0.0
    %593 = vmatprep.subr.mxu0 0.0
    %594 = vmatpush2.msra.mxu0 0.0
    %595 = vmatprep.subr.mxu0 0.0
    %596 = vmatpush2.msra.mxu0 0.0
    %597 = vmatprep.subr.mxu0 0.0
    %598 = vmatpush2.msra.mxu0 0.0
    %599 = vmatprep.subr.mxu0 0.0
    %600 = vmatpush2.msra.mxu0 0.0
    %601 = vmatprep.subr.mxu0 0.0
    %602 = vmatpush2.msra.mxu0 0.0
    %603 = vmatprep.subr.mxu0 0.0
    %604 = vmatpush2.msra.mxu0 0.0
    %605 = vmatprep.subr.mxu0 0.0
    %606 = vmatpush2.msra.mxu0 0.0
    %607 = vmatprep.subr.mxu0 0.0
    %608 = vmatpush2.msra.mxu0 0.0
    %609 = vmatprep.subr.mxu0 0.0
    %610 = vmatpush2.msra.mxu0 0.0
    %611 = vmatprep.subr.mxu0 0.0
    %612 = vmatpush2.msra.mxu0 0.0
    %613 = vmatprep.mubr.f32.mxu0 0.0
    %614 = vmatmul.mubr.f32.gmra.mxu0 %v544
    %v615 = vpop.f32.mrf.mxu0
    %v616 = vadd.f32 0.0, %v615
    %v617 = vpop.f32.mrf.mxu0
    %618 = vmatprep.mubr.f32.mxu0 0.0
    %619 = vmatmul.mubr.f32.gmra.mxu0 %v547
    %v620 = vpop.f32.mrf.mxu0
    %v621 = vadd.f32 0.0, %v620
    %v622 = vpop.f32.mrf.mxu0
    %623 = vdwg.mxu0
    %v624 = vlaneseq
    %v625 = vshrl.u32 %v624, 7
    %v626 = vsub.s32 0, %v625
    %v627 = vrot.slane %v388, %v626
    %v628 = vadd.f32 %v616, %v627
    %v629 = vadd.f32 %v621, %v627
    %v630 = vmax.f32 %v628, 0.0
    %v631 = vmax.f32 %v629, 0.0
    %v632 = vsel %vm322, %v630, 0.0
    %v633 = vrot.slane %v632, 4
    %v634 = vadd.f32 %v632, %v633
    %v635 = vrot.slane %v634, 2
    %v636 = vadd.f32 %v634, %v635
    %v637 = vrot.slane %v636, 1
    %v638 = vadd.f32 %v636, %v637
    %v639 = vsel %vm322, %v631, 0.0
    %v640 = vrot.slane %v639, 4
    %v641 = vadd.f32 %v639, %v640
    %v642 = vrot.slane %v641, 2
    %v643 = vadd.f32 %v641, %v642
    %v644 = vrot.slane %v643, 1
    %v645 = vadd.f32 %v643, %v644
    %v646 = vsel %vm322, %v638, 0.0
    %v647 = vsel %vm322, %v645, 0.0
    %v648 = vadd.f32 %v646, %v647
    %v649 = vmul.f32 %v648, %v340
    %v650 = vsub.f32 %v630, %v649
    %v651 = vsub.f32 %v631, %v649
    %v652 = vmul.f32 %v650, %v650
    %v653 = vmul.f32 %v651, %v651
    %v654 = vsel %vm322, %v652, 0.0
    %v655 = vrot.slane %v654, 4
    %v656 = vadd.f32 %v654, %v655
    %v657 = vrot.slane %v656, 2
    %v658 = vadd.f32 %v656, %v657
    %v659 = vrot.slane %v658, 1
    %v660 = vadd.f32 %v658, %v659
    %v661 = vsel %vm322, %v653, 0.0
    %v662 = vrot.slane %v661, 4
    %v663 = vadd.f32 %v661, %v662
    %v664 = vrot.slane %v663, 2
    %v665 = vadd.f32 %v663, %v664
    %v666 = vrot.slane %v665, 1
    %v667 = vadd.f32 %v665, %v666
    %v668 = vsel %vm322, %v660, 0.0
    %v669 = vsel %vm322, %v667, 0.0
    %v670 = vadd.f32 %v668, %v669
    %v671 = vmul.f32 %v670, %v340
    %v672 = vadd.f32 %v671, 1e-05
    %v673 = vrsqrt.pop %v672
    %v674 = vmul.f32 %v650, %v673
    %v675 = vmul.f32 %v651, %v673
    %v676 = vlaneseq
    %v677 = vshrl.u32 %v676, 7
    %v678 = vsub.s32 0, %v677
    %v679 = vrot.slane %v389, %v678
    %v680 = vmul.f32 %v674, %v679
    %v681 = vmul.f32 %v675, %v679
    %v682 = vlaneseq
    %v683 = vshrl.u32 %v682, 7
    %v684 = vsub.s32 0, %v683
    %v685 = vrot.slane %v390, %v684
    %v686 = vadd.f32 %v680, %v685
    %v687 = vadd.f32 %v681, %v685
    %v688 = vld [vmem:[#allocation2 + $0x106] sm:$0xff]
    %v689 = vld [vmem:[#allocation2 + $0x10e] sm:$0xff]
    %v690 = vld [vmem:[#allocation2 + $0x116] sm:$0xff]
    %v691 = vld [vmem:[#allocation2 + $0x11e] sm:$0xff]
    %v692 = vld [vmem:[#allocation2 + $0x126] sm:$0xff]
    %v693 = vld [vmem:[#allocation2 + $0x12e] sm:$0xff]
    %v694 = vld [vmem:[#allocation2 + $0x136] sm:$0xff]
    %v695 = vld [vmem:[#allocation2 + $0x13e] sm:$0xff]
    %v696 = vld [vmem:[#allocation2 + $0x146] sm:$0x1]
    %v697 = vld [vmem:[#allocation2 + $0x147] sm:$0x1]
    %v698 = vld [vmem:[#allocation2 + $0x148] sm:$0x1]
    %699 = vmatprep.subr.mxu0 0.0
    %700 = vmatpush1.msra.mxu0 0.0
    %701 = vmatprep.subr.mxu0 0.0
    %702 = vmatpush1.msra.mxu0 0.0
    %703 = vmatprep.subr.mxu0 0.0
    %704 = vmatpush1.msra.mxu0 0.0
    %705 = vmatprep.subr.mxu0 0.0
    %706 = vmatpush1.msra.mxu0 0.0
    %707 = vmatprep.subr.mxu0 0.0
    %708 = vmatpush1.msra.mxu0 0.0
    %709 = vmatprep.subr.mxu0 0.0
    %710 = vmatpush1.msra.mxu0 0.0
    %711 = vmatprep.subr.mxu0 0.0
    %712 = vmatpush1.msra.mxu0 0.0
    %713 = vmatprep.subr.mxu0 0.0
    %714 = vmatpush1.msra.mxu0 0.0
    %715 = vmatprep.subr.mxu0 0.0
    %716 = vmatpush1.msra.mxu0 0.0
    %717 = vmatprep.subr.mxu0 0.0
    %718 = vmatpush1.msra.mxu0 0.0
    %719 = vmatprep.subr.mxu0 0.0
    %720 = vmatpush1.msra.mxu0 0.0
    %721 = vmatprep.subr.mxu0 0.0
    %722 = vmatpush1.msra.mxu0 0.0
    %723 = vmatprep.subr.mxu0 0.0
    %724 = vmatpush1.msra.mxu0 0.0
    %725 = vmatprep.subr.mxu0 0.0
    %726 = vmatpush1.msra.mxu0 0.0
    %727 = vmatprep.subr.mxu0 0.0
    %728 = vmatpush1.msra.mxu0 0.0
    %729 = vmatprep.subr.mxu0 0.0
    %730 = vmatpush1.msra.mxu0 %v686
    %731 = vmatprep.subr.mxu0 0.0
    %732 = vmatpush2.msra.mxu0 0.0
    %733 = vmatprep.subr.mxu0 0.0
    %734 = vmatpush2.msra.mxu0 0.0
    %735 = vmatprep.subr.mxu0 0.0
    %736 = vmatpush2.msra.mxu0 0.0
    %737 = vmatprep.subr.mxu0 0.0
    %738 = vmatpush2.msra.mxu0 0.0
    %739 = vmatprep.subr.mxu0 0.0
    %740 = vmatpush2.msra.mxu0 0.0
    %741 = vmatprep.subr.mxu0 0.0
    %742 = vmatpush2.msra.mxu0 0.0
    %743 = vmatprep.subr.mxu0 0.0
    %744 = vmatpush2.msra.mxu0 0.0
    %745 = vmatprep.subr.mxu0 0.0
    %746 = vmatpush2.msra.mxu0 0.0
    %747 = vmatprep.subr.mxu0 0.0
    %748 = vmatpush2.msra.mxu0 0.0
    %749 = vmatprep.subr.mxu0 0.0
    %750 = vmatpush2.msra.mxu0 0.0
    %751 = vmatprep.subr.mxu0 0.0
    %752 = vmatpush2.msra.mxu0 0.0
    %753 = vmatprep.subr.mxu0 0.0
    %754 = vmatpush2.msra.mxu0 0.0
    %755 = vmatprep.subr.mxu0 0.0
    %756 = vmatpush2.msra.mxu0 0.0
    %757 = vmatprep.subr.mxu0 0.0
    %758 = vmatpush2.msra.mxu0 0.0
    %759 = vmatprep.subr.mxu0 0.0
    %760 = vmatpush2.msra.mxu0 0.0
    %761 = vmatprep.subr.mxu0 0.0
    %762 = vmatpush2.msra.mxu0 0.0
    %763 = vmatprep.mubr.f32.mxu0 0.0
    %764 = vmatmul.mubr.f32.gmra.mxu0 %v76
    %v765 = vpop.f32.mrf.mxu0
    %v766 = vadd.f32 0.0, %v765
    %v767 = vpop.f32.mrf.mxu0
    %768 = vdwg.mxu0
    %769 = vmatprep.subr.mxu0 0.0
    %770 = vmatpush1.msra.mxu0 0.0
    %771 = vmatprep.subr.mxu0 0.0
    %772 = vmatpush1.msra.mxu0 0.0
    %773 = vmatprep.subr.mxu0 0.0
    %774 = vmatpush1.msra.mxu0 0.0
    %775 = vmatprep.subr.mxu0 0.0
    %776 = vmatpush1.msra.mxu0 0.0
    %777 = vmatprep.subr.mxu0 0.0
    %778 = vmatpush1.msra.mxu0 0.0
    %779 = vmatprep.subr.mxu0 0.0
    %780 = vmatpush1.msra.mxu0 0.0
    %781 = vmatprep.subr.mxu0 0.0
    %782 = vmatpush1.msra.mxu0 0.0
    %783 = vmatprep.subr.mxu0 0.0
    %784 = vmatpush1.msra.mxu0 0.0
    %785 = vmatprep.subr.mxu0 0.0
    %786 = vmatpush1.msra.mxu0 0.0
    %787 = vmatprep.subr.mxu0 0.0
    %788 = vmatpush1.msra.mxu0 0.0
    %789 = vmatprep.subr.mxu0 0.0
    %790 = vmatpush1.msra.mxu0 0.0
    %791 = vmatprep.subr.mxu0 0.0
    %792 = vmatpush1.msra.mxu0 0.0
    %793 = vmatprep.subr.mxu0 0.0
    %794 = vmatpush1.msra.mxu0 0.0
    %795 = vmatprep.subr.mxu0 0.0
    %796 = vmatpush1.msra.mxu0 0.0
    %797 = vmatprep.subr.mxu0 0.0
    %798 = vmatpush1.msra.mxu0 0.0
    %799 = vmatprep.subr.mxu0 0.0
    %800 = vmatpush1.msra.mxu0 %v687
    %801 = vmatprep.subr.mxu0 0.0
    %802 = vmatpush2.msra.mxu0 0.0
    %803 = vmatprep.subr.mxu0 0.0
    %804 = vmatpush2.msra.mxu0 0.0
    %805 = vmatprep.subr.mxu0 0.0
    %806 = vmatpush2.msra.mxu0 0.0
    %807 = vmatprep.subr.mxu0 0.0
    %808 = vmatpush2.msra.mxu0 0.0
    %809 = vmatprep.subr.mxu0 0.0
    %810 = vmatpush2.msra.mxu0 0.0
    %811 = vmatprep.subr.mxu0 0.0
    %812 = vmatpush2.msra.mxu0 0.0
    %813 = vmatprep.subr.mxu0 0.0
    %814 = vmatpush2.msra.mxu0 0.0
    %815 = vmatprep.subr.mxu0 0.0
    %816 = vmatpush2.msra.mxu0 0.0
    %817 = vmatprep.subr.mxu0 0.0
    %818 = vmatpush2.msra.mxu0 0.0
    %819 = vmatprep.subr.mxu0 0.0
    %820 = vmatpush2.msra.mxu0 0.0
    %821 = vmatprep.subr.mxu0 0.0
    %822 = vmatpush2.msra.mxu0 0.0
    %823 = vmatprep.subr.mxu0 0.0
    %824 = vmatpush2.msra.mxu0 0.0
    %825 = vmatprep.subr.mxu0 0.0
    %826 = vmatpush2.msra.mxu0 0.0
    %827 = vmatprep.subr.mxu0 0.0
    %828 = vmatpush2.msra.mxu0 0.0
    %829 = vmatprep.subr.mxu0 0.0
    %830 = vmatpush2.msra.mxu0 0.0
    %831 = vmatprep.subr.mxu0 0.0
    %832 = vmatpush2.msra.mxu0 0.0
    %833 = vmatprep.mubr.f32.mxu0 0.0
    %834 = vmatmul.mubr.f32.gmra.mxu0 %v149
    %v835 = vpop.f32.mrf.mxu0
    %v836 = vadd.f32 0.0, %v835
    %v837 = vpop.f32.mrf.mxu0
    %838 = vdwg.mxu0
    %v839 = vmul.f32 %v766, %v45
    %v840 = vmul.f32 %v836, %v47
    %843 = vrot.lane.b32.xlu0 %v686, 32
    %v844 = vpop.permute.xlu0 %843
    %845 = vrot.lane.b32.xlu0 %v687, 32
    %v846 = vpop.permute.xlu0 %845
    %v849 = vsel %vm322, %v839, %v844
    %v850 = vsel %vm322, %v840, %v846
    %v852 = vsel %vm234, %v849, 0
    %v855 = vsel %vm234, %v850, 0
    %857 = vmatprep.subr.mxu0 0.0
    %858 = vmatpush1.msra.mxu0 0.0
    %859 = vmatprep.subr.mxu0 0.0
    %860 = vmatpush1.msra.mxu0 0.0
    %861 = vmatprep.subr.mxu0 0.0
    %862 = vmatpush1.msra.mxu0 0.0
    %863 = vmatprep.subr.mxu0 0.0
    %864 = vmatpush1.msra.mxu0 0.0
    %865 = vmatprep.subr.mxu0 0.0
    %866 = vmatpush1.msra.mxu0 0.0
    %867 = vmatprep.subr.mxu0 0.0
    %868 = vmatpush1.msra.mxu0 0.0
    %869 = vmatprep.subr.mxu0 0.0
    %870 = vmatpush1.msra.mxu0 0.0
    %871 = vmatprep.subr.mxu0 0.0
    %872 = vmatpush1.msra.mxu0 0.0
    %873 = vmatprep.subr.mxu0 0.0
    %874 = vmatpush1.msra.mxu0 %v695
    %875 = vmatprep.subr.mxu0 0.0
    %876 = vmatpush1.msra.mxu0 %v694
    %877 = vmatprep.subr.mxu0 0.0
    %878 = vmatpush1.msra.mxu0 %v693
    %879 = vmatprep.subr.mxu0 0.0
    %880 = vmatpush1.msra.mxu0 %v692
    %881 = vmatprep.subr.mxu0 0.0
    %882 = vmatpush1.msra.mxu0 %v691
    %883 = vmatprep.subr.mxu0 0.0
    %884 = vmatpush1.msra.mxu0 %v690
    %885 = vmatprep.subr.mxu0 0.0
    %886 = vmatpush1.msra.mxu0 %v689
    %887 = vmatprep.subr.mxu0 0.0
    %888 = vmatpush1.msra.mxu0 %v688
    %889 = vmatprep.subr.mxu0 0.0
    %890 = vmatpush2.msra.mxu0 0.0
    %891 = vmatprep.subr.mxu0 0.0
    %892 = vmatpush2.msra.mxu0 0.0
    %893 = vmatprep.subr.mxu0 0.0
    %894 = vmatpush2.msra.mxu0 0.0
    %895 = vmatprep.subr.mxu0 0.0
    %896 = vmatpush2.msra.mxu0 0.0
    %897 = vmatprep.subr.mxu0 0.0
    %898 = vmatpush2.msra.mxu0 0.0
    %899 = vmatprep.subr.mxu0 0.0
    %900 = vmatpush2.msra.mxu0 0.0
    %901 = vmatprep.subr.mxu0 0.0
    %902 = vmatpush2.msra.mxu0 0.0
    %903 = vmatprep.subr.mxu0 0.0
    %904 = vmatpush2.msra.mxu0 0.0
    %905 = vmatprep.subr.mxu0 0.0
    %906 = vmatpush2.msra.mxu0 0.0
    %907 = vmatprep.subr.mxu0 0.0
    %908 = vmatpush2.msra.mxu0 0.0
    %909 = vmatprep.subr.mxu0 0.0
    %910 = vmatpush2.msra.mxu0 0.0
    %911 = vmatprep.subr.mxu0 0.0
    %912 = vmatpush2.msra.mxu0 0.0
    %913 = vmatprep.subr.mxu0 0.0
    %914 = vmatpush2.msra.mxu0 0.0
    %915 = vmatprep.subr.mxu0 0.0
    %916 = vmatpush2.msra.mxu0 0.0
    %917 = vmatprep.subr.mxu0 0.0
    %918 = vmatpush2.msra.mxu0 0.0
    %919 = vmatprep.subr.mxu0 0.0
    %920 = vmatpush2.msra.mxu0 0.0
    %921 = vmatprep.mubr.f32.mxu0 0.0
    %922 = vmatmul.mubr.f32.gmra.mxu0 %v852
    %v923 = vpop.f32.mrf.mxu0
    %v924 = vadd.f32 0.0, %v923
    %v925 = vpop.f32.mrf.mxu0
    %926 = vmatprep.mubr.f32.mxu0 0.0
    %927 = vmatmul.mubr.f32.gmra.mxu0 %v855
    %v928 = vpop.f32.mrf.mxu0
    %v929 = vadd.f32 0.0, %v928
    %v930 = vpop.f32.mrf.mxu0
    %931 = vdwg.mxu0
    %v932 = vlaneseq
    %v933 = vshrl.u32 %v932, 7
    %v934 = vsub.s32 0, %v933
    %v935 = vrot.slane %v696, %v934
    %v936 = vadd.f32 %v924, %v935
    %v937 = vadd.f32 %v929, %v935
    %v938 = vmax.f32 %v936, 0.0
    %v939 = vmax.f32 %v937, 0.0
    %vm940 = vcmask 15360
    %v941 = vsel %vm940, %v938, 0.0
    %v942 = vrot.slane %v941, 4
    %v943 = vadd.f32 %v941, %v942
    %v944 = vrot.slane %v943, 2
    %v945 = vadd.f32 %v943, %v944
    %v946 = vrot.slane %v945, 1
    %v947 = vadd.f32 %v945, %v946
    %v948 = vsel %vm940, %v939, 0.0
    %v949 = vrot.slane %v948, 4
    %v950 = vadd.f32 %v948, %v949
    %v951 = vrot.slane %v950, 2
    %v952 = vadd.f32 %v950, %v951
    %v953 = vrot.slane %v952, 1
    %v954 = vadd.f32 %v952, %v953
    %v955 = vsel %vm940, %v947, 0.0
    %v956 = vsel %vm940, %v954, 0.0
    %v957 = vadd.f32 %v955, %v956
    %v958 = vmul.f32 %v957, %v340
    %v959 = vsub.f32 %v938, %v958
    %v960 = vsub.f32 %v939, %v958
    %v961 = vmul.f32 %v959, %v959
    %v962 = vmul.f32 %v960, %v960
    %v963 = vsel %vm940, %v961, 0.0
    %v964 = vrot.slane %v963, 4
    %v965 = vadd.f32 %v963, %v964
    %v966 = vrot.slane %v965, 2
    %v967 = vadd.f32 %v965, %v966
    %v968 = vrot.slane %v967, 1
    %v969 = vadd.f32 %v967, %v968
    %v970 = vsel %vm940, %v962, 0.0
    %v971 = vrot.slane %v970, 4
    %v972 = vadd.f32 %v970, %v971
    %v973 = vrot.slane %v972, 2
    %v974 = vadd.f32 %v972, %v973
    %v975 = vrot.slane %v974, 1
    %v976 = vadd.f32 %v974, %v975
    %v977 = vsel %vm940, %v969, 0.0
    %v978 = vsel %vm940, %v976, 0.0
    %v979 = vadd.f32 %v977, %v978
    %v980 = vmul.f32 %v979, %v340
    %v981 = vadd.f32 %v980, 1e-05
    %v982 = vrsqrt.pop %v981
    %v983 = vmul.f32 %v959, %v982
    %v984 = vmul.f32 %v960, %v982
    %v985 = vlaneseq
    %v986 = vshrl.u32 %v985, 7
    %v987 = vsub.s32 0, %v986
    %v988 = vrot.slane %v697, %v987
    %v989 = vmul.f32 %v983, %v988
    %v990 = vmul.f32 %v984, %v988
    %v991 = vlaneseq
    %v992 = vshrl.u32 %v991, 7
    %v993 = vsub.s32 0, %v992
    %v994 = vrot.slane %v698, %v993
    %v995 = vadd.f32 %v989, %v994
    %v996 = vadd.f32 %v990, %v994
    %999 = vrot.lane.b32.xlu0 %v995, 64
    %v1000 = vpop.permute.xlu0 %999
    %1001 = vrot.lane.b32.xlu0 %v996, 64
    %v1002 = vpop.permute.xlu0 %1001
    %v1005 = vsel %vm322, %v378, %v844
    %v1006 = vsel %vm322, %v379, %v846
    %v1007 = vsel %vm234, %v1005, %v1000
    %v1008 = vsel %vm234, %v1006, %v1002
    %v1009 = vld [vmem:[#allocation2 + $0x149] sm:$0xff]
    %v1010 = vld [vmem:[#allocation2 + $0x151] sm:$0xff]
    %v1011 = vld [vmem:[#allocation2 + $0x159] sm:$0xff]
    %v1012 = vld [vmem:[#allocation2 + $0x161] sm:$0xff]
    %v1013 = vld [vmem:[#allocation2 + $0x169] sm:$0xff]
    %v1014 = vld [vmem:[#allocation2 + $0x171] sm:$0xff]
    %v1015 = vld [vmem:[#allocation2 + $0x179] sm:$0xff]
    %v1016 = vld [vmem:[#allocation2 + $0x181] sm:$0xff]
    %v1017 = vld [vmem:[#allocation2 + $0x189] sm:$0x3]
    %v1018 = vld [vmem:[#allocation2 + $0x18b] sm:$0x1]
    %vm1019 = vcmask 539648
    %v1021 = vsel %vm1019, %v1007, 0
    %v1024 = vsel %vm1019, %v1008, 0
    %vm1026 = vcmask 1041408
    %v1028 = vsel %vm1026, %v1017, 0
    %1030 = vmatprep.subr.mxu0 0.0
    %1031 = vmatpush1.msra.mxu0 0.0
    %1032 = vmatprep.subr.mxu0 0.0
    %1033 = vmatpush1.msra.mxu0 0.0
    %1034 = vmatprep.subr.mxu0 0.0
    %1035 = vmatpush1.msra.mxu0 0.0
    %1036 = vmatprep.subr.mxu0 0.0
    %1037 = vmatpush1.msra.mxu0 0.0
    %1038 = vmatprep.subr.mxu0 0.0
    %1039 = vmatpush1.msra.mxu0 0.0
    %1040 = vmatprep.subr.mxu0 0.0
    %1041 = vmatpush1.msra.mxu0 0.0
    %1042 = vmatprep.subr.mxu0 0.0
    %1043 = vmatpush1.msra.mxu0 0.0
    %1044 = vmatprep.subr.mxu0 0.0
    %1045 = vmatpush1.msra.mxu0 %v1028
    %1046 = vmatprep.subr.mxu0 0.0
    %1047 = vmatpush1.msra.mxu0 %v1016
    %1048 = vmatprep.subr.mxu0 0.0
    %1049 = vmatpush1.msra.mxu0 %v1015
    %1050 = vmatprep.subr.mxu0 0.0
    %1051 = vmatpush1.msra.mxu0 %v1014
    %1052 = vmatprep.subr.mxu0 0.0
    %1053 = vmatpush1.msra.mxu0 %v1013
    %1054 = vmatprep.subr.mxu0 0.0
    %1055 = vmatpush1.msra.mxu0 %v1012
    %1056 = vmatprep.subr.mxu0 0.0
    %1057 = vmatpush1.msra.mxu0 %v1011
    %1058 = vmatprep.subr.mxu0 0.0
    %1059 = vmatpush1.msra.mxu0 %v1010
    %1060 = vmatprep.subr.mxu0 0.0
    %1061 = vmatpush1.msra.mxu0 %v1009
    %1062 = vmatprep.subr.mxu0 0.0
    %1063 = vmatpush2.msra.mxu0 0.0
    %1064 = vmatprep.subr.mxu0 0.0
    %1065 = vmatpush2.msra.mxu0 0.0
    %1066 = vmatprep.subr.mxu0 0.0
    %1067 = vmatpush2.msra.mxu0 0.0
    %1068 = vmatprep.subr.mxu0 0.0
    %1069 = vmatpush2.msra.mxu0 0.0
    %1070 = vmatprep.subr.mxu0 0.0
    %1071 = vmatpush2.msra.mxu0 0.0
    %1072 = vmatprep.subr.mxu0 0.0
    %1073 = vmatpush2.msra.mxu0 0.0
    %1074 = vmatprep.subr.mxu0 0.0
    %1075 = vmatpush2.msra.mxu0 0.0
    %1076 = vmatprep.subr.mxu0 0.0
    %1077 = vmatpush2.msra.mxu0 0.0
    %1078 = vmatprep.subr.mxu0 0.0
    %1079 = vmatpush2.msra.mxu0 0.0
    %1080 = vmatprep.subr.mxu0 0.0
    %1081 = vmatpush2.msra.mxu0 0.0
    %1082 = vmatprep.subr.mxu0 0.0
    %1083 = vmatpush2.msra.mxu0 0.0
    %1084 = vmatprep.subr.mxu0 0.0
    %1085 = vmatpush2.msra.mxu0 0.0
    %1086 = vmatprep.subr.mxu0 0.0
    %1087 = vmatpush2.msra.mxu0 0.0
    %1088 = vmatprep.subr.mxu0 0.0
    %1089 = vmatpush2.msra.mxu0 0.0
    %1090 = vmatprep.subr.mxu0 0.0
    %1091 = vmatpush2.msra.mxu0 0.0
    %1092 = vmatprep.subr.mxu0 0.0
    %1093 = vmatpush2.msra.mxu0 0.0
    %1094 = vmatprep.mubr.f32.mxu0 0.0
    %1095 = vmatmul.mubr.f32.gmra.mxu0 %v1021
    %v1096 = vpop.f32.mrf.mxu0
    %v1097 = vadd.f32 0.0, %v1096
    %v1098 = vpop.f32.mrf.mxu0
    %1099 = vmatprep.mubr.f32.mxu0 0.0
    %1100 = vmatmul.mubr.f32.gmra.mxu0 %v1024
    %v1101 = vpop.f32.mrf.mxu0
    %v1102 = vadd.f32 0.0, %v1101
    %v1103 = vpop.f32.mrf.mxu0
    %1104 = vdwg.mxu0
    %v1105 = vlaneseq
    %v1106 = vshrl.u32 %v1105, 7
    %v1107 = vsub.s32 0, %v1106
    %v1108 = vrot.slane %v1018, %v1107
    %v1109 = vadd.f32 %v1097, %v1108
    %v1110 = vadd.f32 %v1102, %v1108
    %v1111 = vmax.f32 %v1109, 0.0
    %v1112 = vmax.f32 %v1110, 0.0
    %v1113 = vld [vmem:[#allocation2 + $0x18c] sm:$0xff]
    %v1114 = vld [vmem:[#allocation2 + $0x194] sm:$0xff]
    %v1115 = vld [vmem:[#allocation2 + $0x19c] sm:$0xff]
    %v1116 = vld [vmem:[#allocation2 + $0x1a4] sm:$0xff]
    %v1117 = vld [vmem:[#allocation2 + $0x1ac] sm:$0xff]
    %v1118 = vld [vmem:[#allocation2 + $0x1b4] sm:$0xff]
    %v1119 = vld [vmem:[#allocation2 + $0x1bc] sm:$0xff]
    %v1120 = vld [vmem:[#allocation2 + $0x1c4] sm:$0xff]
    %v1121 = vld [vmem:[#allocation2 + $0x1cc] sm:$0xff]
    %v1122 = vld [vmem:[#allocation2 + $0x1d4] sm:$0xff]
    %v1123 = vld [vmem:[#allocation2 + $0x1dc] sm:$0xff]
    %v1124 = vld [vmem:[#allocation2 + $0x1e4] sm:$0xff]
    %v1125 = vld [vmem:[#allocation2 + $0x1ec] sm:$0xff]
    %v1126 = vld [vmem:[#allocation2 + $0x1f4] sm:$0xff]
    %v1127 = vld [vmem:[#allocation2 + $0x1fc] sm:$0xff]
    %v1128 = vld [vmem:[#allocation2 + $0x204] sm:$0xff]
    %v1129 = vld [vmem:[#allocation2 + $0x20c] sm:$0xff]
    %v1130 = vld [vmem:[#allocation2 + $0x214] sm:$0xff]
    %v1131 = vld [vmem:[#allocation2 + $0x21c] sm:$0xff]
    %v1132 = vld [vmem:[#allocation2 + $0x224] sm:$0xff]
    %v1133 = vld [vmem:[#allocation2 + $0x22c] sm:$0xff]
    %v1134 = vld [vmem:[#allocation2 + $0x234] sm:$0xff]
    %v1135 = vld [vmem:[#allocation2 + $0x23c] sm:$0xff]
    %v1136 = vld [vmem:[#allocation2 + $0x244] sm:$0xff]
    %v1137 = vld [vmem:[#allocation2 + $0x24c] sm:$0x1]
    %v1138 = vld [vmem:[#allocation2 + $0x24d] sm:$0x1]
    %v1139 = vld [vmem:[#allocation2 + $0x24e] sm:$0x1]
    %1140 = vmatprep.subr.mxu0 0.0
    %1141 = vmatpush1.msra.mxu0 %v1128
    %1142 = vmatprep.subr.mxu0 0.0
    %1143 = vmatpush1.msra.mxu0 %v1127
    %1144 = vmatprep.subr.mxu0 0.0
    %1145 = vmatpush1.msra.mxu0 %v1126
    %1146 = vmatprep.subr.mxu0 0.0
    %1147 = vmatpush1.msra.mxu0 %v1125
    %1148 = vmatprep.subr.mxu0 0.0
    %1149 = vmatpush1.msra.mxu0 %v1124
    %1150 = vmatprep.subr.mxu0 0.0
    %1151 = vmatpush1.msra.mxu0 %v1123
    %1152 = vmatprep.subr.mxu0 0.0
    %1153 = vmatpush1.msra.mxu0 %v1122
    %1154 = vmatprep.subr.mxu0 0.0
    %1155 = vmatpush1.msra.mxu0 %v1121
    %1156 = vmatprep.subr.mxu0 0.0
    %1157 = vmatpush1.msra.mxu0 %v1120
    %1158 = vmatprep.subr.mxu0 0.0
    %1159 = vmatpush1.msra.mxu0 %v1119
    %1160 = vmatprep.subr.mxu0 0.0
    %1161 = vmatpush1.msra.mxu0 %v1118
    %1162 = vmatprep.subr.mxu0 0.0
    %1163 = vmatpush1.msra.mxu0 %v1117
    %1164 = vmatprep.subr.mxu0 0.0
    %1165 = vmatpush1.msra.mxu0 %v1116
    %1166 = vmatprep.subr.mxu0 0.0
    %1167 = vmatpush1.msra.mxu0 %v1115
    %1168 = vmatprep.subr.mxu0 0.0
    %1169 = vmatpush1.msra.mxu0 %v1114
    %1170 = vmatprep.subr.mxu0 0.0
    %1171 = vmatpush1.msra.mxu0 %v1113
    %1172 = vmatprep.subr.mxu0 0.0
    %1173 = vmatpush2.msra.mxu0 0.0
    %1174 = vmatprep.subr.mxu0 0.0
    %1175 = vmatpush2.msra.mxu0 0.0
    %1176 = vmatprep.subr.mxu0 0.0
    %1177 = vmatpush2.msra.mxu0 0.0
    %1178 = vmatprep.subr.mxu0 0.0
    %1179 = vmatpush2.msra.mxu0 0.0
    %1180 = vmatprep.subr.mxu0 0.0
    %1181 = vmatpush2.msra.mxu0 0.0
    %1182 = vmatprep.subr.mxu0 0.0
    %1183 = vmatpush2.msra.mxu0 0.0
    %1184 = vmatprep.subr.mxu0 0.0
    %1185 = vmatpush2.msra.mxu0 0.0
    %1186 = vmatprep.subr.mxu0 0.0
    %1187 = vmatpush2.msra.mxu0 0.0
    %1188 = vmatprep.subr.mxu0 0.0
    %1189 = vmatpush2.msra.mxu0 %v1136
    %1190 = vmatprep.subr.mxu0 0.0
    %1191 = vmatpush2.msra.mxu0 %v1135
    %1192 = vmatprep.subr.mxu0 0.0
    %1193 = vmatpush2.msra.mxu0 %v1134
    %1194 = vmatprep.subr.mxu0 0.0
    %1195 = vmatpush2.msra.mxu0 %v1133
    %1196 = vmatprep.subr.mxu0 0.0
    %1197 = vmatpush2.msra.mxu0 %v1132
    %1198 = vmatprep.subr.mxu0 0.0
    %1199 = vmatpush2.msra.mxu0 %v1131
    %1200 = vmatprep.subr.mxu0 0.0
    %1201 = vmatpush2.msra.mxu0 %v1130
    %1202 = vmatprep.subr.mxu0 0.0
    %1203 = vmatpush2.msra.mxu0 %v1129
    %1204 = vmatprep.mubr.f32.mxu0 %v235
    %1205 = vmatmul.mubr.f32.gmra.mxu0 %v232
    %v1206 = vpop.f32.mrf.mxu0
    %v1207 = vadd.f32 0.0, %v1206
    %v1208 = vpop.f32.mrf.mxu0
    %1209 = vmatprep.mubr.f32.mxu0 %v237
    %1210 = vmatmul.mubr.f32.gmra.mxu0 %v233
    %v1211 = vpop.f32.mrf.mxu0
    %v1212 = vadd.f32 0.0, %v1211
    %v1213 = vpop.f32.mrf.mxu0
    %1214 = vdwg.mxu0
    %v1215 = vlaneseq
    %v1216 = vshrl.u32 %v1215, 7
    %v1217 = vsub.s32 0, %v1216
    %v1218 = vrot.slane %v1137, %v1217
    %v1219 = vadd.f32 %v1207, %v1218
    %v1220 = vadd.f32 %v1212, %v1218
    %v1221 = vmax.f32 %v1219, 0.0
    %v1222 = vmax.f32 %v1220, 0.0
    %v1223 = vsel %vm322, %v1221, 0.0
    %v1224 = vrot.slane %v1223, 4
    %v1225 = vadd.f32 %v1223, %v1224
    %v1226 = vrot.slane %v1225, 2
    %v1227 = vadd.f32 %v1225, %v1226
    %v1228 = vrot.slane %v1227, 1
    %v1229 = vadd.f32 %v1227, %v1228
    %v1230 = vsel %vm322, %v1222, 0.0
    %v1231 = vrot.slane %v1230, 4
    %v1232 = vadd.f32 %v1230, %v1231
    %v1233 = vrot.slane %v1232, 2
    %v1234 = vadd.f32 %v1232, %v1233
    %v1235 = vrot.slane %v1234, 1
    %v1236 = vadd.f32 %v1234, %v1235
    %v1237 = vsel %vm322, %v1229, 0.0
    %v1238 = vsel %vm322, %v1236, 0.0
    %v1239 = vadd.f32 %v1237, %v1238
    %v1240 = vmul.f32 %v1239, %v340
    %v1241 = vsub.f32 %v1221, %v1240
    %v1242 = vsub.f32 %v1222, %v1240
    %v1243 = vmul.f32 %v1241, %v1241
    %v1244 = vmul.f32 %v1242, %v1242
    %v1245 = vsel %vm322, %v1243, 0.0
    %v1246 = vrot.slane %v1245, 4
    %v1247 = vadd.f32 %v1245, %v1246
    %v1248 = vrot.slane %v1247, 2
    %v1249 = vadd.f32 %v1247, %v1248
    %v1250 = vrot.slane %v1249, 1
    %v1251 = vadd.f32 %v1249, %v1250
    %v1252 = vsel %vm322, %v1244, 0.0
    %v1253 = vrot.slane %v1252, 4
    %v1254 = vadd.f32 %v1252, %v1253
    %v1255 = vrot.slane %v1254, 2
    %v1256 = vadd.f32 %v1254, %v1255
    %v1257 = vrot.slane %v1256, 1
    %v1258 = vadd.f32 %v1256, %v1257
    %v1259 = vsel %vm322, %v1251, 0.0
    %v1260 = vsel %vm322, %v1258, 0.0
    %v1261 = vadd.f32 %v1259, %v1260
    %v1262 = vmul.f32 %v1261, %v340
    %v1263 = vadd.f32 %v1262, 1e-05
    %v1264 = vrsqrt.pop %v1263
    %v1265 = vmul.f32 %v1241, %v1264
    %v1266 = vmul.f32 %v1242, %v1264
    %v1267 = vlaneseq
    %v1268 = vshrl.u32 %v1267, 7
    %v1269 = vsub.s32 0, %v1268
    %v1270 = vrot.slane %v1138, %v1269
    %v1271 = vmul.f32 %v1265, %v1270
    %v1272 = vmul.f32 %v1266, %v1270
    %v1273 = vlaneseq
    %v1274 = vshrl.u32 %v1273, 7
    %v1275 = vsub.s32 0, %v1274
    %v1276 = vrot.slane %v1139, %v1275
    %v1277 = vadd.f32 %v1271, %v1276
    %v1278 = vadd.f32 %v1272, %v1276
    %v1279 = vld [vmem:[#allocation2 + $0x24f] sm:$0xff]
    %v1280 = vld [vmem:[#allocation2 + $0x257] sm:$0xff]
    %v1281 = vld [vmem:[#allocation2 + $0x25f] sm:$0xff]
    %v1282 = vld [vmem:[#allocation2 + $0x267] sm:$0xff]
    %v1283 = vld [vmem:[#allocation2 + $0x26f] sm:$0xff]
    %v1284 = vld [vmem:[#allocation2 + $0x277] sm:$0xff]
    %v1285 = vld [vmem:[#allocation2 + $0x27f] sm:$0xff]
    %v1286 = vld [vmem:[#allocation2 + $0x287] sm:$0xff]
    %v1287 = vld [vmem:[#allocation2 + $0x28f] sm:$0x1]
    %v1288 = vld [vmem:[#allocation2 + $0x290] sm:$0x1]
    %v1289 = vld [vmem:[#allocation2 + $0x291] sm:$0x1]
    %1290 = vmatprep.subr.mxu0 0.0
    %1291 = vmatpush1.msra.mxu0 0.0
    %1292 = vmatprep.subr.mxu0 0.0
    %1293 = vmatpush1.msra.mxu0 0.0
    %1294 = vmatprep.subr.mxu0 0.0
    %1295 = vmatpush1.msra.mxu0 0.0
    %1296 = vmatprep.subr.mxu0 0.0
    %1297 = vmatpush1.msra.mxu0 0.0
    %1298 = vmatprep.subr.mxu0 0.0
    %1299 = vmatpush1.msra.mxu0 0.0
    %1300 = vmatprep.subr.mxu0 0.0
    %1301 = vmatpush1.msra.mxu0 0.0
    %1302 = vmatprep.subr.mxu0 0.0
    %1303 = vmatpush1.msra.mxu0 0.0
    %1304 = vmatprep.subr.mxu0 0.0
    %1305 = vmatpush1.msra.mxu0 0.0
    %1306 = vmatprep.subr.mxu0 0.0
    %1307 = vmatpush1.msra.mxu0 0.0
    %1308 = vmatprep.subr.mxu0 0.0
    %1309 = vmatpush1.msra.mxu0 0.0
    %1310 = vmatprep.subr.mxu0 0.0
    %1311 = vmatpush1.msra.mxu0 0.0
    %1312 = vmatprep.subr.mxu0 0.0
    %1313 = vmatpush1.msra.mxu0 0.0
    %1314 = vmatprep.subr.mxu0 0.0
    %1315 = vmatpush1.msra.mxu0 0.0
    %1316 = vmatprep.subr.mxu0 0.0
    %1317 = vmatpush1.msra.mxu0 0.0
    %1318 = vmatprep.subr.mxu0 0.0
    %1319 = vmatpush1.msra.mxu0 0.0
    %1320 = vmatprep.subr.mxu0 0.0
    %1321 = vmatpush1.msra.mxu0 %v1277
    %1322 = vmatprep.subr.mxu0 0.0
    %1323 = vmatpush2.msra.mxu0 0.0
    %1324 = vmatprep.subr.mxu0 0.0
    %1325 = vmatpush2.msra.mxu0 0.0
    %1326 = vmatprep.subr.mxu0 0.0
    %1327 = vmatpush2.msra.mxu0 0.0
    %1328 = vmatprep.subr.mxu0 0.0
    %1329 = vmatpush2.msra.mxu0 0.0
    %1330 = vmatprep.subr.mxu0 0.0
    %1331 = vmatpush2.msra.mxu0 0.0
    %1332 = vmatprep.subr.mxu0 0.0
    %1333 = vmatpush2.msra.mxu0 0.0
    %1334 = vmatprep.subr.mxu0 0.0
    %1335 = vmatpush2.msra.mxu0 0.0
    %1336 = vmatprep.subr.mxu0 0.0
    %1337 = vmatpush2.msra.mxu0 0.0
    %1338 = vmatprep.subr.mxu0 0.0
    %1339 = vmatpush2.msra.mxu0 0.0
    %1340 = vmatprep.subr.mxu0 0.0
    %1341 = vmatpush2.msra.mxu0 0.0
    %1342 = vmatprep.subr.mxu0 0.0
    %1343 = vmatpush2.msra.mxu0 0.0
    %1344 = vmatprep.subr.mxu0 0.0
    %1345 = vmatpush2.msra.mxu0 0.0
    %1346 = vmatprep.subr.mxu0 0.0
    %1347 = vmatpush2.msra.mxu0 0.0
    %1348 = vmatprep.subr.mxu0 0.0
    %1349 = vmatpush2.msra.mxu0 0.0
    %1350 = vmatprep.subr.mxu0 0.0
    %1351 = vmatpush2.msra.mxu0 0.0
    %1352 = vmatprep.subr.mxu0 0.0
    %1353 = vmatpush2.msra.mxu0 0.0
    %1354 = vmatprep.mubr.f32.mxu0 0.0
    %1355 = vmatmul.mubr.f32.gmra.mxu0 %v76
    %v1356 = vpop.f32.mrf.mxu0
    %v1357 = vadd.f32 0.0, %v1356
    %v1358 = vpop.f32.mrf.mxu0
    %1359 = vdwg.mxu0
    %1360 = vmatprep.subr.mxu0 0.0
    %1361 = vmatpush1.msra.mxu0 0.0
    %1362 = vmatprep.subr.mxu0 0.0
    %1363 = vmatpush1.msra.mxu0 0.0
    %1364 = vmatprep.subr.mxu0 0.0
    %1365 = vmatpush1.msra.mxu0 0.0
    %1366 = vmatprep.subr.mxu0 0.0
    %1367 = vmatpush1.msra.mxu0 0.0
    %1368 = vmatprep.subr.mxu0 0.0
    %1369 = vmatpush1.msra.mxu0 0.0
    %1370 = vmatprep.subr.mxu0 0.0
    %1371 = vmatpush1.msra.mxu0 0.0
    %1372 = vmatprep.subr.mxu0 0.0
    %1373 = vmatpush1.msra.mxu0 0.0
    %1374 = vmatprep.subr.mxu0 0.0
    %1375 = vmatpush1.msra.mxu0 0.0
    %1376 = vmatprep.subr.mxu0 0.0
    %1377 = vmatpush1.msra.mxu0 0.0
    %1378 = vmatprep.subr.mxu0 0.0
    %1379 = vmatpush1.msra.mxu0 0.0
    %1380 = vmatprep.subr.mxu0 0.0
    %1381 = vmatpush1.msra.mxu0 0.0
    %1382 = vmatprep.subr.mxu0 0.0
    %1383 = vmatpush1.msra.mxu0 0.0
    %1384 = vmatprep.subr.mxu0 0.0
    %1385 = vmatpush1.msra.mxu0 0.0
    %1386 = vmatprep.subr.mxu0 0.0
    %1387 = vmatpush1.msra.mxu0 0.0
    %1388 = vmatprep.subr.mxu0 0.0
    %1389 = vmatpush1.msra.mxu0 0.0
    %1390 = vmatprep.subr.mxu0 0.0
    %1391 = vmatpush1.msra.mxu0 %v1278
    %1392 = vmatprep.subr.mxu0 0.0
    %1393 = vmatpush2.msra.mxu0 0.0
    %1394 = vmatprep.subr.mxu0 0.0
    %1395 = vmatpush2.msra.mxu0 0.0
    %1396 = vmatprep.subr.mxu0 0.0
    %1397 = vmatpush2.msra.mxu0 0.0
    %1398 = vmatprep.subr.mxu0 0.0
    %1399 = vmatpush2.msra.mxu0 0.0
    %1400 = vmatprep.subr.mxu0 0.0
    %1401 = vmatpush2.msra.mxu0 0.0
    %1402 = vmatprep.subr.mxu0 0.0
    %1403 = vmatpush2.msra.mxu0 0.0
    %1404 = vmatprep.subr.mxu0 0.0
    %1405 = vmatpush2.msra.mxu0 0.0
    %1406 = vmatprep.subr.mxu0 0.0
    %1407 = vmatpush2.msra.mxu0 0.0
    %1408 = vmatprep.subr.mxu0 0.0
    %1409 = vmatpush2.msra.mxu0 0.0
    %1410 = vmatprep.subr.mxu0 0.0
    %1411 = vmatpush2.msra.mxu0 0.0
    %1412 = vmatprep.subr.mxu0 0.0
    %1413 = vmatpush2.msra.mxu0 0.0
    %1414 = vmatprep.subr.mxu0 0.0
    %1415 = vmatpush2.msra.mxu0 0.0
    %1416 = vmatprep.subr.mxu0 0.0
    %1417 = vmatpush2.msra.mxu0 0.0
    %1418 = vmatprep.subr.mxu0 0.0
    %1419 = vmatpush2.msra.mxu0 0.0
    %1420 = vmatprep.subr.mxu0 0.0
    %1421 = vmatpush2.msra.mxu0 0.0
    %1422 = vmatprep.subr.mxu0 0.0
    %1423 = vmatpush2.msra.mxu0 0.0
    %1424 = vmatprep.mubr.f32.mxu0 0.0
    %1425 = vmatmul.mubr.f32.gmra.mxu0 %v149
    %v1426 = vpop.f32.mrf.mxu0
    %v1427 = vadd.f32 0.0, %v1426
    %v1428 = vpop.f32.mrf.mxu0
    %1429 = vdwg.mxu0
    %v1430 = vmul.f32 %v1357, %v45
    %v1431 = vmul.f32 %v1427, %v47
    %1434 = vrot.lane.b32.xlu0 %v1277, 32
    %v1435 = vpop.permute.xlu0 %1434
    %1436 = vrot.lane.b32.xlu0 %v1278, 32
    %v1437 = vpop.permute.xlu0 %1436
    %v1440 = vsel %vm322, %v1430, %v1435
    %v1441 = vsel %vm322, %v1431, %v1437
    %v1443 = vsel %vm234, %v1440, 0
    %v1446 = vsel %vm234, %v1441, 0
    %1448 = vmatprep.subr.mxu0 0.0
    %1449 = vmatpush1.msra.mxu0 0.0
    %1450 = vmatprep.subr.mxu0 0.0
    %1451 = vmatpush1.msra.mxu0 0.0
    %1452 = vmatprep.subr.mxu0 0.0
    %1453 = vmatpush1.msra.mxu0 0.0
    %1454 = vmatprep.subr.mxu0 0.0
    %1455 = vmatpush1.msra.mxu0 0.0
    %1456 = vmatprep.subr.mxu0 0.0
    %1457 = vmatpush1.msra.mxu0 0.0
    %1458 = vmatprep.subr.mxu0 0.0
    %1459 = vmatpush1.msra.mxu0 0.0
    %1460 = vmatprep.subr.mxu0 0.0
    %1461 = vmatpush1.msra.mxu0 0.0
    %1462 = vmatprep.subr.mxu0 0.0
    %1463 = vmatpush1.msra.mxu0 0.0
    %1464 = vmatprep.subr.mxu0 0.0
    %1465 = vmatpush1.msra.mxu0 %v1286
    %1466 = vmatprep.subr.mxu0 0.0
    %1467 = vmatpush1.msra.mxu0 %v1285
    %1468 = vmatprep.subr.mxu0 0.0
    %1469 = vmatpush1.msra.mxu0 %v1284
    %1470 = vmatprep.subr.mxu0 0.0
    %1471 = vmatpush1.msra.mxu0 %v1283
    %1472 = vmatprep.subr.mxu0 0.0
    %1473 = vmatpush1.msra.mxu0 %v1282
    %1474 = vmatprep.subr.mxu0 0.0
    %1475 = vmatpush1.msra.mxu0 %v1281
    %1476 = vmatprep.subr.mxu0 0.0
    %1477 = vmatpush1.msra.mxu0 %v1280
    %1478 = vmatprep.subr.mxu0 0.0
    %1479 = vmatpush1.msra.mxu0 %v1279
    %1480 = vmatprep.subr.mxu0 0.0
    %1481 = vmatpush2.msra.mxu0 0.0
    %1482 = vmatprep.subr.mxu0 0.0
    %1483 = vmatpush2.msra.mxu0 0.0
    %1484 = vmatprep.subr.mxu0 0.0
    %1485 = vmatpush2.msra.mxu0 0.0
    %1486 = vmatprep.subr.mxu0 0.0
    %1487 = vmatpush2.msra.mxu0 0.0
    %1488 = vmatprep.subr.mxu0 0.0
    %1489 = vmatpush2.msra.mxu0 0.0
    %1490 = vmatprep.subr.mxu0 0.0
    %1491 = vmatpush2.msra.mxu0 0.0
    %1492 = vmatprep.subr.mxu0 0.0
    %1493 = vmatpush2.msra.mxu0 0.0
    %1494 = vmatprep.subr.mxu0 0.0
    %1495 = vmatpush2.msra.mxu0 0.0
    %1496 = vmatprep.subr.mxu0 0.0
    %1497 = vmatpush2.msra.mxu0 0.0
    %1498 = vmatprep.subr.mxu0 0.0
    %1499 = vmatpush2.msra.mxu0 0.0
    %1500 = vmatprep.subr.mxu0 0.0
    %1501 = vmatpush2.msra.mxu0 0.0
    %1502 = vmatprep.subr.mxu0 0.0
    %1503 = vmatpush2.msra.mxu0 0.0
    %1504 = vmatprep.subr.mxu0 0.0
    %1505 = vmatpush2.msra.mxu0 0.0
    %1506 = vmatprep.subr.mxu0 0.0
    %1507 = vmatpush2.msra.mxu0 0.0
    %1508 = vmatprep.subr.mxu0 0.0
    %1509 = vmatpush2.msra.mxu0 0.0
    %1510 = vmatprep.subr.mxu0 0.0
    %1511 = vmatpush2.msra.mxu0 0.0
    %1512 = vmatprep.mubr.f32.mxu0 0.0
    %1513 = vmatmul.mubr.f32.gmra.mxu0 %v1443
    %v1514 = vpop.f32.mrf.mxu0
    %v1515 = vadd.f32 0.0, %v1514
    %v1516 = vpop.f32.mrf.mxu0
    %1517 = vmatprep.mubr.f32.mxu0 0.0
    %1518 = vmatmul.mubr.f32.gmra.mxu0 %v1446
    %v1519 = vpop.f32.mrf.mxu0
    %v1520 = vadd.f32 0.0, %v1519
    %v1521 = vpop.f32.mrf.mxu0
    %1522 = vdwg.mxu0
    %v1523 = vlaneseq
    %v1524 = vshrl.u32 %v1523, 7
    %v1525 = vsub.s32 0, %v1524
    %v1526 = vrot.slane %v1287, %v1525
    %v1527 = vadd.f32 %v1515, %v1526
    %v1528 = vadd.f32 %v1520, %v1526
    %v1529 = vmax.f32 %v1527, 0.0
    %v1530 = vmax.f32 %v1528, 0.0
    %v1531 = vsel %vm322, %v1529, 0.0
    %v1532 = vrot.slane %v1531, 4
    %v1533 = vadd.f32 %v1531, %v1532
    %v1534 = vrot.slane %v1533, 2
    %v1535 = vadd.f32 %v1533, %v1534
    %v1536 = vrot.slane %v1535, 1
    %v1537 = vadd.f32 %v1535, %v1536
    %v1538 = vsel %vm322, %v1530, 0.0
    %v1539 = vrot.slane %v1538, 4
    %v1540 = vadd.f32 %v1538, %v1539
    %v1541 = vrot.slane %v1540, 2
    %v1542 = vadd.f32 %v1540, %v1541
    %v1543 = vrot.slane %v1542, 1
    %v1544 = vadd.f32 %v1542, %v1543
    %v1545 = vsel %vm322, %v1537, 0.0
    %v1546 = vsel %vm322, %v1544, 0.0
    %v1547 = vadd.f32 %v1545, %v1546
    %v1548 = vmul.f32 %v1547, %v340
    %v1549 = vsub.f32 %v1529, %v1548
    %v1550 = vsub.f32 %v1530, %v1548
    %v1551 = vmul.f32 %v1549, %v1549
    %v1552 = vmul.f32 %v1550, %v1550
    %v1553 = vsel %vm322, %v1551, 0.0
    %v1554 = vrot.slane %v1553, 4
    %v1555 = vadd.f32 %v1553, %v1554
    %v1556 = vrot.slane %v1555, 2
    %v1557 = vadd.f32 %v1555, %v1556
    %v1558 = vrot.slane %v1557, 1
    %v1559 = vadd.f32 %v1557, %v1558
    %v1560 = vsel %vm322, %v1552, 0.0
    %v1561 = vrot.slane %v1560, 4
    %v1562 = vadd.f32 %v1560, %v1561
    %v1563 = vrot.slane %v1562, 2
    %v1564 = vadd.f32 %v1562, %v1563
    %v1565 = vrot.slane %v1564, 1
    %v1566 = vadd.f32 %v1564, %v1565
    %v1567 = vsel %vm322, %v1559, 0.0
    %v1568 = vsel %vm322, %v1566, 0.0
    %v1569 = vadd.f32 %v1567, %v1568
    %v1570 = vmul.f32 %v1569, %v340
    %v1571 = vadd.f32 %v1570, 1e-05
    %v1572 = vrsqrt.pop %v1571
    %v1573 = vmul.f32 %v1549, %v1572
    %v1574 = vmul.f32 %v1550, %v1572
    %v1575 = vlaneseq
    %v1576 = vshrl.u32 %v1575, 7
    %v1577 = vsub.s32 0, %v1576
    %v1578 = vrot.slane %v1288, %v1577
    %v1579 = vmul.f32 %v1573, %v1578
    %v1580 = vmul.f32 %v1574, %v1578
    %v1581 = vlaneseq
    %v1582 = vshrl.u32 %v1581, 7
    %v1583 = vsub.s32 0, %v1582
    %v1584 = vrot.slane %v1289, %v1583
    %v1585 = vadd.f32 %v1579, %v1584
    %v1586 = vadd.f32 %v1580, %v1584
    %v1587 = vld [vmem:[#allocation2 + $0x292] sm:$0xff]
    %v1588 = vld [vmem:[#allocation2 + $0x29a] sm:$0xff]
    %v1589 = vld [vmem:[#allocation2 + $0x2a2] sm:$0xff]
    %v1590 = vld [vmem:[#allocation2 + $0x2aa] sm:$0xff]
    %v1591 = vld [vmem:[#allocation2 + $0x2b2] sm:$0xff]
    %v1592 = vld [vmem:[#allocation2 + $0x2ba] sm:$0xff]
    %v1593 = vld [vmem:[#allocation2 + $0x2c2] sm:$0xff]
    %v1594 = vld [vmem:[#allocation2 + $0x2ca] sm:$0xff]
    %v1595 = vld [vmem:[#allocation2 + $0x2d2] sm:$0x1]
    %v1596 = vld [vmem:[#allocation2 + $0x2d3] sm:$0x1]
    %v1597 = vld [vmem:[#allocation2 + $0x2d4] sm:$0x1]
    %1598 = vmatprep.subr.mxu0 0.0
    %1599 = vmatpush1.msra.mxu0 0.0
    %1600 = vmatprep.subr.mxu0 0.0
    %1601 = vmatpush1.msra.mxu0 0.0
    %1602 = vmatprep.subr.mxu0 0.0
    %1603 = vmatpush1.msra.mxu0 0.0
    %1604 = vmatprep.subr.mxu0 0.0
    %1605 = vmatpush1.msra.mxu0 0.0
    %1606 = vmatprep.subr.mxu0 0.0
    %1607 = vmatpush1.msra.mxu0 0.0
    %1608 = vmatprep.subr.mxu0 0.0
    %1609 = vmatpush1.msra.mxu0 0.0
    %1610 = vmatprep.subr.mxu0 0.0
    %1611 = vmatpush1.msra.mxu0 0.0
    %1612 = vmatprep.subr.mxu0 0.0
    %1613 = vmatpush1.msra.mxu0 0.0
    %1614 = vmatprep.subr.mxu0 0.0
    %1615 = vmatpush1.msra.mxu0 0.0
    %1616 = vmatprep.subr.mxu0 0.0
    %1617 = vmatpush1.msra.mxu0 0.0
    %1618 = vmatprep.subr.mxu0 0.0
    %1619 = vmatpush1.msra.mxu0 0.0
    %1620 = vmatprep.subr.mxu0 0.0
    %1621 = vmatpush1.msra.mxu0 0.0
    %1622 = vmatprep.subr.mxu0 0.0
    %1623 = vmatpush1.msra.mxu0 0.0
    %1624 = vmatprep.subr.mxu0 0.0
    %1625 = vmatpush1.msra.mxu0 0.0
    %1626 = vmatprep.subr.mxu0 0.0
    %1627 = vmatpush1.msra.mxu0 0.0
    %1628 = vmatprep.subr.mxu0 0.0
    %1629 = vmatpush1.msra.mxu0 %v1585
    %1630 = vmatprep.subr.mxu0 0.0
    %1631 = vmatpush2.msra.mxu0 0.0
    %1632 = vmatprep.subr.mxu0 0.0
    %1633 = vmatpush2.msra.mxu0 0.0
    %1634 = vmatprep.subr.mxu0 0.0
    %1635 = vmatpush2.msra.mxu0 0.0
    %1636 = vmatprep.subr.mxu0 0.0
    %1637 = vmatpush2.msra.mxu0 0.0
    %1638 = vmatprep.subr.mxu0 0.0
    %1639 = vmatpush2.msra.mxu0 0.0
    %1640 = vmatprep.subr.mxu0 0.0
    %1641 = vmatpush2.msra.mxu0 0.0
    %1642 = vmatprep.subr.mxu0 0.0
    %1643 = vmatpush2.msra.mxu0 0.0
    %1644 = vmatprep.subr.mxu0 0.0
    %1645 = vmatpush2.msra.mxu0 0.0
    %1646 = vmatprep.subr.mxu0 0.0
    %1647 = vmatpush2.msra.mxu0 0.0
    %1648 = vmatprep.subr.mxu0 0.0
    %1649 = vmatpush2.msra.mxu0 0.0
    %1650 = vmatprep.subr.mxu0 0.0
    %1651 = vmatpush2.msra.mxu0 0.0
    %1652 = vmatprep.subr.mxu0 0.0
    %1653 = vmatpush2.msra.mxu0 0.0
    %1654 = vmatprep.subr.mxu0 0.0
    %1655 = vmatpush2.msra.mxu0 0.0
    %1656 = vmatprep.subr.mxu0 0.0
    %1657 = vmatpush2.msra.mxu0 0.0
    %1658 = vmatprep.subr.mxu0 0.0
    %1659 = vmatpush2.msra.mxu0 0.0
    %1660 = vmatprep.subr.mxu0 0.0
    %1661 = vmatpush2.msra.mxu0 0.0
    %1662 = vmatprep.mubr.f32.mxu0 0.0
    %1663 = vmatmul.mubr.f32.gmra.mxu0 %v76
    %v1664 = vpop.f32.mrf.mxu0
    %v1665 = vadd.f32 0.0, %v1664
    %v1666 = vpop.f32.mrf.mxu0
    %1667 = vdwg.mxu0
    %1668 = vmatprep.subr.mxu0 0.0
    %1669 = vmatpush1.msra.mxu0 0.0
    %1670 = vmatprep.subr.mxu0 0.0
    %1671 = vmatpush1.msra.mxu0 0.0
    %1672 = vmatprep.subr.mxu0 0.0
    %1673 = vmatpush1.msra.mxu0 0.0
    %1674 = vmatprep.subr.mxu0 0.0
    %1675 = vmatpush1.msra.mxu0 0.0
    %1676 = vmatprep.subr.mxu0 0.0
    %1677 = vmatpush1.msra.mxu0 0.0
    %1678 = vmatprep.subr.mxu0 0.0
    %1679 = vmatpush1.msra.mxu0 0.0
    %1680 = vmatprep.subr.mxu0 0.0
    %1681 = vmatpush1.msra.mxu0 0.0
    %1682 = vmatprep.subr.mxu0 0.0
    %1683 = vmatpush1.msra.mxu0 0.0
    %1684 = vmatprep.subr.mxu0 0.0
    %1685 = vmatpush1.msra.mxu0 0.0
    %1686 = vmatprep.subr.mxu0 0.0
    %1687 = vmatpush1.msra.mxu0 0.0
    %1688 = vmatprep.subr.mxu0 0.0
    %1689 = vmatpush1.msra.mxu0 0.0
    %1690 = vmatprep.subr.mxu0 0.0
    %1691 = vmatpush1.msra.mxu0 0.0
    %1692 = vmatprep.subr.mxu0 0.0
    %1693 = vmatpush1.msra.mxu0 0.0
    %1694 = vmatprep.subr.mxu0 0.0
    %1695 = vmatpush1.msra.mxu0 0.0
    %1696 = vmatprep.subr.mxu0 0.0
    %1697 = vmatpush1.msra.mxu0 0.0
    %1698 = vmatprep.subr.mxu0 0.0
    %1699 = vmatpush1.msra.mxu0 %v1586
    %1700 = vmatprep.subr.mxu0 0.0
    %1701 = vmatpush2.msra.mxu0 0.0
    %1702 = vmatprep.subr.mxu0 0.0
    %1703 = vmatpush2.msra.mxu0 0.0
    %1704 = vmatprep.subr.mxu0 0.0
    %1705 = vmatpush2.msra.mxu0 0.0
    %1706 = vmatprep.subr.mxu0 0.0
    %1707 = vmatpush2.msra.mxu0 0.0
    %1708 = vmatprep.subr.mxu0 0.0
    %1709 = vmatpush2.msra.mxu0 0.0
    %1710 = vmatprep.subr.mxu0 0.0
    %1711 = vmatpush2.msra.mxu0 0.0
    %1712 = vmatprep.subr.mxu0 0.0
    %1713 = vmatpush2.msra.mxu0 0.0
    %1714 = vmatprep.subr.mxu0 0.0
    %1715 = vmatpush2.msra.mxu0 0.0
    %1716 = vmatprep.subr.mxu0 0.0
    %1717 = vmatpush2.msra.mxu0 0.0
    %1718 = vmatprep.subr.mxu0 0.0
    %1719 = vmatpush2.msra.mxu0 0.0
    %1720 = vmatprep.subr.mxu0 0.0
    %1721 = vmatpush2.msra.mxu0 0.0
    %1722 = vmatprep.subr.mxu0 0.0
    %1723 = vmatpush2.msra.mxu0 0.0
    %1724 = vmatprep.subr.mxu0 0.0
    %1725 = vmatpush2.msra.mxu0 0.0
    %1726 = vmatprep.subr.mxu0 0.0
    %1727 = vmatpush2.msra.mxu0 0.0
    %1728 = vmatprep.subr.mxu0 0.0
    %1729 = vmatpush2.msra.mxu0 0.0
    %1730 = vmatprep.subr.mxu0 0.0
    %1731 = vmatpush2.msra.mxu0 0.0
    %1732 = vmatprep.mubr.f32.mxu0 0.0
    %1733 = vmatmul.mubr.f32.gmra.mxu0 %v149
    %v1734 = vpop.f32.mrf.mxu0
    %v1735 = vadd.f32 0.0, %v1734
    %v1736 = vpop.f32.mrf.mxu0
    %1737 = vdwg.mxu0
    %v1738 = vmul.f32 %v1665, %v45
    %v1739 = vmul.f32 %v1735, %v47
    %1742 = vrot.lane.b32.xlu0 %v1585, 32
    %v1743 = vpop.permute.xlu0 %1742
    %1744 = vrot.lane.b32.xlu0 %v1586, 32
    %v1745 = vpop.permute.xlu0 %1744
    %v1748 = vsel %vm322, %v1738, %v1743
    %v1749 = vsel %vm322, %v1739, %v1745
    %v1751 = vsel %vm234, %v1748, 0
    %v1754 = vsel %vm234, %v1749, 0
    %1756 = vmatprep.subr.mxu0 0.0
    %1757 = vmatpush1.msra.mxu0 0.0
    %1758 = vmatprep.subr.mxu0 0.0
    %1759 = vmatpush1.msra.mxu0 0.0
    %1760 = vmatprep.subr.mxu0 0.0
    %1761 = vmatpush1.msra.mxu0 0.0
    %1762 = vmatprep.subr.mxu0 0.0
    %1763 = vmatpush1.msra.mxu0 0.0
    %1764 = vmatprep.subr.mxu0 0.0
    %1765 = vmatpush1.msra.mxu0 0.0
    %1766 = vmatprep.subr.mxu0 0.0
    %1767 = vmatpush1.msra.mxu0 0.0
    %1768 = vmatprep.subr.mxu0 0.0
    %1769 = vmatpush1.msra.mxu0 0.0
    %1770 = vmatprep.subr.mxu0 0.0
    %1771 = vmatpush1.msra.mxu0 0.0
    %1772 = vmatprep.subr.mxu0 0.0
    %1773 = vmatpush1.msra.mxu0 %v1594
    %1774 = vmatprep.subr.mxu0 0.0
    %1775 = vmatpush1.msra.mxu0 %v1593
    %1776 = vmatprep.subr.mxu0 0.0
    %1777 = vmatpush1.msra.mxu0 %v1592
    %1778 = vmatprep.subr.mxu0 0.0
    %1779 = vmatpush1.msra.mxu0 %v1591
    %1780 = vmatprep.subr.mxu0 0.0
    %1781 = vmatpush1.msra.mxu0 %v1590
    %1782 = vmatprep.subr.mxu0 0.0
    %1783 = vmatpush1.msra.mxu0 %v1589
    %1784 = vmatprep.subr.mxu0 0.0
    %1785 = vmatpush1.msra.mxu0 %v1588
    %1786 = vmatprep.subr.mxu0 0.0
    %1787 = vmatpush1.msra.mxu0 %v1587
    %1788 = vmatprep.subr.mxu0 0.0
    %1789 = vmatpush2.msra.mxu0 0.0
    %1790 = vmatprep.subr.mxu0 0.0
    %1791 = vmatpush2.msra.mxu0 0.0
    %1792 = vmatprep.subr.mxu0 0.0
    %1793 = vmatpush2.msra.mxu0 0.0
    %1794 = vmatprep.subr.mxu0 0.0
    %1795 = vmatpush2.msra.mxu0 0.0
    %1796 = vmatprep.subr.mxu0 0.0
    %1797 = vmatpush2.msra.mxu0 0.0
    %1798 = vmatprep.subr.mxu0 0.0
    %1799 = vmatpush2.msra.mxu0 0.0
    %1800 = vmatprep.subr.mxu0 0.0
    %1801 = vmatpush2.msra.mxu0 0.0
    %1802 = vmatprep.subr.mxu0 0.0
    %1803 = vmatpush2.msra.mxu0 0.0
    %1804 = vmatprep.subr.mxu0 0.0
    %1805 = vmatpush2.msra.mxu0 0.0
    %1806 = vmatprep.subr.mxu0 0.0
    %1807 = vmatpush2.msra.mxu0 0.0
    %1808 = vmatprep.subr.mxu0 0.0
    %1809 = vmatpush2.msra.mxu0 0.0
    %1810 = vmatprep.subr.mxu0 0.0
    %1811 = vmatpush2.msra.mxu0 0.0
    %1812 = vmatprep.subr.mxu0 0.0
    %1813 = vmatpush2.msra.mxu0 0.0
    %1814 = vmatprep.subr.mxu0 0.0
    %1815 = vmatpush2.msra.mxu0 0.0
    %1816 = vmatprep.subr.mxu0 0.0
    %1817 = vmatpush2.msra.mxu0 0.0
    %1818 = vmatprep.subr.mxu0 0.0
    %1819 = vmatpush2.msra.mxu0 0.0
    %1820 = vmatprep.mubr.f32.mxu0 0.0
    %1821 = vmatmul.mubr.f32.gmra.mxu0 %v1751
    %v1822 = vpop.f32.mrf.mxu0
    %v1823 = vadd.f32 0.0, %v1822
    %v1824 = vpop.f32.mrf.mxu0
    %1825 = vmatprep.mubr.f32.mxu0 0.0
    %1826 = vmatmul.mubr.f32.gmra.mxu0 %v1754
    %v1827 = vpop.f32.mrf.mxu0
    %v1828 = vadd.f32 0.0, %v1827
    %v1829 = vpop.f32.mrf.mxu0
    %1830 = vdwg.mxu0
    %v1831 = vlaneseq
    %v1832 = vshrl.u32 %v1831, 7
    %v1833 = vsub.s32 0, %v1832
    %v1834 = vrot.slane %v1595, %v1833
    %v1835 = vadd.f32 %v1823, %v1834
    %v1836 = vadd.f32 %v1828, %v1834
    %v1837 = vmax.f32 %v1835, 0.0
    %v1838 = vmax.f32 %v1836, 0.0
    %v1839 = vsel %vm322, %v1837, 0.0
    %v1840 = vrot.slane %v1839, 4
    %v1841 = vadd.f32 %v1839, %v1840
    %v1842 = vrot.slane %v1841, 2
    %v1843 = vadd.f32 %v1841, %v1842
    %v1844 = vrot.slane %v1843, 1
    %v1845 = vadd.f32 %v1843, %v1844
    %v1846 = vsel %vm322, %v1838, 0.0
    %v1847 = vrot.slane %v1846, 4
    %v1848 = vadd.f32 %v1846, %v1847
    %v1849 = vrot.slane %v1848, 2
    %v1850 = vadd.f32 %v1848, %v1849
    %v1851 = vrot.slane %v1850, 1
    %v1852 = vadd.f32 %v1850, %v1851
    %v1853 = vsel %vm322, %v1845, 0.0
    %v1854 = vsel %vm322, %v1852, 0.0
    %v1855 = vadd.f32 %v1853, %v1854
    %v1856 = vmul.f32 %v1855, %v340
    %v1857 = vsub.f32 %v1837, %v1856
    %v1858 = vsub.f32 %v1838, %v1856
    %v1859 = vmul.f32 %v1857, %v1857
    %v1860 = vmul.f32 %v1858, %v1858
    %v1861 = vsel %vm322, %v1859, 0.0
    %v1862 = vrot.slane %v1861, 4
    %v1863 = vadd.f32 %v1861, %v1862
    %v1864 = vrot.slane %v1863, 2
    %v1865 = vadd.f32 %v1863, %v1864
    %v1866 = vrot.slane %v1865, 1
    %v1867 = vadd.f32 %v1865, %v1866
    %v1868 = vsel %vm322, %v1860, 0.0
    %v1869 = vrot.slane %v1868, 4
    %v1870 = vadd.f32 %v1868, %v1869
    %v1871 = vrot.slane %v1870, 2
    %v1872 = vadd.f32 %v1870, %v1871
    %v1873 = vrot.slane %v1872, 1
    %v1874 = vadd.f32 %v1872, %v1873
    %v1875 = vsel %vm322, %v1867, 0.0
    %v1876 = vsel %vm322, %v1874, 0.0
    %v1877 = vadd.f32 %v1875, %v1876
    %v1878 = vmul.f32 %v1877, %v340
    %v1879 = vadd.f32 %v1878, 1e-05
    %v1880 = vrsqrt.pop %v1879
    %v1881 = vmul.f32 %v1857, %v1880
    %v1882 = vmul.f32 %v1858, %v1880
    %v1883 = vlaneseq
    %v1884 = vshrl.u32 %v1883, 7
    %v1885 = vsub.s32 0, %v1884
    %v1886 = vrot.slane %v1596, %v1885
    %v1887 = vmul.f32 %v1881, %v1886
    %v1888 = vmul.f32 %v1882, %v1886
    %v1889 = vlaneseq
    %v1890 = vshrl.u32 %v1889, 7
    %v1891 = vsub.s32 0, %v1890
    %v1892 = vrot.slane %v1597, %v1891
    %v1893 = vadd.f32 %v1887, %v1892
    %v1894 = vadd.f32 %v1888, %v1892
    %1897 = vrot.lane.b32.xlu0 %v1893, 64
    %v1898 = vpop.permute.xlu0 %1897
    %1899 = vrot.lane.b32.xlu0 %v1894, 64
    %v1900 = vpop.permute.xlu0 %1899
    %v1903 = vsel %vm322, %v1277, %v1743
    %v1904 = vsel %vm322, %v1278, %v1745
    %v1905 = vsel %vm234, %v1903, %v1898
    %v1906 = vsel %vm234, %v1904, %v1900
    %v1907 = vsel %vm940, %v1111, -inf
    %1908 = vmax.xlane.f32.xlu0 %v1907
    %v1909 = vpop.xlane.xlu0 %1908
    %v1910 = vsel %vm940, %v1112, -inf
    %1911 = vmax.xlane.f32.xlu0 %v1910
    %v1912 = vpop.xlane.xlu0 %1911
    %v1913 = vsub.f32 %v1111, %v1909
    %v1914 = vsub.f32 %v1112, %v1912
    %v1915 = vmul.f32 %v1913, 1.442695
    %v1916 = vpow.pop %v1915
    %v1917 = vmul.f32 %v1914, 1.442695
    %v1918 = vpow.pop %v1917
    %v1919 = vsel %vm940, %v1916, 0.0
    %1920 = vadd.xlane.f32.xlu0 %v1919
    %v1921 = vpop.xlane.xlu0 %1920
    %v1922 = vsel %vm940, %v1918, 0.0
    %1923 = vadd.xlane.f32.xlu0 %v1922
    %v1924 = vpop.xlane.xlu0 %1923
    %v1925 = vrcp.pop %v1921
    %v1926 = vmul.f32 %v1916, %v1925
    %v1927 = vrcp.pop %v1924
    %v1928 = vmul.f32 %v1918, %v1927
    %1929 = vxpose.xlu0.b32.start [1/16] %v1926, 128
    %1930 = vxpose.xlu0.b32.cont [2/16] 0.0, 128
    %1931 = vxpose.xlu0.b32.cont [3/16] 0.0, 128
    %1932 = vxpose.xlu0.b32.cont [4/16] 0.0, 128
    %1933 = vxpose.xlu0.b32.cont [5/16] 0.0, 128
    %1934 = vxpose.xlu0.b32.cont [6/16] 0.0, 128
    %1935 = vxpose.xlu0.b32.cont [7/16] 0.0, 128
    %1936 = vxpose.xlu0.b32.cont [8/16] 0.0, 128
    %1937 = vxpose.xlu0.b32.cont [9/16] 0.0, 128
    %1938 = vxpose.xlu0.b32.cont [10/16] 0.0, 128
    %1939 = vxpose.xlu0.b32.cont [11/16] 0.0, 128
    %1940 = vxpose.xlu0.b32.cont [12/16] 0.0, 128
    %1941 = vxpose.xlu0.b32.cont [13/16] 0.0, 128
    %1942 = vxpose.xlu0.b32.cont [14/16] 0.0, 128
    %1943 = vxpose.xlu0.b32.cont [15/16] 0.0, 128
    %1944 = vxpose.xlu0.b32.end [16/16] 0.0, 128
    %v1945 = vpop.trf.xlu0
    %v1946 = vpop.trf.xlu0
    %v1947 = vpop.trf.xlu0
    %v1948 = vpop.trf.xlu0
    %v1949 = vpop.trf.xlu0
    %v1950 = vpop.trf.xlu0
    %v1951 = vpop.trf.xlu0
    %v1952 = vpop.trf.xlu0
    %v1953 = vpop.trf.xlu0
    %v1954 = vpop.trf.xlu0
    %v1955 = vpop.trf.xlu0
    %v1956 = vpop.trf.xlu0
    %v1957 = vpop.trf.xlu0
    %v1958 = vpop.trf.xlu0
    %v1959 = vpop.trf.xlu0
    %v1960 = vpop.trf.xlu0
    %v1962 = vsel %vm35, %v1945, 0
    %1964 = vmatprep.subr.mxu0 0.0
    %1965 = vmatpush1.msra.mxu0 0.0
    %1966 = vmatprep.subr.mxu0 0.0
    %1967 = vmatpush1.msra.mxu0 0.0
    %1968 = vmatprep.subr.mxu0 0.0
    %1969 = vmatpush1.msra.mxu0 0.0
    %1970 = vmatprep.subr.mxu0 0.0
    %1971 = vmatpush1.msra.mxu0 0.0
    %1972 = vmatprep.subr.mxu0 0.0
    %1973 = vmatpush1.msra.mxu0 0.0
    %1974 = vmatprep.subr.mxu0 0.0
    %1975 = vmatpush1.msra.mxu0 0.0
    %1976 = vmatprep.subr.mxu0 0.0
    %1977 = vmatpush1.msra.mxu0 0.0
    %1978 = vmatprep.subr.mxu0 0.0
    %1979 = vmatpush1.msra.mxu0 0.0
    %1980 = vmatprep.subr.mxu0 0.0
    %1981 = vmatpush1.msra.mxu0 0.0
    %1982 = vmatprep.subr.mxu0 0.0
    %1983 = vmatpush1.msra.mxu0 0.0
    %1984 = vmatprep.subr.mxu0 0.0
    %1985 = vmatpush1.msra.mxu0 0.0
    %1986 = vmatprep.subr.mxu0 0.0
    %1987 = vmatpush1.msra.mxu0 0.0
    %1988 = vmatprep.subr.mxu0 0.0
    %1989 = vmatpush1.msra.mxu0 0.0
    %1990 = vmatprep.subr.mxu0 0.0
    %1991 = vmatpush1.msra.mxu0 0.0
    %1992 = vmatprep.subr.mxu0 0.0
    %1993 = vmatpush1.msra.mxu0 0.0
    %1994 = vmatprep.subr.mxu0 0.0
    %1995 = vmatpush1.msra.mxu0 %v1905
    %1996 = vmatprep.subr.mxu0 0.0
    %1997 = vmatpush2.msra.mxu0 0.0
    %1998 = vmatprep.subr.mxu0 0.0
    %1999 = vmatpush2.msra.mxu0 0.0
    %2000 = vmatprep.subr.mxu0 0.0
    %2001 = vmatpush2.msra.mxu0 0.0
    %2002 = vmatprep.subr.mxu0 0.0
    %2003 = vmatpush2.msra.mxu0 0.0
    %2004 = vmatprep.subr.mxu0 0.0
    %2005 = vmatpush2.msra.mxu0 0.0
    %2006 = vmatprep.subr.mxu0 0.0
    %2007 = vmatpush2.msra.mxu0 0.0
    %2008 = vmatprep.subr.mxu0 0.0
    %2009 = vmatpush2.msra.mxu0 0.0
    %2010 = vmatprep.subr.mxu0 0.0
    %2011 = vmatpush2.msra.mxu0 0.0
    %2012 = vmatprep.subr.mxu0 0.0
    %2013 = vmatpush2.msra.mxu0 0.0
    %2014 = vmatprep.subr.mxu0 0.0
    %2015 = vmatpush2.msra.mxu0 0.0
    %2016 = vmatprep.subr.mxu0 0.0
    %2017 = vmatpush2.msra.mxu0 0.0
    %2018 = vmatprep.subr.mxu0 0.0
    %2019 = vmatpush2.msra.mxu0 0.0
    %2020 = vmatprep.subr.mxu0 0.0
    %2021 = vmatpush2.msra.mxu0 0.0
    %2022 = vmatprep.subr.mxu0 0.0
    %2023 = vmatpush2.msra.mxu0 0.0
    %2024 = vmatprep.subr.mxu0 0.0
    %2025 = vmatpush2.msra.mxu0 0.0
    %2026 = vmatprep.subr.mxu0 0.0
    %2027 = vmatpush2.msra.mxu0 0.0
    %2028 = vmatprep.mubr.f32.mxu0 0.0
    %2029 = vmatmul.mubr.f32.gmra.mxu0 %v1962
    %v2030 = vpop.f32.mrf.mxu0
    %v2031 = vadd.f32 0.0, %v2030
    %v2032 = vpop.f32.mrf.mxu0
    %2033 = vdwg.mxu0
    %2034 = vxpose.xlu0.b32.start [1/16] %v1928, 128
    %2035 = vxpose.xlu0.b32.cont [2/16] 0.0, 128
    %2036 = vxpose.xlu0.b32.cont [3/16] 0.0, 128
    %2037 = vxpose.xlu0.b32.cont [4/16] 0.0, 128
    %2038 = vxpose.xlu0.b32.cont [5/16] 0.0, 128
    %2039 = vxpose.xlu0.b32.cont [6/16] 0.0, 128
    %2040 = vxpose.xlu0.b32.cont [7/16] 0.0, 128
    %2041 = vxpose.xlu0.b32.cont [8/16] 0.0, 128
    %2042 = vxpose.xlu0.b32.cont [9/16] 0.0, 128
    %2043 = vxpose.xlu0.b32.cont [10/16] 0.0, 128
    %2044 = vxpose.xlu0.b32.cont [11/16] 0.0, 128
    %2045 = vxpose.xlu0.b32.cont [12/16] 0.0, 128
    %2046 = vxpose.xlu0.b32.cont [13/16] 0.0, 128
    %2047 = vxpose.xlu0.b32.cont [14/16] 0.0, 128
    %2048 = vxpose.xlu0.b32.cont [15/16] 0.0, 128
    %2049 = vxpose.xlu0.b32.end [16/16] 0.0, 128
    %v2050 = vpop.trf.xlu0
    %v2051 = vpop.trf.xlu0
    %v2052 = vpop.trf.xlu0
    %v2053 = vpop.trf.xlu0
    %v2054 = vpop.trf.xlu0
    %v2055 = vpop.trf.xlu0
    %v2056 = vpop.trf.xlu0
    %v2057 = vpop.trf.xlu0
    %v2058 = vpop.trf.xlu0
    %v2059 = vpop.trf.xlu0
    %v2060 = vpop.trf.xlu0
    %v2061 = vpop.trf.xlu0
    %v2062 = vpop.trf.xlu0
    %v2063 = vpop.trf.xlu0
    %v2064 = vpop.trf.xlu0
    %v2065 = vpop.trf.xlu0
    %v2067 = vsel %vm35, %v2050, 0
    %2069 = vmatprep.subr.mxu0 0.0
    %2070 = vmatpush1.msra.mxu0 0.0
    %2071 = vmatprep.subr.mxu0 0.0
    %2072 = vmatpush1.msra.mxu0 0.0
    %2073 = vmatprep.subr.mxu0 0.0
    %2074 = vmatpush1.msra.mxu0 0.0
    %2075 = vmatprep.subr.mxu0 0.0
    %2076 = vmatpush1.msra.mxu0 0.0
    %2077 = vmatprep.subr.mxu0 0.0
    %2078 = vmatpush1.msra.mxu0 0.0
    %2079 = vmatprep.subr.mxu0 0.0
    %2080 = vmatpush1.msra.mxu0 0.0
    %2081 = vmatprep.subr.mxu0 0.0
    %2082 = vmatpush1.msra.mxu0 0.0
    %2083 = vmatprep.subr.mxu0 0.0
    %2084 = vmatpush1.msra.mxu0 0.0
    %2085 = vmatprep.subr.mxu0 0.0
    %2086 = vmatpush1.msra.mxu0 0.0
    %2087 = vmatprep.subr.mxu0 0.0
    %2088 = vmatpush1.msra.mxu0 0.0
    %2089 = vmatprep.subr.mxu0 0.0
    %2090 = vmatpush1.msra.mxu0 0.0
    %2091 = vmatprep.subr.mxu0 0.0
    %2092 = vmatpush1.msra.mxu0 0.0
    %2093 = vmatprep.subr.mxu0 0.0
    %2094 = vmatpush1.msra.mxu0 0.0
    %2095 = vmatprep.subr.mxu0 0.0
    %2096 = vmatpush1.msra.mxu0 0.0
    %2097 = vmatprep.subr.mxu0 0.0
    %2098 = vmatpush1.msra.mxu0 0.0
    %2099 = vmatprep.subr.mxu0 0.0
    %2100 = vmatpush1.msra.mxu0 %v1906
    %2101 = vmatprep.subr.mxu0 0.0
    %2102 = vmatpush2.msra.mxu0 0.0
    %2103 = vmatprep.subr.mxu0 0.0
    %2104 = vmatpush2.msra.mxu0 0.0
    %2105 = vmatprep.subr.mxu0 0.0
    %2106 = vmatpush2.msra.mxu0 0.0
    %2107 = vmatprep.subr.mxu0 0.0
    %2108 = vmatpush2.msra.mxu0 0.0
    %2109 = vmatprep.subr.mxu0 0.0
    %2110 = vmatpush2.msra.mxu0 0.0
    %2111 = vmatprep.subr.mxu0 0.0
    %2112 = vmatpush2.msra.mxu0 0.0
    %2113 = vmatprep.subr.mxu0 0.0
    %2114 = vmatpush2.msra.mxu0 0.0
    %2115 = vmatprep.subr.mxu0 0.0
    %2116 = vmatpush2.msra.mxu0 0.0
    %2117 = vmatprep.subr.mxu0 0.0
    %2118 = vmatpush2.msra.mxu0 0.0
    %2119 = vmatprep.subr.mxu0 0.0
    %2120 = vmatpush2.msra.mxu0 0.0
    %2121 = vmatprep.subr.mxu0 0.0
    %2122 = vmatpush2.msra.mxu0 0.0
    %2123 = vmatprep.subr.mxu0 0.0
    %2124 = vmatpush2.msra.mxu0 0.0
    %2125 = vmatprep.subr.mxu0 0.0
    %2126 = vmatpush2.msra.mxu0 0.0
    %2127 = vmatprep.subr.mxu0 0.0
    %2128 = vmatpush2.msra.mxu0 0.0
    %2129 = vmatprep.subr.mxu0 0.0
    %2130 = vmatpush2.msra.mxu0 0.0
    %2131 = vmatprep.subr.mxu0 0.0
    %2132 = vmatpush2.msra.mxu0 0.0
    %2133 = vmatprep.mubr.f32.mxu0 0.0
    %2134 = vmatmul.mubr.f32.gmra.mxu0 %v2067
    %v2135 = vpop.f32.mrf.mxu0
    %v2136 = vadd.f32 0.0, %v2135
    %v2137 = vpop.f32.mrf.mxu0
    %2138 = vdwg.mxu0
    %2139 = vmatprep.subr.mxu0 0.0
    %2140 = vmatpush1.msra.mxu0 0.0
    %2141 = vmatprep.subr.mxu0 0.0
    %2142 = vmatpush1.msra.mxu0 0.0
    %2143 = vmatprep.subr.mxu0 0.0
    %2144 = vmatpush1.msra.mxu0 0.0
    %2145 = vmatprep.subr.mxu0 0.0
    %2146 = vmatpush1.msra.mxu0 0.0
    %2147 = vmatprep.subr.mxu0 0.0
    %2148 = vmatpush1.msra.mxu0 0.0
    %2149 = vmatprep.subr.mxu0 0.0
    %2150 = vmatpush1.msra.mxu0 0.0
    %2151 = vmatprep.subr.mxu0 0.0
    %2152 = vmatpush1.msra.mxu0 0.0
    %2153 = vmatprep.subr.mxu0 0.0
    %2154 = vmatpush1.msra.mxu0 0.0
    %2155 = vmatprep.subr.mxu0 0.0
    %2156 = vmatpush1.msra.mxu0 0.0
    %2157 = vmatprep.subr.mxu0 0.0
    %2158 = vmatpush1.msra.mxu0 0.0
    %2159 = vmatprep.subr.mxu0 0.0
    %2160 = vmatpush1.msra.mxu0 0.0
    %2161 = vmatprep.subr.mxu0 0.0
    %2162 = vmatpush1.msra.mxu0 0.0
    %2163 = vmatprep.subr.mxu0 0.0
    %2164 = vmatpush1.msra.mxu0 0.0
    %2165 = vmatprep.subr.mxu0 0.0
    %2166 = vmatpush1.msra.mxu0 0.0
    %2167 = vmatprep.subr.mxu0 0.0
    %2168 = vmatpush1.msra.mxu0 0.0
    %2169 = vmatprep.subr.mxu0 0.0
    %2170 = vmatpush1.msra.mxu0 %v33
    %2171 = vmatprep.subr.mxu0 0.0
    %2172 = vmatpush2.msra.mxu0 0.0
    %2173 = vmatprep.subr.mxu0 0.0
    %2174 = vmatpush2.msra.mxu0 0.0
    %2175 = vmatprep.subr.mxu0 0.0
    %2176 = vmatpush2.msra.mxu0 0.0
    %2177 = vmatprep.subr.mxu0 0.0
    %2178 = vmatpush2.msra.mxu0 0.0
    %2179 = vmatprep.subr.mxu0 0.0
    %2180 = vmatpush2.msra.mxu0 0.0
    %2181 = vmatprep.subr.mxu0 0.0
    %2182 = vmatpush2.msra.mxu0 0.0
    %2183 = vmatprep.subr.mxu0 0.0
    %2184 = vmatpush2.msra.mxu0 0.0
    %2185 = vmatprep.subr.mxu0 0.0
    %2186 = vmatpush2.msra.mxu0 0.0
    %2187 = vmatprep.subr.mxu0 0.0
    %2188 = vmatpush2.msra.mxu0 0.0
    %2189 = vmatprep.subr.mxu0 0.0
    %2190 = vmatpush2.msra.mxu0 0.0
    %2191 = vmatprep.subr.mxu0 0.0
    %2192 = vmatpush2.msra.mxu0 0.0
    %2193 = vmatprep.subr.mxu0 0.0
    %2194 = vmatpush2.msra.mxu0 0.0
    %2195 = vmatprep.subr.mxu0 0.0
    %2196 = vmatpush2.msra.mxu0 0.0
    %2197 = vmatprep.subr.mxu0 0.0
    %2198 = vmatpush2.msra.mxu0 0.0
    %2199 = vmatprep.subr.mxu0 0.0
    %2200 = vmatpush2.msra.mxu0 0.0
    %2201 = vmatprep.subr.mxu0 0.0
    %2202 = vmatpush2.msra.mxu0 0.0
    %2203 = vmatprep.mubr.f32.mxu0 0.0
    %2204 = vmatmul.mubr.f32.gmra.mxu0 %v1962
    %v2205 = vpop.f32.mrf.mxu0
    %v2206 = vadd.f32 0.0, %v2205
    %v2207 = vpop.f32.mrf.mxu0
    %2208 = vdwg.mxu0
    %2209 = vmatprep.subr.mxu0 0.0
    %2210 = vmatpush1.msra.mxu0 0.0
    %2211 = vmatprep.subr.mxu0 0.0
    %2212 = vmatpush1.msra.mxu0 0.0
    %2213 = vmatprep.subr.mxu0 0.0
    %2214 = vmatpush1.msra.mxu0 0.0
    %2215 = vmatprep.subr.mxu0 0.0
    %2216 = vmatpush1.msra.mxu0 0.0
    %2217 = vmatprep.subr.mxu0 0.0
    %2218 = vmatpush1.msra.mxu0 0.0
    %2219 = vmatprep.subr.mxu0 0.0
    %2220 = vmatpush1.msra.mxu0 0.0
    %2221 = vmatprep.subr.mxu0 0.0
    %2222 = vmatpush1.msra.mxu0 0.0
    %2223 = vmatprep.subr.mxu0 0.0
    %2224 = vmatpush1.msra.mxu0 0.0
    %2225 = vmatprep.subr.mxu0 0.0
    %2226 = vmatpush1.msra.mxu0 0.0
    %2227 = vmatprep.subr.mxu0 0.0
    %2228 = vmatpush1.msra.mxu0 0.0
    %2229 = vmatprep.subr.mxu0 0.0
    %2230 = vmatpush1.msra.mxu0 0.0
    %2231 = vmatprep.subr.mxu0 0.0
    %2232 = vmatpush1.msra.mxu0 0.0
    %2233 = vmatprep.subr.mxu0 0.0
    %2234 = vmatpush1.msra.mxu0 0.0
    %2235 = vmatprep.subr.mxu0 0.0
    %2236 = vmatpush1.msra.mxu0 0.0
    %2237 = vmatprep.subr.mxu0 0.0
    %2238 = vmatpush1.msra.mxu0 0.0
    %2239 = vmatprep.subr.mxu0 0.0
    %2240 = vmatpush1.msra.mxu0 %v34
    %2241 = vmatprep.subr.mxu0 0.0
    %2242 = vmatpush2.msra.mxu0 0.0
    %2243 = vmatprep.subr.mxu0 0.0
    %2244 = vmatpush2.msra.mxu0 0.0
    %2245 = vmatprep.subr.mxu0 0.0
    %2246 = vmatpush2.msra.mxu0 0.0
    %2247 = vmatprep.subr.mxu0 0.0
    %2248 = vmatpush2.msra.mxu0 0.0
    %2249 = vmatprep.subr.mxu0 0.0
    %2250 = vmatpush2.msra.mxu0 0.0
    %2251 = vmatprep.subr.mxu0 0.0
    %2252 = vmatpush2.msra.mxu0 0.0
    %2253 = vmatprep.subr.mxu0 0.0
    %2254 = vmatpush2.msra.mxu0 0.0
    %2255 = vmatprep.subr.mxu0 0.0
    %2256 = vmatpush2.msra.mxu0 0.0
    %2257 = vmatprep.subr.mxu0 0.0
    %2258 = vmatpush2.msra.mxu0 0.0
    %2259 = vmatprep.subr.mxu0 0.0
    %2260 = vmatpush2.msra.mxu0 0.0
    %2261 = vmatprep.subr.mxu0 0.0
    %2262 = vmatpush2.msra.mxu0 0.0
    %2263 = vmatprep.subr.mxu0 0.0
    %2264 = vmatpush2.msra.mxu0 0.0
    %2265 = vmatprep.subr.mxu0 0.0
    %2266 = vmatpush2.msra.mxu0 0.0
    %2267 = vmatprep.subr.mxu0 0.0
    %2268 = vmatpush2.msra.mxu0 0.0
    %2269 = vmatprep.subr.mxu0 0.0
    %2270 = vmatpush2.msra.mxu0 0.0
    %2271 = vmatprep.subr.mxu0 0.0
    %2272 = vmatpush2.msra.mxu0 0.0
    %2273 = vmatprep.mubr.f32.mxu0 0.0
    %2274 = vmatmul.mubr.f32.gmra.mxu0 %v2067
    %v2275 = vpop.f32.mrf.mxu0
    %v2276 = vadd.f32 0.0, %v2275
    %v2277 = vpop.f32.mrf.mxu0
    %2278 = vdwg.mxu0
    %v2280 = vsel %vm35, %v2206, 0
    %2282 = vmatprep.subr.mxu0 0.0
    %2283 = vmatpush1.msra.mxu0 0.0
    %2284 = vmatprep.subr.mxu0 0.0
    %2285 = vmatpush1.msra.mxu0 0.0
    %2286 = vmatprep.subr.mxu0 0.0
    %2287 = vmatpush1.msra.mxu0 0.0
    %2288 = vmatprep.subr.mxu0 0.0
    %2289 = vmatpush1.msra.mxu0 0.0
    %2290 = vmatprep.subr.mxu0 0.0
    %2291 = vmatpush1.msra.mxu0 0.0
    %2292 = vmatprep.subr.mxu0 0.0
    %2293 = vmatpush1.msra.mxu0 0.0
    %2294 = vmatprep.subr.mxu0 0.0
    %2295 = vmatpush1.msra.mxu0 0.0
    %2296 = vmatprep.subr.mxu0 0.0
    %2297 = vmatpush1.msra.mxu0 0.0
    %2298 = vmatprep.subr.mxu0 0.0
    %2299 = vmatpush1.msra.mxu0 0.0
    %2300 = vmatprep.subr.mxu0 0.0
    %2301 = vmatpush1.msra.mxu0 0.0
    %2302 = vmatprep.subr.mxu0 0.0
    %2303 = vmatpush1.msra.mxu0 0.0
    %2304 = vmatprep.subr.mxu0 0.0
    %2305 = vmatpush1.msra.mxu0 0.0
    %2306 = vmatprep.subr.mxu0 0.0
    %2307 = vmatpush1.msra.mxu0 0.0
    %2308 = vmatprep.subr.mxu0 0.0
    %2309 = vmatpush1.msra.mxu0 0.0
    %2310 = vmatprep.subr.mxu0 0.0
    %2311 = vmatpush1.msra.mxu0 0.0
    %2312 = vmatprep.subr.mxu0 0.0
    %2313 = vmatpush1.msra.mxu0 %v1926
    %2314 = vmatprep.subr.mxu0 0.0
    %2315 = vmatpush2.msra.mxu0 0.0
    %2316 = vmatprep.subr.mxu0 0.0
    %2317 = vmatpush2.msra.mxu0 0.0
    %2318 = vmatprep.subr.mxu0 0.0
    %2319 = vmatpush2.msra.mxu0 0.0
    %2320 = vmatprep.subr.mxu0 0.0
    %2321 = vmatpush2.msra.mxu0 0.0
    %2322 = vmatprep.subr.mxu0 0.0
    %2323 = vmatpush2.msra.mxu0 0.0
    %2324 = vmatprep.subr.mxu0 0.0
    %2325 = vmatpush2.msra.mxu0 0.0
    %2326 = vmatprep.subr.mxu0 0.0
    %2327 = vmatpush2.msra.mxu0 0.0
    %2328 = vmatprep.subr.mxu0 0.0
    %2329 = vmatpush2.msra.mxu0 0.0
    %2330 = vmatprep.subr.mxu0 0.0
    %2331 = vmatpush2.msra.mxu0 0.0
    %2332 = vmatprep.subr.mxu0 0.0
    %2333 = vmatpush2.msra.mxu0 0.0
    %2334 = vmatprep.subr.mxu0 0.0
    %2335 = vmatpush2.msra.mxu0 0.0
    %2336 = vmatprep.subr.mxu0 0.0
    %2337 = vmatpush2.msra.mxu0 0.0
    %2338 = vmatprep.subr.mxu0 0.0
    %2339 = vmatpush2.msra.mxu0 0.0
    %2340 = vmatprep.subr.mxu0 0.0
    %2341 = vmatpush2.msra.mxu0 0.0
    %2342 = vmatprep.subr.mxu0 0.0
    %2343 = vmatpush2.msra.mxu0 0.0
    %2344 = vmatprep.subr.mxu0 0.0
    %2345 = vmatpush2.msra.mxu0 0.0
    %2346 = vmatprep.mubr.f32.mxu0 0.0
    %2347 = vmatmul.mubr.f32.gmra.mxu0 %v2280
    %v2348 = vpop.f32.mrf.mxu0
    %v2349 = vadd.f32 0.0, %v2348
    %v2350 = vpop.f32.mrf.mxu0
    %2351 = vdwg.mxu0
    %v2353 = vsel %vm35, %v2276, 0
    %2355 = vmatprep.subr.mxu0 0.0
    %2356 = vmatpush1.msra.mxu0 0.0
    %2357 = vmatprep.subr.mxu0 0.0
    %2358 = vmatpush1.msra.mxu0 0.0
    %2359 = vmatprep.subr.mxu0 0.0
    %2360 = vmatpush1.msra.mxu0 0.0
    %2361 = vmatprep.subr.mxu0 0.0
    %2362 = vmatpush1.msra.mxu0 0.0
    %2363 = vmatprep.subr.mxu0 0.0
    %2364 = vmatpush1.msra.mxu0 0.0
    %2365 = vmatprep.subr.mxu0 0.0
    %2366 = vmatpush1.msra.mxu0 0.0
    %2367 = vmatprep.subr.mxu0 0.0
    %2368 = vmatpush1.msra.mxu0 0.0
    %2369 = vmatprep.subr.mxu0 0.0
    %2370 = vmatpush1.msra.mxu0 0.0
    %2371 = vmatprep.subr.mxu0 0.0
    %2372 = vmatpush1.msra.mxu0 0.0
    %2373 = vmatprep.subr.mxu0 0.0
    %2374 = vmatpush1.msra.mxu0 0.0
    %2375 = vmatprep.subr.mxu0 0.0
    %2376 = vmatpush1.msra.mxu0 0.0
    %2377 = vmatprep.subr.mxu0 0.0
    %2378 = vmatpush1.msra.mxu0 0.0
    %2379 = vmatprep.subr.mxu0 0.0
    %2380 = vmatpush1.msra.mxu0 0.0
    %2381 = vmatprep.subr.mxu0 0.0
    %2382 = vmatpush1.msra.mxu0 0.0
    %2383 = vmatprep.subr.mxu0 0.0
    %2384 = vmatpush1.msra.mxu0 0.0
    %2385 = vmatprep.subr.mxu0 0.0
    %2386 = vmatpush1.msra.mxu0 %v1928
    %2387 = vmatprep.subr.mxu0 0.0
    %2388 = vmatpush2.msra.mxu0 0.0
    %2389 = vmatprep.subr.mxu0 0.0
    %2390 = vmatpush2.msra.mxu0 0.0
    %2391 = vmatprep.subr.mxu0 0.0
    %2392 = vmatpush2.msra.mxu0 0.0
    %2393 = vmatprep.subr.mxu0 0.0
    %2394 = vmatpush2.msra.mxu0 0.0
    %2395 = vmatprep.subr.mxu0 0.0
    %2396 = vmatpush2.msra.mxu0 0.0
    %2397 = vmatprep.subr.mxu0 0.0
    %2398 = vmatpush2.msra.mxu0 0.0
    %2399 = vmatprep.subr.mxu0 0.0
    %2400 = vmatpush2.msra.mxu0 0.0
    %2401 = vmatprep.subr.mxu0 0.0
    %2402 = vmatpush2.msra.mxu0 0.0
    %2403 = vmatprep.subr.mxu0 0.0
    %2404 = vmatpush2.msra.mxu0 0.0
    %2405 = vmatprep.subr.mxu0 0.0
    %2406 = vmatpush2.msra.mxu0 0.0
    %2407 = vmatprep.subr.mxu0 0.0
    %2408 = vmatpush2.msra.mxu0 0.0
    %2409 = vmatprep.subr.mxu0 0.0
    %2410 = vmatpush2.msra.mxu0 0.0
    %2411 = vmatprep.subr.mxu0 0.0
    %2412 = vmatpush2.msra.mxu0 0.0
    %2413 = vmatprep.subr.mxu0 0.0
    %2414 = vmatpush2.msra.mxu0 0.0
    %2415 = vmatprep.subr.mxu0 0.0
    %2416 = vmatpush2.msra.mxu0 0.0
    %2417 = vmatprep.subr.mxu0 0.0
    %2418 = vmatpush2.msra.mxu0 0.0
    %2419 = vmatprep.mubr.f32.mxu0 0.0
    %2420 = vmatmul.mubr.f32.gmra.mxu0 %v2353
    %v2421 = vpop.f32.mrf.mxu0
    %v2422 = vadd.f32 0.0, %v2421
    %v2423 = vpop.f32.mrf.mxu0
    %2424 = vdwg.mxu0
    %2425 = vmatprep.subr.mxu0 0.0
    %2426 = vmatpush1.msra.mxu0 0.0
    %2427 = vmatprep.subr.mxu0 0.0
    %2428 = vmatpush1.msra.mxu0 0.0
    %2429 = vmatprep.subr.mxu0 0.0
    %2430 = vmatpush1.msra.mxu0 0.0
    %2431 = vmatprep.subr.mxu0 0.0
    %2432 = vmatpush1.msra.mxu0 0.0
    %2433 = vmatprep.subr.mxu0 0.0
    %2434 = vmatpush1.msra.mxu0 0.0
    %2435 = vmatprep.subr.mxu0 0.0
    %2436 = vmatpush1.msra.mxu0 0.0
    %2437 = vmatprep.subr.mxu0 0.0
    %2438 = vmatpush1.msra.mxu0 0.0
    %2439 = vmatprep.subr.mxu0 0.0
    %2440 = vmatpush1.msra.mxu0 0.0
    %2441 = vmatprep.subr.mxu0 0.0
    %2442 = vmatpush1.msra.mxu0 0.0
    %2443 = vmatprep.subr.mxu0 0.0
    %2444 = vmatpush1.msra.mxu0 0.0
    %2445 = vmatprep.subr.mxu0 0.0
    %2446 = vmatpush1.msra.mxu0 0.0
    %2447 = vmatprep.subr.mxu0 0.0
    %2448 = vmatpush1.msra.mxu0 0.0
    %2449 = vmatprep.subr.mxu0 0.0
    %2450 = vmatpush1.msra.mxu0 0.0
    %2451 = vmatprep.subr.mxu0 0.0
    %2452 = vmatpush1.msra.mxu0 0.0
    %2453 = vmatprep.subr.mxu0 0.0
    %2454 = vmatpush1.msra.mxu0 0.0
    %2455 = vmatprep.subr.mxu0 0.0
    %2456 = vmatpush1.msra.mxu0 %v1926
    %2457 = vmatprep.subr.mxu0 0.0
    %2458 = vmatpush2.msra.mxu0 0.0
    %2459 = vmatprep.subr.mxu0 0.0
    %2460 = vmatpush2.msra.mxu0 0.0
    %2461 = vmatprep.subr.mxu0 0.0
    %2462 = vmatpush2.msra.mxu0 0.0
    %2463 = vmatprep.subr.mxu0 0.0
    %2464 = vmatpush2.msra.mxu0 0.0
    %2465 = vmatprep.subr.mxu0 0.0
    %2466 = vmatpush2.msra.mxu0 0.0
    %2467 = vmatprep.subr.mxu0 0.0
    %2468 = vmatpush2.msra.mxu0 0.0
    %2469 = vmatprep.subr.mxu0 0.0
    %2470 = vmatpush2.msra.mxu0 0.0
    %2471 = vmatprep.subr.mxu0 0.0
    %2472 = vmatpush2.msra.mxu0 0.0
    %2473 = vmatprep.subr.mxu0 0.0
    %2474 = vmatpush2.msra.mxu0 0.0
    %2475 = vmatprep.subr.mxu0 0.0
    %2476 = vmatpush2.msra.mxu0 0.0
    %2477 = vmatprep.subr.mxu0 0.0
    %2478 = vmatpush2.msra.mxu0 0.0
    %2479 = vmatprep.subr.mxu0 0.0
    %2480 = vmatpush2.msra.mxu0 0.0
    %2481 = vmatprep.subr.mxu0 0.0
    %2482 = vmatpush2.msra.mxu0 0.0
    %2483 = vmatprep.subr.mxu0 0.0
    %2484 = vmatpush2.msra.mxu0 0.0
    %2485 = vmatprep.subr.mxu0 0.0
    %2486 = vmatpush2.msra.mxu0 0.0
    %2487 = vmatprep.subr.mxu0 0.0
    %2488 = vmatpush2.msra.mxu0 0.0
    %2489 = vmatprep.mubr.f32.mxu0 0.0
    %2490 = vmatmul.mubr.f32.gmra.mxu0 %v1962
    %v2491 = vpop.f32.mrf.mxu0
    %v2492 = vadd.f32 0.0, %v2491
    %v2493 = vpop.f32.mrf.mxu0
    %2494 = vdwg.mxu0
    %2495 = vmatprep.subr.mxu0 0.0
    %2496 = vmatpush1.msra.mxu0 0.0
    %2497 = vmatprep.subr.mxu0 0.0
    %2498 = vmatpush1.msra.mxu0 0.0
    %2499 = vmatprep.subr.mxu0 0.0
    %2500 = vmatpush1.msra.mxu0 0.0
    %2501 = vmatprep.subr.mxu0 0.0
    %2502 = vmatpush1.msra.mxu0 0.0
    %2503 = vmatprep.subr.mxu0 0.0
    %2504 = vmatpush1.msra.mxu0 0.0
    %2505 = vmatprep.subr.mxu0 0.0
    %2506 = vmatpush1.msra.mxu0 0.0
    %2507 = vmatprep.subr.mxu0 0.0
    %2508 = vmatpush1.msra.mxu0 0.0
    %2509 = vmatprep.subr.mxu0 0.0
    %2510 = vmatpush1.msra.mxu0 0.0
    %2511 = vmatprep.subr.mxu0 0.0
    %2512 = vmatpush1.msra.mxu0 0.0
    %2513 = vmatprep.subr.mxu0 0.0
    %2514 = vmatpush1.msra.mxu0 0.0
    %2515 = vmatprep.subr.mxu0 0.0
    %2516 = vmatpush1.msra.mxu0 0.0
    %2517 = vmatprep.subr.mxu0 0.0
    %2518 = vmatpush1.msra.mxu0 0.0
    %2519 = vmatprep.subr.mxu0 0.0
    %2520 = vmatpush1.msra.mxu0 0.0
    %2521 = vmatprep.subr.mxu0 0.0
    %2522 = vmatpush1.msra.mxu0 0.0
    %2523 = vmatprep.subr.mxu0 0.0
    %2524 = vmatpush1.msra.mxu0 0.0
    %2525 = vmatprep.subr.mxu0 0.0
    %2526 = vmatpush1.msra.mxu0 %v1928
    %2527 = vmatprep.subr.mxu0 0.0
    %2528 = vmatpush2.msra.mxu0 0.0
    %2529 = vmatprep.subr.mxu0 0.0
    %2530 = vmatpush2.msra.mxu0 0.0
    %2531 = vmatprep.subr.mxu0 0.0
    %2532 = vmatpush2.msra.mxu0 0.0
    %2533 = vmatprep.subr.mxu0 0.0
    %2534 = vmatpush2.msra.mxu0 0.0
    %2535 = vmatprep.subr.mxu0 0.0
    %2536 = vmatpush2.msra.mxu0 0.0
    %2537 = vmatprep.subr.mxu0 0.0
    %2538 = vmatpush2.msra.mxu0 0.0
    %2539 = vmatprep.subr.mxu0 0.0
    %2540 = vmatpush2.msra.mxu0 0.0
    %2541 = vmatprep.subr.mxu0 0.0
    %2542 = vmatpush2.msra.mxu0 0.0
    %2543 = vmatprep.subr.mxu0 0.0
    %2544 = vmatpush2.msra.mxu0 0.0
    %2545 = vmatprep.subr.mxu0 0.0
    %2546 = vmatpush2.msra.mxu0 0.0
    %2547 = vmatprep.subr.mxu0 0.0
    %2548 = vmatpush2.msra.mxu0 0.0
    %2549 = vmatprep.subr.mxu0 0.0
    %2550 = vmatpush2.msra.mxu0 0.0
    %2551 = vmatprep.subr.mxu0 0.0
    %2552 = vmatpush2.msra.mxu0 0.0
    %2553 = vmatprep.subr.mxu0 0.0
    %2554 = vmatpush2.msra.mxu0 0.0
    %2555 = vmatprep.subr.mxu0 0.0
    %2556 = vmatpush2.msra.mxu0 0.0
    %2557 = vmatprep.subr.mxu0 0.0
    %2558 = vmatpush2.msra.mxu0 0.0
    %2559 = vmatprep.mubr.f32.mxu0 0.0
    %2560 = vmatmul.mubr.f32.gmra.mxu0 %v2067
    %v2561 = vpop.f32.mrf.mxu0
    %v2562 = vadd.f32 0.0, %v2561
    %v2563 = vpop.f32.mrf.mxu0
    %2564 = vdwg.mxu0
    %v2565 = vlaneseq
    %v2566 = vshrl.u32 %v2565, 7
    %v2567 = vlaneseq
    %v2568 = vand.u32 %v2567, 127
    %vm2569 = vcmp.eq.s32.totalorder %v2566, %v2568
    %v2570 = vsel %vm2569, 1, 0
    %v2571 = vcvt.s32.f32 %v2570
    %v2572 = vmul.f32 %v33, %v33
    %v2573 = vmul.f32 %v34, %v34
    %v2574 = vsel %vm35, %v2572, 0.0
    %v2575 = vsel %vm35, %v2573, 0.0
    %v2576 = vadd.f32 %v2574, %v2575
    %v2577 = vsel %vm35, %v2576, 0.0
    %2578 = vadd.xlane.f32.xlu0 %v2577
    %v2579 = vpop.xlane.xlu0 %2578
    %v2580 = vrot.slane %v2579, 4
    %v2581 = vadd.f32 %v2579, %v2580
    %v2582 = vrot.slane %v2581, 2
    %v2583 = vadd.f32 %v2581, %v2582
    %v2584 = vrot.slane %v2583, 1
    %v2585 = vadd.f32 %v2583, %v2584
    %v2586 = vmul.f32 %v2349, %v2571
    %v2587 = vmul.f32 %v2422, %v2571
    %vm2588 = vcmask 9216
    %v2589 = vsel %vm2588, %v2586, 0.0
    %v2590 = vsel %vm2588, %v2587, 0.0
    %v2591 = vadd.f32 %v2589, %v2590
    %v2592 = vsel %vm2588, %v2591, 0.0
    %2593 = vadd.xlane.f32.xlu0 %v2592
    %v2594 = vpop.xlane.xlu0 %2593
    %v2595 = vsel %vm1026, %v2594, 0.0
    %v2596 = vrot.slane %v2595, 4
    %v2597 = vadd.f32 %v2595, %v2596
    %v2598 = vrot.slane %v2597, 2
    %v2599 = vadd.f32 %v2597, %v2598
    %v2600 = vrot.slane %v2599, 1
    %v2601 = vadd.f32 %v2599, %v2600
    %v2602 = vmul.f32 %v2601, 2.0
    %v2603 = vsub.f32 %v2585, %v2602
    %v2604 = vmul.f32 %v2492, %v2492
    %v2605 = vmul.f32 %v2562, %v2562
    %v2606 = vsel %vm2588, %v2604, 0.0
    %v2607 = vsel %vm2588, %v2605, 0.0
    %v2608 = vadd.f32 %v2606, %v2607
    %v2609 = vsel %vm2588, %v2608, 0.0
    %2610 = vadd.xlane.f32.xlu0 %v2609
    %v2611 = vpop.xlane.xlu0 %2610
    %v2612 = vsel %vm1026, %v2611, 0.0
    %v2613 = vrot.slane %v2612, 4
    %v2614 = vadd.f32 %v2612, %v2613
    %v2615 = vrot.slane %v2614, 2
    %v2616 = vadd.f32 %v2614, %v2615
    %v2617 = vrot.slane %v2616, 1
    %v2618 = vadd.f32 %v2616, %v2617
    %v2619 = vadd.f32 %v2603, %v2618
    %v2620 = vsub.f32 0.0, %v1926
    %v2621 = vsub.f32 0.0, %v1928
    %v2622 = vadd.f32 %v1926, 1e-15
    %v2623 = vadd.f32 %v1928, 1e-15
    %v2624 = vlog2.pop %v2622
    %v2625 = vmul.f32 %v2624, 0.6931472
    %v2626 = vlog2.pop %v2623
    %v2627 = vmul.f32 %v2626, 0.6931472
    %v2628 = vmul.f32 %v2620, %v2625
    %v2629 = vmul.f32 %v2621, %v2627
    %v2630 = vsel %vm940, %v2628, 0.0
    %v2631 = vsel %vm940, %v2629, 0.0
    %v2632 = vadd.f32 %v2630, %v2631
    %v2633 = vsel %vm940, %v2632, 0.0
    %2634 = vadd.xlane.f32.xlu0 %v2633
    %v2635 = vpop.xlane.xlu0 %2634
    %v2636 = vrot.slane %v2635, 4
    %v2637 = vadd.f32 %v2635, %v2636
    %v2638 = vrot.slane %v2637, 2
    %v2639 = vadd.f32 %v2637, %v2638
    %v2640 = vrot.slane %v2639, 1
    %v2641 = vadd.f32 %v2639, %v2640
    %vm2642 = vcmp.eq.s32.totalorder %v2566, 0
    %vm2643 = vcmp.eq.s32.totalorder %v2568, 0
    %vm2644 = vmand %vm2642, %vm2643
    %vm2645 = vcmp.eq.s32.totalorder %v2568, 1
    %vm2646 = vmand %vm2642, %vm2645
    %v2647 = vsel %vm2646, %v2641, 0.0
    %v2648 = vsel %vm2644, %v2619, %v2647
    %vm2649 = vcmask 779264
    %2650 = vst.msk [vmem:[%s3] sm:$0x3] %vm2649, %v2031
    %2651 = vst.msk [vmem:[%s3 + $0x2] sm:$0x3] %vm2649, %v2136
    %2652 = vst.msk [vmem:[%s4] sm:$0x3] %vm2588, %v2349
    %2653 = vst.msk [vmem:[%s4 + $0x2] sm:$0x3] %vm2588, %v2422
    %2654 = vst [vmem:[%s5] sm:$0xff] %v2648
    // Predicated region
    $region18: #{net_forward.4} parent=1 // pred_check
      _
    $region19: #{net_forward.4} parent=1 // pred_check_branch
      %2656 = sbr.rel (0) target = $region21
    $region20: #{net_forward.4} parent=1 // pred_region
      _
    $region21: #{net_forward.4} parent=1 // pred_fallthru
      _
    // Predicated region
    $region22: #{net_forward.4} parent=1 // pred_check
      _
    $region23: #{net_forward.4} parent=1 // pred_check_branch
      %2658 = sbr.rel (0) target = $region25
    $region24: #{net_forward.4} parent=1 // pred_region
      _
    $region25: #{net_forward.4} parent=1 // pred_fallthru
      _
    // Predicated region
    $region26: #{net_forward.4} parent=1 // pred_check
      _
    $region27: #{net_forward.4} parent=1 // pred_check_branch
      %2660 = sbr.rel (0) target = $region29
    $region28: #{net_forward.4} parent=1 // pred_region
      _
    $region29: #{net_forward.4} parent=1 // pred_fallthru
      _
    // Predicated region
    $region30: #{net_forward.4} parent=1 // pred_check
      _
    $region31: #{net_forward.4} parent=1 // pred_check_branch
      %2662 = sbr.rel (0) target = $region33
    $region32: #{net_forward.4} parent=1 // pred_region
      _
    $region33: #{net_forward.4} parent=1 // pred_fallthru
      _
    // Predicated region
    $region34: #{net_forward.4} parent=1 // pred_check
      _
    $region35: #{net_forward.4} parent=1 // pred_check_branch
      %2664 = sbr.rel (0) target = $region37
    $region36: #{net_forward.4} parent=1 // pred_region
      _
    $region37: #{net_forward.4} parent=1 // pred_fallthru
      _
    // Predicated region
    $region38: #{net_forward.4} parent=1 // pred_check
      _
    $region39: #{net_forward.4} parent=1 // pred_check_branch
      %2666 = sbr.rel (0) target = $region41
    $region40: #{net_forward.4} parent=1 // pred_region
      _
    $region41: #{net_forward.4} parent=1 // pred_fallthru
      _
    %2667 = vsyncpa [#allocation3], 1

// kernel: net_forward.3
$region0: #{net_forward.3}
  #allocation0 [shape = 'u32[]', space=smem, size = 0x4, offset = 0x4, fixed_abs, tag = 'smem constant byte address 0x4 - core index']
  #allocation1 [shape = 'u32[144,128]{1,0:T(1,128)}', space=vmem, size = 0x12000, scoped, tag = 'internal scratch']
  %s0 = inlined_call_operand.vmem [shape: f32[2,32,6], index: 0, kind: input, shape index: {}]
  %s1 = inlined_call_operand.vmem [shape: f32[2,32,32], index: 1, kind: input, shape index: {}]
  %s2 = inlined_call_operand.vmem [shape: f32[2,32,1], index: 2, kind: input, shape index: {}]
  %s3 = inlined_call_operand.hbm [shape: f32[376,128], index: 3, kind: input, shape index: {}]
  %s4 = inlined_call_operand.vmem [shape: f32[2,8,96], index: 4, kind: output, shape index: {0}]
  %s5 = inlined_call_operand.vmem [shape: f32[2,8,8], index: 5, kind: output, shape index: {1}]
  %s6 = inlined_call_operand.vmem [shape: f32[8,128], index: 6, kind: output, shape index: {2}]
  %7 = xla_tuple %s4, %s5, %s6
  %s8 = sld [smem:[#allocation0]]
  $region46: #{net_forward.3} parent=0
    _
  %s10 = ssub.s32 1, %s8
  %s11 = scalar_select 0, %s10, %s8
  $region1: #{net_forward.3} parent=0
    #allocation2 [shape = 'u8[192512]{0}', space=vmem, size = 0x2f000, scoped, tag = 'input window, operand 3, single buffered']
    #allocation3 [shape = 's32[1]{0}', space=sflag, size = 0x4, scoped, tag = 'scoped memory for net_forward.3']
    %12 = vsyncpa [#allocation3], 0
    // Predicated region
    $region2: #{net_forward.3} parent=1 // pred_check
      _
    $region3: #{net_forward.3} parent=1 // pred_check_branch
      %14 = sbr.rel (0) target = $region5
    $region4: #{net_forward.3} parent=1 // pred_region
      _
    $region5: #{net_forward.3} parent=1 // pred_fallthru
      _
    // Predicated region
    $region6: #{net_forward.3} parent=1 // pred_check
      _
    $region7: #{net_forward.3} parent=1 // pred_check_branch
      %16 = sbr.rel (0) target = $region9
    $region8: #{net_forward.3} parent=1 // pred_region
      _
    $region9: #{net_forward.3} parent=1 // pred_fallthru
      _
    // Predicated region
    $region10: #{net_forward.3} parent=1 // pred_check
      _
    $region11: #{net_forward.3} parent=1 // pred_check_branch
      %18 = sbr.rel (0) target = $region13
    $region12: #{net_forward.3} parent=1 // pred_region
      _
    $region13: #{net_forward.3} parent=1 // pred_fallthru
      _
    // Predicated region
    $region14: #{net_forward.3} parent=1 // pred_check
      _
    $region15: #{net_forward.3} parent=1 // pred_check_branch
      %20 = sbr.rel (0) target = $region17
    $region16: #{net_forward.3} parent=1 // pred_region
      %s22 = ssub.s32 6016, 6016
      %23 = vsyncadd [#allocation3], %s22
      %s24 = sshll.u32 [#allocation2], 4
      %s25 = int_to_ptr.vmem [resolvable:$true] %s24
      %30 = dma.hbm_to_vmem [thread:$0]  %s3, 6016, %s25, [#allocation3], 128, 128, 8
    $region17: #{net_forward.3} parent=1 // pred_fallthru
      _
    // Predicated region
    $region18: #{net_forward.3} parent=1 // pred_check
      _
    $region19: #{net_forward.3} parent=1 // pred_check_branch
      %32 = sbr.rel (0) target = $region21
    $region20: #{net_forward.3} parent=1 // pred_region
      %33 = dma.done [#allocation3], 6016
    $region21: #{net_forward.3} parent=1 // pred_fallthru
      _
    %v34 = vld [vmem:[%s2] sm:$0xff]
    %v35 = vld [vmem:[%s2 + $0x8] sm:$0xff]
    %v36 = vld [vmem:[%s2 + $0x10] sm:$0xff]
    %v37 = vld [vmem:[%s2 + $0x18] sm:$0xff]
    %v38 = vld [vmem:[%s2 + $0x20] sm:$0xff]
    %v39 = vld [vmem:[%s2 + $0x28] sm:$0xff]
    %v40 = vld [vmem:[%s2 + $0x30] sm:$0xff]
    %v41 = vld [vmem:[%s2 + $0x38] sm:$0xff]
    %v42 = vld [vmem:[%s0] sm:$0xff]
    %v43 = vld [vmem:[%s0 + $0x8] sm:$0xff]
    %v44 = vld [vmem:[%s0 + $0x10] sm:$0xff]
    %v45 = vld [vmem:[%s0 + $0x18] sm:$0xff]
    %v46 = vld [vmem:[%s0 + $0x20] sm:$0xff]
    %v47 = vld [vmem:[%s0 + $0x28] sm:$0xff]
    %v48 = vld [vmem:[%s0 + $0x30] sm:$0xff]
    %v49 = vld [vmem:[%s0 + $0x38] sm:$0xff]
    %v50 = vld [vmem:[%s1] sm:$0xff]
    %v51 = vld [vmem:[%s1 + $0x8] sm:$0xff]
    %v52 = vld [vmem:[%s1 + $0x10] sm:$0xff]
    %v53 = vld [vmem:[%s1 + $0x18] sm:$0xff]
    %v54 = vld [vmem:[%s1 + $0x20] sm:$0xff]
    %v55 = vld [vmem:[%s1 + $0x28] sm:$0xff]
    %v56 = vld [vmem:[%s1 + $0x30] sm:$0xff]
    %v57 = vld [vmem:[%s1 + $0x38] sm:$0xff]
    %vm58 = vcmask 261120
    %v59 = vsel %vm58, %v50, 0.0
    %60 = vadd.xlane.f32.xlu0 %v59
    %v61 = vpop.xlane.xlu0 %60
    %v62 = vsel %vm58, %v51, 0.0
    %63 = vadd.xlane.f32.xlu0 %v62
    %v64 = vpop.xlane.xlu0 %63
    %v65 = vsel %vm58, %v52, 0.0
    %66 = vadd.xlane.f32.xlu0 %v65
    %v67 = vpop.xlane.xlu0 %66
    %v68 = vsel %vm58, %v53, 0.0
    %69 = vadd.xlane.f32.xlu0 %v68
    %v70 = vpop.xlane.xlu0 %69
    %v71 = vsel %vm58, %v54, 0.0
    %72 = vadd.xlane.f32.xlu0 %v71
    %v73 = vpop.xlane.xlu0 %72
    %v74 = vsel %vm58, %v55, 0.0
    %75 = vadd.xlane.f32.xlu0 %v74
    %v76 = vpop.xlane.xlu0 %75
    %v77 = vsel %vm58, %v56, 0.0
    %78 = vadd.xlane.f32.xlu0 %v77
    %v79 = vpop.xlane.xlu0 %78
    %v80 = vsel %vm58, %v57, 0.0
    %81 = vadd.xlane.f32.xlu0 %v80
    %v82 = vpop.xlane.xlu0 %81
    %v83 = vmax.f32 %v61, 1.0
    %v84 = vmax.f32 %v64, 1.0
    %v85 = vmax.f32 %v67, 1.0
    %v86 = vmax.f32 %v70, 1.0
    %v87 = vmax.f32 %v73, 1.0
    %v88 = vmax.f32 %v76, 1.0
    %v89 = vmax.f32 %v79, 1.0
    %v90 = vmax.f32 %v82, 1.0
    %v91 = vrcp.pop %v83
    %v92 = vmul.f32 1.0, %v91
    %v93 = vrcp.pop %v84
    %v94 = vmul.f32 1.0, %v93
    %v95 = vrcp.pop %v85
    %v96 = vmul.f32 1.0, %v95
    %v97 = vrcp.pop %v86
    %v98 = vmul.f32 1.0, %v97
    %v99 = vrcp.pop %v87
    %v100 = vmul.f32 1.0, %v99
    %v101 = vrcp.pop %v88
    %v102 = vmul.f32 1.0, %v101
    %v103 = vrcp.pop %v89
    %v104 = vmul.f32 1.0, %v103
    %v105 = vrcp.pop %v90
    %v106 = vmul.f32 1.0, %v105
    %v107 = vld [vmem:[#allocation2] sm:$0xff]
    %v108 = vld [vmem:[#allocation2 + $0x8] sm:$0xf]
    %v109 = vld [vmem:[#allocation2 + $0xc] sm:$0x1]
    %v110 = vld [vmem:[#allocation2 + $0xd] sm:$0x1]
    %v111 = vld [vmem:[#allocation2 + $0xe] sm:$0x1]
    %v113 = vsel %vm58, %v50, 0
    %v116 = vsel %vm58, %v51, 0
    %v119 = vsel %vm58, %v52, 0
    %v122 = vsel %vm58, %v53, 0
    %124 = vmatprep.subr.mxu0 0.0
    %125 = vmatpush1.msra.mxu0 0.0
    %126 = vmatprep.subr.mxu0 0.0
    %127 = vmatpush1.msra.mxu0 0.0
    %128 = vmatprep.subr.mxu0 0.0
    %129 = vmatpush1.msra.mxu0 0.0
    %130 = vmatprep.subr.mxu0 0.0
    %131 = vmatpush1.msra.mxu0 0.0
    %132 = vmatprep.subr.mxu0 0.0
    %133 = vmatpush1.msra.mxu0 0.0
    %134 = vmatprep.subr.mxu0 0.0
    %135 = vmatpush1.msra.mxu0 0.0
    %136 = vmatprep.subr.mxu0 0.0
    %137 = vmatpush1.msra.mxu0 0.0
    %138 = vmatprep.subr.mxu0 0.0
    %139 = vmatpush1.msra.mxu0 0.0
    %140 = vmatprep.subr.mxu0 0.0
    %141 = vmatpush1.msra.mxu0 0.0
    %142 = vmatprep.subr.mxu0 0.0
    %143 = vmatpush1.msra.mxu0 0.0
    %144 = vmatprep.subr.mxu0 0.0
    %145 = vmatpush1.msra.mxu0 0.0
    %146 = vmatprep.subr.mxu0 0.0
    %147 = vmatpush1.msra.mxu0 0.0
    %148 = vmatprep.subr.mxu0 0.0
    %149 = vmatpush1.msra.mxu0 %v45
    %150 = vmatprep.subr.mxu0 0.0
    %151 = vmatpush1.msra.mxu0 %v44
    %152 = vmatprep.subr.mxu0 0.0
    %153 = vmatpush1.msra.mxu0 %v43
    %154 = vmatprep.subr.mxu0 0.0
    %155 = vmatpush1.msra.mxu0 %v42
    %156 = vmatprep.subr.mxu0 0.0
    %157 = vmatpush2.msra.mxu0 0.0
    %158 = vmatprep.subr.mxu0 0.0
    %159 = vmatpush2.msra.mxu0 0.0
    %160 = vmatprep.subr.mxu0 0.0
    %161 = vmatpush2.msra.mxu0 0.0
    %162 = vmatprep.subr.mxu0 0.0
    %163 = vmatpush2.msra.mxu0 0.0
    %164 = vmatprep.subr.mxu0 0.0
    %165 = vmatpush2.msra.mxu0 0.0
    %166 = vmatprep.subr.mxu0 0.0
    %167 = vmatpush2.msra.mxu0 0.0
    %168 = vmatprep.subr.mxu0 0.0
    %169 = vmatpush2.msra.mxu0 0.0
    %170 = vmatprep.subr.mxu0 0.0
    %171 = vmatpush2.msra.mxu0 0.0
    %172 = vmatprep.subr.mxu0 0.0
    %173 = vmatpush2.msra.mxu0 0.0
    %174 = vmatprep.subr.mxu0 0.0
    %175 = vmatpush2.msra.mxu0 0.0
    %176 = vmatprep.subr.mxu0 0.0
    %177 = vmatpush2.msra.mxu0 0.0
    %178 = vmatprep.subr.mxu0 0.0
    %179 = vmatpush2.msra.mxu0 0.0
    %180 = vmatprep.subr.mxu0 0.0
    %181 = vmatpush2.msra.mxu0 0.0
    %182 = vmatprep.subr.mxu0 0.0
    %183 = vmatpush2.msra.mxu0 0.0
    %184 = vmatprep.subr.mxu0 0.0
    %185 = vmatpush2.msra.mxu0 0.0
    %186 = vmatprep.subr.mxu0 0.0
    %187 = vmatpush2.msra.mxu0 0.0
    %188 = vmatprep.mubr.f32.mxu0 0.0
    %189 = vmatmul.mubr.f32.gmra.mxu0 %v113
    %v190 = vpop.f32.mrf.mxu0
    %v191 = vadd.f32 0.0, %v190
    %v192 = vpop.f32.mrf.mxu0
    %193 = vmatprep.mubr.f32.mxu0 0.0
    %194 = vmatmul.mubr.f32.gmra.mxu0 %v116
    %v195 = vpop.f32.mrf.mxu0
    %v196 = vadd.f32 0.0, %v195
    %v197 = vpop.f32.mrf.mxu0
    %198 = vmatprep.mubr.f32.mxu0 0.0
    %199 = vmatmul.mubr.f32.gmra.mxu0 %v119
    %v200 = vpop.f32.mrf.mxu0
    %v201 = vadd.f32 0.0, %v200
    %v202 = vpop.f32.mrf.mxu0
    %203 = vmatprep.mubr.f32.mxu0 0.0
    %204 = vmatmul.mubr.f32.gmra.mxu0 %v122
    %v205 = vpop.f32.mrf.mxu0
    %v206 = vadd.f32 0.0, %v205
    %v207 = vpop.f32.mrf.mxu0
    %208 = vdwg.mxu0
    %v210 = vsel %vm58, %v54, 0
    %v213 = vsel %vm58, %v55, 0
    %v216 = vsel %vm58, %v56, 0
    %v219 = vsel %vm58, %v57, 0
    %221 = vmatprep.subr.mxu0 0.0
    %222 = vmatpush1.msra.mxu0 0.0
    %223 = vmatprep.subr.mxu0 0.0
    %224 = vmatpush1.msra.mxu0 0.0
    %225 = vmatprep.subr.mxu0 0.0
    %226 = vmatpush1.msra.mxu0 0.0
    %227 = vmatprep.subr.mxu0 0.0
    %228 = vmatpush1.msra.mxu0 0.0
    %229 = vmatprep.subr.mxu0 0.0
    %230 = vmatpush1.msra.mxu0 0.0
    %231 = vmatprep.subr.mxu0 0.0
    %232 = vmatpush1.msra.mxu0 0.0
    %233 = vmatprep.subr.mxu0 0.0
    %234 = vmatpush1.msra.mxu0 0.0
    %235 = vmatprep.subr.mxu0 0.0
    %236 = vmatpush1.msra.mxu0 0.0
    %237 = vmatprep.subr.mxu0 0.0
    %238 = vmatpush1.msra.mxu0 0.0
    %239 = vmatprep.subr.mxu0 0.0
    %240 = vmatpush1.msra.mxu0 0.0
    %241 = vmatprep.subr.mxu0 0.0
    %242 = vmatpush1.msra.mxu0 0.0
    %243 = vmatprep.subr.mxu0 0.0
    %244 = vmatpush1.msra.mxu0 0.0
    %245 = vmatprep.subr.mxu0 0.0
    %246 = vmatpush1.msra.mxu0 %v49
    %247 = vmatprep.subr.mxu0 0.0
    %248 = vmatpush1.msra.mxu0 %v48
    %249 = vmatprep.subr.mxu0 0.0
    %250 = vmatpush1.msra.mxu0 %v47
    %251 = vmatprep.subr.mxu0 0.0
    %252 = vmatpush1.msra.mxu0 %v46
    %253 = vmatprep.subr.mxu0 0.0
    %254 = vmatpush2.msra.mxu0 0.0
    %255 = vmatprep.subr.mxu0 0.0
    %256 = vmatpush2.msra.mxu0 0.0
    %257 = vmatprep.subr.mxu0 0.0
    %258 = vmatpush2.msra.mxu0 0.0
    %259 = vmatprep.subr.mxu0 0.0
    %260 = vmatpush2.msra.mxu0 0.0
    %261 = vmatprep.subr.mxu0 0.0
    %262 = vmatpush2.msra.mxu0 0.0
    %263 = vmatprep.subr.mxu0 0.0
    %264 = vmatpush2.msra.mxu0 0.0
    %265 = vmatprep.subr.mxu0 0.0
    %266 = vmatpush2.msra.mxu0 0.0
    %267 = vmatprep.subr.mxu0 0.0
    %268 = vmatpush2.msra.mxu0 0.0
    %269 = vmatprep.subr.mxu0 0.0
    %270 = vmatpush2.msra.mxu0 0.0
    %271 = vmatprep.subr.mxu0 0.0
    %272 = vmatpush2.msra.mxu0 0.0
    %273 = vmatprep.subr.mxu0 0.0
    %274 = vmatpush2.msra.mxu0 0.0
    %275 = vmatprep.subr.mxu0 0.0
    %276 = vmatpush2.msra.mxu0 0.0
    %277 = vmatprep.subr.mxu0 0.0
    %278 = vmatpush2.msra.mxu0 0.0
    %279 = vmatprep.subr.mxu0 0.0
    %280 = vmatpush2.msra.mxu0 0.0
    %281 = vmatprep.subr.mxu0 0.0
    %282 = vmatpush2.msra.mxu0 0.0
    %283 = vmatprep.subr.mxu0 0.0
    %284 = vmatpush2.msra.mxu0 0.0
    %285 = vmatprep.mubr.f32.mxu0 0.0
    %286 = vmatmul.mubr.f32.gmra.mxu0 %v210
    %v287 = vpop.f32.mrf.mxu0
    %v288 = vadd.f32 0.0, %v287
    %v289 = vpop.f32.mrf.mxu0
    %290 = vmatprep.mubr.f32.mxu0 0.0
    %291 = vmatmul.mubr.f32.gmra.mxu0 %v213
    %v292 = vpop.f32.mrf.mxu0
    %v293 = vadd.f32 0.0, %v292
    %v294 = vpop.f32.mrf.mxu0
    %295 = vmatprep.mubr.f32.mxu0 0.0
    %296 = vmatmul.mubr.f32.gmra.mxu0 %v216
    %v297 = vpop.f32.mrf.mxu0
    %v298 = vadd.f32 0.0, %v297
    %v299 = vpop.f32.mrf.mxu0
    %300 = vmatprep.mubr.f32.mxu0 0.0
    %301 = vmatmul.mubr.f32.gmra.mxu0 %v219
    %v302 = vpop.f32.mrf.mxu0
    %v303 = vadd.f32 0.0, %v302
    %v304 = vpop.f32.mrf.mxu0
    %305 = vdwg.mxu0
    %v306 = vmul.f32 %v191, %v92
    %v307 = vmul.f32 %v196, %v94
    %v308 = vmul.f32 %v201, %v96
    %v309 = vmul.f32 %v206, %v98
    %v310 = vmul.f32 %v288, %v100
    %v311 = vmul.f32 %v293, %v102
    %v312 = vmul.f32 %v298, %v104
    %v313 = vmul.f32 %v303, %v106
    %322 = vrot.lane.b32.xlu0 %v42, 6
    %v323 = vpop.permute.xlu0 %322
    %324 = vrot.lane.b32.xlu0 %v43, 6
    %v325 = vpop.permute.xlu0 %324
    %326 = vrot.lane.b32.xlu0 %v44, 6
    %v327 = vpop.permute.xlu0 %326
    %328 = vrot.lane.b32.xlu0 %v45, 6
    %v329 = vpop.permute.xlu0 %328
    %330 = vrot.lane.b32.xlu0 %v46, 6
    %v331 = vpop.permute.xlu0 %330
    %332 = vrot.lane.b32.xlu0 %v47, 6
    %v333 = vpop.permute.xlu0 %332
    %334 = vrot.lane.b32.xlu0 %v48, 6
    %v335 = vpop.permute.xlu0 %334
    %336 = vrot.lane.b32.xlu0 %v49, 6
    %v337 = vpop.permute.xlu0 %336
    %vm346 = vcmask 48128
    %v347 = vsel %vm346, %v306, %v323
    %v348 = vsel %vm346, %v307, %v325
    %v349 = vsel %vm346, %v308, %v327
    %v350 = vsel %vm346, %v309, %v329
    %v351 = vsel %vm346, %v310, %v331
    %v352 = vsel %vm346, %v311, %v333
    %v353 = vsel %vm346, %v312, %v335
    %v354 = vsel %vm346, %v313, %v337
    %vm355 = vcmask 97280
    %v357 = vsel %vm355, %v347, 0
    %v360 = vsel %vm355, %v348, 0
    %v363 = vsel %vm355, %v349, 0
    %v366 = vsel %vm355, %v350, 0
    %v369 = vsel %vm355, %v351, 0
    %v372 = vsel %vm355, %v352, 0
    %v375 = vsel %vm355, %v353, 0
    %v378 = vsel %vm355, %v354, 0
    %vm380 = vcmask 1043456
    %v382 = vsel %vm380, %v108, 0
    %384 = vmatprep.subr.mxu0 0.0
    %385 = vmatpush1.msra.mxu0 0.0
    %386 = vmatprep.subr.mxu0 0.0
    %387 = vmatpush1.msra.mxu0 0.0
    %388 = vmatprep.subr.mxu0 0.0
    %389 = vmatpush1.msra.mxu0 0.0
    %390 = vmatprep.subr.mxu0 0.0
    %391 = vmatpush1.msra.mxu0 0.0
    %392 = vmatprep.subr.mxu0 0.0
    %393 = vmatpush1.msra.mxu0 0.0
    %394 = vmatprep.subr.mxu0 0.0
    %395 = vmatpush1.msra.mxu0 0.0
    %396 = vmatprep.subr.mxu0 0.0
    %397 = vmatpush1.msra.mxu0 0.0
    %398 = vmatprep.subr.mxu0 0.0
    %399 = vmatpush1.msra.mxu0 0.0
    %400 = vmatprep.subr.mxu0 0.0
    %401 = vmatpush1.msra.mxu0 0.0
    %402 = vmatprep.subr.mxu0 0.0
    %403 = vmatpush1.msra.mxu0 0.0
    %404 = vmatprep.subr.mxu0 0.0
    %405 = vmatpush1.msra.mxu0 0.0
    %406 = vmatprep.subr.mxu0 0.0
    %407 = vmatpush1.msra.mxu0 0.0
    %408 = vmatprep.subr.mxu0 0.0
    %409 = vmatpush1.msra.mxu0 0.0
    %410 = vmatprep.subr.mxu0 0.0
    %411 = vmatpush1.msra.mxu0 0.0
    %412 = vmatprep.subr.mxu0 0.0
    %413 = vmatpush1.msra.mxu0 %v382
    %414 = vmatprep.subr.mxu0 0.0
    %415 = vmatpush1.msra.mxu0 %v107
    %416 = vmatprep.subr.mxu0 0.0
    %417 = vmatpush2.msra.mxu0 0.0
    %418 = vmatprep.subr.mxu0 0.0
    %419 = vmatpush2.msra.mxu0 0.0
    %420 = vmatprep.subr.mxu0 0.0
    %421 = vmatpush2.msra.mxu0 0.0
    %422 = vmatprep.subr.mxu0 0.0
    %423 = vmatpush2.msra.mxu0 0.0
    %424 = vmatprep.subr.mxu0 0.0
    %425 = vmatpush2.msra.mxu0 0.0
    %426 = vmatprep.subr.mxu0 0.0
    %427 = vmatpush2.msra.mxu0 0.0
    %428 = vmatprep.subr.mxu0 0.0
    %429 = vmatpush2.msra.mxu0 0.0
    %430 = vmatprep.subr.mxu0 0.0
    %431 = vmatpush2.msra.mxu0 0.0
    %432 = vmatprep.subr.mxu0 0.0
    %433 = vmatpush2.msra.mxu0 0.0
    %434 = vmatprep.subr.mxu0 0.0
    %435 = vmatpush2.msra.mxu0 0.0
    %436 = vmatprep.subr.mxu0 0.0
    %437 = vmatpush2.msra.mxu0 0.0
    %438 = vmatprep.subr.mxu0 0.0
    %439 = vmatpush2.msra.mxu0 0.0
    %440 = vmatprep.subr.mxu0 0.0
    %441 = vmatpush2.msra.mxu0 0.0
    %442 = vmatprep.subr.mxu0 0.0
    %443 = vmatpush2.msra.mxu0 0.0
    %444 = vmatprep.subr.mxu0 0.0
    %445 = vmatpush2.msra.mxu0 0.0
    %446 = vmatprep.subr.mxu0 0.0
    %447 = vmatpush2.msra.mxu0 0.0
    %448 = vmatprep.mubr.f32.mxu0 0.0
    %449 = vmatmul.mubr.f32.gmra.mxu0 %v357
    %v450 = vpop.f32.mrf.mxu0
    %v451 = vadd.f32 0.0, %v450
    %v452 = vpop.f32.mrf.mxu0
    %453 = vmatprep.mubr.f32.mxu0 0.0
    %454 = vmatmul.mubr.f32.gmra.mxu0 %v360
    %v455 = vpop.f32.mrf.mxu0
    %v456 = vadd.f32 0.0, %v455
    %v457 = vpop.f32.mrf.mxu0
    %458 = vmatprep.mubr.f32.mxu0 0.0
    %459 = vmatmul.mubr.f32.gmra.mxu0 %v363
    %v460 = vpop.f32.mrf.mxu0
    %v461 = vadd.f32 0.0, %v460
    %v462 = vpop.f32.mrf.mxu0
    %463 = vmatprep.mubr.f32.mxu0 0.0
    %464 = vmatmul.mubr.f32.gmra.mxu0 %v366
    %v465 = vpop.f32.mrf.mxu0
    %v466 = vadd.f32 0.0, %v465
    %v467 = vpop.f32.mrf.mxu0
    %468 = vmatprep.mubr.f32.mxu0 0.0
    %469 = vmatmul.mubr.f32.gmra.mxu0 %v369
    %v470 = vpop.f32.mrf.mxu0
    %v471 = vadd.f32 0.0, %v470
    %v472 = vpop.f32.mrf.mxu0
    %473 = vmatprep.mubr.f32.mxu0 0.0
    %474 = vmatmul.mubr.f32.gmra.mxu0 %v372
    %v475 = vpop.f32.mrf.mxu0
    %v476 = vadd.f32 0.0, %v475
    %v477 = vpop.f32.mrf.mxu0
    %478 = vmatprep.mubr.f32.mxu0 0.0
    %479 = vmatmul.mubr.f32.gmra.mxu0 %v375
    %v480 = vpop.f32.mrf.mxu0
    %v481 = vadd.f32 0.0, %v480
    %v482 = vpop.f32.mrf.mxu0
    %483 = vmatprep.mubr.f32.mxu0 0.0
    %484 = vmatmul.mubr.f32.gmra.mxu0 %v378
    %v485 = vpop.f32.mrf.mxu0
    %v486 = vadd.f32 0.0, %v485
    %v487 = vpop.f32.mrf.mxu0
    %488 = vdwg.mxu0
    %v489 = vlaneseq
    %v490 = vshrl.u32 %v489, 7
    %v491 = vsub.s32 0, %v490
    %v492 = vrot.slane %v109, %v491
    %v493 = vadd.f32 %v451, %v492
    %v494 = vadd.f32 %v456, %v492
    %v495 = vadd.f32 %v461, %v492
    %v496 = vadd.f32 %v466, %v492
    %v497 = vadd.f32 %v471, %v492
    %v498 = vadd.f32 %v476, %v492
    %v499 = vadd.f32 %v481, %v492
    %v500 = vadd.f32 %v486, %v492
    %502 = vset.pattern.permute.xlu0 0
    %503 = vperm.xlu0 %502, %v34
    %v504 = vpop.permute.xlu0 %503
    %507 = vset.pattern.permute.xlu0 0
    %508 = vperm.xlu0 %507, %v35
    %v509 = vpop.permute.xlu0 %508
    %512 = vset.pattern.permute.xlu0 0
    %513 = vperm.xlu0 %512, %v36
    %v514 = vpop.permute.xlu0 %513
    %517 = vset.pattern.permute.xlu0 0
    %518 = vperm.xlu0 %517, %v37
    %v519 = vpop.permute.xlu0 %518
    %522 = vset.pattern.permute.xlu0 0
    %523 = vperm.xlu0 %522, %v38
    %v524 = vpop.permute.xlu0 %523
    %527 = vset.pattern.permute.xlu0 0
    %528 = vperm.xlu0 %527, %v39
    %v529 = vpop.permute.xlu0 %528
    %532 = vset.pattern.permute.xlu0 0
    %533 = vperm.xlu0 %532, %v40
    %v534 = vpop.permute.xlu0 %533
    %537 = vset.pattern.permute.xlu0 0
    %538 = vperm.xlu0 %537, %v41
    %v539 = vpop.permute.xlu0 %538
    %v541 = vmul.f32 %v493, %v504
    %v542 = vmul.f32 %v494, %v509
    %v543 = vmul.f32 %v495, %v514
    %v544 = vmul.f32 %v496, %v519
    %v545 = vmul.f32 %v497, %v524
    %v546 = vmul.f32 %v498, %v529
    %v547 = vmul.f32 %v499, %v534
    %v548 = vmul.f32 %v500, %v539
    %v549 = vmax.f32 %v541, 0.0
    %v550 = vmax.f32 %v542, 0.0
    %v551 = vmax.f32 %v543, 0.0
    %v552 = vmax.f32 %v544, 0.0
    %v553 = vmax.f32 %v545, 0.0
    %v554 = vmax.f32 %v546, 0.0
    %v555 = vmax.f32 %v547, 0.0
    %v556 = vmax.f32 %v548, 0.0
    %v557 = vsel %vm58, %v549, 0.0
    %v558 = vsel %vm58, %v550, 0.0
    %v559 = vadd.f32 %v557, %v558
    %v560 = vsel %vm58, %v551, 0.0
    %v561 = vadd.f32 %v559, %v560
    %v562 = vsel %vm58, %v552, 0.0
    %v563 = vadd.f32 %v561, %v562
    %v564 = vrot.slane %v563, 4
    %v565 = vadd.f32 %v563, %v564
    %v566 = vrot.slane %v565, 2
    %v567 = vadd.f32 %v565, %v566
    %v568 = vrot.slane %v567, 1
    %v569 = vadd.f32 %v567, %v568
    %v570 = vsel %vm58, %v553, 0.0
    %v571 = vsel %vm58, %v554, 0.0
    %v572 = vadd.f32 %v570, %v571
    %v573 = vsel %vm58, %v555, 0.0
    %v574 = vadd.f32 %v572, %v573
    %v575 = vsel %vm58, %v556, 0.0
    %v576 = vadd.f32 %v574, %v575
    %v577 = vrot.slane %v576, 4
    %v578 = vadd.f32 %v576, %v577
    %v579 = vrot.slane %v578, 2
    %v580 = vadd.f32 %v578, %v579
    %v581 = vrot.slane %v580, 1
    %v582 = vadd.f32 %v580, %v581
    %v583 = vsel %vm58, %v569, 0.0
    %v584 = vsel %vm58, %v582, 0.0
    %v585 = vadd.f32 %v583, %v584
    %v586 = vrcp.pop 64.0
    %v587 = vmul.f32 %v585, %v586
    %v588 = vsub.f32 %v549, %v587
    %v589 = vsub.f32 %v550, %v587
    %v590 = vsub.f32 %v551, %v587
    %v591 = vsub.f32 %v552, %v587
    %v592 = vsub.f32 %v553, %v587
    %v593 = vsub.f32 %v554, %v587
    %v594 = vsub.f32 %v555, %v587
    %v595 = vsub.f32 %v556, %v587
    %v596 = vmul.f32 %v588, %v588
    %v597 = vmul.f32 %v589, %v589
    %v598 = vmul.f32 %v590, %v590
    %v599 = vmul.f32 %v591, %v591
    %v600 = vmul.f32 %v592, %v592
    %v601 = vmul.f32 %v593, %v593
    %v602 = vmul.f32 %v594, %v594
    %v603 = vmul.f32 %v595, %v595
    %v604 = vsel %vm58, %v596, 0.0
    %v605 = vsel %vm58, %v597, 0.0
    %v606 = vadd.f32 %v604, %v605
    %v607 = vsel %vm58, %v598, 0.0
    %v608 = vadd.f32 %v606, %v607
    %v609 = vsel %vm58, %v599, 0.0
    %v610 = vadd.f32 %v608, %v609
    %v611 = vrot.slane %v610, 4
    %v612 = vadd.f32 %v610, %v611
    %v613 = vrot.slane %v612, 2
    %v614 = vadd.f32 %v612, %v613
    %v615 = vrot.slane %v614, 1
    %v616 = vadd.f32 %v614, %v615
    %v617 = vsel %vm58, %v600, 0.0
    %v618 = vsel %vm58, %v601, 0.0
    %v619 = vadd.f32 %v617, %v618
    %v620 = vsel %vm58, %v602, 0.0
    %v621 = vadd.f32 %v619, %v620
    %v622 = vsel %vm58, %v603, 0.0
    %v623 = vadd.f32 %v621, %v622
    %v624 = vrot.slane %v623, 4
    %v625 = vadd.f32 %v623, %v624
    %v626 = vrot.slane %v625, 2
    %v627 = vadd.f32 %v625, %v626
    %v628 = vrot.slane %v627, 1
    %v629 = vadd.f32 %v627, %v628
    %v630 = vsel %vm58, %v616, 0.0
    %v631 = vsel %vm58, %v629, 0.0
    %v632 = vadd.f32 %v630, %v631
    %v633 = vmul.f32 %v632, %v586
    %v634 = vadd.f32 %v633, 1e-05
    %v635 = vrsqrt.pop %v634
    %v636 = vmul.f32 %v588, %v635
    %v637 = vmul.f32 %v589, %v635
    %v638 = vmul.f32 %v590, %v635
    %v639 = vmul.f32 %v591, %v635
    %v640 = vmul.f32 %v592, %v635
    %v641 = vmul.f32 %v593, %v635
    %v642 = vmul.f32 %v594, %v635
    %v643 = vmul.f32 %v595, %v635
    %v644 = vlaneseq
    %v645 = vshrl.u32 %v644, 7
    %v646 = vsub.s32 0, %v645
    %v647 = vrot.slane %v110, %v646
    %v648 = vmul.f32 %v636, %v647
    %v649 = vmul.f32 %v637, %v647
    %v650 = vmul.f32 %v638, %v647
    %v651 = vmul.f32 %v639, %v647
    %v652 = vmul.f32 %v640, %v647
    %v653 = vmul.f32 %v641, %v647
    %v654 = vmul.f32 %v642, %v647
    %v655 = vmul.f32 %v643, %v647
    %v656 = vlaneseq
    %v657 = vshrl.u32 %v656, 7
    %v658 = vsub.s32 0, %v657
    %v659 = vrot.slane %v111, %v658
    %v660 = vadd.f32 %v648, %v659
    %v661 = vadd.f32 %v649, %v659
    %v662 = vadd.f32 %v650, %v659
    %v663 = vadd.f32 %v651, %v659
    %v664 = vadd.f32 %v652, %v659
    %v665 = vadd.f32 %v653, %v659
    %v666 = vadd.f32 %v654, %v659
    %v667 = vadd.f32 %v655, %v659
    %v668 = vld [vmem:[#allocation2 + $0xf] sm:$0xff]
    %v669 = vld [vmem:[#allocation2 + $0x17] sm:$0xff]
    %v670 = vld [vmem:[#allocation2 + $0x1f] sm:$0xff]
    %v671 = vld [vmem:[#allocation2 + $0x27] sm:$0xff]
    %v672 = vld [vmem:[#allocation2 + $0x2f] sm:$0xff]
    %v673 = vld [vmem:[#allocation2 + $0x37] sm:$0xff]
    %v674 = vld [vmem:[#allocation2 + $0x3f] sm:$0xff]
    %v675 = vld [vmem:[#allocation2 + $0x47] sm:$0xff]
    %v676 = vld [vmem:[#allocation2 + $0x4f] sm:$0x1]
    %v677 = vld [vmem:[#allocation2 + $0x50] sm:$0x1]
    %v678 = vld [vmem:[#allocation2 + $0x51] sm:$0x1]
    %679 = vmatprep.subr.mxu0 0.0
    %680 = vmatpush1.msra.mxu0 0.0
    %681 = vmatprep.subr.mxu0 0.0
    %682 = vmatpush1.msra.mxu0 0.0
    %683 = vmatprep.subr.mxu0 0.0
    %684 = vmatpush1.msra.mxu0 0.0
    %685 = vmatprep.subr.mxu0 0.0
    %686 = vmatpush1.msra.mxu0 0.0
    %687 = vmatprep.subr.mxu0 0.0
    %688 = vmatpush1.msra.mxu0 0.0
    %689 = vmatprep.subr.mxu0 0.0
    %690 = vmatpush1.msra.mxu0 0.0
    %691 = vmatprep.subr.mxu0 0.0
    %692 = vmatpush1.msra.mxu0 0.0
    %693 = vmatprep.subr.mxu0 0.0
    %694 = vmatpush1.msra.mxu0 0.0
    %695 = vmatprep.subr.mxu0 0.0
    %696 = vmatpush1.msra.mxu0 0.0
    %697 = vmatprep.subr.mxu0 0.0
    %698 = vmatpush1.msra.mxu0 0.0
    %699 = vmatprep.subr.mxu0 0.0
    %700 = vmatpush1.msra.mxu0 0.0
    %701 = vmatprep.subr.mxu0 0.0
    %702 = vmatpush1.msra.mxu0 0.0
    %703 = vmatprep.subr.mxu0 0.0
    %704 = vmatpush1.msra.mxu0 %v663
    %705 = vmatprep.subr.mxu0 0.0
    %706 = vmatpush1.msra.mxu0 %v662
    %707 = vmatprep.subr.mxu0 0.0
    %708 = vmatpush1.msra.mxu0 %v661
    %709 = vmatprep.subr.mxu0 0.0
    %710 = vmatpush1.msra.mxu0 %v660
    %711 = vmatprep.subr.mxu0 0.0
    %712 = vmatpush2.msra.mxu0 0.0
    %713 = vmatprep.subr.mxu0 0.0
    %714 = vmatpush2.msra.mxu0 0.0
    %715 = vmatprep.subr.mxu0 0.0
    %716 = vmatpush2.msra.mxu0 0.0
    %717 = vmatprep.subr.mxu0 0.0
    %718 = vmatpush2.msra.mxu0 0.0
    %719 = vmatprep.subr.mxu0 0.0
    %720 = vmatpush2.msra.mxu0 0.0
    %721 = vmatprep.subr.mxu0 0.0
    %722 = vmatpush2.msra.mxu0 0.0
    %723 = vmatprep.subr.mxu0 0.0
    %724 = vmatpush2.msra.mxu0 0.0
    %725 = vmatprep.subr.mxu0 0.0
    %726 = vmatpush2.msra.mxu0 0.0
    %727 = vmatprep.subr.mxu0 0.0
    %728 = vmatpush2.msra.mxu0 0.0
    %729 = vmatprep.subr.mxu0 0.0
    %730 = vmatpush2.msra.mxu0 0.0
    %731 = vmatprep.subr.mxu0 0.0
    %732 = vmatpush2.msra.mxu0 0.0
    %733 = vmatprep.subr.mxu0 0.0
    %734 = vmatpush2.msra.mxu0 0.0
    %735 = vmatprep.subr.mxu0 0.0
    %736 = vmatpush2.msra.mxu0 0.0
    %737 = vmatprep.subr.mxu0 0.0
    %738 = vmatpush2.msra.mxu0 0.0
    %739 = vmatprep.subr.mxu0 0.0
    %740 = vmatpush2.msra.mxu0 0.0
    %741 = vmatprep.subr.mxu0 0.0
    %742 = vmatpush2.msra.mxu0 0.0
    %743 = vmatprep.mubr.f32.mxu0 0.0
    %744 = vmatmul.mubr.f32.gmra.mxu0 %v113
    %v745 = vpop.f32.mrf.mxu0
    %v746 = vadd.f32 0.0, %v745
    %v747 = vpop.f32.mrf.mxu0
    %748 = vmatprep.mubr.f32.mxu0 0.0
    %749 = vmatmul.mubr.f32.gmra.mxu0 %v116
    %v750 = vpop.f32.mrf.mxu0
    %v751 = vadd.f32 0.0, %v750
    %v752 = vpop.f32.mrf.mxu0
    %753 = vmatprep.mubr.f32.mxu0 0.0
    %754 = vmatmul.mubr.f32.gmra.mxu0 %v119
    %v755 = vpop.f32.mrf.mxu0
    %v756 = vadd.f32 0.0, %v755
    %v757 = vpop.f32.mrf.mxu0
    %758 = vmatprep.mubr.f32.mxu0 0.0
    %759 = vmatmul.mubr.f32.gmra.mxu0 %v122
    %v760 = vpop.f32.mrf.mxu0
    %v761 = vadd.f32 0.0, %v760
    %v762 = vpop.f32.mrf.mxu0
    %763 = vdwg.mxu0
    %764 = vmatprep.subr.mxu0 0.0
    %765 = vmatpush1.msra.mxu0 0.0
    %766 = vmatprep.subr.mxu0 0.0
    %767 = vmatpush1.msra.mxu0 0.0
    %768 = vmatprep.subr.mxu0 0.0
    %769 = vmatpush1.msra.mxu0 0.0
    %770 = vmatprep.subr.mxu0 0.0
    %771 = vmatpush1.msra.mxu0 0.0
    %772 = vmatprep.subr.mxu0 0.0
    %773 = vmatpush1.msra.mxu0 0.0
    %774 = vmatprep.subr.mxu0 0.0
    %775 = vmatpush1.msra.mxu0 0.0
    %776 = vmatprep.subr.mxu0 0.0
    %777 = vmatpush1.msra.mxu0 0.0
    %778 = vmatprep.subr.mxu0 0.0
    %779 = vmatpush1.msra.mxu0 0.0
    %780 = vmatprep.subr.mxu0 0.0
    %781 = vmatpush1.msra.mxu0 0.0
    %782 = vmatprep.subr.mxu0 0.0
    %783 = vmatpush1.msra.mxu0 0.0
    %784 = vmatprep.subr.mxu0 0.0
    %785 = vmatpush1.msra.mxu0 0.0
    %786 = vmatprep.subr.mxu0 0.0
    %787 = vmatpush1.msra.mxu0 0.0
    %788 = vmatprep.subr.mxu0 0.0
    %789 = vmatpush1.msra.mxu0 %v667
    %790 = vmatprep.subr.mxu0 0.0
    %791 = vmatpush1.msra.mxu0 %v666
    %792 = vmatprep.subr.mxu0 0.0
    %793 = vmatpush1.msra.mxu0 %v665
    %794 = vmatprep.subr.mxu0 0.0
    %795 = vmatpush1.msra.mxu0 %v664
    %796 = vmatprep.subr.mxu0 0.0
    %797 = vmatpush2.msra.mxu0 0.0
    %798 = vmatprep.subr.mxu0 0.0
    %799 = vmatpush2.msra.mxu0 0.0
    %800 = vmatprep.subr.mxu0 0.0
    %801 = vmatpush2.msra.mxu0 0.0
    %802 = vmatprep.subr.mxu0 0.0
    %803 = vmatpush2.msra.mxu0 0.0
    %804 = vmatprep.subr.mxu0 0.0
    %805 = vmatpush2.msra.mxu0 0.0
    %806 = vmatprep.subr.mxu0 0.0
    %807 = vmatpush2.msra.mxu0 0.0
    %808 = vmatprep.subr.mxu0 0.0
    %809 = vmatpush2.msra.mxu0 0.0
    %810 = vmatprep.subr.mxu0 0.0
    %811 = vmatpush2.msra.mxu0 0.0
    %812 = vmatprep.subr.mxu0 0.0
    %813 = vmatpush2.msra.mxu0 0.0
    %814 = vmatprep.subr.mxu0 0.0
    %815 = vmatpush2.msra.mxu0 0.0
    %816 = vmatprep.subr.mxu0 0.0
    %817 = vmatpush2.msra.mxu0 0.0
    %818 = vmatprep.subr.mxu0 0.0
    %819 = vmatpush2.msra.mxu0 0.0
    %820 = vmatprep.subr.mxu0 0.0
    %821 = vmatpush2.msra.mxu0 0.0
    %822 = vmatprep.subr.mxu0 0.0
    %823 = vmatpush2.msra.mxu0 0.0
    %824 = vmatprep.subr.mxu0 0.0
    %825 = vmatpush2.msra.mxu0 0.0
    %826 = vmatprep.subr.mxu0 0.0
    %827 = vmatpush2.msra.mxu0 0.0
    %828 = vmatprep.mubr.f32.mxu0 0.0
    %829 = vmatmul.mubr.f32.gmra.mxu0 %v210
    %v830 = vpop.f32.mrf.mxu0
    %v831 = vadd.f32 0.0, %v830
    %v832 = vpop.f32.mrf.mxu0
    %833 = vmatprep.mubr.f32.mxu0 0.0
    %834 = vmatmul.mubr.f32.gmra.mxu0 %v213
    %v835 = vpop.f32.mrf.mxu0
    %v836 = vadd.f32 0.0, %v835
    %v837 = vpop.f32.mrf.mxu0
    %838 = vmatprep.mubr.f32.mxu0 0.0
    %839 = vmatmul.mubr.f32.gmra.mxu0 %v216
    %v840 = vpop.f32.mrf.mxu0
    %v841 = vadd.f32 0.0, %v840
    %v842 = vpop.f32.mrf.mxu0
    %843 = vmatprep.mubr.f32.mxu0 0.0
    %844 = vmatmul.mubr.f32.gmra.mxu0 %v219
    %v845 = vpop.f32.mrf.mxu0
    %v846 = vadd.f32 0.0, %v845
    %v847 = vpop.f32.mrf.mxu0
    %848 = vdwg.mxu0
    %v849 = vmul.f32 %v746, %v92
    %v850 = vmul.f32 %v751, %v94
    %v851 = vmul.f32 %v756, %v96
    %v852 = vmul.f32 %v761, %v98
    %v853 = vmul.f32 %v831, %v100
    %v854 = vmul.f32 %v836, %v102
    %v855 = vmul.f32 %v841, %v104
    %v856 = vmul.f32 %v846, %v106
    %865 = vrot.lane.b32.xlu0 %v660, 32
    %v866 = vpop.permute.xlu0 %865
    %867 = vrot.lane.b32.xlu0 %v661, 32
    %v868 = vpop.permute.xlu0 %867
    %869 = vrot.lane.b32.xlu0 %v662, 32
    %v870 = vpop.permute.xlu0 %869
    %871 = vrot.lane.b32.xlu0 %v663, 32
    %v872 = vpop.permute.xlu0 %871
    %873 = vrot.lane.b32.xlu0 %v664, 32
    %v874 = vpop.permute.xlu0 %873
    %875 = vrot.lane.b32.xlu0 %v665, 32
    %v876 = vpop.permute.xlu0 %875
    %877 = vrot.lane.b32.xlu0 %v666, 32
    %v878 = vpop.permute.xlu0 %877
    %879 = vrot.lane.b32.xlu0 %v667, 32
    %v880 = vpop.permute.xlu0 %879
    %v889 = vsel %vm58, %v849, %v866
    %v890 = vsel %vm58, %v850, %v868
    %v891 = vsel %vm58, %v851, %v870
    %v892 = vsel %vm58, %v852, %v872
    %v893 = vsel %vm58, %v853, %v874
    %v894 = vsel %vm58, %v854, %v876
    %v895 = vsel %vm58, %v855, %v878
    %v896 = vsel %vm58, %v856, %v880
    %vm897 = vcmask 523264
    %v899 = vsel %vm897, %v889, 0
    %v902 = vsel %vm897, %v890, 0
    %v905 = vsel %vm897, %v891, 0
    %v908 = vsel %vm897, %v892, 0
    %v911 = vsel %vm897, %v893, 0
    %v914 = vsel %vm897, %v894, 0
    %v917 = vsel %vm897, %v895, 0
    %v920 = vsel %vm897, %v896, 0
    %922 = vmatprep.subr.mxu0 0.0
    %923 = vmatpush1.msra.mxu0 0.0
    %924 = vmatprep.subr.mxu0 0.0
    %925 = vmatpush1.msra.mxu0 0.0
    %926 = vmatprep.subr.mxu0 0.0
    %927 = vmatpush1.msra.mxu0 0.0
    %928 = vmatprep.subr.mxu0 0.0
    %929 = vmatpush1.msra.mxu0 0.0
    %930 = vmatprep.subr.mxu0 0.0
    %931 = vmatpush1.msra.mxu0 0.0
    %932 = vmatprep.subr.mxu0 0.0
    %933 = vmatpush1.msra.mxu0 0.0
    %934 = vmatprep.subr.mxu0 0.0
    %935 = vmatpush1.msra.mxu0 0.0
    %936 = vmatprep.subr.mxu0 0.0
    %937 = vmatpush1.msra.mxu0 0.0
    %938 = vmatprep.subr.mxu0 0.0
    %939 = vmatpush1.msra.mxu0 %v675
    %940 = vmatprep.subr.mxu0 0.0
    %941 = vmatpush1.msra.mxu0 %v674
    %942 = vmatprep.subr.mxu0 0.0
    %943 = vmatpush1.msra.mxu0 %v673
    %944 = vmatprep.subr.mxu0 0.0
    %945 = vmatpush1.msra.mxu0 %v672
    %946 = vmatprep.subr.mxu0 0.0
    %947 = vmatpush1.msra.mxu0 %v671
    %948 = vmatprep.subr.mxu0 0.0
    %949 = vmatpush1.msra.mxu0 %v670
    %950 = vmatprep.subr.mxu0 0.0
    %951 = vmatpush1.msra.mxu0 %v669
    %952 = vmatprep.subr.mxu0 0.0
    %953 = vmatpush1.msra.mxu0 %v668
    %954 = vmatprep.subr.mxu0 0.0
    %955 = vmatpush2.msra.mxu0 0.0
    %956 = vmatprep.subr.mxu0 0.0
    %957 = vmatpush2.msra.mxu0 0.0
    %958 = vmatprep.subr.mxu0 0.0
    %959 = vmatpush2.msra.mxu0 0.0
    %960 = vmatprep.subr.mxu0 0.0
    %961 = vmatpush2.msra.mxu0 0.0
    %962 = vmatprep.subr.mxu0 0.0
    %963 = vmatpush2.msra.mxu0 0.0
    %964 = vmatprep.subr.mxu0 0.0
    %965 = vmatpush2.msra.mxu0 0.0
    %966 = vmatprep.subr.mxu0 0.0
    %967 = vmatpush2.msra.mxu0 0.0
    %968 = vmatprep.subr.mxu0 0.0
    %969 = vmatpush2.msra.mxu0 0.0
    %970 = vmatprep.subr.mxu0 0.0
    %971 = vmatpush2.msra.mxu0 0.0
    %972 = vmatprep.subr.mxu0 0.0
    %973 = vmatpush2.msra.mxu0 0.0
    %974 = vmatprep.subr.mxu0 0.0
    %975 = vmatpush2.msra.mxu0 0.0
    %976 = vmatprep.subr.mxu0 0.0
    %977 = vmatpush2.msra.mxu0 0.0
    %978 = vmatprep.subr.mxu0 0.0
    %979 = vmatpush2.msra.mxu0 0.0
    %980 = vmatprep.subr.mxu0 0.0
    %981 = vmatpush2.msra.mxu0 0.0
    %982 = vmatprep.subr.mxu0 0.0
    %983 = vmatpush2.msra.mxu0 0.0
    %984 = vmatprep.subr.mxu0 0.0
    %985 = vmatpush2.msra.mxu0 0.0
    %986 = vmatprep.mubr.f32.mxu0 0.0
    %987 = vmatmul.mubr.f32.gmra.mxu0 %v899
    %v988 = vpop.f32.mrf.mxu0
    %v989 = vadd.f32 0.0, %v988
    %v990 = vpop.f32.mrf.mxu0
    %991 = vmatprep.mubr.f32.mxu0 0.0
    %992 = vmatmul.mubr.f32.gmra.mxu0 %v902
    %v993 = vpop.f32.mrf.mxu0
    %v994 = vadd.f32 0.0, %v993
    %v995 = vpop.f32.mrf.mxu0
    %996 = vmatprep.mubr.f32.mxu0 0.0
    %997 = vmatmul.mubr.f32.gmra.mxu0 %v905
    %v998 = vpop.f32.mrf.mxu0
    %v999 = vadd.f32 0.0, %v998
    %v1000 = vpop.f32.mrf.mxu0
    %1001 = vmatprep.mubr.f32.mxu0 0.0
    %1002 = vmatmul.mubr.f32.gmra.mxu0 %v908
    %v1003 = vpop.f32.mrf.mxu0
    %v1004 = vadd.f32 0.0, %v1003
    %v1005 = vpop.f32.mrf.mxu0
    %1006 = vmatprep.mubr.f32.mxu0 0.0
    %1007 = vmatmul.mubr.f32.gmra.mxu0 %v911
    %v1008 = vpop.f32.mrf.mxu0
    %v1009 = vadd.f32 0.0, %v1008
    %v1010 = vpop.f32.mrf.mxu0
    %1011 = vmatprep.mubr.f32.mxu0 0.0
    %1012 = vmatmul.mubr.f32.gmra.mxu0 %v914
    %v1013 = vpop.f32.mrf.mxu0
    %v1014 = vadd.f32 0.0, %v1013
    %v1015 = vpop.f32.mrf.mxu0
    %1016 = vmatprep.mubr.f32.mxu0 0.0
    %1017 = vmatmul.mubr.f32.gmra.mxu0 %v917
    %v1018 = vpop.f32.mrf.mxu0
    %v1019 = vadd.f32 0.0, %v1018
    %v1020 = vpop.f32.mrf.mxu0
    %1021 = vmatprep.mubr.f32.mxu0 0.0
    %1022 = vmatmul.mubr.f32.gmra.mxu0 %v920
    %v1023 = vpop.f32.mrf.mxu0
    %v1024 = vadd.f32 0.0, %v1023
    %v1025 = vpop.f32.mrf.mxu0
    %1026 = vdwg.mxu0
    %v1027 = vlaneseq
    %v1028 = vshrl.u32 %v1027, 7
    %v1029 = vsub.s32 0, %v1028
    %v1030 = vrot.slane %v676, %v1029
    %v1031 = vadd.f32 %v989, %v1030
    %v1032 = vadd.f32 %v994, %v1030
    %v1033 = vadd.f32 %v999, %v1030
    %v1034 = vadd.f32 %v1004, %v1030
    %v1035 = vadd.f32 %v1009, %v1030
    %v1036 = vadd.f32 %v1014, %v1030
    %v1037 = vadd.f32 %v1019, %v1030
    %v1038 = vadd.f32 %v1024, %v1030
    %v1039 = vmul.f32 %v1031, %v504
    %v1040 = vmul.f32 %v1032, %v509
    %v1041 = vmul.f32 %v1033, %v514
    %v1042 = vmul.f32 %v1034, %v519
    %v1043 = vmul.f32 %v1035, %v524
    %v1044 = vmul.f32 %v1036, %v529
    %v1045 = vmul.f32 %v1037, %v534
    %v1046 = vmul.f32 %v1038, %v539
    %v1047 = vmax.f32 %v1039, 0.0
    %v1048 = vmax.f32 %v1040, 0.0
    %v1049 = vmax.f32 %v1041, 0.0
    %v1050 = vmax.f32 %v1042, 0.0
    %v1051 = vmax.f32 %v1043, 0.0
    %v1052 = vmax.f32 %v1044, 0.0
    %v1053 = vmax.f32 %v1045, 0.0
    %v1054 = vmax.f32 %v1046, 0.0
    %v1055 = vsel %vm58, %v1047, 0.0
    %v1056 = vsel %vm58, %v1048, 0.0
    %v1057 = vadd.f32 %v1055, %v1056
    %v1058 = vsel %vm58, %v1049, 0.0
    %v1059 = vadd.f32 %v1057, %v1058
    %v1060 = vsel %vm58, %v1050, 0.0
    %v1061 = vadd.f32 %v1059, %v1060
    %v1062 = vrot.slane %v1061, 4
    %v1063 = vadd.f32 %v1061, %v1062
    %v1064 = vrot.slane %v1063, 2
    %v1065 = vadd.f32 %v1063, %v1064
    %v1066 = vrot.slane %v1065, 1
    %v1067 = vadd.f32 %v1065, %v1066
    %v1068 = vsel %vm58, %v1051, 0.0
    %v1069 = vsel %vm58, %v1052, 0.0
    %v1070 = vadd.f32 %v1068, %v1069
    %v1071 = vsel %vm58, %v1053, 0.0
    %v1072 = vadd.f32 %v1070, %v1071
    %v1073 = vsel %vm58, %v1054, 0.0
    %v1074 = vadd.f32 %v1072, %v1073
    %v1075 = vrot.slane %v1074, 4
    %v1076 = vadd.f32 %v1074, %v1075
    %v1077 = vrot.slane %v1076, 2
    %v1078 = vadd.f32 %v1076, %v1077
    %v1079 = vrot.slane %v1078, 1
    %v1080 = vadd.f32 %v1078, %v1079
    %v1081 = vsel %vm58, %v1067, 0.0
    %v1082 = vsel %vm58, %v1080, 0.0
    %v1083 = vadd.f32 %v1081, %v1082
    %v1084 = vmul.f32 %v1083, %v586
    %v1085 = vsub.f32 %v1047, %v1084
    %v1086 = vsub.f32 %v1048, %v1084
    %v1087 = vsub.f32 %v1049, %v1084
    %v1088 = vsub.f32 %v1050, %v1084
    %v1089 = vsub.f32 %v1051, %v1084
    %v1090 = vsub.f32 %v1052, %v1084
    %v1091 = vsub.f32 %v1053, %v1084
    %v1092 = vsub.f32 %v1054, %v1084
    %v1093 = vmul.f32 %v1085, %v1085
    %v1094 = vmul.f32 %v1086, %v1086
    %v1095 = vmul.f32 %v1087, %v1087
    %v1096 = vmul.f32 %v1088, %v1088
    %v1097 = vmul.f32 %v1089, %v1089
    %v1098 = vmul.f32 %v1090, %v1090
    %v1099 = vmul.f32 %v1091, %v1091
    %v1100 = vmul.f32 %v1092, %v1092
    %v1101 = vsel %vm58, %v1093, 0.0
    %v1102 = vsel %vm58, %v1094, 0.0
    %v1103 = vadd.f32 %v1101, %v1102
    %v1104 = vsel %vm58, %v1095, 0.0
    %v1105 = vadd.f32 %v1103, %v1104
    %v1106 = vsel %vm58, %v1096, 0.0
    %v1107 = vadd.f32 %v1105, %v1106
    %v1108 = vrot.slane %v1107, 4
    %v1109 = vadd.f32 %v1107, %v1108
    %v1110 = vrot.slane %v1109, 2
    %v1111 = vadd.f32 %v1109, %v1110
    %v1112 = vrot.slane %v1111, 1
    %v1113 = vadd.f32 %v1111, %v1112
    %v1114 = vsel %vm58, %v1097, 0.0
    %v1115 = vsel %vm58, %v1098, 0.0
    %v1116 = vadd.f32 %v1114, %v1115
    %v1117 = vsel %vm58, %v1099, 0.0
    %v1118 = vadd.f32 %v1116, %v1117
    %v1119 = vsel %vm58, %v1100, 0.0
    %v1120 = vadd.f32 %v1118, %v1119
    %v1121 = vrot.slane %v1120, 4
    %v1122 = vadd.f32 %v1120, %v1121
    %v1123 = vrot.slane %v1122, 2
    %v1124 = vadd.f32 %v1122, %v1123
    %v1125 = vrot.slane %v1124, 1
    %v1126 = vadd.f32 %v1124, %v1125
    %v1127 = vsel %vm58, %v1113, 0.0
    %v1128 = vsel %vm58, %v1126, 0.0
    %v1129 = vadd.f32 %v1127, %v1128
    %v1130 = vmul.f32 %v1129, %v586
    %v1131 = vadd.f32 %v1130, 1e-05
    %v1132 = vrsqrt.pop %v1131
    %v1133 = vmul.f32 %v1085, %v1132
    %v1134 = vmul.f32 %v1086, %v1132
    %v1135 = vmul.f32 %v1087, %v1132
    %v1136 = vmul.f32 %v1088, %v1132
    %v1137 = vmul.f32 %v1089, %v1132
    %v1138 = vmul.f32 %v1090, %v1132
    %v1139 = vmul.f32 %v1091, %v1132
    %v1140 = vmul.f32 %v1092, %v1132
    %v1141 = vlaneseq
    %v1142 = vshrl.u32 %v1141, 7
    %v1143 = vsub.s32 0, %v1142
    %v1144 = vrot.slane %v677, %v1143
    %v1145 = vmul.f32 %v1133, %v1144
    %v1146 = vmul.f32 %v1134, %v1144
    %v1147 = vmul.f32 %v1135, %v1144
    %v1148 = vmul.f32 %v1136, %v1144
    %v1149 = vmul.f32 %v1137, %v1144
    %v1150 = vmul.f32 %v1138, %v1144
    %v1151 = vmul.f32 %v1139, %v1144
    %v1152 = vmul.f32 %v1140, %v1144
    %v1153 = vlaneseq
    %v1154 = vshrl.u32 %v1153, 7
    %v1155 = vsub.s32 0, %v1154
    %v1156 = vrot.slane %v678, %v1155
    %v1157 = vadd.f32 %v1145, %v1156
    %v1158 = vadd.f32 %v1146, %v1156
    %v1159 = vadd.f32 %v1147, %v1156
    %v1160 = vadd.f32 %v1148, %v1156
    %v1161 = vadd.f32 %v1149, %v1156
    %v1162 = vadd.f32 %v1150, %v1156
    %v1163 = vadd.f32 %v1151, %v1156
    %v1164 = vadd.f32 %v1152, %v1156
    %v1165 = vld [vmem:[#allocation2 + $0x52] sm:$0xff]
    %v1166 = vld [vmem:[#allocation2 + $0x5a] sm:$0xff]
    %v1167 = vld [vmem:[#allocation2 + $0x62] sm:$0xff]
    %v1168 = vld [vmem:[#allocation2 + $0x6a] sm:$0xff]
    %v1169 = vld [vmem:[#allocation2 + $0x72] sm:$0xff]
    %v1170 = vld [vmem:[#allocation2 + $0x7a] sm:$0xff]
    %v1171 = vld [vmem:[#allocation2 + $0x82] sm:$0xff]
    %v1172 = vld [vmem:[#allocation2 + $0x8a] sm:$0xff]
    %v1173 = vld [vmem:[#allocation2 + $0x92] sm:$0x1]
    %v1174 = vld [vmem:[#allocation2 + $0x93] sm:$0x1]
    %v1175 = vld [vmem:[#allocation2 + $0x94] sm:$0x1]
    %1176 = vmatprep.subr.mxu0 0.0
    %1177 = vmatpush1.msra.mxu0 0.0
    %1178 = vmatprep.subr.mxu0 0.0
    %1179 = vmatpush1.msra.mxu0 0.0
    %1180 = vmatprep.subr.mxu0 0.0
    %1181 = vmatpush1.msra.mxu0 0.0
    %1182 = vmatprep.subr.mxu0 0.0
    %1183 = vmatpush1.msra.mxu0 0.0
    %1184 = vmatprep.subr.mxu0 0.0
    %1185 = vmatpush1.msra.mxu0 0.0
    %1186 = vmatprep.subr.mxu0 0.0
    %1187 = vmatpush1.msra.mxu0 0.0
    %1188 = vmatprep.subr.mxu0 0.0
    %1189 = vmatpush1.msra.mxu0 0.0
    %1190 = vmatprep.subr.mxu0 0.0
    %1191 = vmatpush1.msra.mxu0 0.0
    %1192 = vmatprep.subr.mxu0 0.0
    %1193 = vmatpush1.msra.mxu0 0.0
    %1194 = vmatprep.subr.mxu0 0.0
    %1195 = vmatpush1.msra.mxu0 0.0
    %1196 = vmatprep.subr.mxu0 0.0
    %1197 = vmatpush1.msra.mxu0 0.0
    %1198 = vmatprep.subr.mxu0 0.0
    %1199 = vmatpush1.msra.mxu0 0.0
    %1200 = vmatprep.subr.mxu0 0.0
    %1201 = vmatpush1.msra.mxu0 %v1160
    %1202 = vmatprep.subr.mxu0 0.0
    %1203 = vmatpush1.msra.mxu0 %v1159
    %1204 = vmatprep.subr.mxu0 0.0
    %1205 = vmatpush1.msra.mxu0 %v1158
    %1206 = vmatprep.subr.mxu0 0.0
    %1207 = vmatpush1.msra.mxu0 %v1157
    %1208 = vmatprep.subr.mxu0 0.0
    %1209 = vmatpush2.msra.mxu0 0.0
    %1210 = vmatprep.subr.mxu0 0.0
    %1211 = vmatpush2.msra.mxu0 0.0
    %1212 = vmatprep.subr.mxu0 0.0
    %1213 = vmatpush2.msra.mxu0 0.0
    %1214 = vmatprep.subr.mxu0 0.0
    %1215 = vmatpush2.msra.mxu0 0.0
    %1216 = vmatprep.subr.mxu0 0.0
    %1217 = vmatpush2.msra.mxu0 0.0
    %1218 = vmatprep.subr.mxu0 0.0
    %1219 = vmatpush2.msra.mxu0 0.0
    %1220 = vmatprep.subr.mxu0 0.0
    %1221 = vmatpush2.msra.mxu0 0.0
    %1222 = vmatprep.subr.mxu0 0.0
    %1223 = vmatpush2.msra.mxu0 0.0
    %1224 = vmatprep.subr.mxu0 0.0
    %1225 = vmatpush2.msra.mxu0 0.0
    %1226 = vmatprep.subr.mxu0 0.0
    %1227 = vmatpush2.msra.mxu0 0.0
    %1228 = vmatprep.subr.mxu0 0.0
    %1229 = vmatpush2.msra.mxu0 0.0
    %1230 = vmatprep.subr.mxu0 0.0
    %1231 = vmatpush2.msra.mxu0 0.0
    %1232 = vmatprep.subr.mxu0 0.0
    %1233 = vmatpush2.msra.mxu0 0.0
    %1234 = vmatprep.subr.mxu0 0.0
    %1235 = vmatpush2.msra.mxu0 0.0
    %1236 = vmatprep.subr.mxu0 0.0
    %1237 = vmatpush2.msra.mxu0 0.0
    %1238 = vmatprep.subr.mxu0 0.0
    %1239 = vmatpush2.msra.mxu0 0.0
    %1240 = vmatprep.mubr.f32.mxu0 0.0
    %1241 = vmatmul.mubr.f32.gmra.mxu0 %v113
    %v1242 = vpop.f32.mrf.mxu0
    %v1243 = vadd.f32 0.0, %v1242
    %v1244 = vpop.f32.mrf.mxu0
    %1245 = vmatprep.mubr.f32.mxu0 0.0
    %1246 = vmatmul.mubr.f32.gmra.mxu0 %v116
    %v1247 = vpop.f32.mrf.mxu0
    %v1248 = vadd.f32 0.0, %v1247
    %v1249 = vpop.f32.mrf.mxu0
    %1250 = vmatprep.mubr.f32.mxu0 0.0
    %1251 = vmatmul.mubr.f32.gmra.mxu0 %v119
    %v1252 = vpop.f32.mrf.mxu0
    %v1253 = vadd.f32 0.0, %v1252
    %v1254 = vpop.f32.mrf.mxu0
    %1255 = vmatprep.mubr.f32.mxu0 0.0
    %1256 = vmatmul.mubr.f32.gmra.mxu0 %v122
    %v1257 = vpop.f32.mrf.mxu0
    %v1258 = vadd.f32 0.0, %v1257
    %v1259 = vpop.f32.mrf.mxu0
    %1260 = vdwg.mxu0
    %1261 = vmatprep.subr.mxu0 0.0
    %1262 = vmatpush1.msra.mxu0 0.0
    %1263 = vmatprep.subr.mxu0 0.0
    %1264 = vmatpush1.msra.mxu0 0.0
    %1265 = vmatprep.subr.mxu0 0.0
    %1266 = vmatpush1.msra.mxu0 0.0
    %1267 = vmatprep.subr.mxu0 0.0
    %1268 = vmatpush1.msra.mxu0 0.0
    %1269 = vmatprep.subr.mxu0 0.0
    %1270 = vmatpush1.msra.mxu0 0.0
    %1271 = vmatprep.subr.mxu0 0.0
    %1272 = vmatpush1.msra.mxu0 0.0
    %1273 = vmatprep.subr.mxu0 0.0
    %1274 = vmatpush1.msra.mxu0 0.0
    %1275 = vmatprep.subr.mxu0 0.0
    %1276 = vmatpush1.msra.mxu0 0.0
    %1277 = vmatprep.subr.mxu0 0.0
    %1278 = vmatpush1.msra.mxu0 0.0
    %1279 = vmatprep.subr.mxu0 0.0
    %1280 = vmatpush1.msra.mxu0 0.0
    %1281 = vmatprep.subr.mxu0 0.0
    %1282 = vmatpush1.msra.mxu0 0.0
    %1283 = vmatprep.subr.mxu0 0.0
    %1284 = vmatpush1.msra.mxu0 0.0
    %1285 = vmatprep.subr.mxu0 0.0
    %1286 = vmatpush1.msra.mxu0 %v1164
    %1287 = vmatprep.subr.mxu0 0.0
    %1288 = vmatpush1.msra.mxu0 %v1163
    %1289 = vmatprep.subr.mxu0 0.0
    %1290 = vmatpush1.msra.mxu0 %v1162
    %1291 = vmatprep.subr.mxu0 0.0
    %1292 = vmatpush1.msra.mxu0 %v1161
    %1293 = vmatprep.subr.mxu0 0.0
    %1294 = vmatpush2.msra.mxu0 0.0
    %1295 = vmatprep.subr.mxu0 0.0
    %1296 = vmatpush2.msra.mxu0 0.0
    %1297 = vmatprep.subr.mxu0 0.0
    %1298 = vmatpush2.msra.mxu0 0.0
    %1299 = vmatprep.subr.mxu0 0.0
    %1300 = vmatpush2.msra.mxu0 0.0
    %1301 = vmatprep.subr.mxu0 0.0
    %1302 = vmatpush2.msra.mxu0 0.0
    %1303 = vmatprep.subr.mxu0 0.0
    %1304 = vmatpush2.msra.mxu0 0.0
    %1305 = vmatprep.subr.mxu0 0.0
    %1306 = vmatpush2.msra.mxu0 0.0
    %1307 = vmatprep.subr.mxu0 0.0
    %1308 = vmatpush2.msra.mxu0 0.0
    %1309 = vmatprep.subr.mxu0 0.0
    %1310 = vmatpush2.msra.mxu0 0.0
    %1311 = vmatprep.subr.mxu0 0.0
    %1312 = vmatpush2.msra.mxu0 0.0
    %1313 = vmatprep.subr.mxu0 0.0
    %1314 = vmatpush2.msra.mxu0 0.0
    %1315 = vmatprep.subr.mxu0 0.0
    %1316 = vmatpush2.msra.mxu0 0.0
    %1317 = vmatprep.subr.mxu0 0.0
    %1318 = vmatpush2.msra.mxu0 0.0
    %1319 = vmatprep.subr.mxu0 0.0
    %1320 = vmatpush2.msra.mxu0 0.0
    %1321 = vmatprep.subr.mxu0 0.0
    %1322 = vmatpush2.msra.mxu0 0.0
    %1323 = vmatprep.subr.mxu0 0.0
    %1324 = vmatpush2.msra.mxu0 0.0
    %1325 = vmatprep.mubr.f32.mxu0 0.0
    %1326 = vmatmul.mubr.f32.gmra.mxu0 %v210
    %v1327 = vpop.f32.mrf.mxu0
    %v1328 = vadd.f32 0.0, %v1327
    %v1329 = vpop.f32.mrf.mxu0
    %1330 = vmatprep.mubr.f32.mxu0 0.0
    %1331 = vmatmul.mubr.f32.gmra.mxu0 %v213
    %v1332 = vpop.f32.mrf.mxu0
    %v1333 = vadd.f32 0.0, %v1332
    %v1334 = vpop.f32.mrf.mxu0
    %1335 = vmatprep.mubr.f32.mxu0 0.0
    %1336 = vmatmul.mubr.f32.gmra.mxu0 %v216
    %v1337 = vpop.f32.mrf.mxu0
    %v1338 = vadd.f32 0.0, %v1337
    %v1339 = vpop.f32.mrf.mxu0
    %1340 = vmatprep.mubr.f32.mxu0 0.0
    %1341 = vmatmul.mubr.f32.gmra.mxu0 %v219
    %v1342 = vpop.f32.mrf.mxu0
    %v1343 = vadd.f32 0.0, %v1342
    %v1344 = vpop.f32.mrf.mxu0
    %1345 = vdwg.mxu0
    %v1346 = vmul.f32 %v1243, %v92
    %v1347 = vmul.f32 %v1248, %v94
    %v1348 = vmul.f32 %v1253, %v96
    %v1349 = vmul.f32 %v1258, %v98
    %v1350 = vmul.f32 %v1328, %v100
    %v1351 = vmul.f32 %v1333, %v102
    %v1352 = vmul.f32 %v1338, %v104
    %v1353 = vmul.f32 %v1343, %v106
    %1362 = vrot.lane.b32.xlu0 %v1157, 32
    %v1363 = vpop.permute.xlu0 %1362
    %1364 = vrot.lane.b32.xlu0 %v1158, 32
    %v1365 = vpop.permute.xlu0 %1364
    %1366 = vrot.lane.b32.xlu0 %v1159, 32
    %v1367 = vpop.permute.xlu0 %1366
    %1368 = vrot.lane.b32.xlu0 %v1160, 32
    %v1369 = vpop.permute.xlu0 %1368
    %1370 = vrot.lane.b32.xlu0 %v1161, 32
    %v1371 = vpop.permute.xlu0 %1370
    %1372 = vrot.lane.b32.xlu0 %v1162, 32
    %v1373 = vpop.permute.xlu0 %1372
    %1374 = vrot.lane.b32.xlu0 %v1163, 32
    %v1375 = vpop.permute.xlu0 %1374
    %1376 = vrot.lane.b32.xlu0 %v1164, 32
    %v1377 = vpop.permute.xlu0 %1376
    %v1386 = vsel %vm58, %v1346, %v1363
    %v1387 = vsel %vm58, %v1347, %v1365
    %v1388 = vsel %vm58, %v1348, %v1367
    %v1389 = vsel %vm58, %v1349, %v1369
    %v1390 = vsel %vm58, %v1350, %v1371
    %v1391 = vsel %vm58, %v1351, %v1373
    %v1392 = vsel %vm58, %v1352, %v1375
    %v1393 = vsel %vm58, %v1353, %v1377
    %v1395 = vsel %vm897, %v1386, 0
    %v1398 = vsel %vm897, %v1387, 0
    %v1401 = vsel %vm897, %v1388, 0
    %v1404 = vsel %vm897, %v1389, 0
    %v1407 = vsel %vm897, %v1390, 0
    %v1410 = vsel %vm897, %v1391, 0
    %v1413 = vsel %vm897, %v1392, 0
    %v1416 = vsel %vm897, %v1393, 0
    %1418 = vmatprep.subr.mxu0 0.0
    %1419 = vmatpush1.msra.mxu0 0.0
    %1420 = vmatprep.subr.mxu0 0.0
    %1421 = vmatpush1.msra.mxu0 0.0
    %1422 = vmatprep.subr.mxu0 0.0
    %1423 = vmatpush1.msra.mxu0 0.0
    %1424 = vmatprep.subr.mxu0 0.0
    %1425 = vmatpush1.msra.mxu0 0.0
    %1426 = vmatprep.subr.mxu0 0.0
    %1427 = vmatpush1.msra.mxu0 0.0
    %1428 = vmatprep.subr.mxu0 0.0
    %1429 = vmatpush1.msra.mxu0 0.0
    %1430 = vmatprep.subr.mxu0 0.0
    %1431 = vmatpush1.msra.mxu0 0.0
    %1432 = vmatprep.subr.mxu0 0.0
    %1433 = vmatpush1.msra.mxu0 0.0
    %1434 = vmatprep.subr.mxu0 0.0
    %1435 = vmatpush1.msra.mxu0 %v1172
    %1436 = vmatprep.subr.mxu0 0.0
    %1437 = vmatpush1.msra.mxu0 %v1171
    %1438 = vmatprep.subr.mxu0 0.0
    %1439 = vmatpush1.msra.mxu0 %v1170
    %1440 = vmatprep.subr.mxu0 0.0
    %1441 = vmatpush1.msra.mxu0 %v1169
    %1442 = vmatprep.subr.mxu0 0.0
    %1443 = vmatpush1.msra.mxu0 %v1168
    %1444 = vmatprep.subr.mxu0 0.0
    %1445 = vmatpush1.msra.mxu0 %v1167
    %1446 = vmatprep.subr.mxu0 0.0
    %1447 = vmatpush1.msra.mxu0 %v1166
    %1448 = vmatprep.subr.mxu0 0.0
    %1449 = vmatpush1.msra.mxu0 %v1165
    %1450 = vmatprep.subr.mxu0 0.0
    %1451 = vmatpush2.msra.mxu0 0.0
    %1452 = vmatprep.subr.mxu0 0.0
    %1453 = vmatpush2.msra.mxu0 0.0
    %1454 = vmatprep.subr.mxu0 0.0
    %1455 = vmatpush2.msra.mxu0 0.0
    %1456 = vmatprep.subr.mxu0 0.0
    %1457 = vmatpush2.msra.mxu0 0.0
    %1458 = vmatprep.subr.mxu0 0.0
    %1459 = vmatpush2.msra.mxu0 0.0
    %1460 = vmatprep.subr.mxu0 0.0
    %1461 = vmatpush2.msra.mxu0 0.0
    %1462 = vmatprep.subr.mxu0 0.0
    %1463 = vmatpush2.msra.mxu0 0.0
    %1464 = vmatprep.subr.mxu0 0.0
    %1465 = vmatpush2.msra.mxu0 0.0
    %1466 = vmatprep.subr.mxu0 0.0
    %1467 = vmatpush2.msra.mxu0 0.0
    %1468 = vmatprep.subr.mxu0 0.0
    %1469 = vmatpush2.msra.mxu0 0.0
    %1470 = vmatprep.subr.mxu0 0.0
    %1471 = vmatpush2.msra.mxu0 0.0
    %1472 = vmatprep.subr.mxu0 0.0
    %1473 = vmatpush2.msra.mxu0 0.0
    %1474 = vmatprep.subr.mxu0 0.0
    %1475 = vmatpush2.msra.mxu0 0.0
    %1476 = vmatprep.subr.mxu0 0.0
    %1477 = vmatpush2.msra.mxu0 0.0
    %1478 = vmatprep.subr.mxu0 0.0
    %1479 = vmatpush2.msra.mxu0 0.0
    %1480 = vmatprep.subr.mxu0 0.0
    %1481 = vmatpush2.msra.mxu0 0.0
    %1482 = vmatprep.mubr.f32.mxu0 0.0
    %1483 = vmatmul.mubr.f32.gmra.mxu0 %v1395
    %v1484 = vpop.f32.mrf.mxu0
    %v1485 = vadd.f32 0.0, %v1484
    %v1486 = vpop.f32.mrf.mxu0
    %1487 = vmatprep.mubr.f32.mxu0 0.0
    %1488 = vmatmul.mubr.f32.gmra.mxu0 %v1398
    %v1489 = vpop.f32.mrf.mxu0
    %v1490 = vadd.f32 0.0, %v1489
    %v1491 = vpop.f32.mrf.mxu0
    %1492 = vmatprep.mubr.f32.mxu0 0.0
    %1493 = vmatmul.mubr.f32.gmra.mxu0 %v1401
    %v1494 = vpop.f32.mrf.mxu0
    %v1495 = vadd.f32 0.0, %v1494
    %v1496 = vpop.f32.mrf.mxu0
    %1497 = vmatprep.mubr.f32.mxu0 0.0
    %1498 = vmatmul.mubr.f32.gmra.mxu0 %v1404
    %v1499 = vpop.f32.mrf.mxu0
    %v1500 = vadd.f32 0.0, %v1499
    %v1501 = vpop.f32.mrf.mxu0
    %1502 = vmatprep.mubr.f32.mxu0 0.0
    %1503 = vmatmul.mubr.f32.gmra.mxu0 %v1407
    %v1504 = vpop.f32.mrf.mxu0
    %v1505 = vadd.f32 0.0, %v1504
    %v1506 = vpop.f32.mrf.mxu0
    %1507 = vmatprep.mubr.f32.mxu0 0.0
    %1508 = vmatmul.mubr.f32.gmra.mxu0 %v1410
    %v1509 = vpop.f32.mrf.mxu0
    %v1510 = vadd.f32 0.0, %v1509
    %v1511 = vpop.f32.mrf.mxu0
    %1512 = vmatprep.mubr.f32.mxu0 0.0
    %1513 = vmatmul.mubr.f32.gmra.mxu0 %v1413
    %v1514 = vpop.f32.mrf.mxu0
    %v1515 = vadd.f32 0.0, %v1514
    %v1516 = vpop.f32.mrf.mxu0
    %1517 = vmatprep.mubr.f32.mxu0 0.0
    %1518 = vmatmul.mubr.f32.gmra.mxu0 %v1416
    %v1519 = vpop.f32.mrf.mxu0
    %v1520 = vadd.f32 0.0, %v1519
    %v1521 = vpop.f32.mrf.mxu0
    %1522 = vdwg.mxu0
    %v1523 = vlaneseq
    %v1524 = vshrl.u32 %v1523, 7
    %v1525 = vsub.s32 0, %v1524
    %v1526 = vrot.slane %v1173, %v1525
    %v1527 = vadd.f32 %v1485, %v1526
    %v1528 = vadd.f32 %v1490, %v1526
    %v1529 = vadd.f32 %v1495, %v1526
    %v1530 = vadd.f32 %v1500, %v1526
    %v1531 = vadd.f32 %v1505, %v1526
    %v1532 = vadd.f32 %v1510, %v1526
    %v1533 = vadd.f32 %v1515, %v1526
    %v1534 = vadd.f32 %v1520, %v1526
    %v1535 = vmul.f32 %v1527, %v504
    %v1536 = vmul.f32 %v1528, %v509
    %v1537 = vmul.f32 %v1529, %v514
    %v1538 = vmul.f32 %v1530, %v519
    %v1539 = vmul.f32 %v1531, %v524
    %v1540 = vmul.f32 %v1532, %v529
    %v1541 = vmul.f32 %v1533, %v534
    %v1542 = vmul.f32 %v1534, %v539
    %v1543 = vmax.f32 %v1535, 0.0
    %v1544 = vmax.f32 %v1536, 0.0
    %v1545 = vmax.f32 %v1537, 0.0
    %v1546 = vmax.f32 %v1538, 0.0
    %v1547 = vmax.f32 %v1539, 0.0
    %v1548 = vmax.f32 %v1540, 0.0
    %v1549 = vmax.f32 %v1541, 0.0
    %v1550 = vmax.f32 %v1542, 0.0
    %vm1551 = vcmask 64512
    %v1552 = vsel %vm1551, %v1543, 0.0
    %v1553 = vsel %vm1551, %v1544, 0.0
    %v1554 = vadd.f32 %v1552, %v1553
    %v1555 = vsel %vm1551, %v1545, 0.0
    %v1556 = vadd.f32 %v1554, %v1555
    %v1557 = vsel %vm1551, %v1546, 0.0
    %v1558 = vadd.f32 %v1556, %v1557
    %v1559 = vrot.slane %v1558, 4
    %v1560 = vadd.f32 %v1558, %v1559
    %v1561 = vrot.slane %v1560, 2
    %v1562 = vadd.f32 %v1560, %v1561
    %v1563 = vrot.slane %v1562, 1
    %v1564 = vadd.f32 %v1562, %v1563
    %v1565 = vsel %vm1551, %v1547, 0.0
    %v1566 = vsel %vm1551, %v1548, 0.0
    %v1567 = vadd.f32 %v1565, %v1566
    %v1568 = vsel %vm1551, %v1549, 0.0
    %v1569 = vadd.f32 %v1567, %v1568
    %v1570 = vsel %vm1551, %v1550, 0.0
    %v1571 = vadd.f32 %v1569, %v1570
    %v1572 = vrot.slane %v1571, 4
    %v1573 = vadd.f32 %v1571, %v1572
    %v1574 = vrot.slane %v1573, 2
    %v1575 = vadd.f32 %v1573, %v1574
    %v1576 = vrot.slane %v1575, 1
    %v1577 = vadd.f32 %v1575, %v1576
    %v1578 = vsel %vm1551, %v1564, 0.0
    %v1579 = vsel %vm1551, %v1577, 0.0
    %v1580 = vadd.f32 %v1578, %v1579
    %v1581 = vmul.f32 %v1580, %v586
    %v1582 = vsub.f32 %v1543, %v1581
    %v1583 = vsub.f32 %v1544, %v1581
    %v1584 = vsub.f32 %v1545, %v1581
    %v1585 = vsub.f32 %v1546, %v1581
    %v1586 = vsub.f32 %v1547, %v1581
    %v1587 = vsub.f32 %v1548, %v1581
    %v1588 = vsub.f32 %v1549, %v1581
    %v1589 = vsub.f32 %v1550, %v1581
    %v1590 = vmul.f32 %v1582, %v1582
    %v1591 = vmul.f32 %v1583, %v1583
    %v1592 = vmul.f32 %v1584, %v1584
    %v1593 = vmul.f32 %v1585, %v1585
    %v1594 = vmul.f32 %v1586, %v1586
    %v1595 = vmul.f32 %v1587, %v1587
    %v1596 = vmul.f32 %v1588, %v1588
    %v1597 = vmul.f32 %v1589, %v1589
    %v1598 = vsel %vm1551, %v1590, 0.0
    %v1599 = vsel %vm1551, %v1591, 0.0
    %v1600 = vadd.f32 %v1598, %v1599
    %v1601 = vsel %vm1551, %v1592, 0.0
    %v1602 = vadd.f32 %v1600, %v1601
    %v1603 = vsel %vm1551, %v1593, 0.0
    %v1604 = vadd.f32 %v1602, %v1603
    %v1605 = vrot.slane %v1604, 4
    %v1606 = vadd.f32 %v1604, %v1605
    %v1607 = vrot.slane %v1606, 2
    %v1608 = vadd.f32 %v1606, %v1607
    %v1609 = vrot.slane %v1608, 1
    %v1610 = vadd.f32 %v1608, %v1609
    %v1611 = vsel %vm1551, %v1594, 0.0
    %v1612 = vsel %vm1551, %v1595, 0.0
    %v1613 = vadd.f32 %v1611, %v1612
    %v1614 = vsel %vm1551, %v1596, 0.0
    %v1615 = vadd.f32 %v1613, %v1614
    %v1616 = vsel %vm1551, %v1597, 0.0
    %v1617 = vadd.f32 %v1615, %v1616
    %v1618 = vrot.slane %v1617, 4
    %v1619 = vadd.f32 %v1617, %v1618
    %v1620 = vrot.slane %v1619, 2
    %v1621 = vadd.f32 %v1619, %v1620
    %v1622 = vrot.slane %v1621, 1
    %v1623 = vadd.f32 %v1621, %v1622
    %v1624 = vsel %vm1551, %v1610, 0.0
    %v1625 = vsel %vm1551, %v1623, 0.0
    %v1626 = vadd.f32 %v1624, %v1625
    %v1627 = vmul.f32 %v1626, %v586
    %v1628 = vadd.f32 %v1627, 1e-05
    %v1629 = vrsqrt.pop %v1628
    %v1630 = vmul.f32 %v1582, %v1629
    %v1631 = vmul.f32 %v1583, %v1629
    %v1632 = vmul.f32 %v1584, %v1629
    %v1633 = vmul.f32 %v1585, %v1629
    %v1634 = vmul.f32 %v1586, %v1629
    %v1635 = vmul.f32 %v1587, %v1629
    %v1636 = vmul.f32 %v1588, %v1629
    %v1637 = vmul.f32 %v1589, %v1629
    %v1638 = vlaneseq
    %v1639 = vshrl.u32 %v1638, 7
    %v1640 = vsub.s32 0, %v1639
    %v1641 = vrot.slane %v1174, %v1640
    %v1642 = vmul.f32 %v1630, %v1641
    %v1643 = vmul.f32 %v1631, %v1641
    %v1644 = vmul.f32 %v1632, %v1641
    %v1645 = vmul.f32 %v1633, %v1641
    %v1646 = vmul.f32 %v1634, %v1641
    %v1647 = vmul.f32 %v1635, %v1641
    %v1648 = vmul.f32 %v1636, %v1641
    %v1649 = vmul.f32 %v1637, %v1641
    %v1650 = vlaneseq
    %v1651 = vshrl.u32 %v1650, 7
    %v1652 = vsub.s32 0, %v1651
    %v1653 = vrot.slane %v1175, %v1652
    %v1654 = vadd.f32 %v1642, %v1653
    %v1655 = vadd.f32 %v1643, %v1653
    %v1656 = vadd.f32 %v1644, %v1653
    %v1657 = vadd.f32 %v1645, %v1653
    %v1658 = vadd.f32 %v1646, %v1653
    %v1659 = vadd.f32 %v1647, %v1653
    %v1660 = vadd.f32 %v1648, %v1653
    %v1661 = vadd.f32 %v1649, %v1653
    %1670 = vrot.lane.b32.xlu0 %v1654, 64
    %v1671 = vpop.permute.xlu0 %1670
    %1672 = vrot.lane.b32.xlu0 %v1655, 64
    %v1673 = vpop.permute.xlu0 %1672
    %1674 = vrot.lane.b32.xlu0 %v1656, 64
    %v1675 = vpop.permute.xlu0 %1674
    %1676 = vrot.lane.b32.xlu0 %v1657, 64
    %v1677 = vpop.permute.xlu0 %1676
    %1678 = vrot.lane.b32.xlu0 %v1658, 64
    %v1679 = vpop.permute.xlu0 %1678
    %1680 = vrot.lane.b32.xlu0 %v1659, 64
    %v1681 = vpop.permute.xlu0 %1680
    %1682 = vrot.lane.b32.xlu0 %v1660, 64
    %v1683 = vpop.permute.xlu0 %1682
    %1684 = vrot.lane.b32.xlu0 %v1661, 64
    %v1685 = vpop.permute.xlu0 %1684
    %v1694 = vsel %vm58, %v660, %v1363
    %v1695 = vsel %vm58, %v661, %v1365
    %v1696 = vsel %vm58, %v662, %v1367
    %v1697 = vsel %vm58, %v663, %v1369
    %v1698 = vsel %vm58, %v664, %v1371
    %v1699 = vsel %vm58, %v665, %v1373
    %v1700 = vsel %vm58, %v666, %v1375
    %v1701 = vsel %vm58, %v667, %v1377
    %v1702 = vsel %vm897, %v1694, %v1671
    %v1703 = vsel %vm897, %v1695, %v1673
    %v1704 = vsel %vm897, %v1696, %v1675
    %v1705 = vsel %vm897, %v1697, %v1677
    %v1706 = vsel %vm897, %v1698, %v1679
    %v1707 = vsel %vm897, %v1699, %v1681
    %v1708 = vsel %vm897, %v1700, %v1683
    %v1709 = vsel %vm897, %v1701, %v1685
    %v1710 = vld [vmem:[#allocation2 + $0x95] sm:$0xff]
    %v1711 = vld [vmem:[#allocation2 + $0x9d] sm:$0xff]
    %v1712 = vld [vmem:[#allocation2 + $0xa5] sm:$0xff]
    %v1713 = vld [vmem:[#allocation2 + $0xad] sm:$0xff]
    %v1714 = vld [vmem:[#allocation2 + $0xb5] sm:$0xff]
    %v1715 = vld [vmem:[#allocation2 + $0xbd] sm:$0xff]
    %v1716 = vld [vmem:[#allocation2 + $0xc5] sm:$0xff]
    %v1717 = vld [vmem:[#allocation2 + $0xcd] sm:$0xff]
    %v1718 = vld [vmem:[#allocation2 + $0xd5] sm:$0xff]
    %v1719 = vld [vmem:[#allocation2 + $0xdd] sm:$0x1]
    %vm1720 = vcmask 588800
    %v1722 = vsel %vm1720, %v1702, 0
    %v1725 = vsel %vm1720, %v1703, 0
    %v1728 = vsel %vm1720, %v1704, 0
    %v1731 = vsel %vm1720, %v1705, 0
    %v1734 = vsel %vm1720, %v1706, 0
    %v1737 = vsel %vm1720, %v1707, 0
    %v1740 = vsel %vm1720, %v1708, 0
    %v1743 = vsel %vm1720, %v1709, 0
    %1745 = vmatprep.subr.mxu0 0.0
    %1746 = vmatpush1.msra.mxu0 0.0
    %1747 = vmatprep.subr.mxu0 0.0
    %1748 = vmatpush1.msra.mxu0 0.0
    %1749 = vmatprep.subr.mxu0 0.0
    %1750 = vmatpush1.msra.mxu0 0.0
    %1751 = vmatprep.subr.mxu0 0.0
    %1752 = vmatpush1.msra.mxu0 0.0
    %1753 = vmatprep.subr.mxu0 0.0
    %1754 = vmatpush1.msra.mxu0 0.0
    %1755 = vmatprep.subr.mxu0 0.0
    %1756 = vmatpush1.msra.mxu0 0.0
    %1757 = vmatprep.subr.mxu0 0.0
    %1758 = vmatpush1.msra.mxu0 0.0
    %1759 = vmatprep.subr.mxu0 0.0
    %1760 = vmatpush1.msra.mxu0 %v1718
    %1761 = vmatprep.subr.mxu0 0.0
    %1762 = vmatpush1.msra.mxu0 %v1717
    %1763 = vmatprep.subr.mxu0 0.0
    %1764 = vmatpush1.msra.mxu0 %v1716
    %1765 = vmatprep.subr.mxu0 0.0
    %1766 = vmatpush1.msra.mxu0 %v1715
    %1767 = vmatprep.subr.mxu0 0.0
    %1768 = vmatpush1.msra.mxu0 %v1714
    %1769 = vmatprep.subr.mxu0 0.0
    %1770 = vmatpush1.msra.mxu0 %v1713
    %1771 = vmatprep.subr.mxu0 0.0
    %1772 = vmatpush1.msra.mxu0 %v1712
    %1773 = vmatprep.subr.mxu0 0.0
    %1774 = vmatpush1.msra.mxu0 %v1711
    %1775 = vmatprep.subr.mxu0 0.0
    %1776 = vmatpush1.msra.mxu0 %v1710
    %1777 = vmatprep.subr.mxu0 0.0
    %1778 = vmatpush2.msra.mxu0 0.0
    %1779 = vmatprep.subr.mxu0 0.0
    %1780 = vmatpush2.msra.mxu0 0.0
    %1781 = vmatprep.subr.mxu0 0.0
    %1782 = vmatpush2.msra.mxu0 0.0
    %1783 = vmatprep.subr.mxu0 0.0
    %1784 = vmatpush2.msra.mxu0 0.0
    %1785 = vmatprep.subr.mxu0 0.0
    %1786 = vmatpush2.msra.mxu0 0.0
    %1787 = vmatprep.subr.mxu0 0.0
    %1788 = vmatpush2.msra.mxu0 0.0
    %1789 = vmatprep.subr.mxu0 0.0
    %1790 = vmatpush2.msra.mxu0 0.0
    %1791 = vmatprep.subr.mxu0 0.0
    %1792 = vmatpush2.msra.mxu0 0.0
    %1793 = vmatprep.subr.mxu0 0.0
    %1794 = vmatpush2.msra.mxu0 0.0
    %1795 = vmatprep.subr.mxu0 0.0
    %1796 = vmatpush2.msra.mxu0 0.0
    %1797 = vmatprep.subr.mxu0 0.0
    %1798 = vmatpush2.msra.mxu0 0.0
    %1799 = vmatprep.subr.mxu0 0.0
    %1800 = vmatpush2.msra.mxu0 0.0
    %1801 = vmatprep.subr.mxu0 0.0
    %1802 = vmatpush2.msra.mxu0 0.0
    %1803 = vmatprep.subr.mxu0 0.0
    %1804 = vmatpush2.msra.mxu0 0.0
    %1805 = vmatprep.subr.mxu0 0.0
    %1806 = vmatpush2.msra.mxu0 0.0
    %1807 = vmatprep.subr.mxu0 0.0
    %1808 = vmatpush2.msra.mxu0 0.0
    %1809 = vmatprep.mubr.f32.mxu0 0.0
    %1810 = vmatmul.mubr.f32.gmra.mxu0 %v1722
    %v1811 = vpop.f32.mrf.mxu0
    %v1812 = vadd.f32 0.0, %v1811
    %v1813 = vpop.f32.mrf.mxu0
    %1814 = vmatprep.mubr.f32.mxu0 0.0
    %1815 = vmatmul.mubr.f32.gmra.mxu0 %v1725
    %v1816 = vpop.f32.mrf.mxu0
    %v1817 = vadd.f32 0.0, %v1816
    %v1818 = vpop.f32.mrf.mxu0
    %1819 = vmatprep.mubr.f32.mxu0 0.0
    %1820 = vmatmul.mubr.f32.gmra.mxu0 %v1728
    %v1821 = vpop.f32.mrf.mxu0
    %v1822 = vadd.f32 0.0, %v1821
    %v1823 = vpop.f32.mrf.mxu0
    %1824 = vmatprep.mubr.f32.mxu0 0.0
    %1825 = vmatmul.mubr.f32.gmra.mxu0 %v1731
    %v1826 = vpop.f32.mrf.mxu0
    %v1827 = vadd.f32 0.0, %v1826
    %v1828 = vpop.f32.mrf.mxu0
    %1829 = vmatprep.mubr.f32.mxu0 0.0
    %1830 = vmatmul.mubr.f32.gmra.mxu0 %v1734
    %v1831 = vpop.f32.mrf.mxu0
    %v1832 = vadd.f32 0.0, %v1831
    %v1833 = vpop.f32.mrf.mxu0
    %1834 = vmatprep.mubr.f32.mxu0 0.0
    %1835 = vmatmul.mubr.f32.gmra.mxu0 %v1737
    %v1836 = vpop.f32.mrf.mxu0
    %v1837 = vadd.f32 0.0, %v1836
    %v1838 = vpop.f32.mrf.mxu0
    %1839 = vmatprep.mubr.f32.mxu0 0.0
    %1840 = vmatmul.mubr.f32.gmra.mxu0 %v1740
    %v1841 = vpop.f32.mrf.mxu0
    %v1842 = vadd.f32 0.0, %v1841
    %v1843 = vpop.f32.mrf.mxu0
    %1844 = vmatprep.mubr.f32.mxu0 0.0
    %1845 = vmatmul.mubr.f32.gmra.mxu0 %v1743
    %v1846 = vpop.f32.mrf.mxu0
    %v1847 = vadd.f32 0.0, %v1846
    %v1848 = vpop.f32.mrf.mxu0
    %1849 = vdwg.mxu0
    %v1850 = vlaneseq
    %v1851 = vshrl.u32 %v1850, 7
    %v1852 = vsub.s32 0, %v1851
    %v1853 = vrot.slane %v1719, %v1852
    %v1854 = vadd.f32 %v1812, %v1853
    %v1855 = vadd.f32 %v1817, %v1853
    %v1856 = vadd.f32 %v1822, %v1853
    %v1857 = vadd.f32 %v1827, %v1853
    %v1858 = vadd.f32 %v1832, %v1853
    %v1859 = vadd.f32 %v1837, %v1853
    %v1860 = vadd.f32 %v1842, %v1853
    %v1861 = vadd.f32 %v1847, %v1853
    %v1862 = vmax.f32 %v1854, 0.0
    %v1863 = vmax.f32 %v1855, 0.0
    %v1864 = vmax.f32 %v1856, 0.0
    %v1865 = vmax.f32 %v1857, 0.0
    %v1866 = vmax.f32 %v1858, 0.0
    %v1867 = vmax.f32 %v1859, 0.0
    %v1868 = vmax.f32 %v1860, 0.0
    %v1869 = vmax.f32 %v1861, 0.0
    %v1870 = vld [vmem:[#allocation2 + $0xde] sm:$0xff]
    %v1871 = vld [vmem:[#allocation2 + $0xe6] sm:$0xf]
    %v1872 = vld [vmem:[#allocation2 + $0xea] sm:$0x1]
    %v1873 = vld [vmem:[#allocation2 + $0xeb] sm:$0x1]
    %v1874 = vld [vmem:[#allocation2 + $0xec] sm:$0x1]
    %v1876 = vsel %vm380, %v1871, 0
    %1878 = vmatprep.subr.mxu0 0.0
    %1879 = vmatpush1.msra.mxu0 0.0
    %1880 = vmatprep.subr.mxu0 0.0
    %1881 = vmatpush1.msra.mxu0 0.0
    %1882 = vmatprep.subr.mxu0 0.0
    %1883 = vmatpush1.msra.mxu0 0.0
    %1884 = vmatprep.subr.mxu0 0.0
    %1885 = vmatpush1.msra.mxu0 0.0
    %1886 = vmatprep.subr.mxu0 0.0
    %1887 = vmatpush1.msra.mxu0 0.0
    %1888 = vmatprep.subr.mxu0 0.0
    %1889 = vmatpush1.msra.mxu0 0.0
    %1890 = vmatprep.subr.mxu0 0.0
    %1891 = vmatpush1.msra.mxu0 0.0
    %1892 = vmatprep.subr.mxu0 0.0
    %1893 = vmatpush1.msra.mxu0 0.0
    %1894 = vmatprep.subr.mxu0 0.0
    %1895 = vmatpush1.msra.mxu0 0.0
    %1896 = vmatprep.subr.mxu0 0.0
    %1897 = vmatpush1.msra.mxu0 0.0
    %1898 = vmatprep.subr.mxu0 0.0
    %1899 = vmatpush1.msra.mxu0 0.0
    %1900 = vmatprep.subr.mxu0 0.0
    %1901 = vmatpush1.msra.mxu0 0.0
    %1902 = vmatprep.subr.mxu0 0.0
    %1903 = vmatpush1.msra.mxu0 0.0
    %1904 = vmatprep.subr.mxu0 0.0
    %1905 = vmatpush1.msra.mxu0 0.0
    %1906 = vmatprep.subr.mxu0 0.0
    %1907 = vmatpush1.msra.mxu0 %v1876
    %1908 = vmatprep.subr.mxu0 0.0
    %1909 = vmatpush1.msra.mxu0 %v1870
    %1910 = vmatprep.subr.mxu0 0.0
    %1911 = vmatpush2.msra.mxu0 0.0
    %1912 = vmatprep.subr.mxu0 0.0
    %1913 = vmatpush2.msra.mxu0 0.0
    %1914 = vmatprep.subr.mxu0 0.0
    %1915 = vmatpush2.msra.mxu0 0.0
    %1916 = vmatprep.subr.mxu0 0.0
    %1917 = vmatpush2.msra.mxu0 0.0
    %1918 = vmatprep.subr.mxu0 0.0
    %1919 = vmatpush2.msra.mxu0 0.0
    %1920 = vmatprep.subr.mxu0 0.0
    %1921 = vmatpush2.msra.mxu0 0.0
    %1922 = vmatprep.subr.mxu0 0.0
    %1923 = vmatpush2.msra.mxu0 0.0
    %1924 = vmatprep.subr.mxu0 0.0
    %1925 = vmatpush2.msra.mxu0 0.0
    %1926 = vmatprep.subr.mxu0 0.0
    %1927 = vmatpush2.msra.mxu0 0.0
    %1928 = vmatprep.subr.mxu0 0.0
    %1929 = vmatpush2.msra.mxu0 0.0
    %1930 = vmatprep.subr.mxu0 0.0
    %1931 = vmatpush2.msra.mxu0 0.0
    %1932 = vmatprep.subr.mxu0 0.0
    %1933 = vmatpush2.msra.mxu0 0.0
    %1934 = vmatprep.subr.mxu0 0.0
    %1935 = vmatpush2.msra.mxu0 0.0
    %1936 = vmatprep.subr.mxu0 0.0
    %1937 = vmatpush2.msra.mxu0 0.0
    %1938 = vmatprep.subr.mxu0 0.0
    %1939 = vmatpush2.msra.mxu0 0.0
    %1940 = vmatprep.subr.mxu0 0.0
    %1941 = vmatpush2.msra.mxu0 0.0
    %1942 = vmatprep.mubr.f32.mxu0 0.0
    %1943 = vmatmul.mubr.f32.gmra.mxu0 %v357
    %v1944 = vpop.f32.mrf.mxu0
    %v1945 = vadd.f32 0.0, %v1944
    %v1946 = vpop.f32.mrf.mxu0
    %1947 = vmatprep.mubr.f32.mxu0 0.0
    %1948 = vmatmul.mubr.f32.gmra.mxu0 %v360
    %v1949 = vpop.f32.mrf.mxu0
    %v1950 = vadd.f32 0.0, %v1949
    %v1951 = vpop.f32.mrf.mxu0
    %1952 = vmatprep.mubr.f32.mxu0 0.0
    %1953 = vmatmul.mubr.f32.gmra.mxu0 %v363
    %v1954 = vpop.f32.mrf.mxu0
    %v1955 = vadd.f32 0.0, %v1954
    %v1956 = vpop.f32.mrf.mxu0
    %1957 = vmatprep.mubr.f32.mxu0 0.0
    %1958 = vmatmul.mubr.f32.gmra.mxu0 %v366
    %v1959 = vpop.f32.mrf.mxu0
    %v1960 = vadd.f32 0.0, %v1959
    %v1961 = vpop.f32.mrf.mxu0
    %1962 = vmatprep.mubr.f32.mxu0 0.0
    %1963 = vmatmul.mubr.f32.gmra.mxu0 %v369
    %v1964 = vpop.f32.mrf.mxu0
    %v1965 = vadd.f32 0.0, %v1964
    %v1966 = vpop.f32.mrf.mxu0
    %1967 = vmatprep.mubr.f32.mxu0 0.0
    %1968 = vmatmul.mubr.f32.gmra.mxu0 %v372
    %v1969 = vpop.f32.mrf.mxu0
    %v1970 = vadd.f32 0.0, %v1969
    %v1971 = vpop.f32.mrf.mxu0
    %1972 = vmatprep.mubr.f32.mxu0 0.0
    %1973 = vmatmul.mubr.f32.gmra.mxu0 %v375
    %v1974 = vpop.f32.mrf.mxu0
    %v1975 = vadd.f32 0.0, %v1974
    %v1976 = vpop.f32.mrf.mxu0
    %1977 = vmatprep.mubr.f32.mxu0 0.0
    %1978 = vmatmul.mubr.f32.gmra.mxu0 %v378
    %v1979 = vpop.f32.mrf.mxu0
    %v1980 = vadd.f32 0.0, %v1979
    %v1981 = vpop.f32.mrf.mxu0
    %1982 = vdwg.mxu0
    %v1983 = vlaneseq
    %v1984 = vshrl.u32 %v1983, 7
    %v1985 = vsub.s32 0, %v1984
    %v1986 = vrot.slane %v1872, %v1985
    %v1987 = vadd.f32 %v1945, %v1986
    %v1988 = vadd.f32 %v1950, %v1986
    %v1989 = vadd.f32 %v1955, %v1986
    %v1990 = vadd.f32 %v1960, %v1986
    %v1991 = vadd.f32 %v1965, %v1986
    %v1992 = vadd.f32 %v1970, %v1986
    %v1993 = vadd.f32 %v1975, %v1986
    %v1994 = vadd.f32 %v1980, %v1986
    %v1995 = vmul.f32 %v1987, %v504
    %v1996 = vmul.f32 %v1988, %v509
    %v1997 = vmul.f32 %v1989, %v514
    %v1998 = vmul.f32 %v1990, %v519
    %v1999 = vmul.f32 %v1991, %v524
    %v2000 = vmul.f32 %v1992, %v529
    %v2001 = vmul.f32 %v1993, %v534
    %v2002 = vmul.f32 %v1994, %v539
    %v2003 = vmax.f32 %v1995, 0.0
    %v2004 = vmax.f32 %v1996, 0.0
    %v2005 = vmax.f32 %v1997, 0.0
    %v2006 = vmax.f32 %v1998, 0.0
    %v2007 = vmax.f32 %v1999, 0.0
    %v2008 = vmax.f32 %v2000, 0.0
    %v2009 = vmax.f32 %v2001, 0.0
    %v2010 = vmax.f32 %v2002, 0.0
    %v2011 = vsel %vm58, %v2003, 0.0
    %v2012 = vsel %vm58, %v2004, 0.0
    %v2013 = vadd.f32 %v2011, %v2012
    %v2014 = vsel %vm58, %v2005, 0.0
    %v2015 = vadd.f32 %v2013, %v2014
    %v2016 = vsel %vm58, %v2006, 0.0
    %v2017 = vadd.f32 %v2015, %v2016
    %v2018 = vrot.slane %v2017, 4
    %v2019 = vadd.f32 %v2017, %v2018
    %v2020 = vrot.slane %v2019, 2
    %v2021 = vadd.f32 %v2019, %v2020
    %v2022 = vrot.slane %v2021, 1
    %v2023 = vadd.f32 %v2021, %v2022
    %v2024 = vsel %vm58, %v2007, 0.0
    %v2025 = vsel %vm58, %v2008, 0.0
    %v2026 = vadd.f32 %v2024, %v2025
    %v2027 = vsel %vm58, %v2009, 0.0
    %v2028 = vadd.f32 %v2026, %v2027
    %v2029 = vsel %vm58, %v2010, 0.0
    %v2030 = vadd.f32 %v2028, %v2029
    %v2031 = vrot.slane %v2030, 4
    %v2032 = vadd.f32 %v2030, %v2031
    %v2033 = vrot.slane %v2032, 2
    %v2034 = vadd.f32 %v2032, %v2033
    %v2035 = vrot.slane %v2034, 1
    %v2036 = vadd.f32 %v2034, %v2035
    %v2037 = vsel %vm58, %v2023, 0.0
    %v2038 = vsel %vm58, %v2036, 0.0
    %v2039 = vadd.f32 %v2037, %v2038
    %v2040 = vmul.f32 %v2039, %v586
    %v2041 = vsub.f32 %v2003, %v2040
    %v2042 = vsub.f32 %v2004, %v2040
    %v2043 = vsub.f32 %v2005, %v2040
    %v2044 = vsub.f32 %v2006, %v2040
    %v2045 = vsub.f32 %v2007, %v2040
    %v2046 = vsub.f32 %v2008, %v2040
    %v2047 = vsub.f32 %v2009, %v2040
    %v2048 = vsub.f32 %v2010, %v2040
    %v2049 = vmul.f32 %v2041, %v2041
    %v2050 = vmul.f32 %v2042, %v2042
    %v2051 = vmul.f32 %v2043, %v2043
    %v2052 = vmul.f32 %v2044, %v2044
    %v2053 = vmul.f32 %v2045, %v2045
    %v2054 = vmul.f32 %v2046, %v2046
    %v2055 = vmul.f32 %v2047, %v2047
    %v2056 = vmul.f32 %v2048, %v2048
    %v2057 = vsel %vm58, %v2049, 0.0
    %v2058 = vsel %vm58, %v2050, 0.0
    %v2059 = vadd.f32 %v2057, %v2058
    %v2060 = vsel %vm58, %v2051, 0.0
    %v2061 = vadd.f32 %v2059, %v2060
    %v2062 = vsel %vm58, %v2052, 0.0
    %v2063 = vadd.f32 %v2061, %v2062
    %v2064 = vrot.slane %v2063, 4
    %v2065 = vadd.f32 %v2063, %v2064
    %v2066 = vrot.slane %v2065, 2
    %v2067 = vadd.f32 %v2065, %v2066
    %v2068 = vrot.slane %v2067, 1
    %v2069 = vadd.f32 %v2067, %v2068
    %v2070 = vsel %vm58, %v2053, 0.0
    %v2071 = vsel %vm58, %v2054, 0.0
    %v2072 = vadd.f32 %v2070, %v2071
    %v2073 = vsel %vm58, %v2055, 0.0
    %v2074 = vadd.f32 %v2072, %v2073
    %v2075 = vsel %vm58, %v2056, 0.0
    %v2076 = vadd.f32 %v2074, %v2075
    %v2077 = vrot.slane %v2076, 4
    %v2078 = vadd.f32 %v2076, %v2077
    %v2079 = vrot.slane %v2078, 2
    %v2080 = vadd.f32 %v2078, %v2079
    %v2081 = vrot.slane %v2080, 1
    %v2082 = vadd.f32 %v2080, %v2081
    %v2083 = vsel %vm58, %v2069, 0.0
    %v2084 = vsel %vm58, %v2082, 0.0
    %v2085 = vadd.f32 %v2083, %v2084
    %v2086 = vmul.f32 %v2085, %v586
    %v2087 = vadd.f32 %v2086, 1e-05
    %v2088 = vrsqrt.pop %v2087
    %v2089 = vmul.f32 %v2041, %v2088
    %v2090 = vmul.f32 %v2042, %v2088
    %v2091 = vmul.f32 %v2043, %v2088
    %v2092 = vmul.f32 %v2044, %v2088
    %v2093 = vmul.f32 %v2045, %v2088
    %v2094 = vmul.f32 %v2046, %v2088
    %v2095 = vmul.f32 %v2047, %v2088
    %v2096 = vmul.f32 %v2048, %v2088
    %v2097 = vlaneseq
    %v2098 = vshrl.u32 %v2097, 7
    %v2099 = vsub.s32 0, %v2098
    %v2100 = vrot.slane %v1873, %v2099
    %v2101 = vmul.f32 %v2089, %v2100
    %v2102 = vmul.f32 %v2090, %v2100
    %v2103 = vmul.f32 %v2091, %v2100
    %v2104 = vmul.f32 %v2092, %v2100
    %v2105 = vmul.f32 %v2093, %v2100
    %v2106 = vmul.f32 %v2094, %v2100
    %v2107 = vmul.f32 %v2095, %v2100
    %v2108 = vmul.f32 %v2096, %v2100
    %v2109 = vlaneseq
    %v2110 = vshrl.u32 %v2109, 7
    %v2111 = vsub.s32 0, %v2110
    %v2112 = vrot.slane %v1874, %v2111
    %v2113 = vadd.f32 %v2101, %v2112
    %v2114 = vadd.f32 %v2102, %v2112
    %v2115 = vadd.f32 %v2103, %v2112
    %v2116 = vadd.f32 %v2104, %v2112
    %v2117 = vadd.f32 %v2105, %v2112
    %v2118 = vadd.f32 %v2106, %v2112
    %v2119 = vadd.f32 %v2107, %v2112
    %v2120 = vadd.f32 %v2108, %v2112
    %v2121 = vld [vmem:[#allocation2 + $0xed] sm:$0xff]
    %v2122 = vld [vmem:[#allocation2 + $0xf5] sm:$0xff]
    %v2123 = vld [vmem:[#allocation2 + $0xfd] sm:$0xff]
    %v2124 = vld [vmem:[#allocation2 + $0x105] sm:$0xff]
    %v2125 = vld [vmem:[#allocation2 + $0x10d] sm:$0xff]
    %v2126 = vld [vmem:[#allocation2 + $0x115] sm:$0xff]
    %v2127 = vld [vmem:[#allocation2 + $0x11d] sm:$0xff]
    %v2128 = vld [vmem:[#allocation2 + $0x125] sm:$0xff]
    %v2129 = vld [vmem:[#allocation2 + $0x12d] sm:$0x1]
    %v2130 = vld [vmem:[#allocation2 + $0x12e] sm:$0x1]
    %v2131 = vld [vmem:[#allocation2 + $0x12f] sm:$0x1]
    %2132 = vmatprep.subr.mxu0 0.0
    %2133 = vmatpush1.msra.mxu0 0.0
    %2134 = vmatprep.subr.mxu0 0.0
    %2135 = vmatpush1.msra.mxu0 0.0
    %2136 = vmatprep.subr.mxu0 0.0
    %2137 = vmatpush1.msra.mxu0 0.0
    %2138 = vmatprep.subr.mxu0 0.0
    %2139 = vmatpush1.msra.mxu0 0.0
    %2140 = vmatprep.subr.mxu0 0.0
    %2141 = vmatpush1.msra.mxu0 0.0
    %2142 = vmatprep.subr.mxu0 0.0
    %2143 = vmatpush1.msra.mxu0 0.0
    %2144 = vmatprep.subr.mxu0 0.0
    %2145 = vmatpush1.msra.mxu0 0.0
    %2146 = vmatprep.subr.mxu0 0.0
    %2147 = vmatpush1.msra.mxu0 0.0
    %2148 = vmatprep.subr.mxu0 0.0
    %2149 = vmatpush1.msra.mxu0 0.0
    %2150 = vmatprep.subr.mxu0 0.0
    %2151 = vmatpush1.msra.mxu0 0.0
    %2152 = vmatprep.subr.mxu0 0.0
    %2153 = vmatpush1.msra.mxu0 0.0
    %2154 = vmatprep.subr.mxu0 0.0
    %2155 = vmatpush1.msra.mxu0 0.0
    %2156 = vmatprep.subr.mxu0 0.0
    %2157 = vmatpush1.msra.mxu0 %v2116
    %2158 = vmatprep.subr.mxu0 0.0
    %2159 = vmatpush1.msra.mxu0 %v2115
    %2160 = vmatprep.subr.mxu0 0.0
    %2161 = vmatpush1.msra.mxu0 %v2114
    %2162 = vmatprep.subr.mxu0 0.0
    %2163 = vmatpush1.msra.mxu0 %v2113
    %2164 = vmatprep.subr.mxu0 0.0
    %2165 = vmatpush2.msra.mxu0 0.0
    %2166 = vmatprep.subr.mxu0 0.0
    %2167 = vmatpush2.msra.mxu0 0.0
    %2168 = vmatprep.subr.mxu0 0.0
    %2169 = vmatpush2.msra.mxu0 0.0
    %2170 = vmatprep.subr.mxu0 0.0
    %2171 = vmatpush2.msra.mxu0 0.0
    %2172 = vmatprep.subr.mxu0 0.0
    %2173 = vmatpush2.msra.mxu0 0.0
    %2174 = vmatprep.subr.mxu0 0.0
    %2175 = vmatpush2.msra.mxu0 0.0
    %2176 = vmatprep.subr.mxu0 0.0
    %2177 = vmatpush2.msra.mxu0 0.0
    %2178 = vmatprep.subr.mxu0 0.0
    %2179 = vmatpush2.msra.mxu0 0.0
    %2180 = vmatprep.subr.mxu0 0.0
    %2181 = vmatpush2.msra.mxu0 0.0
    %2182 = vmatprep.subr.mxu0 0.0
    %2183 = vmatpush2.msra.mxu0 0.0
    %2184 = vmatprep.subr.mxu0 0.0
    %2185 = vmatpush2.msra.mxu0 0.0
    %2186 = vmatprep.subr.mxu0 0.0
    %2187 = vmatpush2.msra.mxu0 0.0
    %2188 = vmatprep.subr.mxu0 0.0
    %2189 = vmatpush2.msra.mxu0 0.0
    %2190 = vmatprep.subr.mxu0 0.0
    %2191 = vmatpush2.msra.mxu0 0.0
    %2192 = vmatprep.subr.mxu0 0.0
    %2193 = vmatpush2.msra.mxu0 0.0
    %2194 = vmatprep.subr.mxu0 0.0
    %2195 = vmatpush2.msra.mxu0 0.0
    %2196 = vmatprep.mubr.f32.mxu0 0.0
    %2197 = vmatmul.mubr.f32.gmra.mxu0 %v113
    %v2198 = vpop.f32.mrf.mxu0
    %v2199 = vadd.f32 0.0, %v2198
    %v2200 = vpop.f32.mrf.mxu0
    %2201 = vmatprep.mubr.f32.mxu0 0.0
    %2202 = vmatmul.mubr.f32.gmra.mxu0 %v116
    %v2203 = vpop.f32.mrf.mxu0
    %v2204 = vadd.f32 0.0, %v2203
    %v2205 = vpop.f32.mrf.mxu0
    %2206 = vmatprep.mubr.f32.mxu0 0.0
    %2207 = vmatmul.mubr.f32.gmra.mxu0 %v119
    %v2208 = vpop.f32.mrf.mxu0
    %v2209 = vadd.f32 0.0, %v2208
    %v2210 = vpop.f32.mrf.mxu0
    %2211 = vmatprep.mubr.f32.mxu0 0.0
    %2212 = vmatmul.mubr.f32.gmra.mxu0 %v122
    %v2213 = vpop.f32.mrf.mxu0
    %v2214 = vadd.f32 0.0, %v2213
    %v2215 = vpop.f32.mrf.mxu0
    %2216 = vdwg.mxu0
    %2217 = vmatprep.subr.mxu0 0.0
    %2218 = vmatpush1.msra.mxu0 0.0
    %2219 = vmatprep.subr.mxu0 0.0
    %2220 = vmatpush1.msra.mxu0 0.0
    %2221 = vmatprep.subr.mxu0 0.0
    %2222 = vmatpush1.msra.mxu0 0.0
    %2223 = vmatprep.subr.mxu0 0.0
    %2224 = vmatpush1.msra.mxu0 0.0
    %2225 = vmatprep.subr.mxu0 0.0
    %2226 = vmatpush1.msra.mxu0 0.0
    %2227 = vmatprep.subr.mxu0 0.0
    %2228 = vmatpush1.msra.mxu0 0.0
    %2229 = vmatprep.subr.mxu0 0.0
    %2230 = vmatpush1.msra.mxu0 0.0
    %2231 = vmatprep.subr.mxu0 0.0
    %2232 = vmatpush1.msra.mxu0 0.0
    %2233 = vmatprep.subr.mxu0 0.0
    %2234 = vmatpush1.msra.mxu0 0.0
    %2235 = vmatprep.subr.mxu0 0.0
    %2236 = vmatpush1.msra.mxu0 0.0
    %2237 = vmatprep.subr.mxu0 0.0
    %2238 = vmatpush1.msra.mxu0 0.0
    %2239 = vmatprep.subr.mxu0 0.0
    %2240 = vmatpush1.msra.mxu0 0.0
    %2241 = vmatprep.subr.mxu0 0.0
    %2242 = vmatpush1.msra.mxu0 %v2120
    %2243 = vmatprep.subr.mxu0 0.0
    %2244 = vmatpush1.msra.mxu0 %v2119
    %2245 = vmatprep.subr.mxu0 0.0
    %2246 = vmatpush1.msra.mxu0 %v2118
    %2247 = vmatprep.subr.mxu0 0.0
    %2248 = vmatpush1.msra.mxu0 %v2117
    %2249 = vmatprep.subr.mxu0 0.0
    %2250 = vmatpush2.msra.mxu0 0.0
    %2251 = vmatprep.subr.mxu0 0.0
    %2252 = vmatpush2.msra.mxu0 0.0
    %2253 = vmatprep.subr.mxu0 0.0
    %2254 = vmatpush2.msra.mxu0 0.0
    %2255 = vmatprep.subr.mxu0 0.0
    %2256 = vmatpush2.msra.mxu0 0.0
    %2257 = vmatprep.subr.mxu0 0.0
    %2258 = vmatpush2.msra.mxu0 0.0
    %2259 = vmatprep.subr.mxu0 0.0
    %2260 = vmatpush2.msra.mxu0 0.0
    %2261 = vmatprep.subr.mxu0 0.0
    %2262 = vmatpush2.msra.mxu0 0.0
    %2263 = vmatprep.subr.mxu0 0.0
    %2264 = vmatpush2.msra.mxu0 0.0
    %2265 = vmatprep.subr.mxu0 0.0
    %2266 = vmatpush2.msra.mxu0 0.0
    %2267 = vmatprep.subr.mxu0 0.0
    %2268 = vmatpush2.msra.mxu0 0.0
    %2269 = vmatprep.subr.mxu0 0.0
    %2270 = vmatpush2.msra.mxu0 0.0
    %2271 = vmatprep.subr.mxu0 0.0
    %2272 = vmatpush2.msra.mxu0 0.0
    %2273 = vmatprep.subr.mxu0 0.0
    %2274 = vmatpush2.msra.mxu0 0.0
    %2275 = vmatprep.subr.mxu0 0.0
    %2276 = vmatpush2.msra.mxu0 0.0
    %2277 = vmatprep.subr.mxu0 0.0
    %2278 = vmatpush2.msra.mxu0 0.0
    %2279 = vmatprep.subr.mxu0 0.0
    %2280 = vmatpush2.msra.mxu0 0.0
    %2281 = vmatprep.mubr.f32.mxu0 0.0
    %2282 = vmatmul.mubr.f32.gmra.mxu0 %v210
    %v2283 = vpop.f32.mrf.mxu0
    %v2284 = vadd.f32 0.0, %v2283
    %v2285 = vpop.f32.mrf.mxu0
    %2286 = vmatprep.mubr.f32.mxu0 0.0
    %2287 = vmatmul.mubr.f32.gmra.mxu0 %v213
    %v2288 = vpop.f32.mrf.mxu0
    %v2289 = vadd.f32 0.0, %v2288
    %v2290 = vpop.f32.mrf.mxu0
    %2291 = vmatprep.mubr.f32.mxu0 0.0
    %2292 = vmatmul.mubr.f32.gmra.mxu0 %v216
    %v2293 = vpop.f32.mrf.mxu0
    %v2294 = vadd.f32 0.0, %v2293
    %v2295 = vpop.f32.mrf.mxu0
    %2296 = vmatprep.mubr.f32.mxu0 0.0
    %2297 = vmatmul.mubr.f32.gmra.mxu0 %v219
    %v2298 = vpop.f32.mrf.mxu0
    %v2299 = vadd.f32 0.0, %v2298
    %v2300 = vpop.f32.mrf.mxu0
    %2301 = vdwg.mxu0
    %v2302 = vmul.f32 %v2199, %v92
    %v2303 = vmul.f32 %v2204, %v94
    %v2304 = vmul.f32 %v2209, %v96
    %v2305 = vmul.f32 %v2214, %v98
    %v2306 = vmul.f32 %v2284, %v100
    %v2307 = vmul.f32 %v2289, %v102
    %v2308 = vmul.f32 %v2294, %v104
    %v2309 = vmul.f32 %v2299, %v106
    %2318 = vrot.lane.b32.xlu0 %v2113, 32
    %v2319 = vpop.permute.xlu0 %2318
    %2320 = vrot.lane.b32.xlu0 %v2114, 32
    %v2321 = vpop.permute.xlu0 %2320
    %2322 = vrot.lane.b32.xlu0 %v2115, 32
    %v2323 = vpop.permute.xlu0 %2322
    %2324 = vrot.lane.b32.xlu0 %v2116, 32
    %v2325 = vpop.permute.xlu0 %2324
    %2326 = vrot.lane.b32.xlu0 %v2117, 32
    %v2327 = vpop.permute.xlu0 %2326
    %2328 = vrot.lane.b32.xlu0 %v2118, 32
    %v2329 = vpop.permute.xlu0 %2328
    %2330 = vrot.lane.b32.xlu0 %v2119, 32
    %v2331 = vpop.permute.xlu0 %2330
    %2332 = vrot.lane.b32.xlu0 %v2120, 32
    %v2333 = vpop.permute.xlu0 %2332
    %v2342 = vsel %vm58, %v2302, %v2319
    %v2343 = vsel %vm58, %v2303, %v2321
    %v2344 = vsel %vm58, %v2304, %v2323
    %v2345 = vsel %vm58, %v2305, %v2325
    %v2346 = vsel %vm58, %v2306, %v2327
    %v2347 = vsel %vm58, %v2307, %v2329
    %v2348 = vsel %vm58, %v2308, %v2331
    %v2349 = vsel %vm58, %v2309, %v2333
    %v2351 = vsel %vm897, %v2342, 0
    %v2354 = vsel %vm897, %v2343, 0
    %v2357 = vsel %vm897, %v2344, 0
    %v2360 = vsel %vm897, %v2345, 0
    %v2363 = vsel %vm897, %v2346, 0
    %v2366 = vsel %vm897, %v2347, 0
    %v2369 = vsel %vm897, %v2348, 0
    %v2372 = vsel %vm897, %v2349, 0
    %2374 = vmatprep.subr.mxu0 0.0
    %2375 = vmatpush1.msra.mxu0 0.0
    %2376 = vmatprep.subr.mxu0 0.0
    %2377 = vmatpush1.msra.mxu0 0.0
    %2378 = vmatprep.subr.mxu0 0.0
    %2379 = vmatpush1.msra.mxu0 0.0
    %2380 = vmatprep.subr.mxu0 0.0
    %2381 = vmatpush1.msra.mxu0 0.0
    %2382 = vmatprep.subr.mxu0 0.0
    %2383 = vmatpush1.msra.mxu0 0.0
    %2384 = vmatprep.subr.mxu0 0.0
    %2385 = vmatpush1.msra.mxu0 0.0
    %2386 = vmatprep.subr.mxu0 0.0
    %2387 = vmatpush1.msra.mxu0 0.0
    %2388 = vmatprep.subr.mxu0 0.0
    %2389 = vmatpush1.msra.mxu0 0.0
    %2390 = vmatprep.subr.mxu0 0.0
    %2391 = vmatpush1.msra.mxu0 %v2128
    %2392 = vmatprep.subr.mxu0 0.0
    %2393 = vmatpush1.msra.mxu0 %v2127
    %2394 = vmatprep.subr.mxu0 0.0
    %2395 = vmatpush1.msra.mxu0 %v2126
    %2396 = vmatprep.subr.mxu0 0.0
    %2397 = vmatpush1.msra.mxu0 %v2125
    %2398 = vmatprep.subr.mxu0 0.0
    %2399 = vmatpush1.msra.mxu0 %v2124
    %2400 = vmatprep.subr.mxu0 0.0
    %2401 = vmatpush1.msra.mxu0 %v2123
    %2402 = vmatprep.subr.mxu0 0.0
    %2403 = vmatpush1.msra.mxu0 %v2122
    %2404 = vmatprep.subr.mxu0 0.0
    %2405 = vmatpush1.msra.mxu0 %v2121
    %2406 = vmatprep.subr.mxu0 0.0
    %2407 = vmatpush2.msra.mxu0 0.0
    %2408 = vmatprep.subr.mxu0 0.0
    %2409 = vmatpush2.msra.mxu0 0.0
    %2410 = vmatprep.subr.mxu0 0.0
    %2411 = vmatpush2.msra.mxu0 0.0
    %2412 = vmatprep.subr.mxu0 0.0
    %2413 = vmatpush2.msra.mxu0 0.0
    %2414 = vmatprep.subr.mxu0 0.0
    %2415 = vmatpush2.msra.mxu0 0.0
    %2416 = vmatprep.subr.mxu0 0.0
    %2417 = vmatpush2.msra.mxu0 0.0
    %2418 = vmatprep.subr.mxu0 0.0
    %2419 = vmatpush2.msra.mxu0 0.0
    %2420 = vmatprep.subr.mxu0 0.0
    %2421 = vmatpush2.msra.mxu0 0.0
    %2422 = vmatprep.subr.mxu0 0.0
    %2423 = vmatpush2.msra.mxu0 0.0
    %2424 = vmatprep.subr.mxu0 0.0
    %2425 = vmatpush2.msra.mxu0 0.0
    %2426 = vmatprep.subr.mxu0 0.0
    %2427 = vmatpush2.msra.mxu0 0.0
    %2428 = vmatprep.subr.mxu0 0.0
    %2429 = vmatpush2.msra.mxu0 0.0
    %2430 = vmatprep.subr.mxu0 0.0
    %2431 = vmatpush2.msra.mxu0 0.0
    %2432 = vmatprep.subr.mxu0 0.0
    %2433 = vmatpush2.msra.mxu0 0.0
    %2434 = vmatprep.subr.mxu0 0.0
    %2435 = vmatpush2.msra.mxu0 0.0
    %2436 = vmatprep.subr.mxu0 0.0
    %2437 = vmatpush2.msra.mxu0 0.0
    %2438 = vmatprep.mubr.f32.mxu0 0.0
    %2439 = vmatmul.mubr.f32.gmra.mxu0 %v2351
    %v2440 = vpop.f32.mrf.mxu0
    %v2441 = vadd.f32 0.0, %v2440
    %v2442 = vpop.f32.mrf.mxu0
    %2443 = vmatprep.mubr.f32.mxu0 0.0
    %2444 = vmatmul.mubr.f32.gmra.mxu0 %v2354
    %v2445 = vpop.f32.mrf.mxu0
    %v2446 = vadd.f32 0.0, %v2445
    %v2447 = vpop.f32.mrf.mxu0
    %2448 = vmatprep.mubr.f32.mxu0 0.0
    %2449 = vmatmul.mubr.f32.gmra.mxu0 %v2357
    %v2450 = vpop.f32.mrf.mxu0
    %v2451 = vadd.f32 0.0, %v2450
    %v2452 = vpop.f32.mrf.mxu0
    %2453 = vmatprep.mubr.f32.mxu0 0.0
    %2454 = vmatmul.mubr.f32.gmra.mxu0 %v2360
    %v2455 = vpop.f32.mrf.mxu0
    %v2456 = vadd.f32 0.0, %v2455
    %v2457 = vpop.f32.mrf.mxu0
    %2458 = vmatprep.mubr.f32.mxu0 0.0
    %2459 = vmatmul.mubr.f32.gmra.mxu0 %v2363
    %v2460 = vpop.f32.mrf.mxu0
    %v2461 = vadd.f32 0.0, %v2460
    %v2462 = vpop.f32.mrf.mxu0
    %2463 = vmatprep.mubr.f32.mxu0 0.0
    %2464 = vmatmul.mubr.f32.gmra.mxu0 %v2366
    %v2465 = vpop.f32.mrf.mxu0
    %v2466 = vadd.f32 0.0, %v2465
    %v2467 = vpop.f32.mrf.mxu0
    %2468 = vmatprep.mubr.f32.mxu0 0.0
    %2469 = vmatmul.mubr.f32.gmra.mxu0 %v2369
    %v2470 = vpop.f32.mrf.mxu0
    %v2471 = vadd.f32 0.0, %v2470
    %v2472 = vpop.f32.mrf.mxu0
    %2473 = vmatprep.mubr.f32.mxu0 0.0
    %2474 = vmatmul.mubr.f32.gmra.mxu0 %v2372
    %v2475 = vpop.f32.mrf.mxu0
    %v2476 = vadd.f32 0.0, %v2475
    %v2477 = vpop.f32.mrf.mxu0
    %2478 = vdwg.mxu0
    %v2479 = vlaneseq
    %v2480 = vshrl.u32 %v2479, 7
    %v2481 = vsub.s32 0, %v2480
    %v2482 = vrot.slane %v2129, %v2481
    %v2483 = vadd.f32 %v2441, %v2482
    %v2484 = vadd.f32 %v2446, %v2482
    %v2485 = vadd.f32 %v2451, %v2482
    %v2486 = vadd.f32 %v2456, %v2482
    %v2487 = vadd.f32 %v2461, %v2482
    %v2488 = vadd.f32 %v2466, %v2482
    %v2489 = vadd.f32 %v2471, %v2482
    %v2490 = vadd.f32 %v2476, %v2482
    %v2491 = vmul.f32 %v2483, %v504
    %v2492 = vmul.f32 %v2484, %v509
    %v2493 = vmul.f32 %v2485, %v514
    %v2494 = vmul.f32 %v2486, %v519
    %v2495 = vmul.f32 %v2487, %v524
    %v2496 = vmul.f32 %v2488, %v529
    %v2497 = vmul.f32 %v2489, %v534
    %v2498 = vmul.f32 %v2490, %v539
    %v2499 = vmax.f32 %v2491, 0.0
    %v2500 = vmax.f32 %v2492, 0.0
    %v2501 = vmax.f32 %v2493, 0.0
    %v2502 = vmax.f32 %v2494, 0.0
    %v2503 = vmax.f32 %v2495, 0.0
    %v2504 = vmax.f32 %v2496, 0.0
    %v2505 = vmax.f32 %v2497, 0.0
    %v2506 = vmax.f32 %v2498, 0.0
    %v2507 = vsel %vm58, %v2499, 0.0
    %v2508 = vsel %vm58, %v2500, 0.0
    %v2509 = vadd.f32 %v2507, %v2508
    %v2510 = vsel %vm58, %v2501, 0.0
    %v2511 = vadd.f32 %v2509, %v2510
    %v2512 = vsel %vm58, %v2502, 0.0
    %v2513 = vadd.f32 %v2511, %v2512
    %v2514 = vrot.slane %v2513, 4
    %v2515 = vadd.f32 %v2513, %v2514
    %v2516 = vrot.slane %v2515, 2
    %v2517 = vadd.f32 %v2515, %v2516
    %v2518 = vrot.slane %v2517, 1
    %v2519 = vadd.f32 %v2517, %v2518
    %v2520 = vsel %vm58, %v2503, 0.0
    %v2521 = vsel %vm58, %v2504, 0.0
    %v2522 = vadd.f32 %v2520, %v2521
    %v2523 = vsel %vm58, %v2505, 0.0
    %v2524 = vadd.f32 %v2522, %v2523
    %v2525 = vsel %vm58, %v2506, 0.0
    %v2526 = vadd.f32 %v2524, %v2525
    %v2527 = vrot.slane %v2526, 4
    %v2528 = vadd.f32 %v2526, %v2527
    %v2529 = vrot.slane %v2528, 2
    %v2530 = vadd.f32 %v2528, %v2529
    %v2531 = vrot.slane %v2530, 1
    %v2532 = vadd.f32 %v2530, %v2531
    %v2533 = vsel %vm58, %v2519, 0.0
    %v2534 = vsel %vm58, %v2532, 0.0
    %v2535 = vadd.f32 %v2533, %v2534
    %v2536 = vmul.f32 %v2535, %v586
    %v2537 = vsub.f32 %v2499, %v2536
    %v2538 = vsub.f32 %v2500, %v2536
    %v2539 = vsub.f32 %v2501, %v2536
    %v2540 = vsub.f32 %v2502, %v2536
    %v2541 = vsub.f32 %v2503, %v2536
    %v2542 = vsub.f32 %v2504, %v2536
    %v2543 = vsub.f32 %v2505, %v2536
    %v2544 = vsub.f32 %v2506, %v2536
    %v2545 = vmul.f32 %v2537, %v2537
    %v2546 = vmul.f32 %v2538, %v2538
    %v2547 = vmul.f32 %v2539, %v2539
    %v2548 = vmul.f32 %v2540, %v2540
    %v2549 = vmul.f32 %v2541, %v2541
    %v2550 = vmul.f32 %v2542, %v2542
    %v2551 = vmul.f32 %v2543, %v2543
    %v2552 = vmul.f32 %v2544, %v2544
    %v2553 = vsel %vm58, %v2545, 0.0
    %v2554 = vsel %vm58, %v2546, 0.0
    %v2555 = vadd.f32 %v2553, %v2554
    %v2556 = vsel %vm58, %v2547, 0.0
    %v2557 = vadd.f32 %v2555, %v2556
    %v2558 = vsel %vm58, %v2548, 0.0
    %v2559 = vadd.f32 %v2557, %v2558
    %v2560 = vrot.slane %v2559, 4
    %v2561 = vadd.f32 %v2559, %v2560
    %v2562 = vrot.slane %v2561, 2
    %v2563 = vadd.f32 %v2561, %v2562
    %v2564 = vrot.slane %v2563, 1
    %v2565 = vadd.f32 %v2563, %v2564
    %v2566 = vsel %vm58, %v2549, 0.0
    %v2567 = vsel %vm58, %v2550, 0.0
    %v2568 = vadd.f32 %v2566, %v2567
    %v2569 = vsel %vm58, %v2551, 0.0
    %v2570 = vadd.f32 %v2568, %v2569
    %v2571 = vsel %vm58, %v2552, 0.0
    %v2572 = vadd.f32 %v2570, %v2571
    %v2573 = vrot.slane %v2572, 4
    %v2574 = vadd.f32 %v2572, %v2573
    %v2575 = vrot.slane %v2574, 2
    %v2576 = vadd.f32 %v2574, %v2575
    %v2577 = vrot.slane %v2576, 1
    %v2578 = vadd.f32 %v2576, %v2577
    %v2579 = vsel %vm58, %v2565, 0.0
    %v2580 = vsel %vm58, %v2578, 0.0
    %v2581 = vadd.f32 %v2579, %v2580
    %v2582 = vmul.f32 %v2581, %v586
    %v2583 = vadd.f32 %v2582, 1e-05
    %v2584 = vrsqrt.pop %v2583
    %v2585 = vmul.f32 %v2537, %v2584
    %v2586 = vmul.f32 %v2538, %v2584
    %v2587 = vmul.f32 %v2539, %v2584
    %v2588 = vmul.f32 %v2540, %v2584
    %v2589 = vmul.f32 %v2541, %v2584
    %v2590 = vmul.f32 %v2542, %v2584
    %v2591 = vmul.f32 %v2543, %v2584
    %v2592 = vmul.f32 %v2544, %v2584
    %v2593 = vlaneseq
    %v2594 = vshrl.u32 %v2593, 7
    %v2595 = vsub.s32 0, %v2594
    %v2596 = vrot.slane %v2130, %v2595
    %v2597 = vmul.f32 %v2585, %v2596
    %v2598 = vmul.f32 %v2586, %v2596
    %v2599 = vmul.f32 %v2587, %v2596
    %v2600 = vmul.f32 %v2588, %v2596
    %v2601 = vmul.f32 %v2589, %v2596
    %v2602 = vmul.f32 %v2590, %v2596
    %v2603 = vmul.f32 %v2591, %v2596
    %v2604 = vmul.f32 %v2592, %v2596
    %v2605 = vlaneseq
    %v2606 = vshrl.u32 %v2605, 7
    %v2607 = vsub.s32 0, %v2606
    %v2608 = vrot.slane %v2131, %v2607
    %v2609 = vadd.f32 %v2597, %v2608
    %v2610 = vadd.f32 %v2598, %v2608
    %v2611 = vadd.f32 %v2599, %v2608
    %v2612 = vadd.f32 %v2600, %v2608
    %v2613 = vadd.f32 %v2601, %v2608
    %v2614 = vadd.f32 %v2602, %v2608
    %v2615 = vadd.f32 %v2603, %v2608
    %v2616 = vadd.f32 %v2604, %v2608
    %v2617 = vld [vmem:[#allocation2 + $0x130] sm:$0xff]
    %v2618 = vld [vmem:[#allocation2 + $0x138] sm:$0xff]
    %v2619 = vld [vmem:[#allocation2 + $0x140] sm:$0xff]
    %v2620 = vld [vmem:[#allocation2 + $0x148] sm:$0xff]
    %v2621 = vld [vmem:[#allocation2 + $0x150] sm:$0xff]
    %v2622 = vld [vmem:[#allocation2 + $0x158] sm:$0xff]
    %v2623 = vld [vmem:[#allocation2 + $0x160] sm:$0xff]
    %v2624 = vld [vmem:[#allocation2 + $0x168] sm:$0xff]
    %v2625 = vld [vmem:[#allocation2 + $0x170] sm:$0x1]
    %v2626 = vld [vmem:[#allocation2 + $0x171] sm:$0x1]
    %v2627 = vld [vmem:[#allocation2 + $0x172] sm:$0x1]
    %2628 = vmatprep.subr.mxu0 0.0
    %2629 = vmatpush1.msra.mxu0 0.0
    %2630 = vmatprep.subr.mxu0 0.0
    %2631 = vmatpush1.msra.mxu0 0.0
    %2632 = vmatprep.subr.mxu0 0.0
    %2633 = vmatpush1.msra.mxu0 0.0
    %2634 = vmatprep.subr.mxu0 0.0
    %2635 = vmatpush1.msra.mxu0 0.0
    %2636 = vmatprep.subr.mxu0 0.0
    %2637 = vmatpush1.msra.mxu0 0.0
    %2638 = vmatprep.subr.mxu0 0.0
    %2639 = vmatpush1.msra.mxu0 0.0
    %2640 = vmatprep.subr.mxu0 0.0
    %2641 = vmatpush1.msra.mxu0 0.0
    %2642 = vmatprep.subr.mxu0 0.0
    %2643 = vmatpush1.msra.mxu0 0.0
    %2644 = vmatprep.subr.mxu0 0.0
    %2645 = vmatpush1.msra.mxu0 0.0
    %2646 = vmatprep.subr.mxu0 0.0
    %2647 = vmatpush1.msra.mxu0 0.0
    %2648 = vmatprep.subr.mxu0 0.0
    %2649 = vmatpush1.msra.mxu0 0.0
    %2650 = vmatprep.subr.mxu0 0.0
    %2651 = vmatpush1.msra.mxu0 0.0
    %2652 = vmatprep.subr.mxu0 0.0
    %2653 = vmatpush1.msra.mxu0 %v2612
    %2654 = vmatprep.subr.mxu0 0.0
    %2655 = vmatpush1.msra.mxu0 %v2611
    %2656 = vmatprep.subr.mxu0 0.0
    %2657 = vmatpush1.msra.mxu0 %v2610
    %2658 = vmatprep.subr.mxu0 0.0
    %2659 = vmatpush1.msra.mxu0 %v2609
    %2660 = vmatprep.subr.mxu0 0.0
    %2661 = vmatpush2.msra.mxu0 0.0
    %2662 = vmatprep.subr.mxu0 0.0
    %2663 = vmatpush2.msra.mxu0 0.0
    %2664 = vmatprep.subr.mxu0 0.0
    %2665 = vmatpush2.msra.mxu0 0.0
    %2666 = vmatprep.subr.mxu0 0.0
    %2667 = vmatpush2.msra.mxu0 0.0
    %2668 = vmatprep.subr.mxu0 0.0
    %2669 = vmatpush2.msra.mxu0 0.0
    %2670 = vmatprep.subr.mxu0 0.0
    %2671 = vmatpush2.msra.mxu0 0.0
    %2672 = vmatprep.subr.mxu0 0.0
    %2673 = vmatpush2.msra.mxu0 0.0
    %2674 = vmatprep.subr.mxu0 0.0
    %2675 = vmatpush2.msra.mxu0 0.0
    %2676 = vmatprep.subr.mxu0 0.0
    %2677 = vmatpush2.msra.mxu0 0.0
    %2678 = vmatprep.subr.mxu0 0.0
    %2679 = vmatpush2.msra.mxu0 0.0
    %2680 = vmatprep.subr.mxu0 0.0
    %2681 = vmatpush2.msra.mxu0 0.0
    %2682 = vmatprep.subr.mxu0 0.0
    %2683 = vmatpush2.msra.mxu0 0.0
    %2684 = vmatprep.subr.mxu0 0.0
    %2685 = vmatpush2.msra.mxu0 0.0
    %2686 = vmatprep.subr.mxu0 0.0
    %2687 = vmatpush2.msra.mxu0 0.0
    %2688 = vmatprep.subr.mxu0 0.0
    %2689 = vmatpush2.msra.mxu0 0.0
    %2690 = vmatprep.subr.mxu0 0.0
    %2691 = vmatpush2.msra.mxu0 0.0
    %2692 = vmatprep.mubr.f32.mxu0 0.0
    %2693 = vmatmul.mubr.f32.gmra.mxu0 %v113
    %v2694 = vpop.f32.mrf.mxu0
    %v2695 = vadd.f32 0.0, %v2694
    %v2696 = vpop.f32.mrf.mxu0
    %2697 = vmatprep.mubr.f32.mxu0 0.0
    %2698 = vmatmul.mubr.f32.gmra.mxu0 %v116
    %v2699 = vpop.f32.mrf.mxu0
    %v2700 = vadd.f32 0.0, %v2699
    %v2701 = vpop.f32.mrf.mxu0
    %2702 = vmatprep.mubr.f32.mxu0 0.0
    %2703 = vmatmul.mubr.f32.gmra.mxu0 %v119
    %v2704 = vpop.f32.mrf.mxu0
    %v2705 = vadd.f32 0.0, %v2704
    %v2706 = vpop.f32.mrf.mxu0
    %2707 = vmatprep.mubr.f32.mxu0 0.0
    %2708 = vmatmul.mubr.f32.gmra.mxu0 %v122
    %v2709 = vpop.f32.mrf.mxu0
    %v2710 = vadd.f32 0.0, %v2709
    %v2711 = vpop.f32.mrf.mxu0
    %2712 = vdwg.mxu0
    %2713 = vmatprep.subr.mxu0 0.0
    %2714 = vmatpush1.msra.mxu0 0.0
    %2715 = vmatprep.subr.mxu0 0.0
    %2716 = vmatpush1.msra.mxu0 0.0
    %2717 = vmatprep.subr.mxu0 0.0
    %2718 = vmatpush1.msra.mxu0 0.0
    %2719 = vmatprep.subr.mxu0 0.0
    %2720 = vmatpush1.msra.mxu0 0.0
    %2721 = vmatprep.subr.mxu0 0.0
    %2722 = vmatpush1.msra.mxu0 0.0
    %2723 = vmatprep.subr.mxu0 0.0
    %2724 = vmatpush1.msra.mxu0 0.0
    %2725 = vmatprep.subr.mxu0 0.0
    %2726 = vmatpush1.msra.mxu0 0.0
    %2727 = vmatprep.subr.mxu0 0.0
    %2728 = vmatpush1.msra.mxu0 0.0
    %2729 = vmatprep.subr.mxu0 0.0
    %2730 = vmatpush1.msra.mxu0 0.0
    %2731 = vmatprep.subr.mxu0 0.0
    %2732 = vmatpush1.msra.mxu0 0.0
    %2733 = vmatprep.subr.mxu0 0.0
    %2734 = vmatpush1.msra.mxu0 0.0
    %2735 = vmatprep.subr.mxu0 0.0
    %2736 = vmatpush1.msra.mxu0 0.0
    %2737 = vmatprep.subr.mxu0 0.0
    %2738 = vmatpush1.msra.mxu0 %v2616
    %2739 = vmatprep.subr.mxu0 0.0
    %2740 = vmatpush1.msra.mxu0 %v2615
    %2741 = vmatprep.subr.mxu0 0.0
    %2742 = vmatpush1.msra.mxu0 %v2614
    %2743 = vmatprep.subr.mxu0 0.0
    %2744 = vmatpush1.msra.mxu0 %v2613
    %2745 = vmatprep.subr.mxu0 0.0
    %2746 = vmatpush2.msra.mxu0 0.0
    %2747 = vmatprep.subr.mxu0 0.0
    %2748 = vmatpush2.msra.mxu0 0.0
    %2749 = vmatprep.subr.mxu0 0.0
    %2750 = vmatpush2.msra.mxu0 0.0
    %2751 = vmatprep.subr.mxu0 0.0
    %2752 = vmatpush2.msra.mxu0 0.0
    %2753 = vmatprep.subr.mxu0 0.0
    %2754 = vmatpush2.msra.mxu0 0.0
    %2755 = vmatprep.subr.mxu0 0.0
    %2756 = vmatpush2.msra.mxu0 0.0
    %2757 = vmatprep.subr.mxu0 0.0
    %2758 = vmatpush2.msra.mxu0 0.0
    %2759 = vmatprep.subr.mxu0 0.0
    %2760 = vmatpush2.msra.mxu0 0.0
    %2761 = vmatprep.subr.mxu0 0.0
    %2762 = vmatpush2.msra.mxu0 0.0
    %2763 = vmatprep.subr.mxu0 0.0
    %2764 = vmatpush2.msra.mxu0 0.0
    %2765 = vmatprep.subr.mxu0 0.0
    %2766 = vmatpush2.msra.mxu0 0.0
    %2767 = vmatprep.subr.mxu0 0.0
    %2768 = vmatpush2.msra.mxu0 0.0
    %2769 = vmatprep.subr.mxu0 0.0
    %2770 = vmatpush2.msra.mxu0 0.0
    %2771 = vmatprep.subr.mxu0 0.0
    %2772 = vmatpush2.msra.mxu0 0.0
    %2773 = vmatprep.subr.mxu0 0.0
    %2774 = vmatpush2.msra.mxu0 0.0
    %2775 = vmatprep.subr.mxu0 0.0
    %2776 = vmatpush2.msra.mxu0 0.0
    %2777 = vmatprep.mubr.f32.mxu0 0.0
    %2778 = vmatmul.mubr.f32.gmra.mxu0 %v210
    %v2779 = vpop.f32.mrf.mxu0
    %v2780 = vadd.f32 0.0, %v2779
    %v2781 = vpop.f32.mrf.mxu0
    %2782 = vmatprep.mubr.f32.mxu0 0.0
    %2783 = vmatmul.mubr.f32.gmra.mxu0 %v213
    %v2784 = vpop.f32.mrf.mxu0
    %v2785 = vadd.f32 0.0, %v2784
    %v2786 = vpop.f32.mrf.mxu0
    %2787 = vmatprep.mubr.f32.mxu0 0.0
    %2788 = vmatmul.mubr.f32.gmra.mxu0 %v216
    %v2789 = vpop.f32.mrf.mxu0
    %v2790 = vadd.f32 0.0, %v2789
    %v2791 = vpop.f32.mrf.mxu0
    %2792 = vmatprep.mubr.f32.mxu0 0.0
    %2793 = vmatmul.mubr.f32.gmra.mxu0 %v219
    %v2794 = vpop.f32.mrf.mxu0
    %v2795 = vadd.f32 0.0, %v2794
    %v2796 = vpop.f32.mrf.mxu0
    %2797 = vdwg.mxu0
    %v2798 = vmul.f32 %v2695, %v92
    %v2799 = vmul.f32 %v2700, %v94
    %v2800 = vmul.f32 %v2705, %v96
    %v2801 = vmul.f32 %v2710, %v98
    %v2802 = vmul.f32 %v2780, %v100
    %v2803 = vmul.f32 %v2785, %v102
    %v2804 = vmul.f32 %v2790, %v104
    %v2805 = vmul.f32 %v2795, %v106
    %2814 = vrot.lane.b32.xlu0 %v2609, 32
    %v2815 = vpop.permute.xlu0 %2814
    %2816 = vrot.lane.b32.xlu0 %v2610, 32
    %v2817 = vpop.permute.xlu0 %2816
    %2818 = vrot.lane.b32.xlu0 %v2611, 32
    %v2819 = vpop.permute.xlu0 %2818
    %2820 = vrot.lane.b32.xlu0 %v2612, 32
    %v2821 = vpop.permute.xlu0 %2820
    %2822 = vrot.lane.b32.xlu0 %v2613, 32
    %v2823 = vpop.permute.xlu0 %2822
    %2824 = vrot.lane.b32.xlu0 %v2614, 32
    %v2825 = vpop.permute.xlu0 %2824
    %2826 = vrot.lane.b32.xlu0 %v2615, 32
    %v2827 = vpop.permute.xlu0 %2826
    %2828 = vrot.lane.b32.xlu0 %v2616, 32
    %v2829 = vpop.permute.xlu0 %2828
    %v2838 = vsel %vm58, %v2798, %v2815
    %v2839 = vsel %vm58, %v2799, %v2817
    %v2840 = vsel %vm58, %v2800, %v2819
    %v2841 = vsel %vm58, %v2801, %v2821
    %v2842 = vsel %vm58, %v2802, %v2823
    %v2843 = vsel %vm58, %v2803, %v2825
    %v2844 = vsel %vm58, %v2804, %v2827
    %v2845 = vsel %vm58, %v2805, %v2829
    %v2847 = vsel %vm897, %v2838, 0
    %v2850 = vsel %vm897, %v2839, 0
    %v2853 = vsel %vm897, %v2840, 0
    %v2856 = vsel %vm897, %v2841, 0
    %v2859 = vsel %vm897, %v2842, 0
    %v2862 = vsel %vm897, %v2843, 0
    %v2865 = vsel %vm897, %v2844, 0
    %v2868 = vsel %vm897, %v2845, 0
    %2870 = vmatprep.subr.mxu0 0.0
    %2871 = vmatpush1.msra.mxu0 0.0
    %2872 = vmatprep.subr.mxu0 0.0
    %2873 = vmatpush1.msra.mxu0 0.0
    %2874 = vmatprep.subr.mxu0 0.0
    %2875 = vmatpush1.msra.mxu0 0.0
    %2876 = vmatprep.subr.mxu0 0.0
    %2877 = vmatpush1.msra.mxu0 0.0
    %2878 = vmatprep.subr.mxu0 0.0
    %2879 = vmatpush1.msra.mxu0 0.0
    %2880 = vmatprep.subr.mxu0 0.0
    %2881 = vmatpush1.msra.mxu0 0.0
    %2882 = vmatprep.subr.mxu0 0.0
    %2883 = vmatpush1.msra.mxu0 0.0
    %2884 = vmatprep.subr.mxu0 0.0
    %2885 = vmatpush1.msra.mxu0 0.0
    %2886 = vmatprep.subr.mxu0 0.0
    %2887 = vmatpush1.msra.mxu0 %v2624
    %2888 = vmatprep.subr.mxu0 0.0
    %2889 = vmatpush1.msra.mxu0 %v2623
    %2890 = vmatprep.subr.mxu0 0.0
    %2891 = vmatpush1.msra.mxu0 %v2622
    %2892 = vmatprep.subr.mxu0 0.0
    %2893 = vmatpush1.msra.mxu0 %v2621
    %2894 = vmatprep.subr.mxu0 0.0
    %2895 = vmatpush1.msra.mxu0 %v2620
    %2896 = vmatprep.subr.mxu0 0.0
    %2897 = vmatpush1.msra.mxu0 %v2619
    %2898 = vmatprep.subr.mxu0 0.0
    %2899 = vmatpush1.msra.mxu0 %v2618
    %2900 = vmatprep.subr.mxu0 0.0
    %2901 = vmatpush1.msra.mxu0 %v2617
    %2902 = vmatprep.subr.mxu0 0.0
    %2903 = vmatpush2.msra.mxu0 0.0
    %2904 = vmatprep.subr.mxu0 0.0
    %2905 = vmatpush2.msra.mxu0 0.0
    %2906 = vmatprep.subr.mxu0 0.0
    %2907 = vmatpush2.msra.mxu0 0.0
    %2908 = vmatprep.subr.mxu0 0.0
    %2909 = vmatpush2.msra.mxu0 0.0
    %2910 = vmatprep.subr.mxu0 0.0
    %2911 = vmatpush2.msra.mxu0 0.0
    %2912 = vmatprep.subr.mxu0 0.0
    %2913 = vmatpush2.msra.mxu0 0.0
    %2914 = vmatprep.subr.mxu0 0.0
    %2915 = vmatpush2.msra.mxu0 0.0
    %2916 = vmatprep.subr.mxu0 0.0
    %2917 = vmatpush2.msra.mxu0 0.0
    %2918 = vmatprep.subr.mxu0 0.0
    %2919 = vmatpush2.msra.mxu0 0.0
    %2920 = vmatprep.subr.mxu0 0.0
    %2921 = vmatpush2.msra.mxu0 0.0
    %2922 = vmatprep.subr.mxu0 0.0
    %2923 = vmatpush2.msra.mxu0 0.0
    %2924 = vmatprep.subr.mxu0 0.0
    %2925 = vmatpush2.msra.mxu0 0.0
    %2926 = vmatprep.subr.mxu0 0.0
    %2927 = vmatpush2.msra.mxu0 0.0
    %2928 = vmatprep.subr.mxu0 0.0
    %2929 = vmatpush2.msra.mxu0 0.0
    %2930 = vmatprep.subr.mxu0 0.0
    %2931 = vmatpush2.msra.mxu0 0.0
    %2932 = vmatprep.subr.mxu0 0.0
    %2933 = vmatpush2.msra.mxu0 0.0
    %2934 = vmatprep.mubr.f32.mxu0 0.0
    %2935 = vmatmul.mubr.f32.gmra.mxu0 %v2847
    %v2936 = vpop.f32.mrf.mxu0
    %v2937 = vadd.f32 0.0, %v2936
    %v2938 = vpop.f32.mrf.mxu0
    %2939 = vmatprep.mubr.f32.mxu0 0.0
    %2940 = vmatmul.mubr.f32.gmra.mxu0 %v2850
    %v2941 = vpop.f32.mrf.mxu0
    %v2942 = vadd.f32 0.0, %v2941
    %v2943 = vpop.f32.mrf.mxu0
    %2944 = vmatprep.mubr.f32.mxu0 0.0
    %2945 = vmatmul.mubr.f32.gmra.mxu0 %v2853
    %v2946 = vpop.f32.mrf.mxu0
    %v2947 = vadd.f32 0.0, %v2946
    %v2948 = vpop.f32.mrf.mxu0
    %2949 = vmatprep.mubr.f32.mxu0 0.0
    %2950 = vmatmul.mubr.f32.gmra.mxu0 %v2856
    %v2951 = vpop.f32.mrf.mxu0
    %v2952 = vadd.f32 0.0, %v2951
    %v2953 = vpop.f32.mrf.mxu0
    %2954 = vmatprep.mubr.f32.mxu0 0.0
    %2955 = vmatmul.mubr.f32.gmra.mxu0 %v2859
    %v2956 = vpop.f32.mrf.mxu0
    %v2957 = vadd.f32 0.0, %v2956
    %v2958 = vpop.f32.mrf.mxu0
    %2959 = vmatprep.mubr.f32.mxu0 0.0
    %2960 = vmatmul.mubr.f32.gmra.mxu0 %v2862
    %v2961 = vpop.f32.mrf.mxu0
    %v2962 = vadd.f32 0.0, %v2961
    %v2963 = vpop.f32.mrf.mxu0
    %2964 = vmatprep.mubr.f32.mxu0 0.0
    %2965 = vmatmul.mubr.f32.gmra.mxu0 %v2865
    %v2966 = vpop.f32.mrf.mxu0
    %v2967 = vadd.f32 0.0, %v2966
    %v2968 = vpop.f32.mrf.mxu0
    %2969 = vmatprep.mubr.f32.mxu0 0.0
    %2970 = vmatmul.mubr.f32.gmra.mxu0 %v2868
    %v2971 = vpop.f32.mrf.mxu0
    %v2972 = vadd.f32 0.0, %v2971
    %v2973 = vpop.f32.mrf.mxu0
    %2974 = vdwg.mxu0
    %v2975 = vlaneseq
    %v2976 = vshrl.u32 %v2975, 7
    %v2977 = vsub.s32 0, %v2976
    %v2978 = vrot.slane %v2625, %v2977
    %v2979 = vadd.f32 %v2937, %v2978
    %v2980 = vadd.f32 %v2942, %v2978
    %v2981 = vadd.f32 %v2947, %v2978
    %v2982 = vadd.f32 %v2952, %v2978
    %v2983 = vadd.f32 %v2957, %v2978
    %v2984 = vadd.f32 %v2962, %v2978
    %v2985 = vadd.f32 %v2967, %v2978
    %v2986 = vadd.f32 %v2972, %v2978
    %v2987 = vmul.f32 %v2979, %v504
    %v2988 = vmul.f32 %v2980, %v509
    %v2989 = vmul.f32 %v2981, %v514
    %v2990 = vmul.f32 %v2982, %v519
    %v2991 = vmul.f32 %v2983, %v524
    %v2992 = vmul.f32 %v2984, %v529
    %v2993 = vmul.f32 %v2985, %v534
    %v2994 = vmul.f32 %v2986, %v539
    %v2995 = vmax.f32 %v2987, 0.0
    %v2996 = vmax.f32 %v2988, 0.0
    %v2997 = vmax.f32 %v2989, 0.0
    %v2998 = vmax.f32 %v2990, 0.0
    %v2999 = vmax.f32 %v2991, 0.0
    %v3000 = vmax.f32 %v2992, 0.0
    %v3001 = vmax.f32 %v2993, 0.0
    %v3002 = vmax.f32 %v2994, 0.0
    %v3003 = vsel %vm58, %v2995, 0.0
    %v3004 = vsel %vm58, %v2996, 0.0
    %v3005 = vadd.f32 %v3003, %v3004
    %v3006 = vsel %vm58, %v2997, 0.0
    %v3007 = vadd.f32 %v3005, %v3006
    %v3008 = vsel %vm58, %v2998, 0.0
    %v3009 = vadd.f32 %v3007, %v3008
    %v3010 = vrot.slane %v3009, 4
    %v3011 = vadd.f32 %v3009, %v3010
    %v3012 = vrot.slane %v3011, 2
    %v3013 = vadd.f32 %v3011, %v3012
    %v3014 = vrot.slane %v3013, 1
    %v3015 = vadd.f32 %v3013, %v3014
    %v3016 = vsel %vm58, %v2999, 0.0
    %v3017 = vsel %vm58, %v3000, 0.0
    %v3018 = vadd.f32 %v3016, %v3017
    %v3019 = vsel %vm58, %v3001, 0.0
    %v3020 = vadd.f32 %v3018, %v3019
    %v3021 = vsel %vm58, %v3002, 0.0
    %v3022 = vadd.f32 %v3020, %v3021
    %v3023 = vrot.slane %v3022, 4
    %v3024 = vadd.f32 %v3022, %v3023
    %v3025 = vrot.slane %v3024, 2
    %v3026 = vadd.f32 %v3024, %v3025
    %v3027 = vrot.slane %v3026, 1
    %v3028 = vadd.f32 %v3026, %v3027
    %v3029 = vsel %vm58, %v3015, 0.0
    %v3030 = vsel %vm58, %v3028, 0.0
    %v3031 = vadd.f32 %v3029, %v3030
    %v3032 = vmul.f32 %v3031, %v586
    %v3033 = vsub.f32 %v2995, %v3032
    %v3034 = vsub.f32 %v2996, %v3032
    %v3035 = vsub.f32 %v2997, %v3032
    %v3036 = vsub.f32 %v2998, %v3032
    %v3037 = vsub.f32 %v2999, %v3032
    %v3038 = vsub.f32 %v3000, %v3032
    %v3039 = vsub.f32 %v3001, %v3032
    %v3040 = vsub.f32 %v3002, %v3032
    %v3041 = vmul.f32 %v3033, %v3033
    %v3042 = vmul.f32 %v3034, %v3034
    %v3043 = vmul.f32 %v3035, %v3035
    %v3044 = vmul.f32 %v3036, %v3036
    %v3045 = vmul.f32 %v3037, %v3037
    %v3046 = vmul.f32 %v3038, %v3038
    %v3047 = vmul.f32 %v3039, %v3039
    %v3048 = vmul.f32 %v3040, %v3040
    %v3049 = vsel %vm58, %v3041, 0.0
    %v3050 = vsel %vm58, %v3042, 0.0
    %v3051 = vadd.f32 %v3049, %v3050
    %v3052 = vsel %vm58, %v3043, 0.0
    %v3053 = vadd.f32 %v3051, %v3052
    %v3054 = vsel %vm58, %v3044, 0.0
    %v3055 = vadd.f32 %v3053, %v3054
    %v3056 = vrot.slane %v3055, 4
    %v3057 = vadd.f32 %v3055, %v3056
    %v3058 = vrot.slane %v3057, 2
    %v3059 = vadd.f32 %v3057, %v3058
    %v3060 = vrot.slane %v3059, 1
    %v3061 = vadd.f32 %v3059, %v3060
    %v3062 = vsel %vm58, %v3045, 0.0
    %v3063 = vsel %vm58, %v3046, 0.0
    %v3064 = vadd.f32 %v3062, %v3063
    %v3065 = vsel %vm58, %v3047, 0.0
    %v3066 = vadd.f32 %v3064, %v3065
    %v3067 = vsel %vm58, %v3048, 0.0
    %v3068 = vadd.f32 %v3066, %v3067
    %v3069 = vrot.slane %v3068, 4
    %v3070 = vadd.f32 %v3068, %v3069
    %v3071 = vrot.slane %v3070, 2
    %v3072 = vadd.f32 %v3070, %v3071
    %v3073 = vrot.slane %v3072, 1
    %v3074 = vadd.f32 %v3072, %v3073
    %v3075 = vsel %vm58, %v3061, 0.0
    %v3076 = vsel %vm58, %v3074, 0.0
    %v3077 = vadd.f32 %v3075, %v3076
    %v3078 = vmul.f32 %v3077, %v586
    %v3079 = vadd.f32 %v3078, 1e-05
    %v3080 = vrsqrt.pop %v3079
    %v3081 = vmul.f32 %v3033, %v3080
    %v3082 = vmul.f32 %v3034, %v3080
    %v3083 = vmul.f32 %v3035, %v3080
    %v3084 = vmul.f32 %v3036, %v3080
    %v3085 = vmul.f32 %v3037, %v3080
    %v3086 = vmul.f32 %v3038, %v3080
    %v3087 = vmul.f32 %v3039, %v3080
    %v3088 = vmul.f32 %v3040, %v3080
    %v3089 = vlaneseq
    %v3090 = vshrl.u32 %v3089, 7
    %v3091 = vsub.s32 0, %v3090
    %v3092 = vrot.slane %v2626, %v3091
    %v3093 = vmul.f32 %v3081, %v3092
    %v3094 = vmul.f32 %v3082, %v3092
    %v3095 = vmul.f32 %v3083, %v3092
    %v3096 = vmul.f32 %v3084, %v3092
    %v3097 = vmul.f32 %v3085, %v3092
    %v3098 = vmul.f32 %v3086, %v3092
    %v3099 = vmul.f32 %v3087, %v3092
    %v3100 = vmul.f32 %v3088, %v3092
    %v3101 = vlaneseq
    %v3102 = vshrl.u32 %v3101, 7
    %v3103 = vsub.s32 0, %v3102
    %v3104 = vrot.slane %v2627, %v3103
    %v3105 = vadd.f32 %v3093, %v3104
    %v3106 = vadd.f32 %v3094, %v3104
    %v3107 = vadd.f32 %v3095, %v3104
    %v3108 = vadd.f32 %v3096, %v3104
    %v3109 = vadd.f32 %v3097, %v3104
    %v3110 = vadd.f32 %v3098, %v3104
    %v3111 = vadd.f32 %v3099, %v3104
    %v3112 = vadd.f32 %v3100, %v3104
    %3121 = vrot.lane.b32.xlu0 %v3105, 64
    %v3122 = vpop.permute.xlu0 %3121
    %3123 = vrot.lane.b32.xlu0 %v3106, 64
    %v3124 = vpop.permute.xlu0 %3123
    %3125 = vrot.lane.b32.xlu0 %v3107, 64
    %v3126 = vpop.permute.xlu0 %3125
    %3127 = vrot.lane.b32.xlu0 %v3108, 64
    %v3128 = vpop.permute.xlu0 %3127
    %3129 = vrot.lane.b32.xlu0 %v3109, 64
    %v3130 = vpop.permute.xlu0 %3129
    %3131 = vrot.lane.b32.xlu0 %v3110, 64
    %v3132 = vpop.permute.xlu0 %3131
    %3133 = vrot.lane.b32.xlu0 %v3111, 64
    %v3134 = vpop.permute.xlu0 %3133
    %3135 = vrot.lane.b32.xlu0 %v3112, 64
    %v3136 = vpop.permute.xlu0 %3135
    %v3145 = vsel %vm58, %v2113, %v2815
    %v3146 = vsel %vm58, %v2114, %v2817
    %v3147 = vsel %vm58, %v2115, %v2819
    %v3148 = vsel %vm58, %v2116, %v2821
    %v3149 = vsel %vm58, %v2117, %v2823
    %v3150 = vsel %vm58, %v2118, %v2825
    %v3151 = vsel %vm58, %v2119, %v2827
    %v3152 = vsel %vm58, %v2120, %v2829
    %v3153 = vsel %vm897, %v3145, %v3122
    %v3154 = vsel %vm897, %v3146, %v3124
    %v3155 = vsel %vm897, %v3147, %v3126
    %v3156 = vsel %vm897, %v3148, %v3128
    %v3157 = vsel %vm897, %v3149, %v3130
    %v3158 = vsel %vm897, %v3150, %v3132
    %v3159 = vsel %vm897, %v3151, %v3134
    %v3160 = vsel %vm897, %v3152, %v3136
    %v3161 = vsel %vm1551, %v1862, -inf
    %3162 = vmax.xlane.f32.xlu0 %v3161
    %v3163 = vpop.xlane.xlu0 %3162
    %v3164 = vsel %vm1551, %v1863, -inf
    %3165 = vmax.xlane.f32.xlu0 %v3164
    %v3166 = vpop.xlane.xlu0 %3165
    %v3167 = vsel %vm1551, %v1864, -inf
    %3168 = vmax.xlane.f32.xlu0 %v3167
    %v3169 = vpop.xlane.xlu0 %3168
    %v3170 = vsel %vm1551, %v1865, -inf
    %3171 = vmax.xlane.f32.xlu0 %v3170
    %v3172 = vpop.xlane.xlu0 %3171
    %v3173 = vsel %vm1551, %v1866, -inf
    %3174 = vmax.xlane.f32.xlu0 %v3173
    %v3175 = vpop.xlane.xlu0 %3174
    %v3176 = vsel %vm1551, %v1867, -inf
    %3177 = vmax.xlane.f32.xlu0 %v3176
    %v3178 = vpop.xlane.xlu0 %3177
    %v3179 = vsel %vm1551, %v1868, -inf
    %3180 = vmax.xlane.f32.xlu0 %v3179
    %v3181 = vpop.xlane.xlu0 %3180
    %v3182 = vsel %vm1551, %v1869, -inf
    %3183 = vmax.xlane.f32.xlu0 %v3182
    %v3184 = vpop.xlane.xlu0 %3183
    %v3185 = vsub.f32 %v1862, %v3163
    %v3186 = vsub.f32 %v1863, %v3166
    %v3187 = vsub.f32 %v1864, %v3169
    %v3188 = vsub.f32 %v1865, %v3172
    %v3189 = vsub.f32 %v1866, %v3175
    %v3190 = vsub.f32 %v1867, %v3178
    %v3191 = vsub.f32 %v1868, %v3181
    %v3192 = vsub.f32 %v1869, %v3184
    %v3193 = vmul.f32 %v3185, 1.442695
    %v3194 = vpow.pop %v3193
    %v3195 = vmul.f32 %v3186, 1.442695
    %v3196 = vpow.pop %v3195
    %v3197 = vmul.f32 %v3187, 1.442695
    %v3198 = vpow.pop %v3197
    %v3199 = vmul.f32 %v3188, 1.442695
    %v3200 = vpow.pop %v3199
    %v3201 = vmul.f32 %v3189, 1.442695
    %v3202 = vpow.pop %v3201
    %v3203 = vmul.f32 %v3190, 1.442695
    %v3204 = vpow.pop %v3203
    %v3205 = vmul.f32 %v3191, 1.442695
    %v3206 = vpow.pop %v3205
    %v3207 = vmul.f32 %v3192, 1.442695
    %v3208 = vpow.pop %v3207
    %v3209 = vsel %vm1551, %v3194, 0.0
    %3210 = vadd.xlane.f32.xlu0 %v3209
    %v3211 = vpop.xlane.xlu0 %3210
    %v3212 = vsel %vm1551, %v3196, 0.0
    %3213 = vadd.xlane.f32.xlu0 %v3212
    %v3214 = vpop.xlane.xlu0 %3213
    %v3215 = vsel %vm1551, %v3198, 0.0
    %3216 = vadd.xlane.f32.xlu0 %v3215
    %v3217 = vpop.xlane.xlu0 %3216
    %v3218 = vsel %vm1551, %v3200, 0.0
    %3219 = vadd.xlane.f32.xlu0 %v3218
    %v3220 = vpop.xlane.xlu0 %3219
    %v3221 = vsel %vm1551, %v3202, 0.0
    %3222 = vadd.xlane.f32.xlu0 %v3221
    %v3223 = vpop.xlane.xlu0 %3222
    %v3224 = vsel %vm1551, %v3204, 0.0
    %3225 = vadd.xlane.f32.xlu0 %v3224
    %v3226 = vpop.xlane.xlu0 %3225
    %v3227 = vsel %vm1551, %v3206, 0.0
    %3228 = vadd.xlane.f32.xlu0 %v3227
    %v3229 = vpop.xlane.xlu0 %3228
    %v3230 = vsel %vm1551, %v3208, 0.0
    %3231 = vadd.xlane.f32.xlu0 %v3230
    %v3232 = vpop.xlane.xlu0 %3231
    %v3233 = vrcp.pop %v3211
    %v3234 = vmul.f32 %v3194, %v3233
    %v3235 = vrcp.pop %v3214
    %v3236 = vmul.f32 %v3196, %v3235
    %v3237 = vrcp.pop %v3217
    %v3238 = vmul.f32 %v3198, %v3237
    %v3239 = vrcp.pop %v3220
    %v3240 = vmul.f32 %v3200, %v3239
    %v3241 = vrcp.pop %v3223
    %v3242 = vmul.f32 %v3202, %v3241
    %v3243 = vrcp.pop %v3226
    %v3244 = vmul.f32 %v3204, %v3243
    %v3245 = vrcp.pop %v3229
    %v3246 = vmul.f32 %v3206, %v3245
    %v3247 = vrcp.pop %v3232
    %v3248 = vmul.f32 %v3208, %v3247
    %v3249 = vmul.f32 %v3153, %v504
    %v3250 = vmul.f32 %v3154, %v509
    %v3251 = vmul.f32 %v3155, %v514
    %v3252 = vmul.f32 %v3156, %v519
    %v3253 = vmul.f32 %v3157, %v524
    %v3254 = vmul.f32 %v3158, %v529
    %v3255 = vmul.f32 %v3159, %v534
    %v3256 = vmul.f32 %v3160, %v539
    %v3257 = vmul.f32 %v3234, %v504
    %v3258 = vmul.f32 %v3236, %v509
    %v3259 = vmul.f32 %v3238, %v514
    %v3260 = vmul.f32 %v3240, %v519
    %v3261 = vmul.f32 %v3242, %v524
    %v3262 = vmul.f32 %v3244, %v529
    %v3263 = vmul.f32 %v3246, %v534
    %v3264 = vmul.f32 %v3248, %v539
    %3265 = vxpose.xlu0.b32.start [1/16] %v3257, 128
    %3266 = vxpose.xlu0.b32.cont [2/16] %v3258, 128
    %3267 = vxpose.xlu0.b32.cont [3/16] %v3259, 128
    %3268 = vxpose.xlu0.b32.cont [4/16] %v3260, 128
    %3269 = vxpose.xlu0.b32.cont [5/16] 0.0, 128
    %3270 = vxpose.xlu0.b32.cont [6/16] 0.0, 128
    %3271 = vxpose.xlu0.b32.cont [7/16] 0.0, 128
    %3272 = vxpose.xlu0.b32.cont [8/16] 0.0, 128
    %3273 = vxpose.xlu0.b32.cont [9/16] 0.0, 128
    %3274 = vxpose.xlu0.b32.cont [10/16] 0.0, 128
    %3275 = vxpose.xlu0.b32.cont [11/16] 0.0, 128
    %3276 = vxpose.xlu0.b32.cont [12/16] 0.0, 128
    %3277 = vxpose.xlu0.b32.cont [13/16] 0.0, 128
    %3278 = vxpose.xlu0.b32.cont [14/16] 0.0, 128
    %3279 = vxpose.xlu0.b32.cont [15/16] 0.0, 128
    %3280 = vxpose.xlu0.b32.end [16/16] 0.0, 128
    %v3281 = vpop.trf.xlu0
    %v3282 = vpop.trf.xlu0
    %v3283 = vpop.trf.xlu0
    %v3284 = vpop.trf.xlu0
    %v3285 = vpop.trf.xlu0
    %v3286 = vpop.trf.xlu0
    %v3287 = vpop.trf.xlu0
    %v3288 = vpop.trf.xlu0
    %v3289 = vpop.trf.xlu0
    %v3290 = vpop.trf.xlu0
    %v3291 = vpop.trf.xlu0
    %v3292 = vpop.trf.xlu0
    %v3293 = vpop.trf.xlu0
    %v3294 = vpop.trf.xlu0
    %v3295 = vpop.trf.xlu0
    %v3296 = vpop.trf.xlu0
    %v3298 = vsel %vm58, %v3281, 0
    %3300 = vmatprep.subr.mxu0 0.0
    %3301 = vmatpush1.msra.mxu0 0.0
    %3302 = vmatprep.subr.mxu0 0.0
    %3303 = vmatpush1.msra.mxu0 0.0
    %3304 = vmatprep.subr.mxu0 0.0
    %3305 = vmatpush1.msra.mxu0 0.0
    %3306 = vmatprep.subr.mxu0 0.0
    %3307 = vmatpush1.msra.mxu0 0.0
    %3308 = vmatprep.subr.mxu0 0.0
    %3309 = vmatpush1.msra.mxu0 0.0
    %3310 = vmatprep.subr.mxu0 0.0
    %3311 = vmatpush1.msra.mxu0 0.0
    %3312 = vmatprep.subr.mxu0 0.0
    %3313 = vmatpush1.msra.mxu0 0.0
    %3314 = vmatprep.subr.mxu0 0.0
    %3315 = vmatpush1.msra.mxu0 0.0
    %3316 = vmatprep.subr.mxu0 0.0
    %3317 = vmatpush1.msra.mxu0 0.0
    %3318 = vmatprep.subr.mxu0 0.0
    %3319 = vmatpush1.msra.mxu0 0.0
    %3320 = vmatprep.subr.mxu0 0.0
    %3321 = vmatpush1.msra.mxu0 0.0
    %3322 = vmatprep.subr.mxu0 0.0
    %3323 = vmatpush1.msra.mxu0 0.0
    %3324 = vmatprep.subr.mxu0 0.0
    %3325 = vmatpush1.msra.mxu0 %v3252
    %3326 = vmatprep.subr.mxu0 0.0
    %3327 = vmatpush1.msra.mxu0 %v3251
    %3328 = vmatprep.subr.mxu0 0.0
    %3329 = vmatpush1.msra.mxu0 %v3250
    %3330 = vmatprep.subr.mxu0 0.0
    %3331 = vmatpush1.msra.mxu0 %v3249
    %3332 = vmatprep.subr.mxu0 0.0
    %3333 = vmatpush2.msra.mxu0 0.0
    %3334 = vmatprep.subr.mxu0 0.0
    %3335 = vmatpush2.msra.mxu0 0.0
    %3336 = vmatprep.subr.mxu0 0.0
    %3337 = vmatpush2.msra.mxu0 0.0
    %3338 = vmatprep.subr.mxu0 0.0
    %3339 = vmatpush2.msra.mxu0 0.0
    %3340 = vmatprep.subr.mxu0 0.0
    %3341 = vmatpush2.msra.mxu0 0.0
    %3342 = vmatprep.subr.mxu0 0.0
    %3343 = vmatpush2.msra.mxu0 0.0
    %3344 = vmatprep.subr.mxu0 0.0
    %3345 = vmatpush2.msra.mxu0 0.0
    %3346 = vmatprep.subr.mxu0 0.0
    %3347 = vmatpush2.msra.mxu0 0.0
    %3348 = vmatprep.subr.mxu0 0.0
    %3349 = vmatpush2.msra.mxu0 0.0
    %3350 = vmatprep.subr.mxu0 0.0
    %3351 = vmatpush2.msra.mxu0 0.0
    %3352 = vmatprep.subr.mxu0 0.0
    %3353 = vmatpush2.msra.mxu0 0.0
    %3354 = vmatprep.subr.mxu0 0.0
    %3355 = vmatpush2.msra.mxu0 0.0
    %3356 = vmatprep.subr.mxu0 0.0
    %3357 = vmatpush2.msra.mxu0 0.0
    %3358 = vmatprep.subr.mxu0 0.0
    %3359 = vmatpush2.msra.mxu0 0.0
    %3360 = vmatprep.subr.mxu0 0.0
    %3361 = vmatpush2.msra.mxu0 0.0
    %3362 = vmatprep.subr.mxu0 0.0
    %3363 = vmatpush2.msra.mxu0 0.0
    %3364 = vmatprep.mubr.f32.mxu0 0.0
    %3365 = vmatmul.mubr.f32.gmra.mxu0 %v3298
    %v3366 = vpop.f32.mrf.mxu0
    %v3367 = vadd.f32 0.0, %v3366
    %v3368 = vpop.f32.mrf.mxu0
    %3369 = vdwg.mxu0
    %3370 = vxpose.xlu0.b32.start [1/16] %v3261, 128
    %3371 = vxpose.xlu0.b32.cont [2/16] %v3262, 128
    %3372 = vxpose.xlu0.b32.cont [3/16] %v3263, 128
    %3373 = vxpose.xlu0.b32.cont [4/16] %v3264, 128
    %3374 = vxpose.xlu0.b32.cont [5/16] 0.0, 128
    %3375 = vxpose.xlu0.b32.cont [6/16] 0.0, 128
    %3376 = vxpose.xlu0.b32.cont [7/16] 0.0, 128
    %3377 = vxpose.xlu0.b32.cont [8/16] 0.0, 128
    %3378 = vxpose.xlu0.b32.cont [9/16] 0.0, 128
    %3379 = vxpose.xlu0.b32.cont [10/16] 0.0, 128
    %3380 = vxpose.xlu0.b32.cont [11/16] 0.0, 128
    %3381 = vxpose.xlu0.b32.cont [12/16] 0.0, 128
    %3382 = vxpose.xlu0.b32.cont [13/16] 0.0, 128
    %3383 = vxpose.xlu0.b32.cont [14/16] 0.0, 128
    %3384 = vxpose.xlu0.b32.cont [15/16] 0.0, 128
    %3385 = vxpose.xlu0.b32.end [16/16] 0.0, 128
    %v3386 = vpop.trf.xlu0
    %v3387 = vpop.trf.xlu0
    %v3388 = vpop.trf.xlu0
    %v3389 = vpop.trf.xlu0
    %v3390 = vpop.trf.xlu0
    %v3391 = vpop.trf.xlu0
    %v3392 = vpop.trf.xlu0
    %v3393 = vpop.trf.xlu0
    %v3394 = vpop.trf.xlu0
    %v3395 = vpop.trf.xlu0
    %v3396 = vpop.trf.xlu0
    %v3397 = vpop.trf.xlu0
    %v3398 = vpop.trf.xlu0
    %v3399 = vpop.trf.xlu0
    %v3400 = vpop.trf.xlu0
    %v3401 = vpop.trf.xlu0
    %v3403 = vsel %vm58, %v3386, 0
    %3405 = vmatprep.subr.mxu0 0.0
    %3406 = vmatpush1.msra.mxu0 0.0
    %3407 = vmatprep.subr.mxu0 0.0
    %3408 = vmatpush1.msra.mxu0 0.0
    %3409 = vmatprep.subr.mxu0 0.0
    %3410 = vmatpush1.msra.mxu0 0.0
    %3411 = vmatprep.subr.mxu0 0.0
    %3412 = vmatpush1.msra.mxu0 0.0
    %3413 = vmatprep.subr.mxu0 0.0
    %3414 = vmatpush1.msra.mxu0 0.0
    %3415 = vmatprep.subr.mxu0 0.0
    %3416 = vmatpush1.msra.mxu0 0.0
    %3417 = vmatprep.subr.mxu0 0.0
    %3418 = vmatpush1.msra.mxu0 0.0
    %3419 = vmatprep.subr.mxu0 0.0
    %3420 = vmatpush1.msra.mxu0 0.0
    %3421 = vmatprep.subr.mxu0 0.0
    %3422 = vmatpush1.msra.mxu0 0.0
    %3423 = vmatprep.subr.mxu0 0.0
    %3424 = vmatpush1.msra.mxu0 0.0
    %3425 = vmatprep.subr.mxu0 0.0
    %3426 = vmatpush1.msra.mxu0 0.0
    %3427 = vmatprep.subr.mxu0 0.0
    %3428 = vmatpush1.msra.mxu0 0.0
    %3429 = vmatprep.subr.mxu0 0.0
    %3430 = vmatpush1.msra.mxu0 %v3256
    %3431 = vmatprep.subr.mxu0 0.0
    %3432 = vmatpush1.msra.mxu0 %v3255
    %3433 = vmatprep.subr.mxu0 0.0
    %3434 = vmatpush1.msra.mxu0 %v3254
    %3435 = vmatprep.subr.mxu0 0.0
    %3436 = vmatpush1.msra.mxu0 %v3253
    %3437 = vmatprep.subr.mxu0 0.0
    %3438 = vmatpush2.msra.mxu0 0.0
    %3439 = vmatprep.subr.mxu0 0.0
    %3440 = vmatpush2.msra.mxu0 0.0
    %3441 = vmatprep.subr.mxu0 0.0
    %3442 = vmatpush2.msra.mxu0 0.0
    %3443 = vmatprep.subr.mxu0 0.0
    %3444 = vmatpush2.msra.mxu0 0.0
    %3445 = vmatprep.subr.mxu0 0.0
    %3446 = vmatpush2.msra.mxu0 0.0
    %3447 = vmatprep.subr.mxu0 0.0
    %3448 = vmatpush2.msra.mxu0 0.0
    %3449 = vmatprep.subr.mxu0 0.0
    %3450 = vmatpush2.msra.mxu0 0.0
    %3451 = vmatprep.subr.mxu0 0.0
    %3452 = vmatpush2.msra.mxu0 0.0
    %3453 = vmatprep.subr.mxu0 0.0
    %3454 = vmatpush2.msra.mxu0 0.0
    %3455 = vmatprep.subr.mxu0 0.0
    %3456 = vmatpush2.msra.mxu0 0.0
    %3457 = vmatprep.subr.mxu0 0.0
    %3458 = vmatpush2.msra.mxu0 0.0
    %3459 = vmatprep.subr.mxu0 0.0
    %3460 = vmatpush2.msra.mxu0 0.0
    %3461 = vmatprep.subr.mxu0 0.0
    %3462 = vmatpush2.msra.mxu0 0.0
    %3463 = vmatprep.subr.mxu0 0.0
    %3464 = vmatpush2.msra.mxu0 0.0
    %3465 = vmatprep.subr.mxu0 0.0
    %3466 = vmatpush2.msra.mxu0 0.0
    %3467 = vmatprep.subr.mxu0 0.0
    %3468 = vmatpush2.msra.mxu0 0.0
    %3469 = vmatprep.mubr.f32.mxu0 0.0
    %3470 = vmatmul.mubr.f32.gmra.mxu0 %v3403
    %v3471 = vpop.f32.mrf.mxu0
    %v3472 = vadd.f32 0.0, %v3471
    %v3473 = vpop.f32.mrf.mxu0
    %3474 = vdwg.mxu0
    %3475 = vmatprep.subr.mxu0 0.0
    %3476 = vmatpush1.msra.mxu0 0.0
    %3477 = vmatprep.subr.mxu0 0.0
    %3478 = vmatpush1.msra.mxu0 0.0
    %3479 = vmatprep.subr.mxu0 0.0
    %3480 = vmatpush1.msra.mxu0 0.0
    %3481 = vmatprep.subr.mxu0 0.0
    %3482 = vmatpush1.msra.mxu0 0.0
    %3483 = vmatprep.subr.mxu0 0.0
    %3484 = vmatpush1.msra.mxu0 0.0
    %3485 = vmatprep.subr.mxu0 0.0
    %3486 = vmatpush1.msra.mxu0 0.0
    %3487 = vmatprep.subr.mxu0 0.0
    %3488 = vmatpush1.msra.mxu0 0.0
    %3489 = vmatprep.subr.mxu0 0.0
    %3490 = vmatpush1.msra.mxu0 0.0
    %3491 = vmatprep.subr.mxu0 0.0
    %3492 = vmatpush1.msra.mxu0 0.0
    %3493 = vmatprep.subr.mxu0 0.0
    %3494 = vmatpush1.msra.mxu0 0.0
    %3495 = vmatprep.subr.mxu0 0.0
    %3496 = vmatpush1.msra.mxu0 0.0
    %3497 = vmatprep.subr.mxu0 0.0
    %3498 = vmatpush1.msra.mxu0 0.0
    %3499 = vmatprep.subr.mxu0 0.0
    %3500 = vmatpush1.msra.mxu0 %v53
    %3501 = vmatprep.subr.mxu0 0.0
    %3502 = vmatpush1.msra.mxu0 %v52
    %3503 = vmatprep.subr.mxu0 0.0
    %3504 = vmatpush1.msra.mxu0 %v51
    %3505 = vmatprep.subr.mxu0 0.0
    %3506 = vmatpush1.msra.mxu0 %v50
    %3507 = vmatprep.subr.mxu0 0.0
    %3508 = vmatpush2.msra.mxu0 0.0
    %3509 = vmatprep.subr.mxu0 0.0
    %3510 = vmatpush2.msra.mxu0 0.0
    %3511 = vmatprep.subr.mxu0 0.0
    %3512 = vmatpush2.msra.mxu0 0.0
    %3513 = vmatprep.subr.mxu0 0.0
    %3514 = vmatpush2.msra.mxu0 0.0
    %3515 = vmatprep.subr.mxu0 0.0
    %3516 = vmatpush2.msra.mxu0 0.0
    %3517 = vmatprep.subr.mxu0 0.0
    %3518 = vmatpush2.msra.mxu0 0.0
    %3519 = vmatprep.subr.mxu0 0.0
    %3520 = vmatpush2.msra.mxu0 0.0
    %3521 = vmatprep.subr.mxu0 0.0
    %3522 = vmatpush2.msra.mxu0 0.0
    %3523 = vmatprep.subr.mxu0 0.0
    %3524 = vmatpush2.msra.mxu0 0.0
    %3525 = vmatprep.subr.mxu0 0.0
    %3526 = vmatpush2.msra.mxu0 0.0
    %3527 = vmatprep.subr.mxu0 0.0
    %3528 = vmatpush2.msra.mxu0 0.0
    %3529 = vmatprep.subr.mxu0 0.0
    %3530 = vmatpush2.msra.mxu0 0.0
    %3531 = vmatprep.subr.mxu0 0.0
    %3532 = vmatpush2.msra.mxu0 0.0
    %3533 = vmatprep.subr.mxu0 0.0
    %3534 = vmatpush2.msra.mxu0 0.0
    %3535 = vmatprep.subr.mxu0 0.0
    %3536 = vmatpush2.msra.mxu0 0.0
    %3537 = vmatprep.subr.mxu0 0.0
    %3538 = vmatpush2.msra.mxu0 0.0
    %3539 = vmatprep.mubr.f32.mxu0 0.0
    %3540 = vmatmul.mubr.f32.gmra.mxu0 %v3298
    %v3541 = vpop.f32.mrf.mxu0
    %v3542 = vadd.f32 0.0, %v3541
    %v3543 = vpop.f32.mrf.mxu0
    %3544 = vdwg.mxu0
    %3545 = vmatprep.subr.mxu0 0.0
    %3546 = vmatpush1.msra.mxu0 0.0
    %3547 = vmatprep.subr.mxu0 0.0
    %3548 = vmatpush1.msra.mxu0 0.0
    %3549 = vmatprep.subr.mxu0 0.0
    %3550 = vmatpush1.msra.mxu0 0.0
    %3551 = vmatprep.subr.mxu0 0.0
    %3552 = vmatpush1.msra.mxu0 0.0
    %3553 = vmatprep.subr.mxu0 0.0
    %3554 = vmatpush1.msra.mxu0 0.0
    %3555 = vmatprep.subr.mxu0 0.0
    %3556 = vmatpush1.msra.mxu0 0.0
    %3557 = vmatprep.subr.mxu0 0.0
    %3558 = vmatpush1.msra.mxu0 0.0
    %3559 = vmatprep.subr.mxu0 0.0
    %3560 = vmatpush1.msra.mxu0 0.0
    %3561 = vmatprep.subr.mxu0 0.0
    %3562 = vmatpush1.msra.mxu0 0.0
    %3563 = vmatprep.subr.mxu0 0.0
    %3564 = vmatpush1.msra.mxu0 0.0
    %3565 = vmatprep.subr.mxu0 0.0
    %3566 = vmatpush1.msra.mxu0 0.0
    %3567 = vmatprep.subr.mxu0 0.0
    %3568 = vmatpush1.msra.mxu0 0.0
    %3569 = vmatprep.subr.mxu0 0.0
    %3570 = vmatpush1.msra.mxu0 %v57
    %3571 = vmatprep.subr.mxu0 0.0
    %3572 = vmatpush1.msra.mxu0 %v56
    %3573 = vmatprep.subr.mxu0 0.0
    %3574 = vmatpush1.msra.mxu0 %v55
    %3575 = vmatprep.subr.mxu0 0.0
    %3576 = vmatpush1.msra.mxu0 %v54
    %3577 = vmatprep.subr.mxu0 0.0
    %3578 = vmatpush2.msra.mxu0 0.0
    %3579 = vmatprep.subr.mxu0 0.0
    %3580 = vmatpush2.msra.mxu0 0.0
    %3581 = vmatprep.subr.mxu0 0.0
    %3582 = vmatpush2.msra.mxu0 0.0
    %3583 = vmatprep.subr.mxu0 0.0
    %3584 = vmatpush2.msra.mxu0 0.0
    %3585 = vmatprep.subr.mxu0 0.0
    %3586 = vmatpush2.msra.mxu0 0.0
    %3587 = vmatprep.subr.mxu0 0.0
    %3588 = vmatpush2.msra.mxu0 0.0
    %3589 = vmatprep.subr.mxu0 0.0
    %3590 = vmatpush2.msra.mxu0 0.0
    %3591 = vmatprep.subr.mxu0 0.0
    %3592 = vmatpush2.msra.mxu0 0.0
    %3593 = vmatprep.subr.mxu0 0.0
    %3594 = vmatpush2.msra.mxu0 0.0
    %3595 = vmatprep.subr.mxu0 0.0
    %3596 = vmatpush2.msra.mxu0 0.0
    %3597 = vmatprep.subr.mxu0 0.0
    %3598 = vmatpush2.msra.mxu0 0.0
    %3599 = vmatprep.subr.mxu0 0.0
    %3600 = vmatpush2.msra.mxu0 0.0
    %3601 = vmatprep.subr.mxu0 0.0
    %3602 = vmatpush2.msra.mxu0 0.0
    %3603 = vmatprep.subr.mxu0 0.0
    %3604 = vmatpush2.msra.mxu0 0.0
    %3605 = vmatprep.subr.mxu0 0.0
    %3606 = vmatpush2.msra.mxu0 0.0
    %3607 = vmatprep.subr.mxu0 0.0
    %3608 = vmatpush2.msra.mxu0 0.0
    %3609 = vmatprep.mubr.f32.mxu0 0.0
    %3610 = vmatmul.mubr.f32.gmra.mxu0 %v3403
    %v3611 = vpop.f32.mrf.mxu0
    %v3612 = vadd.f32 0.0, %v3611
    %v3613 = vpop.f32.mrf.mxu0
    %3614 = vdwg.mxu0
    %v3616 = vsel %vm58, %v3542, 0
    %3618 = vmatprep.subr.mxu0 0.0
    %3619 = vmatpush1.msra.mxu0 0.0
    %3620 = vmatprep.subr.mxu0 0.0
    %3621 = vmatpush1.msra.mxu0 0.0
    %3622 = vmatprep.subr.mxu0 0.0
    %3623 = vmatpush1.msra.mxu0 0.0
    %3624 = vmatprep.subr.mxu0 0.0
    %3625 = vmatpush1.msra.mxu0 0.0
    %3626 = vmatprep.subr.mxu0 0.0
    %3627 = vmatpush1.msra.mxu0 0.0
    %3628 = vmatprep.subr.mxu0 0.0
    %3629 = vmatpush1.msra.mxu0 0.0
    %3630 = vmatprep.subr.mxu0 0.0
    %3631 = vmatpush1.msra.mxu0 0.0
    %3632 = vmatprep.subr.mxu0 0.0
    %3633 = vmatpush1.msra.mxu0 0.0
    %3634 = vmatprep.subr.mxu0 0.0
    %3635 = vmatpush1.msra.mxu0 0.0
    %3636 = vmatprep.subr.mxu0 0.0
    %3637 = vmatpush1.msra.mxu0 0.0
    %3638 = vmatprep.subr.mxu0 0.0
    %3639 = vmatpush1.msra.mxu0 0.0
    %3640 = vmatprep.subr.mxu0 0.0
    %3641 = vmatpush1.msra.mxu0 0.0
    %3642 = vmatprep.subr.mxu0 0.0
    %3643 = vmatpush1.msra.mxu0 %v3260
    %3644 = vmatprep.subr.mxu0 0.0
    %3645 = vmatpush1.msra.mxu0 %v3259
    %3646 = vmatprep.subr.mxu0 0.0
    %3647 = vmatpush1.msra.mxu0 %v3258
    %3648 = vmatprep.subr.mxu0 0.0
    %3649 = vmatpush1.msra.mxu0 %v3257
    %3650 = vmatprep.subr.mxu0 0.0
    %3651 = vmatpush2.msra.mxu0 0.0
    %3652 = vmatprep.subr.mxu0 0.0
    %3653 = vmatpush2.msra.mxu0 0.0
    %3654 = vmatprep.subr.mxu0 0.0
    %3655 = vmatpush2.msra.mxu0 0.0
    %3656 = vmatprep.subr.mxu0 0.0
    %3657 = vmatpush2.msra.mxu0 0.0
    %3658 = vmatprep.subr.mxu0 0.0
    %3659 = vmatpush2.msra.mxu0 0.0
    %3660 = vmatprep.subr.mxu0 0.0
    %3661 = vmatpush2.msra.mxu0 0.0
    %3662 = vmatprep.subr.mxu0 0.0
    %3663 = vmatpush2.msra.mxu0 0.0
    %3664 = vmatprep.subr.mxu0 0.0
    %3665 = vmatpush2.msra.mxu0 0.0
    %3666 = vmatprep.subr.mxu0 0.0
    %3667 = vmatpush2.msra.mxu0 0.0
    %3668 = vmatprep.subr.mxu0 0.0
    %3669 = vmatpush2.msra.mxu0 0.0
    %3670 = vmatprep.subr.mxu0 0.0
    %3671 = vmatpush2.msra.mxu0 0.0
    %3672 = vmatprep.subr.mxu0 0.0
    %3673 = vmatpush2.msra.mxu0 0.0
    %3674 = vmatprep.subr.mxu0 0.0
    %3675 = vmatpush2.msra.mxu0 0.0
    %3676 = vmatprep.subr.mxu0 0.0
    %3677 = vmatpush2.msra.mxu0 0.0
    %3678 = vmatprep.subr.mxu0 0.0
    %3679 = vmatpush2.msra.mxu0 0.0
    %3680 = vmatprep.subr.mxu0 0.0
    %3681 = vmatpush2.msra.mxu0 0.0
    %3682 = vmatprep.mubr.f32.mxu0 0.0
    %3683 = vmatmul.mubr.f32.gmra.mxu0 %v3616
    %v3684 = vpop.f32.mrf.mxu0
    %v3685 = vadd.f32 0.0, %v3684
    %v3686 = vpop.f32.mrf.mxu0
    %3687 = vdwg.mxu0
    %v3689 = vsel %vm58, %v3612, 0
    %3691 = vmatprep.subr.mxu0 0.0
    %3692 = vmatpush1.msra.mxu0 0.0
    %3693 = vmatprep.subr.mxu0 0.0
    %3694 = vmatpush1.msra.mxu0 0.0
    %3695 = vmatprep.subr.mxu0 0.0
    %3696 = vmatpush1.msra.mxu0 0.0
    %3697 = vmatprep.subr.mxu0 0.0
    %3698 = vmatpush1.msra.mxu0 0.0
    %3699 = vmatprep.subr.mxu0 0.0
    %3700 = vmatpush1.msra.mxu0 0.0
    %3701 = vmatprep.subr.mxu0 0.0
    %3702 = vmatpush1.msra.mxu0 0.0
    %3703 = vmatprep.subr.mxu0 0.0
    %3704 = vmatpush1.msra.mxu0 0.0
    %3705 = vmatprep.subr.mxu0 0.0
    %3706 = vmatpush1.msra.mxu0 0.0
    %3707 = vmatprep.subr.mxu0 0.0
    %3708 = vmatpush1.msra.mxu0 0.0
    %3709 = vmatprep.subr.mxu0 0.0
    %3710 = vmatpush1.msra.mxu0 0.0
    %3711 = vmatprep.subr.mxu0 0.0
    %3712 = vmatpush1.msra.mxu0 0.0
    %3713 = vmatprep.subr.mxu0 0.0
    %3714 = vmatpush1.msra.mxu0 0.0
    %3715 = vmatprep.subr.mxu0 0.0
    %3716 = vmatpush1.msra.mxu0 %v3264
    %3717 = vmatprep.subr.mxu0 0.0
    %3718 = vmatpush1.msra.mxu0 %v3263
    %3719 = vmatprep.subr.mxu0 0.0
    %3720 = vmatpush1.msra.mxu0 %v3262
    %3721 = vmatprep.subr.mxu0 0.0
    %3722 = vmatpush1.msra.mxu0 %v3261
    %3723 = vmatprep.subr.mxu0 0.0
    %3724 = vmatpush2.msra.mxu0 0.0
    %3725 = vmatprep.subr.mxu0 0.0
    %3726 = vmatpush2.msra.mxu0 0.0
    %3727 = vmatprep.subr.mxu0 0.0
    %3728 = vmatpush2.msra.mxu0 0.0
    %3729 = vmatprep.subr.mxu0 0.0
    %3730 = vmatpush2.msra.mxu0 0.0
    %3731 = vmatprep.subr.mxu0 0.0
    %3732 = vmatpush2.msra.mxu0 0.0
    %3733 = vmatprep.subr.mxu0 0.0
    %3734 = vmatpush2.msra.mxu0 0.0
    %3735 = vmatprep.subr.mxu0 0.0
    %3736 = vmatpush2.msra.mxu0 0.0
    %3737 = vmatprep.subr.mxu0 0.0
    %3738 = vmatpush2.msra.mxu0 0.0
    %3739 = vmatprep.subr.mxu0 0.0
    %3740 = vmatpush2.msra.mxu0 0.0
    %3741 = vmatprep.subr.mxu0 0.0
    %3742 = vmatpush2.msra.mxu0 0.0
    %3743 = vmatprep.subr.mxu0 0.0
    %3744 = vmatpush2.msra.mxu0 0.0
    %3745 = vmatprep.subr.mxu0 0.0
    %3746 = vmatpush2.msra.mxu0 0.0
    %3747 = vmatprep.subr.mxu0 0.0
    %3748 = vmatpush2.msra.mxu0 0.0
    %3749 = vmatprep.subr.mxu0 0.0
    %3750 = vmatpush2.msra.mxu0 0.0
    %3751 = vmatprep.subr.mxu0 0.0
    %3752 = vmatpush2.msra.mxu0 0.0
    %3753 = vmatprep.subr.mxu0 0.0
    %3754 = vmatpush2.msra.mxu0 0.0
    %3755 = vmatprep.mubr.f32.mxu0 0.0
    %3756 = vmatmul.mubr.f32.gmra.mxu0 %v3689
    %v3757 = vpop.f32.mrf.mxu0
    %v3758 = vadd.f32 0.0, %v3757
    %v3759 = vpop.f32.mrf.mxu0
    %3760 = vdwg.mxu0
    %3761 = vmatprep.subr.mxu0 0.0
    %3762 = vmatpush1.msra.mxu0 0.0
    %3763 = vmatprep.subr.mxu0 0.0
    %3764 = vmatpush1.msra.mxu0 0.0
    %3765 = vmatprep.subr.mxu0 0.0
    %3766 = vmatpush1.msra.mxu0 0.0
    %3767 = vmatprep.subr.mxu0 0.0
    %3768 = vmatpush1.msra.mxu0 0.0
    %3769 = vmatprep.subr.mxu0 0.0
    %3770 = vmatpush1.msra.mxu0 0.0
    %3771 = vmatprep.subr.mxu0 0.0
    %3772 = vmatpush1.msra.mxu0 0.0
    %3773 = vmatprep.subr.mxu0 0.0
    %3774 = vmatpush1.msra.mxu0 0.0
    %3775 = vmatprep.subr.mxu0 0.0
    %3776 = vmatpush1.msra.mxu0 0.0
    %3777 = vmatprep.subr.mxu0 0.0
    %3778 = vmatpush1.msra.mxu0 0.0
    %3779 = vmatprep.subr.mxu0 0.0
    %3780 = vmatpush1.msra.mxu0 0.0
    %3781 = vmatprep.subr.mxu0 0.0
    %3782 = vmatpush1.msra.mxu0 0.0
    %3783 = vmatprep.subr.mxu0 0.0
    %3784 = vmatpush1.msra.mxu0 0.0
    %3785 = vmatprep.subr.mxu0 0.0
    %3786 = vmatpush1.msra.mxu0 %v3260
    %3787 = vmatprep.subr.mxu0 0.0
    %3788 = vmatpush1.msra.mxu0 %v3259
    %3789 = vmatprep.subr.mxu0 0.0
    %3790 = vmatpush1.msra.mxu0 %v3258
    %3791 = vmatprep.subr.mxu0 0.0
    %3792 = vmatpush1.msra.mxu0 %v3257
    %3793 = vmatprep.subr.mxu0 0.0
    %3794 = vmatpush2.msra.mxu0 0.0
    %3795 = vmatprep.subr.mxu0 0.0
    %3796 = vmatpush2.msra.mxu0 0.0
    %3797 = vmatprep.subr.mxu0 0.0
    %3798 = vmatpush2.msra.mxu0 0.0
    %3799 = vmatprep.subr.mxu0 0.0
    %3800 = vmatpush2.msra.mxu0 0.0
    %3801 = vmatprep.subr.mxu0 0.0
    %3802 = vmatpush2.msra.mxu0 0.0
    %3803 = vmatprep.subr.mxu0 0.0
    %3804 = vmatpush2.msra.mxu0 0.0
    %3805 = vmatprep.subr.mxu0 0.0
    %3806 = vmatpush2.msra.mxu0 0.0
    %3807 = vmatprep.subr.mxu0 0.0
    %3808 = vmatpush2.msra.mxu0 0.0
    %3809 = vmatprep.subr.mxu0 0.0
    %3810 = vmatpush2.msra.mxu0 0.0
    %3811 = vmatprep.subr.mxu0 0.0
    %3812 = vmatpush2.msra.mxu0 0.0
    %3813 = vmatprep.subr.mxu0 0.0
    %3814 = vmatpush2.msra.mxu0 0.0
    %3815 = vmatprep.subr.mxu0 0.0
    %3816 = vmatpush2.msra.mxu0 0.0
    %3817 = vmatprep.subr.mxu0 0.0
    %3818 = vmatpush2.msra.mxu0 0.0
    %3819 = vmatprep.subr.mxu0 0.0
    %3820 = vmatpush2.msra.mxu0 0.0
    %3821 = vmatprep.subr.mxu0 0.0
    %3822 = vmatpush2.msra.mxu0 0.0
    %3823 = vmatprep.subr.mxu0 0.0
    %3824 = vmatpush2.msra.mxu0 0.0
    %3825 = vmatprep.mubr.f32.mxu0 0.0
    %3826 = vmatmul.mubr.f32.gmra.mxu0 %v3298
    %v3827 = vpop.f32.mrf.mxu0
    %v3828 = vadd.f32 0.0, %v3827
    %v3829 = vpop.f32.mrf.mxu0
    %3830 = vdwg.mxu0
    %3831 = vmatprep.subr.mxu0 0.0
    %3832 = vmatpush1.msra.mxu0 0.0
    %3833 = vmatprep.subr.mxu0 0.0
    %3834 = vmatpush1.msra.mxu0 0.0
    %3835 = vmatprep.subr.mxu0 0.0
    %3836 = vmatpush1.msra.mxu0 0.0
    %3837 = vmatprep.subr.mxu0 0.0
    %3838 = vmatpush1.msra.mxu0 0.0
    %3839 = vmatprep.subr.mxu0 0.0
    %3840 = vmatpush1.msra.mxu0 0.0
    %3841 = vmatprep.subr.mxu0 0.0
    %3842 = vmatpush1.msra.mxu0 0.0
    %3843 = vmatprep.subr.mxu0 0.0
    %3844 = vmatpush1.msra.mxu0 0.0
    %3845 = vmatprep.subr.mxu0 0.0
    %3846 = vmatpush1.msra.mxu0 0.0
    %3847 = vmatprep.subr.mxu0 0.0
    %3848 = vmatpush1.msra.mxu0 0.0
    %3849 = vmatprep.subr.mxu0 0.0
    %3850 = vmatpush1.msra.mxu0 0.0
    %3851 = vmatprep.subr.mxu0 0.0
    %3852 = vmatpush1.msra.mxu0 0.0
    %3853 = vmatprep.subr.mxu0 0.0
    %3854 = vmatpush1.msra.mxu0 0.0
    %3855 = vmatprep.subr.mxu0 0.0
    %3856 = vmatpush1.msra.mxu0 %v3264
    %3857 = vmatprep.subr.mxu0 0.0
    %3858 = vmatpush1.msra.mxu0 %v3263
    %3859 = vmatprep.subr.mxu0 0.0
    %3860 = vmatpush1.msra.mxu0 %v3262
    %3861 = vmatprep.subr.mxu0 0.0
    %3862 = vmatpush1.msra.mxu0 %v3261
    %3863 = vmatprep.subr.mxu0 0.0
    %3864 = vmatpush2.msra.mxu0 0.0
    %3865 = vmatprep.subr.mxu0 0.0
    %3866 = vmatpush2.msra.mxu0 0.0
    %3867 = vmatprep.subr.mxu0 0.0
    %3868 = vmatpush2.msra.mxu0 0.0
    %3869 = vmatprep.subr.mxu0 0.0
    %3870 = vmatpush2.msra.mxu0 0.0
    %3871 = vmatprep.subr.mxu0 0.0
    %3872 = vmatpush2.msra.mxu0 0.0
    %3873 = vmatprep.subr.mxu0 0.0
    %3874 = vmatpush2.msra.mxu0 0.0
    %3875 = vmatprep.subr.mxu0 0.0
    %3876 = vmatpush2.msra.mxu0 0.0
    %3877 = vmatprep.subr.mxu0 0.0
    %3878 = vmatpush2.msra.mxu0 0.0
    %3879 = vmatprep.subr.mxu0 0.0
    %3880 = vmatpush2.msra.mxu0 0.0
    %3881 = vmatprep.subr.mxu0 0.0
    %3882 = vmatpush2.msra.mxu0 0.0
    %3883 = vmatprep.subr.mxu0 0.0
    %3884 = vmatpush2.msra.mxu0 0.0
    %3885 = vmatprep.subr.mxu0 0.0
    %3886 = vmatpush2.msra.mxu0 0.0
    %3887 = vmatprep.subr.mxu0 0.0
    %3888 = vmatpush2.msra.mxu0 0.0
    %3889 = vmatprep.subr.mxu0 0.0
    %3890 = vmatpush2.msra.mxu0 0.0
    %3891 = vmatprep.subr.mxu0 0.0
    %3892 = vmatpush2.msra.mxu0 0.0
    %3893 = vmatprep.subr.mxu0 0.0
    %3894 = vmatpush2.msra.mxu0 0.0
    %3895 = vmatprep.mubr.f32.mxu0 0.0
    %3896 = vmatmul.mubr.f32.gmra.mxu0 %v3403
    %v3897 = vpop.f32.mrf.mxu0
    %v3898 = vadd.f32 0.0, %v3897
    %v3899 = vpop.f32.mrf.mxu0
    %3900 = vdwg.mxu0
    %v3901 = vlaneseq
    %v3902 = vshrl.u32 %v3901, 7
    %v3903 = vlaneseq
    %v3904 = vand.u32 %v3903, 127
    %vm3905 = vcmp.eq.s32.totalorder %v3902, %v3904
    %v3906 = vsel %vm3905, 1, 0
    %v3907 = vcvt.s32.f32 %v3906
    %v3908 = vmul.f32 %v50, %v50
    %v3909 = vmul.f32 %v51, %v51
    %v3910 = vmul.f32 %v52, %v52
    %v3911 = vmul.f32 %v53, %v53
    %v3912 = vmul.f32 %v54, %v54
    %v3913 = vmul.f32 %v55, %v55
    %v3914 = vmul.f32 %v56, %v56
    %v3915 = vmul.f32 %v57, %v57
    %v3916 = vsel %vm58, %v3908, 0.0
    %v3917 = vsel %vm58, %v3912, 0.0
    %v3918 = vadd.f32 %v3916, %v3917
    %v3919 = vsel %vm58, %v3909, 0.0
    %v3920 = vsel %vm58, %v3913, 0.0
    %v3921 = vadd.f32 %v3919, %v3920
    %v3922 = vsel %vm58, %v3910, 0.0
    %v3923 = vsel %vm58, %v3914, 0.0
    %v3924 = vadd.f32 %v3922, %v3923
    %v3925 = vsel %vm58, %v3911, 0.0
    %v3926 = vsel %vm58, %v3915, 0.0
    %v3927 = vadd.f32 %v3925, %v3926
    %v3928 = vsel %vm58, %v3918, 0.0
    %3929 = vadd.xlane.f32.xlu0 %v3928
    %v3930 = vpop.xlane.xlu0 %3929
    %v3931 = vsel %vm58, %v3921, 0.0
    %3932 = vadd.xlane.f32.xlu0 %v3931
    %v3933 = vpop.xlane.xlu0 %3932
    %v3934 = vsel %vm58, %v3924, 0.0
    %3935 = vadd.xlane.f32.xlu0 %v3934
    %v3936 = vpop.xlane.xlu0 %3935
    %v3937 = vsel %vm58, %v3927, 0.0
    %3938 = vadd.xlane.f32.xlu0 %v3937
    %v3939 = vpop.xlane.xlu0 %3938
    %v3940 = vadd.f32 %v3930, %v3933
    %v3941 = vadd.f32 %v3940, %v3936
    %v3942 = vadd.f32 %v3941, %v3939
    %v3943 = vrot.slane %v3942, 4
    %v3944 = vadd.f32 %v3942, %v3943
    %v3945 = vrot.slane %v3944, 2
    %v3946 = vadd.f32 %v3944, %v3945
    %v3947 = vrot.slane %v3946, 1
    %v3948 = vadd.f32 %v3946, %v3947
    %v3949 = vmul.f32 %v3685, %v3907
    %v3950 = vmul.f32 %v3758, %v3907
    %v3951 = vsel %vm1551, %v3949, 0.0
    %v3952 = vsel %vm1551, %v3950, 0.0
    %v3953 = vadd.f32 %v3951, %v3952
    %v3954 = vsel %vm1551, %v3953, 0.0
    %3955 = vadd.xlane.f32.xlu0 %v3954
    %v3956 = vpop.xlane.xlu0 %3955
    %v3957 = vrot.slane %v3956, 4
    %v3958 = vadd.f32 %v3956, %v3957
    %v3959 = vrot.slane %v3958, 2
    %v3960 = vadd.f32 %v3958, %v3959
    %v3961 = vrot.slane %v3960, 1
    %v3962 = vadd.f32 %v3960, %v3961
    %v3963 = vmul.f32 %v3962, 2.0
    %v3964 = vsub.f32 %v3948, %v3963
    %v3965 = vmul.f32 %v3828, %v3828
    %v3966 = vmul.f32 %v3898, %v3898
    %v3967 = vsel %vm1551, %v3965, 0.0
    %v3968 = vsel %vm1551, %v3966, 0.0
    %v3969 = vadd.f32 %v3967, %v3968
    %v3970 = vsel %vm1551, %v3969, 0.0
    %3971 = vadd.xlane.f32.xlu0 %v3970
    %v3972 = vpop.xlane.xlu0 %3971
    %v3973 = vrot.slane %v3972, 4
    %v3974 = vadd.f32 %v3972, %v3973
    %v3975 = vrot.slane %v3974, 2
    %v3976 = vadd.f32 %v3974, %v3975
    %v3977 = vrot.slane %v3976, 1
    %v3978 = vadd.f32 %v3976, %v3977
    %v3979 = vadd.f32 %v3964, %v3978
    %v3980 = vsub.f32 0.0, %v3257
    %v3981 = vsub.f32 0.0, %v3258
    %v3982 = vsub.f32 0.0, %v3259
    %v3983 = vsub.f32 0.0, %v3260
    %v3984 = vsub.f32 0.0, %v3261
    %v3985 = vsub.f32 0.0, %v3262
    %v3986 = vsub.f32 0.0, %v3263
    %v3987 = vsub.f32 0.0, %v3264
    %v3988 = vadd.f32 %v3257, 1e-15
    %v3989 = vadd.f32 %v3258, 1e-15
    %v3990 = vadd.f32 %v3259, 1e-15
    %v3991 = vadd.f32 %v3260, 1e-15
    %v3992 = vadd.f32 %v3261, 1e-15
    %v3993 = vadd.f32 %v3262, 1e-15
    %v3994 = vadd.f32 %v3263, 1e-15
    %v3995 = vadd.f32 %v3264, 1e-15
    %v3996 = vlog2.pop %v3988
    %v3997 = vmul.f32 %v3996, 0.6931472
    %v3998 = vlog2.pop %v3989
    %v3999 = vmul.f32 %v3998, 0.6931472
    %v4000 = vlog2.pop %v3990
    %v4001 = vmul.f32 %v4000, 0.6931472
    %v4002 = vlog2.pop %v3991
    %v4003 = vmul.f32 %v4002, 0.6931472
    %v4004 = vlog2.pop %v3992
    %v4005 = vmul.f32 %v4004, 0.6931472
    %v4006 = vlog2.pop %v3993
    %v4007 = vmul.f32 %v4006, 0.6931472
    %v4008 = vlog2.pop %v3994
    %v4009 = vmul.f32 %v4008, 0.6931472
    %v4010 = vlog2.pop %v3995
    %v4011 = vmul.f32 %v4010, 0.6931472
    %v4012 = vmul.f32 %v3980, %v3997
    %v4013 = vmul.f32 %v3981, %v3999
    %v4014 = vmul.f32 %v3982, %v4001
    %v4015 = vmul.f32 %v3983, %v4003
    %v4016 = vmul.f32 %v3984, %v4005
    %v4017 = vmul.f32 %v3985, %v4007
    %v4018 = vmul.f32 %v3986, %v4009
    %v4019 = vmul.f32 %v3987, %v4011
    %v4020 = vsel %vm1551, %v4012, 0.0
    %v4021 = vsel %vm1551, %v4016, 0.0
    %v4022 = vadd.f32 %v4020, %v4021
    %v4023 = vsel %vm1551, %v4013, 0.0
    %v4024 = vsel %vm1551, %v4017, 0.0
    %v4025 = vadd.f32 %v4023, %v4024
    %v4026 = vsel %vm1551, %v4014, 0.0
    %v4027 = vsel %vm1551, %v4018, 0.0
    %v4028 = vadd.f32 %v4026, %v4027
    %v4029 = vsel %vm1551, %v4015, 0.0
    %v4030 = vsel %vm1551, %v4019, 0.0
    %v4031 = vadd.f32 %v4029, %v4030
    %v4032 = vsel %vm1551, %v4022, 0.0
    %4033 = vadd.xlane.f32.xlu0 %v4032
    %v4034 = vpop.xlane.xlu0 %4033
    %v4035 = vsel %vm1551, %v4025, 0.0
    %4036 = vadd.xlane.f32.xlu0 %v4035
    %v4037 = vpop.xlane.xlu0 %4036
    %v4038 = vsel %vm1551, %v4028, 0.0
    %4039 = vadd.xlane.f32.xlu0 %v4038
    %v4040 = vpop.xlane.xlu0 %4039
    %v4041 = vsel %vm1551, %v4031, 0.0
    %4042 = vadd.xlane.f32.xlu0 %v4041
    %v4043 = vpop.xlane.xlu0 %4042
    %v4044 = vadd.f32 %v4034, %v4037
    %v4045 = vadd.f32 %v4044, %v4040
    %v4046 = vadd.f32 %v4045, %v4043
    %v4047 = vrot.slane %v4046, 4
    %v4048 = vadd.f32 %v4046, %v4047
    %v4049 = vrot.slane %v4048, 2
    %v4050 = vadd.f32 %v4048, %v4049
    %v4051 = vrot.slane %v4050, 1
    %v4052 = vadd.f32 %v4050, %v4051
    %vm4053 = vcmp.eq.s32.totalorder %v3902, 0
    %vm4054 = vcmp.eq.s32.totalorder %v3904, 0
    %vm4055 = vmand %vm4053, %vm4054
    %vm4056 = vcmp.eq.s32.totalorder %v3904, 1
    %vm4057 = vmand %vm4053, %vm4056
    %v4058 = vsel %vm4057, %v4052, 0.0
    %v4059 = vsel %vm4055, %v3979, %v4058
    %vm4060 = vcmask 785408
    %4061 = vst.msk [vmem:[%s4] sm:$0xff] %vm4060, %v3367
    %4062 = vst.msk [vmem:[%s4 + $0x8] sm:$0xff] %vm4060, %v3472
    %4063 = vst.msk [vmem:[%s5] sm:$0xff] %vm1551, %v3685
    %4064 = vst.msk [vmem:[%s5 + $0x8] sm:$0xff] %vm1551, %v3758
    %4065 = vst [vmem:[%s6] sm:$0xff] %v4059
    // Predicated region
    $region22: #{net_forward.3} parent=1 // pred_check
      _
    $region23: #{net_forward.3} parent=1 // pred_check_branch
      %4067 = sbr.rel (0) target = $region25
    $region24: #{net_forward.3} parent=1 // pred_region
      _
    $region25: #{net_forward.3} parent=1 // pred_fallthru
      _
    // Predicated region
    $region26: #{net_forward.3} parent=1 // pred_check
      _
    $region27: #{net_forward.3} parent=1 // pred_check_branch
      %4069 = sbr.rel (0) target = $region29
    $region28: #{net_forward.3} parent=1 // pred_region
      _
    $region29: #{net_forward.3} parent=1 // pred_fallthru
      _
    // Predicated region
    $region30: #{net_forward.3} parent=1 // pred_check
      _
    $region31: #{net_forward.3} parent=1 // pred_check_branch
      %4071 = sbr.rel (0) target = $region33
    $region32: #{net_forward.3} parent=1 // pred_region
      _
    $region33: #{net_forward.3} parent=1 // pred_fallthru
      _
    // Predicated region
    $region34: #{net_forward.3} parent=1 // pred_check
      _
    $region35: #{net_forward.3} parent=1 // pred_check_branch
      %4073 = sbr.rel (0) target = $region37
    $region36: #{net_forward.3} parent=1 // pred_region
      _
    $region37: #{net_forward.3} parent=1 // pred_fallthru
      _
    // Predicated region
    $region38: #{net_forward.3} parent=1 // pred_check
      _
    $region39: #{net_forward.3} parent=1 // pred_check_branch
      %4075 = sbr.rel (0) target = $region41
    $region40: #{net_forward.3} parent=1 // pred_region
      _
    $region41: #{net_forward.3} parent=1 // pred_fallthru
      _
    // Predicated region
    $region42: #{net_forward.3} parent=1 // pred_check
      _
    $region43: #{net_forward.3} parent=1 // pred_check_branch
      %4077 = sbr.rel (0) target = $region45
    $region44: #{net_forward.3} parent=1 // pred_region
      _
    $region45: #{net_forward.3} parent=1 // pred_fallthru
      _
    %4078 = vsyncpa [#allocation3], 1

</llo_original>
